<compile_context>
chip_gen: v5e
topology: v5e:2x2
jax: 0.10.0
libtpu: 0.0.40
codegen_flags: <defaults>
</compile_context>

<pallas_src>
import functools

import jax
import jax.numpy as jnp
from jax import lax
from jax.experimental import pallas as pl
from jax.experimental.pallas import tpu as pltpu

LANES = 128  # TPU lane width; activations are packed to exactly this many lanes


# ----------------------------------------------------------------------------
# Fused whole-network Pallas kernel (packed lane-dense layout)
# ----------------------------------------------------------------------------
def _make_srresnet_kernel(H, Wg, R):
    """H rows, Wg packed pixel-groups per row (group = 128 lanes), R res-blocks."""
    HWg = H * Wg

    def conv(hpad, w_ref, s_ref, t_ref, l):
        # 3x3 SAME conv in packed layout: 9 (HWg,128)@(128,128) MXU matmuls.
        # c = 0/1/2 selects the left-neighbour / same / right-neighbour pixel
        # group window; the kx shift itself is folded into the block-structured
        # weights, so there are no lane-misaligned slices here.
        acc = jnp.zeros((HWg, LANES), jnp.float32)
        for ky in range(3):
            for c in range(3):
                win = hpad[ky:ky + H, c:c + Wg, :].reshape(HWg, LANES)
                acc = acc + jnp.dot(win, w_ref[l * 9 + ky * 3 + c],
                                    preferred_element_type=jnp.float32)
        return acc * s_ref[l] + t_ref[l]          # folded conv-bias + BN affine

    def kernel(x_ref, w_ref, s_ref, t_ref, a_ref, o_ref, hpad):
        # x_ref : (1, H+2, Wg+2, 128)  packed, zero-halo'd input
        # w_ref : (L*9, 128, 128)      block-structured conv taps
        # s/t/a : (L, 1, 128)          folded scale / shift / PReLU alpha (lane-tiled)
        # o_ref : (1, HWg, 128)        packed output of the final conv
        hpad[...] = x_ref[0]                      # halo stays zero for all layers

        def write_interior(y):                    # single lane-dense store/layer
            hpad[1:1 + H, 1:1 + Wg, :] = y.reshape(H, Wg, LANES)

        def prelu(y, l):
            return jnp.where(y >= 0.0, y, y * a_ref[l])

        # --- layer 0: input conv + PReLU; x0 stays live as a value (global skip)
        x0 = prelu(conv(hpad, w_ref, s_ref, t_ref, 0), 0)
        write_interior(x0)

        # --- residual blocks; block input carried as a value (no scratch trip)
        def block(b, h):
            l1 = 1 + 2 * b
            y1 = prelu(conv(hpad, w_ref, s_ref, t_ref, l1), l1)
            write_interior(y1)
            y2 = conv(hpad, w_ref, s_ref, t_ref, l1 + 1) + h
            write_interior(y2)
            return y2

        lax.fori_loop(0, R, block, x0, unroll=True)

        # --- mid conv + BN + global skip from x0
        ym = conv(hpad, w_ref, s_ref, t_ref, 2 * R + 1) + x0
        write_interior(ym)

        # --- output conv (c_out zero-padded to F; sliced off in the wrapper)
        o_ref[0] = conv(hpad, w_ref, s_ref, t_ref, 2 * R + 2)

    return kernel


# ----------------------------------------------------------------------------
# Host-side weight packing: fold the kx shift into block-structured matrices
# ----------------------------------------------------------------------------
def _pack_taps(w, F, P):
    """(3,3,F,F) HWIO tap -> (9, 128, 128) packed-layout weights.

    Index = ky*3 + c with c: 0 = left-neighbour group, 1 = same group,
    2 = right-neighbour group.  Lanes are p*F + channel with pixel w = P*g + p.
    """
    K = P * F
    mats = []
    for ky in range(3):
        # left cross: dx=-1 reaching into the previous group (p_out=0 <- p_in=P-1)
        wl = jnp.zeros((K, K), jnp.float32)
        wl = wl.at[(P - 1) * F:P * F, 0:F].set(w[ky, 0])
        # same group: all dx with 0 <= p_out+dx < P (block (p_in, p_out) = tap)
        ws = jnp.zeros((K, K), jnp.float32)
        for dx in (-1, 0, 1):
            for p_out in range(P):
                p_in = p_out + dx
                if 0 <= p_in < P:
                    ws = ws.at[p_in * F:(p_in + 1) * F,
                               p_out * F:(p_out + 1) * F].set(w[ky, dx + 1])
        # right cross: dx=+1 reaching into the next group (p_out=P-1 <- p_in=0)
        wr = jnp.zeros((K, K), jnp.float32)
        wr = wr.at[0:F, (P - 1) * F:P * F].set(w[ky, 2])
        mats += [wl, ws, wr]
    return jnp.stack(mats)


def _fold_layers(params, in_ch, F):
    """Stack every conv layer as packed 128x128 taps + folded affine + alpha."""
    P = LANES // F
    ones = jnp.ones((F,), jnp.float32)

    def tile_lane(v):                              # (F,) -> (1, 128)
        return jnp.tile(v.astype(jnp.float32), P).reshape(1, LANES)

    w_l, s_l, t_l, a_l = [], [], [], []

    # input conv (+PReLU): zero-pad c_in -> F
    w_in = jnp.pad(params["in_w"], ((0, 0), (0, 0), (0, F - in_ch), (0, 0)))
    w_l.append(_pack_taps(w_in, F, P)); s_l.append(tile_lane(ones))
    t_l.append(tile_lane(params["in_b"]))
    a_l.append(tile_lane(jnp.full((F,), params["in_alpha"], jnp.float32)))

    for blk in params["blocks"]:
        s1, t1 = blk["bn1"]
        w_l.append(_pack_taps(blk["w1"], F, P)); s_l.append(tile_lane(s1))
        t_l.append(tile_lane(blk["b1"] * s1 + t1))
        a_l.append(tile_lane(jnp.full((F,), blk["alpha"], jnp.float32)))
        s2, t2 = blk["bn2"]
        w_l.append(_pack_taps(blk["w2"], F, P)); s_l.append(tile_lane(s2))
        t_l.append(tile_lane(blk["b2"] * s2 + t2))
        a_l.append(tile_lane(ones))                # unused (no PReLU on conv2)

    sm, tm = params["mid_bn"]
    w_l.append(_pack_taps(params["mid_w"], F, P)); s_l.append(tile_lane(sm))
    t_l.append(tile_lane(params["mid_b"] * sm + tm)); a_l.append(tile_lane(ones))

    # output conv: zero-pad c_out -> F (extra channels are zero, sliced off)
    cout = params["out_w"].shape[-1]
    w_out = jnp.pad(params["out_w"], ((0, 0), (0, 0), (0, 0), (0, F - cout)))
    w_l.append(_pack_taps(w_out, F, P)); s_l.append(tile_lane(ones))
    t_l.append(tile_lane(jnp.pad(params["out_b"], (0, F - cout))))
    a_l.append(tile_lane(ones))

    L = len(w_l)
    w_all = jnp.concatenate(w_l, axis=0).astype(jnp.float32)   # (L*9, 128, 128)
    s_all = jnp.stack(s_l).astype(jnp.float32)                 # (L, 1, 128)
    t_all = jnp.stack(t_l).astype(jnp.float32)
    a_all = jnp.stack(a_l).astype(jnp.float32)
    return w_all, s_all, t_all, a_all, L


# ----------------------------------------------------------------------------
# Full SRResNet forward (single pallas_call)
# ----------------------------------------------------------------------------
def srresnet_forward_pallas(params, x_nchw):
    x = jnp.transpose(x_nchw, (0, 2, 3, 1)).astype(jnp.float32)   # NCHW -> NHWC
    N, H, W, Cin = x.shape
    F = params["in_w"].shape[-1]
    R = len(params["blocks"])
    assert LANES % F == 0, "feature_dim must divide 128 (lane packing)"
    P = LANES // F
    assert W % P == 0, "W must be a multiple of 128 // feature_dim"
    Wg = W // P
    Hp, Wgp, HWg = H + 2, Wg + 2, H * Wg

    w_all, s_all, t_all, a_all, L = _fold_layers(params, Cin, F)

    # One-time packing: channels zero-padded Cin -> F, 4 W-pixels per 128 lanes,
    # zero halo of 1 row (H) and 1 pixel-group (W) on each side.
    xpk = jnp.pad(x, ((0, 0), (0, 0), (0, 0), (0, F - Cin))).reshape(N, H, Wg, LANES)
    xp = jnp.zeros((N, Hp, Wgp, LANES), jnp.float32)
    xp = xp.at[:, 1:1 + H, 1:1 + Wg, :].set(xpk)

    flops = 2 * N * L * 9 * HWg * LANES * LANES
    bytes_accessed = 4 * (xp.size + w_all.size + s_all.size + t_all.size
                          + a_all.size + N * HWg * LANES)

    out = pl.pallas_call(
        _make_srresnet_kernel(H, Wg, R),
        out_shape=jax.ShapeDtypeStruct((N, HWg, LANES), jnp.float32),
        grid=(N,),
        in_specs=[
            pl.BlockSpec((1, Hp, Wgp, LANES), lambda n: (n, 0, 0, 0)),
            pl.BlockSpec((L * 9, LANES, LANES), lambda n: (0, 0, 0)),
            pl.BlockSpec((L, 1, LANES), lambda n: (0, 0, 0)),
            pl.BlockSpec((L, 1, LANES), lambda n: (0, 0, 0)),
            pl.BlockSpec((L, 1, LANES), lambda n: (0, 0, 0)),
        ],
        out_specs=pl.BlockSpec((1, HWg, LANES), lambda n: (n, 0, 0)),
        scratch_shapes=[
            pltpu.VMEM((Hp, Wgp, LANES), jnp.float32),   # padded packed activation
        ],
        compiler_params=pltpu.CompilerParams(
            dimension_semantics=("parallel",),
            vmem_limit_bytes=32 * 1024 * 1024),
        cost_estimate=pl.CostEstimate(
            flops=int(flops), transcendentals=0,
            bytes_accessed=int(bytes_accessed)),
    )(xp, w_all, s_all, t_all, a_all)

    out = out.reshape(N, H, Wg, P, F).reshape(N, H, W, F)[..., :Cin]
    return jnp.transpose(out, (0, 3, 1, 2))          # NHWC -> NCHW


# ----------------------------------------------------------------------------
# Deterministic parameter init (matching the PyTorch module's shapes)
# ----------------------------------------------------------------------------
def _init_conv(key, cin, cout):
    kw, kb = jax.random.split(key)
    std = 1.0 / jnp.sqrt(9.0 * cin)
    w = jax.random.normal(kw, (3, 3, cin, cout), jnp.float32) * std  # HWIO
    b = jax.random.normal(kb, (cout,), jnp.float32) * 0.01
    return w, b


def _init_bn(key, c, eps=1e-5):
    k1, k2, k3, k4 = jax.random.split(key, 4)
    gamma = 1.0 + 0.1 * jax.random.normal(k1, (c,), jnp.float32)
    beta = 0.1 * jax.random.normal(k2, (c,), jnp.float32)
    mean = 0.1 * jax.random.normal(k3, (c,), jnp.float32)
    var = jax.random.uniform(k4, (c,), jnp.float32, 0.5, 1.5)
    scale = gamma / jnp.sqrt(var + eps)
    shift = beta - mean * scale
    return scale, shift


def make_params(key, input_channel_num, feature_dim, resunit_num):
    keys = jax.random.split(key, 4 + 5 * resunit_num)
    it = iter(keys)
    p = {}
    p["in_w"], p["in_b"] = _init_conv(next(it), input_channel_num, feature_dim)
    p["in_alpha"] = 0.25
    blocks = []
    for _ in range(resunit_num):
        blk = {}
        blk["w1"], blk["b1"] = _init_conv(next(it), feature_dim, feature_dim)
        blk["bn1"] = _init_bn(next(it), feature_dim)
        blk["alpha"] = 0.25
        blk["w2"], blk["b2"] = _init_conv(next(it), feature_dim, feature_dim)
        blk["bn2"] = _init_bn(next(it), feature_dim)
        next(it)  # reserved
        blocks.append(blk)
    p["blocks"] = blocks
    p["mid_w"], p["mid_b"] = _init_conv(next(it), feature_dim, feature_dim)
    p["mid_bn"] = _init_bn(next(it), feature_dim)
    p["out_w"], p["out_b"] = _init_conv(next(it), feature_dim, input_channel_num)
    return p


# ----------------------------------------------------------------------------
# Pure-JAX reference
# ----------------------------------------------------------------------------
def _conv_ref(x, w, b):
    y = lax.conv_general_dilated(
        x, w, (1, 1), "SAME",
        dimension_numbers=("NHWC", "HWIO", "NHWC"),
        precision=lax.Precision.HIGHEST)
    return y + b


def srresnet_forward_ref(params, x_nchw):
    x = jnp.transpose(x_nchw, (0, 2, 3, 1)).astype(jnp.float32)

    def prelu(v, a):
        return jnp.where(v >= 0, v, a * v)

    def affine(v, st):
        s, t = st
        return v * s + t

    x0 = prelu(_conv_ref(x, params["in_w"], params["in_b"]), params["in_alpha"])
    h = x0
    for blk in params["blocks"]:
        h1 = prelu(affine(_conv_ref(h, blk["w1"], blk["b1"]), blk["bn1"]),
                   blk["alpha"])
        h = affine(_conv_ref(h1, blk["w2"], blk["b2"]), blk["bn2"]) + h
    h = affine(_conv_ref(h, params["mid_w"], params["mid_b"]),
               params["mid_bn"]) + x0
    out = _conv_ref(h, params["out_w"], params["out_b"])
    return jnp.transpose(out, (0, 3, 1, 2))


# ----------------------------------------------------------------------------
if __name__ == "__main__":
    # Small config consistent with the module's constructor parameters.
    N, IN_CH, H, W = 2, 4, 16, 16
    FEATURE_DIM, RESUNIT_NUM = 32, 2

    key = jax.random.PRNGKey(0)
    kx, kp = jax.random.split(key)
    x = jax.random.normal(kx, (N, IN_CH, H, W), jnp.float32)  # PyTorch NCHW
    params = make_params(kp, IN_CH, FEATURE_DIM, RESUNIT_NUM)

    fwd = jax.jit(functools.partial(srresnet_forward_pallas, params))
    y = fwd(x)
    jax.block_until_ready(y)

    y_ref = srresnet_forward_ref(params, x)
    jax.block_until_ready(y_ref)

    assert y.shape == (N, IN_CH, H, W), y.shape
    max_err = float(jnp.max(jnp.abs(y - y_ref)))
    assert max_err < 1e-2, f"max abs error too large: {max_err}"

    print("KERNEL_OK")
</pallas_src>

<mosaic_0001>
module attributes {stable_mosaic.version = 11 : i64} {
  func.func @kernel(%arg0: i32, %arg1: memref<1x18x6x128xf32, #tpu.memory_space<vmem>>, %arg2: memref<63x128x128xf32, #tpu.memory_space<vmem>>, %arg3: memref<7x1x128xf32, #tpu.memory_space<vmem>>, %arg4: memref<7x1x128xf32, #tpu.memory_space<vmem>>, %arg5: memref<7x1x128xf32, #tpu.memory_space<vmem>>, %arg6: memref<1x64x128xf32, #tpu.memory_space<vmem>>, %arg7: memref<18x6x128xf32, #tpu.memory_space<vmem>>) attributes {dimension_semantics = [#tpu.dimension_semantics<parallel>], iteration_bounds = array<i64: 2>, scalar_prefetch = 0 : i64, scratch_operands = 1 : i64, tpu.core_type = #tpu.core_type<tc>, window_params = [{transform_indices = @transform_0, window_bounds = array<i64: 1, 18, 6, 128>}, {pipeline_mode = #tpu.pipeline_mode<synchronous>, transform_indices = @transform_1, window_bounds = array<i64: 63, 128, 128>}, {pipeline_mode = #tpu.pipeline_mode<synchronous>, transform_indices = @transform_2, window_bounds = array<i64: 7, 1, 128>}, {pipeline_mode = #tpu.pipeline_mode<synchronous>, transform_indices = @transform_3, window_bounds = array<i64: 7, 1, 128>}, {pipeline_mode = #tpu.pipeline_mode<synchronous>, transform_indices = @transform_4, window_bounds = array<i64: 7, 1, 128>}, {transform_indices = @transform_5, window_bounds = array<i64: 1, 64, 128>}]} {
    %c0 = arith.constant 0 : index
    %c0_0 = arith.constant 0 : index
    %c0_1 = arith.constant 0 : index
    %c0_2 = arith.constant 0 : index
    %0 = vector.load %arg1[%c0, %c0_0, %c0_1, %c0_2] : memref<1x18x6x128xf32, #tpu.memory_space<vmem>>, vector<1x18x6x128xf32>
    %1 = vector.shape_cast %0 : vector<1x18x6x128xf32> to vector<18x6x128xf32>
    %c0_3 = arith.constant 0 : index
    %c0_4 = arith.constant 0 : index
    %c0_5 = arith.constant 0 : index
    %2 = vector.load %arg7[%c0_3, %c0_4, %c0_5] : memref<18x6x128xf32, #tpu.memory_space<vmem>>, vector<18x6x128xf32>
    tpu.vector_store %arg7[%c0_3, %c0_4, %c0_5], %1 {strides = array<i32>} : memref<18x6x128xf32, #tpu.memory_space<vmem>>, vector<18x6x128xf32>,
    %cst = arith.constant 0.000000e+00 : f32
    %3 = vector.broadcast %cst : f32 to vector<64x128xf32>
    %c0_6 = arith.constant 0 : index
    %c0_7 = arith.constant 0 : index
    %c0_8 = arith.constant 0 : index
    %4 = vector.load %arg7[%c0_6, %c0_7, %c0_8] : memref<18x6x128xf32, #tpu.memory_space<vmem>>, vector<16x4x128xf32>
    %5 = vector.shape_cast %4 : vector<16x4x128xf32> to vector<64x128xf32>
    %c0_9 = arith.constant 0 : index
    %c0_10 = arith.constant 0 : index
    %c0_11 = arith.constant 0 : index
    %6 = vector.load %arg2[%c0_9, %c0_10, %c0_11] : memref<63x128x128xf32, #tpu.memory_space<vmem>>, vector<1x128x128xf32>
    %7 = vector.shape_cast %6 : vector<1x128x128xf32> to vector<128x128xf32>
    %cst_12 = arith.constant dense<0.000000e+00> : vector<64x128xf32>
    %8 = tpu.matmul %5, %7, %cst_12 {dimension_numbers = #tpu.dot_dimension_numbers<[1], [0], [0], [1], [0, 0, 1, 1], [], []>} : vector<64x128xf32>, vector<128x128xf32>, vector<64x128xf32> -> vector<64x128xf32>
    %9 = arith.addf %3, %8 : vector<64x128xf32>
    %c0_13 = arith.constant 0 : index
    %c1 = arith.constant 1 : index
    %c0_14 = arith.constant 0 : index
    %10 = vector.load %arg7[%c0_13, %c1, %c0_14] : memref<18x6x128xf32, #tpu.memory_space<vmem>>, vector<16x4x128xf32>
    %11 = vector.shape_cast %10 : vector<16x4x128xf32> to vector<64x128xf32>
    %c1_15 = arith.constant 1 : index
    %c0_16 = arith.constant 0 : index
    %c0_17 = arith.constant 0 : index
    %12 = vector.load %arg2[%c1_15, %c0_16, %c0_17] : memref<63x128x128xf32, #tpu.memory_space<vmem>>, vector<1x128x128xf32>
    %13 = vector.shape_cast %12 : vector<1x128x128xf32> to vector<128x128xf32>
    %cst_18 = arith.constant dense<0.000000e+00> : vector<64x128xf32>
    %14 = tpu.matmul %11, %13, %cst_18 {dimension_numbers = #tpu.dot_dimension_numbers<[1], [0], [0], [1], [0, 0, 1, 1], [], []>} : vector<64x128xf32>, vector<128x128xf32>, vector<64x128xf32> -> vector<64x128xf32>
    %15 = arith.addf %9, %14 : vector<64x128xf32>
    %c0_19 = arith.constant 0 : index
    %c2 = arith.constant 2 : index
    %c0_20 = arith.constant 0 : index
    %16 = vector.load %arg7[%c0_19, %c2, %c0_20] : memref<18x6x128xf32, #tpu.memory_space<vmem>>, vector<16x4x128xf32>
    %17 = vector.shape_cast %16 : vector<16x4x128xf32> to vector<64x128xf32>
    %c2_21 = arith.constant 2 : index
    %c0_22 = arith.constant 0 : index
    %c0_23 = arith.constant 0 : index
    %18 = vector.load %arg2[%c2_21, %c0_22, %c0_23] : memref<63x128x128xf32, #tpu.memory_space<vmem>>, vector<1x128x128xf32>
    %19 = vector.shape_cast %18 : vector<1x128x128xf32> to vector<128x128xf32>
    %cst_24 = arith.constant dense<0.000000e+00> : vector<64x128xf32>
    %20 = tpu.matmul %17, %19, %cst_24 {dimension_numbers = #tpu.dot_dimension_numbers<[1], [0], [0], [1], [0, 0, 1, 1], [], []>} : vector<64x128xf32>, vector<128x128xf32>, vector<64x128xf32> -> vector<64x128xf32>
    %21 = arith.addf %15, %20 : vector<64x128xf32>
    %c1_25 = arith.constant 1 : index
    %c0_26 = arith.constant 0 : index
    %c0_27 = arith.constant 0 : index
    %22 = vector.load %arg7[%c1_25, %c0_26, %c0_27] : memref<18x6x128xf32, #tpu.memory_space<vmem>>, vector<16x4x128xf32>
    %23 = vector.shape_cast %22 : vector<16x4x128xf32> to vector<64x128xf32>
    %c3 = arith.constant 3 : index
    %c0_28 = arith.constant 0 : index
    %c0_29 = arith.constant 0 : index
    %24 = vector.load %arg2[%c3, %c0_28, %c0_29] : memref<63x128x128xf32, #tpu.memory_space<vmem>>, vector<1x128x128xf32>
    %25 = vector.shape_cast %24 : vector<1x128x128xf32> to vector<128x128xf32>
    %cst_30 = arith.constant dense<0.000000e+00> : vector<64x128xf32>
    %26 = tpu.matmul %23, %25, %cst_30 {dimension_numbers = #tpu.dot_dimension_numbers<[1], [0], [0], [1], [0, 0, 1, 1], [], []>} : vector<64x128xf32>, vector<128x128xf32>, vector<64x128xf32> -> vector<64x128xf32>
    %27 = arith.addf %21, %26 : vector<64x128xf32>
    %c1_31 = arith.constant 1 : index
    %c1_32 = arith.constant 1 : index
    %c0_33 = arith.constant 0 : index
    %28 = vector.load %arg7[%c1_31, %c1_32, %c0_33] : memref<18x6x128xf32, #tpu.memory_space<vmem>>, vector<16x4x128xf32>
    %29 = vector.shape_cast %28 : vector<16x4x128xf32> to vector<64x128xf32>
    %c4 = arith.constant 4 : index
    %c0_34 = arith.constant 0 : index
    %c0_35 = arith.constant 0 : index
    %30 = vector.load %arg2[%c4, %c0_34, %c0_35] : memref<63x128x128xf32, #tpu.memory_space<vmem>>, vector<1x128x128xf32>
    %31 = vector.shape_cast %30 : vector<1x128x128xf32> to vector<128x128xf32>
    %cst_36 = arith.constant dense<0.000000e+00> : vector<64x128xf32>
    %32 = tpu.matmul %29, %31, %cst_36 {dimension_numbers = #tpu.dot_dimension_numbers<[1], [0], [0], [1], [0, 0, 1, 1], [], []>} : vector<64x128xf32>, vector<128x128xf32>, vector<64x128xf32> -> vector<64x128xf32>
    %33 = arith.addf %27, %32 : vector<64x128xf32>
    %c1_37 = arith.constant 1 : index
    %c2_38 = arith.constant 2 : index
    %c0_39 = arith.constant 0 : index
    %34 = vector.load %arg7[%c1_37, %c2_38, %c0_39] : memref<18x6x128xf32, #tpu.memory_space<vmem>>, vector<16x4x128xf32>
    %35 = vector.shape_cast %34 : vector<16x4x128xf32> to vector<64x128xf32>
    %c5 = arith.constant 5 : index
    %c0_40 = arith.constant 0 : index
    %c0_41 = arith.constant 0 : index
    %36 = vector.load %arg2[%c5, %c0_40, %c0_41] : memref<63x128x128xf32, #tpu.memory_space<vmem>>, vector<1x128x128xf32>
    %37 = vector.shape_cast %36 : vector<1x128x128xf32> to vector<128x128xf32>
    %cst_42 = arith.constant dense<0.000000e+00> : vector<64x128xf32>
    %38 = tpu.matmul %35, %37, %cst_42 {dimension_numbers = #tpu.dot_dimension_numbers<[1], [0], [0], [1], [0, 0, 1, 1], [], []>} : vector<64x128xf32>, vector<128x128xf32>, vector<64x128xf32> -> vector<64x128xf32>
    %39 = arith.addf %33, %38 : vector<64x128xf32>
    %c2_43 = arith.constant 2 : index
    %c0_44 = arith.constant 0 : index
    %c0_45 = arith.constant 0 : index
    %40 = vector.load %arg7[%c2_43, %c0_44, %c0_45] : memref<18x6x128xf32, #tpu.memory_space<vmem>>, vector<16x4x128xf32>
    %41 = vector.shape_cast %40 : vector<16x4x128xf32> to vector<64x128xf32>
    %c6 = arith.constant 6 : index
    %c0_46 = arith.constant 0 : index
    %c0_47 = arith.constant 0 : index
    %42 = vector.load %arg2[%c6, %c0_46, %c0_47] : memref<63x128x128xf32, #tpu.memory_space<vmem>>, vector<1x128x128xf32>
    %43 = vector.shape_cast %42 : vector<1x128x128xf32> to vector<128x128xf32>
    %cst_48 = arith.constant dense<0.000000e+00> : vector<64x128xf32>
    %44 = tpu.matmul %41, %43, %cst_48 {dimension_numbers = #tpu.dot_dimension_numbers<[1], [0], [0], [1], [0, 0, 1, 1], [], []>} : vector<64x128xf32>, vector<128x128xf32>, vector<64x128xf32> -> vector<64x128xf32>
    %45 = arith.addf %39, %44 : vector<64x128xf32>
    %c2_49 = arith.constant 2 : index
    %c1_50 = arith.constant 1 : index
    %c0_51 = arith.constant 0 : index
    %46 = vector.load %arg7[%c2_49, %c1_50, %c0_51] : memref<18x6x128xf32, #tpu.memory_space<vmem>>, vector<16x4x128xf32>
    %47 = vector.shape_cast %46 : vector<16x4x128xf32> to vector<64x128xf32>
    %c7 = arith.constant 7 : index
    %c0_52 = arith.constant 0 : index
    %c0_53 = arith.constant 0 : index
    %48 = vector.load %arg2[%c7, %c0_52, %c0_53] : memref<63x128x128xf32, #tpu.memory_space<vmem>>, vector<1x128x128xf32>
    %49 = vector.shape_cast %48 : vector<1x128x128xf32> to vector<128x128xf32>
    %cst_54 = arith.constant dense<0.000000e+00> : vector<64x128xf32>
    %50 = tpu.matmul %47, %49, %cst_54 {dimension_numbers = #tpu.dot_dimension_numbers<[1], [0], [0], [1], [0, 0, 1, 1], [], []>} : vector<64x128xf32>, vector<128x128xf32>, vector<64x128xf32> -> vector<64x128xf32>
    %51 = arith.addf %45, %50 : vector<64x128xf32>
    %c2_55 = arith.constant 2 : index
    %c2_56 = arith.constant 2 : index
    %c0_57 = arith.constant 0 : index
    %52 = vector.load %arg7[%c2_55, %c2_56, %c0_57] : memref<18x6x128xf32, #tpu.memory_space<vmem>>, vector<16x4x128xf32>
    %53 = vector.shape_cast %52 : vector<16x4x128xf32> to vector<64x128xf32>
    %c8 = arith.constant 8 : index
    %c0_58 = arith.constant 0 : index
    %c0_59 = arith.constant 0 : index
    %54 = vector.load %arg2[%c8, %c0_58, %c0_59] : memref<63x128x128xf32, #tpu.memory_space<vmem>>, vector<1x128x128xf32>
    %55 = vector.shape_cast %54 : vector<1x128x128xf32> to vector<128x128xf32>
    %cst_60 = arith.constant dense<0.000000e+00> : vector<64x128xf32>
    %56 = tpu.matmul %53, %55, %cst_60 {dimension_numbers = #tpu.dot_dimension_numbers<[1], [0], [0], [1], [0, 0, 1, 1], [], []>} : vector<64x128xf32>, vector<128x128xf32>, vector<64x128xf32> -> vector<64x128xf32>
    %57 = arith.addf %51, %56 : vector<64x128xf32>
    %c0_61 = arith.constant 0 : index
    %c0_62 = arith.constant 0 : index
    %c0_63 = arith.constant 0 : index
    %58 = vector.load %arg3[%c0_61, %c0_62, %c0_63] : memref<7x1x128xf32, #tpu.memory_space<vmem>>, vector<1x1x128xf32>
    %59 = vector.shape_cast %58 : vector<1x1x128xf32> to vector<1x128xf32>
    %60 = vector.broadcast %59 : vector<1x128xf32> to vector<64x128xf32>
    %61 = arith.mulf %57, %60 : vector<64x128xf32>
    %c0_64 = arith.constant 0 : index
    %c0_65 = arith.constant 0 : index
    %c0_66 = arith.constant 0 : index
    %62 = vector.load %arg4[%c0_64, %c0_65, %c0_66] : memref<7x1x128xf32, #tpu.memory_space<vmem>>, vector<1x1x128xf32>
    %63 = vector.shape_cast %62 : vector<1x1x128xf32> to vector<1x128xf32>
    %64 = vector.broadcast %63 : vector<1x128xf32> to vector<64x128xf32>
    %65 = arith.addf %61, %64 : vector<64x128xf32>
    %cst_67 = arith.constant 0.000000e+00 : f32
    %66 = vector.broadcast %cst_67 : f32 to vector<64x128xf32>
    %67 = arith.cmpf oge, %65, %66 : vector<64x128xf32>
    %c0_68 = arith.constant 0 : index
    %c0_69 = arith.constant 0 : index
    %c0_70 = arith.constant 0 : index
    %68 = vector.load %arg5[%c0_68, %c0_69, %c0_70] : memref<7x1x128xf32, #tpu.memory_space<vmem>>, vector<1x1x128xf32>
    %69 = vector.shape_cast %68 : vector<1x1x128xf32> to vector<1x128xf32>
    %70 = vector.broadcast %69 : vector<1x128xf32> to vector<64x128xf32>
    %71 = arith.mulf %65, %70 : vector<64x128xf32>
    %72 = arith.select %67, %65, %71 : vector<64x128xi1>, vector<64x128xf32>
    %73 = vector.shape_cast %72 : vector<64x128xf32> to vector<16x4x128xf32>
    %c1_71 = arith.constant 1 : index
    %c1_72 = arith.constant 1 : index
    %c0_73 = arith.constant 0 : index
    %74 = vector.load %arg7[%c1_71, %c1_72, %c0_73] : memref<18x6x128xf32, #tpu.memory_space<vmem>>, vector<16x4x128xf32>
    tpu.vector_store %arg7[%c1_71, %c1_72, %c0_73], %73 {strides = array<i32>} : memref<18x6x128xf32, #tpu.memory_space<vmem>>, vector<16x4x128xf32>,
    %c0_i32 = arith.constant 0 : i32
    %c2_i32 = arith.constant 2 : i32
    %75 = arith.muli %c2_i32, %c0_i32 : i32
    %c1_i32 = arith.constant 1 : i32
    %76 = arith.addi %c1_i32, %75 : i32
    %cst_74 = arith.constant 0.000000e+00 : f32
    %77 = vector.broadcast %cst_74 : f32 to vector<64x128xf32>
    %c0_75 = arith.constant 0 : index
    %c0_76 = arith.constant 0 : index
    %c0_77 = arith.constant 0 : index
    %78 = vector.load %arg7[%c0_75, %c0_76, %c0_77] : memref<18x6x128xf32, #tpu.memory_space<vmem>>, vector<16x4x128xf32>
    %79 = vector.shape_cast %78 : vector<16x4x128xf32> to vector<64x128xf32>
    %c9_i32 = arith.constant 9 : i32
    %80 = arith.muli %76, %c9_i32 : i32
    %c0_i32_78 = arith.constant 0 : i32
    %81 = arith.addi %80, %c0_i32_78 : i32
    %c0_i32_79 = arith.constant 0 : i32
    %82 = arith.addi %81, %c0_i32_79 : i32
    %83 = arith.index_cast %82 : i32 to index
    %c0_80 = arith.constant 0 : index
    %c0_81 = arith.constant 0 : index
    %84 = vector.load %arg2[%83, %c0_80, %c0_81] : memref<63x128x128xf32, #tpu.memory_space<vmem>>, vector<1x128x128xf32>
    %85 = vector.shape_cast %84 : vector<1x128x128xf32> to vector<128x128xf32>
    %cst_82 = arith.constant dense<0.000000e+00> : vector<64x128xf32>
    %86 = tpu.matmul %79, %85, %cst_82 {dimension_numbers = #tpu.dot_dimension_numbers<[1], [0], [0], [1], [0, 0, 1, 1], [], []>} : vector<64x128xf32>, vector<128x128xf32>, vector<64x128xf32> -> vector<64x128xf32>
    %87 = arith.addf %77, %86 : vector<64x128xf32>
    %c0_83 = arith.constant 0 : index
    %c1_84 = arith.constant 1 : index
    %c0_85 = arith.constant 0 : index
    %88 = vector.load %arg7[%c0_83, %c1_84, %c0_85] : memref<18x6x128xf32, #tpu.memory_space<vmem>>, vector<16x4x128xf32>
    %89 = vector.shape_cast %88 : vector<16x4x128xf32> to vector<64x128xf32>
    %c9_i32_86 = arith.constant 9 : i32
    %90 = arith.muli %76, %c9_i32_86 : i32
    %c0_i32_87 = arith.constant 0 : i32
    %91 = arith.addi %90, %c0_i32_87 : i32
    %c1_i32_88 = arith.constant 1 : i32
    %92 = arith.addi %91, %c1_i32_88 : i32
    %93 = arith.index_cast %92 : i32 to index
    %c0_89 = arith.constant 0 : index
    %c0_90 = arith.constant 0 : index
    %94 = vector.load %arg2[%93, %c0_89, %c0_90] : memref<63x128x128xf32, #tpu.memory_space<vmem>>, vector<1x128x128xf32>
    %95 = vector.shape_cast %94 : vector<1x128x128xf32> to vector<128x128xf32>
    %cst_91 = arith.constant dense<0.000000e+00> : vector<64x128xf32>
    %96 = tpu.matmul %89, %95, %cst_91 {dimension_numbers = #tpu.dot_dimension_numbers<[1], [0], [0], [1], [0, 0, 1, 1], [], []>} : vector<64x128xf32>, vector<128x128xf32>, vector<64x128xf32> -> vector<64x128xf32>
    %97 = arith.addf %87, %96 : vector<64x128xf32>
    %c0_92 = arith.constant 0 : index
    %c2_93 = arith.constant 2 : index
    %c0_94 = arith.constant 0 : index
    %98 = vector.load %arg7[%c0_92, %c2_93, %c0_94] : memref<18x6x128xf32, #tpu.memory_space<vmem>>, vector<16x4x128xf32>
    %99 = vector.shape_cast %98 : vector<16x4x128xf32> to vector<64x128xf32>
    %c9_i32_95 = arith.constant 9 : i32
    %100 = arith.muli %76, %c9_i32_95 : i32
    %c0_i32_96 = arith.constant 0 : i32
    %101 = arith.addi %100, %c0_i32_96 : i32
    %c2_i32_97 = arith.constant 2 : i32
    %102 = arith.addi %101, %c2_i32_97 : i32
    %103 = arith.index_cast %102 : i32 to index
    %c0_98 = arith.constant 0 : index
    %c0_99 = arith.constant 0 : index
    %104 = vector.load %arg2[%103, %c0_98, %c0_99] : memref<63x128x128xf32, #tpu.memory_space<vmem>>, vector<1x128x128xf32>
    %105 = vector.shape_cast %104 : vector<1x128x128xf32> to vector<128x128xf32>
    %cst_100 = arith.constant dense<0.000000e+00> : vector<64x128xf32>
    %106 = tpu.matmul %99, %105, %cst_100 {dimension_numbers = #tpu.dot_dimension_numbers<[1], [0], [0], [1], [0, 0, 1, 1], [], []>} : vector<64x128xf32>, vector<128x128xf32>, vector<64x128xf32> -> vector<64x128xf32>
    %107 = arith.addf %97, %106 : vector<64x128xf32>
    %c1_101 = arith.constant 1 : index
    %c0_102 = arith.constant 0 : index
    %c0_103 = arith.constant 0 : index
    %108 = vector.load %arg7[%c1_101, %c0_102, %c0_103] : memref<18x6x128xf32, #tpu.memory_space<vmem>>, vector<16x4x128xf32>
    %109 = vector.shape_cast %108 : vector<16x4x128xf32> to vector<64x128xf32>
    %c9_i32_104 = arith.constant 9 : i32
    %110 = arith.muli %76, %c9_i32_104 : i32
    %c3_i32 = arith.constant 3 : i32
    %111 = arith.addi %110, %c3_i32 : i32
    %c0_i32_105 = arith.constant 0 : i32
    %112 = arith.addi %111, %c0_i32_105 : i32
    %113 = arith.index_cast %112 : i32 to index
    %c0_106 = arith.constant 0 : index
    %c0_107 = arith.constant 0 : index
    %114 = vector.load %arg2[%113, %c0_106, %c0_107] : memref<63x128x128xf32, #tpu.memory_space<vmem>>, vector<1x128x128xf32>
    %115 = vector.shape_cast %114 : vector<1x128x128xf32> to vector<128x128xf32>
    %cst_108 = arith.constant dense<0.000000e+00> : vector<64x128xf32>
    %116 = tpu.matmul %109, %115, %cst_108 {dimension_numbers = #tpu.dot_dimension_numbers<[1], [0], [0], [1], [0, 0, 1, 1], [], []>} : vector<64x128xf32>, vector<128x128xf32>, vector<64x128xf32> -> vector<64x128xf32>
    %117 = arith.addf %107, %116 : vector<64x128xf32>
    %c1_109 = arith.constant 1 : index
    %c1_110 = arith.constant 1 : index
    %c0_111 = arith.constant 0 : index
    %118 = vector.load %arg7[%c1_109, %c1_110, %c0_111] : memref<18x6x128xf32, #tpu.memory_space<vmem>>, vector<16x4x128xf32>
    %119 = vector.shape_cast %118 : vector<16x4x128xf32> to vector<64x128xf32>
    %c9_i32_112 = arith.constant 9 : i32
    %120 = arith.muli %76, %c9_i32_112 : i32
    %c3_i32_113 = arith.constant 3 : i32
    %121 = arith.addi %120, %c3_i32_113 : i32
    %c1_i32_114 = arith.constant 1 : i32
    %122 = arith.addi %121, %c1_i32_114 : i32
    %123 = arith.index_cast %122 : i32 to index
    %c0_115 = arith.constant 0 : index
    %c0_116 = arith.constant 0 : index
    %124 = vector.load %arg2[%123, %c0_115, %c0_116] : memref<63x128x128xf32, #tpu.memory_space<vmem>>, vector<1x128x128xf32>
    %125 = vector.shape_cast %124 : vector<1x128x128xf32> to vector<128x128xf32>
    %cst_117 = arith.constant dense<0.000000e+00> : vector<64x128xf32>
    %126 = tpu.matmul %119, %125, %cst_117 {dimension_numbers = #tpu.dot_dimension_numbers<[1], [0], [0], [1], [0, 0, 1, 1], [], []>} : vector<64x128xf32>, vector<128x128xf32>, vector<64x128xf32> -> vector<64x128xf32>
    %127 = arith.addf %117, %126 : vector<64x128xf32>
    %c1_118 = arith.constant 1 : index
    %c2_119 = arith.constant 2 : index
    %c0_120 = arith.constant 0 : index
    %128 = vector.load %arg7[%c1_118, %c2_119, %c0_120] : memref<18x6x128xf32, #tpu.memory_space<vmem>>, vector<16x4x128xf32>
    %129 = vector.shape_cast %128 : vector<16x4x128xf32> to vector<64x128xf32>
    %c9_i32_121 = arith.constant 9 : i32
    %130 = arith.muli %76, %c9_i32_121 : i32
    %c3_i32_122 = arith.constant 3 : i32
    %131 = arith.addi %130, %c3_i32_122 : i32
    %c2_i32_123 = arith.constant 2 : i32
    %132 = arith.addi %131, %c2_i32_123 : i32
    %133 = arith.index_cast %132 : i32 to index
    %c0_124 = arith.constant 0 : index
    %c0_125 = arith.constant 0 : index
    %134 = vector.load %arg2[%133, %c0_124, %c0_125] : memref<63x128x128xf32, #tpu.memory_space<vmem>>, vector<1x128x128xf32>
    %135 = vector.shape_cast %134 : vector<1x128x128xf32> to vector<128x128xf32>
    %cst_126 = arith.constant dense<0.000000e+00> : vector<64x128xf32>
    %136 = tpu.matmul %129, %135, %cst_126 {dimension_numbers = #tpu.dot_dimension_numbers<[1], [0], [0], [1], [0, 0, 1, 1], [], []>} : vector<64x128xf32>, vector<128x128xf32>, vector<64x128xf32> -> vector<64x128xf32>
    %137 = arith.addf %127, %136 : vector<64x128xf32>
    %c2_127 = arith.constant 2 : index
    %c0_128 = arith.constant 0 : index
    %c0_129 = arith.constant 0 : index
    %138 = vector.load %arg7[%c2_127, %c0_128, %c0_129] : memref<18x6x128xf32, #tpu.memory_space<vmem>>, vector<16x4x128xf32>
    %139 = vector.shape_cast %138 : vector<16x4x128xf32> to vector<64x128xf32>
    %c9_i32_130 = arith.constant 9 : i32
    %140 = arith.muli %76, %c9_i32_130 : i32
    %c6_i32 = arith.constant 6 : i32
    %141 = arith.addi %140, %c6_i32 : i32
    %c0_i32_131 = arith.constant 0 : i32
    %142 = arith.addi %141, %c0_i32_131 : i32
    %143 = arith.index_cast %142 : i32 to index
    %c0_132 = arith.constant 0 : index
    %c0_133 = arith.constant 0 : index
    %144 = vector.load %arg2[%143, %c0_132, %c0_133] : memref<63x128x128xf32, #tpu.memory_space<vmem>>, vector<1x128x128xf32>
    %145 = vector.shape_cast %144 : vector<1x128x128xf32> to vector<128x128xf32>
    %cst_134 = arith.constant dense<0.000000e+00> : vector<64x128xf32>
    %146 = tpu.matmul %139, %145, %cst_134 {dimension_numbers = #tpu.dot_dimension_numbers<[1], [0], [0], [1], [0, 0, 1, 1], [], []>} : vector<64x128xf32>, vector<128x128xf32>, vector<64x128xf32> -> vector<64x128xf32>
    %147 = arith.addf %137, %146 : vector<64x128xf32>
    %c2_135 = arith.constant 2 : index
    %c1_136 = arith.constant 1 : index
    %c0_137 = arith.constant 0 : index
    %148 = vector.load %arg7[%c2_135, %c1_136, %c0_137] : memref<18x6x128xf32, #tpu.memory_space<vmem>>, vector<16x4x128xf32>
    %149 = vector.shape_cast %148 : vector<16x4x128xf32> to vector<64x128xf32>
    %c9_i32_138 = arith.constant 9 : i32
    %150 = arith.muli %76, %c9_i32_138 : i32
    %c6_i32_139 = arith.constant 6 : i32
    %151 = arith.addi %150, %c6_i32_139 : i32
    %c1_i32_140 = arith.constant 1 : i32
    %152 = arith.addi %151, %c1_i32_140 : i32
    %153 = arith.index_cast %152 : i32 to index
    %c0_141 = arith.constant 0 : index
    %c0_142 = arith.constant 0 : index
    %154 = vector.load %arg2[%153, %c0_141, %c0_142] : memref<63x128x128xf32, #tpu.memory_space<vmem>>, vector<1x128x128xf32>
    %155 = vector.shape_cast %154 : vector<1x128x128xf32> to vector<128x128xf32>
    %cst_143 = arith.constant dense<0.000000e+00> : vector<64x128xf32>
    %156 = tpu.matmul %149, %155, %cst_143 {dimension_numbers = #tpu.dot_dimension_numbers<[1], [0], [0], [1], [0, 0, 1, 1], [], []>} : vector<64x128xf32>, vector<128x128xf32>, vector<64x128xf32> -> vector<64x128xf32>
    %157 = arith.addf %147, %156 : vector<64x128xf32>
    %c2_144 = arith.constant 2 : index
    %c2_145 = arith.constant 2 : index
    %c0_146 = arith.constant 0 : index
    %158 = vector.load %arg7[%c2_144, %c2_145, %c0_146] : memref<18x6x128xf32, #tpu.memory_space<vmem>>, vector<16x4x128xf32>
    %159 = vector.shape_cast %158 : vector<16x4x128xf32> to vector<64x128xf32>
    %c9_i32_147 = arith.constant 9 : i32
    %160 = arith.muli %76, %c9_i32_147 : i32
    %c6_i32_148 = arith.constant 6 : i32
    %161 = arith.addi %160, %c6_i32_148 : i32
    %c2_i32_149 = arith.constant 2 : i32
    %162 = arith.addi %161, %c2_i32_149 : i32
    %163 = arith.index_cast %162 : i32 to index
    %c0_150 = arith.constant 0 : index
    %c0_151 = arith.constant 0 : index
    %164 = vector.load %arg2[%163, %c0_150, %c0_151] : memref<63x128x128xf32, #tpu.memory_space<vmem>>, vector<1x128x128xf32>
    %165 = vector.shape_cast %164 : vector<1x128x128xf32> to vector<128x128xf32>
    %cst_152 = arith.constant dense<0.000000e+00> : vector<64x128xf32>
    %166 = tpu.matmul %159, %165, %cst_152 {dimension_numbers = #tpu.dot_dimension_numbers<[1], [0], [0], [1], [0, 0, 1, 1], [], []>} : vector<64x128xf32>, vector<128x128xf32>, vector<64x128xf32> -> vector<64x128xf32>
    %167 = arith.addf %157, %166 : vector<64x128xf32>
    %168 = arith.index_cast %76 : i32 to index
    %c0_153 = arith.constant 0 : index
    %c0_154 = arith.constant 0 : index
    %169 = vector.load %arg3[%168, %c0_153, %c0_154] : memref<7x1x128xf32, #tpu.memory_space<vmem>>, vector<1x1x128xf32>
    %170 = vector.shape_cast %169 : vector<1x1x128xf32> to vector<1x128xf32>
    %171 = vector.broadcast %170 : vector<1x128xf32> to vector<64x128xf32>
    %172 = arith.mulf %167, %171 : vector<64x128xf32>
    %173 = arith.index_cast %76 : i32 to index
    %c0_155 = arith.constant 0 : index
    %c0_156 = arith.constant 0 : index
    %174 = vector.load %arg4[%173, %c0_155, %c0_156] : memref<7x1x128xf32, #tpu.memory_space<vmem>>, vector<1x1x128xf32>
    %175 = vector.shape_cast %174 : vector<1x1x128xf32> to vector<1x128xf32>
    %176 = vector.broadcast %175 : vector<1x128xf32> to vector<64x128xf32>
    %177 = arith.addf %172, %176 : vector<64x128xf32>
    %cst_157 = arith.constant 0.000000e+00 : f32
    %178 = vector.broadcast %cst_157 : f32 to vector<64x128xf32>
    %179 = arith.cmpf oge, %177, %178 : vector<64x128xf32>
    %180 = arith.index_cast %76 : i32 to index
    %c0_158 = arith.constant 0 : index
    %c0_159 = arith.constant 0 : index
    %181 = vector.load %arg5[%180, %c0_158, %c0_159] : memref<7x1x128xf32, #tpu.memory_space<vmem>>, vector<1x1x128xf32>
    %182 = vector.shape_cast %181 : vector<1x1x128xf32> to vector<1x128xf32>
    %183 = vector.broadcast %182 : vector<1x128xf32> to vector<64x128xf32>
    %184 = arith.mulf %177, %183 : vector<64x128xf32>
    %185 = arith.select %179, %177, %184 : vector<64x128xi1>, vector<64x128xf32>
    %186 = vector.shape_cast %185 : vector<64x128xf32> to vector<16x4x128xf32>
    %c1_160 = arith.constant 1 : index
    %c1_161 = arith.constant 1 : index
    %c0_162 = arith.constant 0 : index
    %187 = vector.load %arg7[%c1_160, %c1_161, %c0_162] : memref<18x6x128xf32, #tpu.memory_space<vmem>>, vector<16x4x128xf32>
    tpu.vector_store %arg7[%c1_160, %c1_161, %c0_162], %186 {strides = array<i32>} : memref<18x6x128xf32, #tpu.memory_space<vmem>>, vector<16x4x128xf32>,
    %c1_i32_163 = arith.constant 1 : i32
    %188 = arith.addi %76, %c1_i32_163 : i32
    %cst_164 = arith.constant 0.000000e+00 : f32
    %189 = vector.broadcast %cst_164 : f32 to vector<64x128xf32>
    %c0_165 = arith.constant 0 : index
    %c0_166 = arith.constant 0 : index
    %c0_167 = arith.constant 0 : index
    %190 = vector.load %arg7[%c0_165, %c0_166, %c0_167] : memref<18x6x128xf32, #tpu.memory_space<vmem>>, vector<16x4x128xf32>
    %191 = vector.shape_cast %190 : vector<16x4x128xf32> to vector<64x128xf32>
    %c9_i32_168 = arith.constant 9 : i32
    %192 = arith.muli %188, %c9_i32_168 : i32
    %c0_i32_169 = arith.constant 0 : i32
    %193 = arith.addi %192, %c0_i32_169 : i32
    %c0_i32_170 = arith.constant 0 : i32
    %194 = arith.addi %193, %c0_i32_170 : i32
    %195 = arith.index_cast %194 : i32 to index
    %c0_171 = arith.constant 0 : index
    %c0_172 = arith.constant 0 : index
    %196 = vector.load %arg2[%195, %c0_171, %c0_172] : memref<63x128x128xf32, #tpu.memory_space<vmem>>, vector<1x128x128xf32>
    %197 = vector.shape_cast %196 : vector<1x128x128xf32> to vector<128x128xf32>
    %cst_173 = arith.constant dense<0.000000e+00> : vector<64x128xf32>
    %198 = tpu.matmul %191, %197, %cst_173 {dimension_numbers = #tpu.dot_dimension_numbers<[1], [0], [0], [1], [0, 0, 1, 1], [], []>} : vector<64x128xf32>, vector<128x128xf32>, vector<64x128xf32> -> vector<64x128xf32>
    %199 = arith.addf %189, %198 : vector<64x128xf32>
    %c0_174 = arith.constant 0 : index
    %c1_175 = arith.constant 1 : index
    %c0_176 = arith.constant 0 : index
    %200 = vector.load %arg7[%c0_174, %c1_175, %c0_176] : memref<18x6x128xf32, #tpu.memory_space<vmem>>, vector<16x4x128xf32>
    %201 = vector.shape_cast %200 : vector<16x4x128xf32> to vector<64x128xf32>
    %c9_i32_177 = arith.constant 9 : i32
    %202 = arith.muli %188, %c9_i32_177 : i32
    %c0_i32_178 = arith.constant 0 : i32
    %203 = arith.addi %202, %c0_i32_178 : i32
    %c1_i32_179 = arith.constant 1 : i32
    %204 = arith.addi %203, %c1_i32_179 : i32
    %205 = arith.index_cast %204 : i32 to index
    %c0_180 = arith.constant 0 : index
    %c0_181 = arith.constant 0 : index
    %206 = vector.load %arg2[%205, %c0_180, %c0_181] : memref<63x128x128xf32, #tpu.memory_space<vmem>>, vector<1x128x128xf32>
    %207 = vector.shape_cast %206 : vector<1x128x128xf32> to vector<128x128xf32>
    %cst_182 = arith.constant dense<0.000000e+00> : vector<64x128xf32>
    %208 = tpu.matmul %201, %207, %cst_182 {dimension_numbers = #tpu.dot_dimension_numbers<[1], [0], [0], [1], [0, 0, 1, 1], [], []>} : vector<64x128xf32>, vector<128x128xf32>, vector<64x128xf32> -> vector<64x128xf32>
    %209 = arith.addf %199, %208 : vector<64x128xf32>
    %c0_183 = arith.constant 0 : index
    %c2_184 = arith.constant 2 : index
    %c0_185 = arith.constant 0 : index
    %210 = vector.load %arg7[%c0_183, %c2_184, %c0_185] : memref<18x6x128xf32, #tpu.memory_space<vmem>>, vector<16x4x128xf32>
    %211 = vector.shape_cast %210 : vector<16x4x128xf32> to vector<64x128xf32>
    %c9_i32_186 = arith.constant 9 : i32
    %212 = arith.muli %188, %c9_i32_186 : i32
    %c0_i32_187 = arith.constant 0 : i32
    %213 = arith.addi %212, %c0_i32_187 : i32
    %c2_i32_188 = arith.constant 2 : i32
    %214 = arith.addi %213, %c2_i32_188 : i32
    %215 = arith.index_cast %214 : i32 to index
    %c0_189 = arith.constant 0 : index
    %c0_190 = arith.constant 0 : index
    %216 = vector.load %arg2[%215, %c0_189, %c0_190] : memref<63x128x128xf32, #tpu.memory_space<vmem>>, vector<1x128x128xf32>
    %217 = vector.shape_cast %216 : vector<1x128x128xf32> to vector<128x128xf32>
    %cst_191 = arith.constant dense<0.000000e+00> : vector<64x128xf32>
    %218 = tpu.matmul %211, %217, %cst_191 {dimension_numbers = #tpu.dot_dimension_numbers<[1], [0], [0], [1], [0, 0, 1, 1], [], []>} : vector<64x128xf32>, vector<128x128xf32>, vector<64x128xf32> -> vector<64x128xf32>
    %219 = arith.addf %209, %218 : vector<64x128xf32>
    %c1_192 = arith.constant 1 : index
    %c0_193 = arith.constant 0 : index
    %c0_194 = arith.constant 0 : index
    %220 = vector.load %arg7[%c1_192, %c0_193, %c0_194] : memref<18x6x128xf32, #tpu.memory_space<vmem>>, vector<16x4x128xf32>
    %221 = vector.shape_cast %220 : vector<16x4x128xf32> to vector<64x128xf32>
    %c9_i32_195 = arith.constant 9 : i32
    %222 = arith.muli %188, %c9_i32_195 : i32
    %c3_i32_196 = arith.constant 3 : i32
    %223 = arith.addi %222, %c3_i32_196 : i32
    %c0_i32_197 = arith.constant 0 : i32
    %224 = arith.addi %223, %c0_i32_197 : i32
    %225 = arith.index_cast %224 : i32 to index
    %c0_198 = arith.constant 0 : index
    %c0_199 = arith.constant 0 : index
    %226 = vector.load %arg2[%225, %c0_198, %c0_199] : memref<63x128x128xf32, #tpu.memory_space<vmem>>, vector<1x128x128xf32>
    %227 = vector.shape_cast %226 : vector<1x128x128xf32> to vector<128x128xf32>
    %cst_200 = arith.constant dense<0.000000e+00> : vector<64x128xf32>
    %228 = tpu.matmul %221, %227, %cst_200 {dimension_numbers = #tpu.dot_dimension_numbers<[1], [0], [0], [1], [0, 0, 1, 1], [], []>} : vector<64x128xf32>, vector<128x128xf32>, vector<64x128xf32> -> vector<64x128xf32>
    %229 = arith.addf %219, %228 : vector<64x128xf32>
    %c1_201 = arith.constant 1 : index
    %c1_202 = arith.constant 1 : index
    %c0_203 = arith.constant 0 : index
    %230 = vector.load %arg7[%c1_201, %c1_202, %c0_203] : memref<18x6x128xf32, #tpu.memory_space<vmem>>, vector<16x4x128xf32>
    %231 = vector.shape_cast %230 : vector<16x4x128xf32> to vector<64x128xf32>
    %c9_i32_204 = arith.constant 9 : i32
    %232 = arith.muli %188, %c9_i32_204 : i32
    %c3_i32_205 = arith.constant 3 : i32
    %233 = arith.addi %232, %c3_i32_205 : i32
    %c1_i32_206 = arith.constant 1 : i32
    %234 = arith.addi %233, %c1_i32_206 : i32
    %235 = arith.index_cast %234 : i32 to index
    %c0_207 = arith.constant 0 : index
    %c0_208 = arith.constant 0 : index
    %236 = vector.load %arg2[%235, %c0_207, %c0_208] : memref<63x128x128xf32, #tpu.memory_space<vmem>>, vector<1x128x128xf32>
    %237 = vector.shape_cast %236 : vector<1x128x128xf32> to vector<128x128xf32>
    %cst_209 = arith.constant dense<0.000000e+00> : vector<64x128xf32>
    %238 = tpu.matmul %231, %237, %cst_209 {dimension_numbers = #tpu.dot_dimension_numbers<[1], [0], [0], [1], [0, 0, 1, 1], [], []>} : vector<64x128xf32>, vector<128x128xf32>, vector<64x128xf32> -> vector<64x128xf32>
    %239 = arith.addf %229, %238 : vector<64x128xf32>
    %c1_210 = arith.constant 1 : index
    %c2_211 = arith.constant 2 : index
    %c0_212 = arith.constant 0 : index
    %240 = vector.load %arg7[%c1_210, %c2_211, %c0_212] : memref<18x6x128xf32, #tpu.memory_space<vmem>>, vector<16x4x128xf32>
    %241 = vector.shape_cast %240 : vector<16x4x128xf32> to vector<64x128xf32>
    %c9_i32_213 = arith.constant 9 : i32
    %242 = arith.muli %188, %c9_i32_213 : i32
    %c3_i32_214 = arith.constant 3 : i32
    %243 = arith.addi %242, %c3_i32_214 : i32
    %c2_i32_215 = arith.constant 2 : i32
    %244 = arith.addi %243, %c2_i32_215 : i32
    %245 = arith.index_cast %244 : i32 to index
    %c0_216 = arith.constant 0 : index
    %c0_217 = arith.constant 0 : index
    %246 = vector.load %arg2[%245, %c0_216, %c0_217] : memref<63x128x128xf32, #tpu.memory_space<vmem>>, vector<1x128x128xf32>
    %247 = vector.shape_cast %246 : vector<1x128x128xf32> to vector<128x128xf32>
    %cst_218 = arith.constant dense<0.000000e+00> : vector<64x128xf32>
    %248 = tpu.matmul %241, %247, %cst_218 {dimension_numbers = #tpu.dot_dimension_numbers<[1], [0], [0], [1], [0, 0, 1, 1], [], []>} : vector<64x128xf32>, vector<128x128xf32>, vector<64x128xf32> -> vector<64x128xf32>
    %249 = arith.addf %239, %248 : vector<64x128xf32>
    %c2_219 = arith.constant 2 : index
    %c0_220 = arith.constant 0 : index
    %c0_221 = arith.constant 0 : index
    %250 = vector.load %arg7[%c2_219, %c0_220, %c0_221] : memref<18x6x128xf32, #tpu.memory_space<vmem>>, vector<16x4x128xf32>
    %251 = vector.shape_cast %250 : vector<16x4x128xf32> to vector<64x128xf32>
    %c9_i32_222 = arith.constant 9 : i32
    %252 = arith.muli %188, %c9_i32_222 : i32
    %c6_i32_223 = arith.constant 6 : i32
    %253 = arith.addi %252, %c6_i32_223 : i32
    %c0_i32_224 = arith.constant 0 : i32
    %254 = arith.addi %253, %c0_i32_224 : i32
    %255 = arith.index_cast %254 : i32 to index
    %c0_225 = arith.constant 0 : index
    %c0_226 = arith.constant 0 : index
    %256 = vector.load %arg2[%255, %c0_225, %c0_226] : memref<63x128x128xf32, #tpu.memory_space<vmem>>, vector<1x128x128xf32>
    %257 = vector.shape_cast %256 : vector<1x128x128xf32> to vector<128x128xf32>
    %cst_227 = arith.constant dense<0.000000e+00> : vector<64x128xf32>
    %258 = tpu.matmul %251, %257, %cst_227 {dimension_numbers = #tpu.dot_dimension_numbers<[1], [0], [0], [1], [0, 0, 1, 1], [], []>} : vector<64x128xf32>, vector<128x128xf32>, vector<64x128xf32> -> vector<64x128xf32>
    %259 = arith.addf %249, %258 : vector<64x128xf32>
    %c2_228 = arith.constant 2 : index
    %c1_229 = arith.constant 1 : index
    %c0_230 = arith.constant 0 : index
    %260 = vector.load %arg7[%c2_228, %c1_229, %c0_230] : memref<18x6x128xf32, #tpu.memory_space<vmem>>, vector<16x4x128xf32>
    %261 = vector.shape_cast %260 : vector<16x4x128xf32> to vector<64x128xf32>
    %c9_i32_231 = arith.constant 9 : i32
    %262 = arith.muli %188, %c9_i32_231 : i32
    %c6_i32_232 = arith.constant 6 : i32
    %263 = arith.addi %262, %c6_i32_232 : i32
    %c1_i32_233 = arith.constant 1 : i32
    %264 = arith.addi %263, %c1_i32_233 : i32
    %265 = arith.index_cast %264 : i32 to index
    %c0_234 = arith.constant 0 : index
    %c0_235 = arith.constant 0 : index
    %266 = vector.load %arg2[%265, %c0_234, %c0_235] : memref<63x128x128xf32, #tpu.memory_space<vmem>>, vector<1x128x128xf32>
    %267 = vector.shape_cast %266 : vector<1x128x128xf32> to vector<128x128xf32>
    %cst_236 = arith.constant dense<0.000000e+00> : vector<64x128xf32>
    %268 = tpu.matmul %261, %267, %cst_236 {dimension_numbers = #tpu.dot_dimension_numbers<[1], [0], [0], [1], [0, 0, 1, 1], [], []>} : vector<64x128xf32>, vector<128x128xf32>, vector<64x128xf32> -> vector<64x128xf32>
    %269 = arith.addf %259, %268 : vector<64x128xf32>
    %c2_237 = arith.constant 2 : index
    %c2_238 = arith.constant 2 : index
    %c0_239 = arith.constant 0 : index
    %270 = vector.load %arg7[%c2_237, %c2_238, %c0_239] : memref<18x6x128xf32, #tpu.memory_space<vmem>>, vector<16x4x128xf32>
    %271 = vector.shape_cast %270 : vector<16x4x128xf32> to vector<64x128xf32>
    %c9_i32_240 = arith.constant 9 : i32
    %272 = arith.muli %188, %c9_i32_240 : i32
    %c6_i32_241 = arith.constant 6 : i32
    %273 = arith.addi %272, %c6_i32_241 : i32
    %c2_i32_242 = arith.constant 2 : i32
    %274 = arith.addi %273, %c2_i32_242 : i32
    %275 = arith.index_cast %274 : i32 to index
    %c0_243 = arith.constant 0 : index
    %c0_244 = arith.constant 0 : index
    %276 = vector.load %arg2[%275, %c0_243, %c0_244] : memref<63x128x128xf32, #tpu.memory_space<vmem>>, vector<1x128x128xf32>
    %277 = vector.shape_cast %276 : vector<1x128x128xf32> to vector<128x128xf32>
    %cst_245 = arith.constant dense<0.000000e+00> : vector<64x128xf32>
    %278 = tpu.matmul %271, %277, %cst_245 {dimension_numbers = #tpu.dot_dimension_numbers<[1], [0], [0], [1], [0, 0, 1, 1], [], []>} : vector<64x128xf32>, vector<128x128xf32>, vector<64x128xf32> -> vector<64x128xf32>
    %279 = arith.addf %269, %278 : vector<64x128xf32>
    %280 = arith.index_cast %188 : i32 to index
    %c0_246 = arith.constant 0 : index
    %c0_247 = arith.constant 0 : index
    %281 = vector.load %arg3[%280, %c0_246, %c0_247] : memref<7x1x128xf32, #tpu.memory_space<vmem>>, vector<1x1x128xf32>
    %282 = vector.shape_cast %281 : vector<1x1x128xf32> to vector<1x128xf32>
    %283 = vector.broadcast %282 : vector<1x128xf32> to vector<64x128xf32>
    %284 = arith.mulf %279, %283 : vector<64x128xf32>
    %285 = arith.index_cast %188 : i32 to index
    %c0_248 = arith.constant 0 : index
    %c0_249 = arith.constant 0 : index
    %286 = vector.load %arg4[%285, %c0_248, %c0_249] : memref<7x1x128xf32, #tpu.memory_space<vmem>>, vector<1x1x128xf32>
    %287 = vector.shape_cast %286 : vector<1x1x128xf32> to vector<1x128xf32>
    %288 = vector.broadcast %287 : vector<1x128xf32> to vector<64x128xf32>
    %289 = arith.addf %284, %288 : vector<64x128xf32>
    %290 = arith.addf %289, %72 : vector<64x128xf32>
    %291 = vector.shape_cast %290 : vector<64x128xf32> to vector<16x4x128xf32>
    %c1_250 = arith.constant 1 : index
    %c1_251 = arith.constant 1 : index
    %c0_252 = arith.constant 0 : index
    %292 = vector.load %arg7[%c1_250, %c1_251, %c0_252] : memref<18x6x128xf32, #tpu.memory_space<vmem>>, vector<16x4x128xf32>
    tpu.vector_store %arg7[%c1_250, %c1_251, %c0_252], %291 {strides = array<i32>} : memref<18x6x128xf32, #tpu.memory_space<vmem>>, vector<16x4x128xf32>,
    %c1_i32_253 = arith.constant 1 : i32
    %c2_i32_254 = arith.constant 2 : i32
    %293 = arith.muli %c2_i32_254, %c1_i32_253 : i32
    %c1_i32_255 = arith.constant 1 : i32
    %294 = arith.addi %c1_i32_255, %293 : i32
    %cst_256 = arith.constant 0.000000e+00 : f32
    %295 = vector.broadcast %cst_256 : f32 to vector<64x128xf32>
    %c0_257 = arith.constant 0 : index
    %c0_258 = arith.constant 0 : index
    %c0_259 = arith.constant 0 : index
    %296 = vector.load %arg7[%c0_257, %c0_258, %c0_259] : memref<18x6x128xf32, #tpu.memory_space<vmem>>, vector<16x4x128xf32>
    %297 = vector.shape_cast %296 : vector<16x4x128xf32> to vector<64x128xf32>
    %c9_i32_260 = arith.constant 9 : i32
    %298 = arith.muli %294, %c9_i32_260 : i32
    %c0_i32_261 = arith.constant 0 : i32
    %299 = arith.addi %298, %c0_i32_261 : i32
    %c0_i32_262 = arith.constant 0 : i32
    %300 = arith.addi %299, %c0_i32_262 : i32
    %301 = arith.index_cast %300 : i32 to index
    %c0_263 = arith.constant 0 : index
    %c0_264 = arith.constant 0 : index
    %302 = vector.load %arg2[%301, %c0_263, %c0_264] : memref<63x128x128xf32, #tpu.memory_space<vmem>>, vector<1x128x128xf32>
    %303 = vector.shape_cast %302 : vector<1x128x128xf32> to vector<128x128xf32>
    %cst_265 = arith.constant dense<0.000000e+00> : vector<64x128xf32>
    %304 = tpu.matmul %297, %303, %cst_265 {dimension_numbers = #tpu.dot_dimension_numbers<[1], [0], [0], [1], [0, 0, 1, 1], [], []>} : vector<64x128xf32>, vector<128x128xf32>, vector<64x128xf32> -> vector<64x128xf32>
    %305 = arith.addf %295, %304 : vector<64x128xf32>
    %c0_266 = arith.constant 0 : index
    %c1_267 = arith.constant 1 : index
    %c0_268 = arith.constant 0 : index
    %306 = vector.load %arg7[%c0_266, %c1_267, %c0_268] : memref<18x6x128xf32, #tpu.memory_space<vmem>>, vector<16x4x128xf32>
    %307 = vector.shape_cast %306 : vector<16x4x128xf32> to vector<64x128xf32>
    %c9_i32_269 = arith.constant 9 : i32
    %308 = arith.muli %294, %c9_i32_269 : i32
    %c0_i32_270 = arith.constant 0 : i32
    %309 = arith.addi %308, %c0_i32_270 : i32
    %c1_i32_271 = arith.constant 1 : i32
    %310 = arith.addi %309, %c1_i32_271 : i32
    %311 = arith.index_cast %310 : i32 to index
    %c0_272 = arith.constant 0 : index
    %c0_273 = arith.constant 0 : index
    %312 = vector.load %arg2[%311, %c0_272, %c0_273] : memref<63x128x128xf32, #tpu.memory_space<vmem>>, vector<1x128x128xf32>
    %313 = vector.shape_cast %312 : vector<1x128x128xf32> to vector<128x128xf32>
    %cst_274 = arith.constant dense<0.000000e+00> : vector<64x128xf32>
    %314 = tpu.matmul %307, %313, %cst_274 {dimension_numbers = #tpu.dot_dimension_numbers<[1], [0], [0], [1], [0, 0, 1, 1], [], []>} : vector<64x128xf32>, vector<128x128xf32>, vector<64x128xf32> -> vector<64x128xf32>
    %315 = arith.addf %305, %314 : vector<64x128xf32>
    %c0_275 = arith.constant 0 : index
    %c2_276 = arith.constant 2 : index
    %c0_277 = arith.constant 0 : index
    %316 = vector.load %arg7[%c0_275, %c2_276, %c0_277] : memref<18x6x128xf32, #tpu.memory_space<vmem>>, vector<16x4x128xf32>
    %317 = vector.shape_cast %316 : vector<16x4x128xf32> to vector<64x128xf32>
    %c9_i32_278 = arith.constant 9 : i32
    %318 = arith.muli %294, %c9_i32_278 : i32
    %c0_i32_279 = arith.constant 0 : i32
    %319 = arith.addi %318, %c0_i32_279 : i32
    %c2_i32_280 = arith.constant 2 : i32
    %320 = arith.addi %319, %c2_i32_280 : i32
    %321 = arith.index_cast %320 : i32 to index
    %c0_281 = arith.constant 0 : index
    %c0_282 = arith.constant 0 : index
    %322 = vector.load %arg2[%321, %c0_281, %c0_282] : memref<63x128x128xf32, #tpu.memory_space<vmem>>, vector<1x128x128xf32>
    %323 = vector.shape_cast %322 : vector<1x128x128xf32> to vector<128x128xf32>
    %cst_283 = arith.constant dense<0.000000e+00> : vector<64x128xf32>
    %324 = tpu.matmul %317, %323, %cst_283 {dimension_numbers = #tpu.dot_dimension_numbers<[1], [0], [0], [1], [0, 0, 1, 1], [], []>} : vector<64x128xf32>, vector<128x128xf32>, vector<64x128xf32> -> vector<64x128xf32>
    %325 = arith.addf %315, %324 : vector<64x128xf32>
    %c1_284 = arith.constant 1 : index
    %c0_285 = arith.constant 0 : index
    %c0_286 = arith.constant 0 : index
    %326 = vector.load %arg7[%c1_284, %c0_285, %c0_286] : memref<18x6x128xf32, #tpu.memory_space<vmem>>, vector<16x4x128xf32>
    %327 = vector.shape_cast %326 : vector<16x4x128xf32> to vector<64x128xf32>
    %c9_i32_287 = arith.constant 9 : i32
    %328 = arith.muli %294, %c9_i32_287 : i32
    %c3_i32_288 = arith.constant 3 : i32
    %329 = arith.addi %328, %c3_i32_288 : i32
    %c0_i32_289 = arith.constant 0 : i32
    %330 = arith.addi %329, %c0_i32_289 : i32
    %331 = arith.index_cast %330 : i32 to index
    %c0_290 = arith.constant 0 : index
    %c0_291 = arith.constant 0 : index
    %332 = vector.load %arg2[%331, %c0_290, %c0_291] : memref<63x128x128xf32, #tpu.memory_space<vmem>>, vector<1x128x128xf32>
    %333 = vector.shape_cast %332 : vector<1x128x128xf32> to vector<128x128xf32>
    %cst_292 = arith.constant dense<0.000000e+00> : vector<64x128xf32>
    %334 = tpu.matmul %327, %333, %cst_292 {dimension_numbers = #tpu.dot_dimension_numbers<[1], [0], [0], [1], [0, 0, 1, 1], [], []>} : vector<64x128xf32>, vector<128x128xf32>, vector<64x128xf32> -> vector<64x128xf32>
    %335 = arith.addf %325, %334 : vector<64x128xf32>
    %c1_293 = arith.constant 1 : index
    %c1_294 = arith.constant 1 : index
    %c0_295 = arith.constant 0 : index
    %336 = vector.load %arg7[%c1_293, %c1_294, %c0_295] : memref<18x6x128xf32, #tpu.memory_space<vmem>>, vector<16x4x128xf32>
    %337 = vector.shape_cast %336 : vector<16x4x128xf32> to vector<64x128xf32>
    %c9_i32_296 = arith.constant 9 : i32
    %338 = arith.muli %294, %c9_i32_296 : i32
    %c3_i32_297 = arith.constant 3 : i32
    %339 = arith.addi %338, %c3_i32_297 : i32
    %c1_i32_298 = arith.constant 1 : i32
    %340 = arith.addi %339, %c1_i32_298 : i32
    %341 = arith.index_cast %340 : i32 to index
    %c0_299 = arith.constant 0 : index
    %c0_300 = arith.constant 0 : index
    %342 = vector.load %arg2[%341, %c0_299, %c0_300] : memref<63x128x128xf32, #tpu.memory_space<vmem>>, vector<1x128x128xf32>
    %343 = vector.shape_cast %342 : vector<1x128x128xf32> to vector<128x128xf32>
    %cst_301 = arith.constant dense<0.000000e+00> : vector<64x128xf32>
    %344 = tpu.matmul %337, %343, %cst_301 {dimension_numbers = #tpu.dot_dimension_numbers<[1], [0], [0], [1], [0, 0, 1, 1], [], []>} : vector<64x128xf32>, vector<128x128xf32>, vector<64x128xf32> -> vector<64x128xf32>
    %345 = arith.addf %335, %344 : vector<64x128xf32>
    %c1_302 = arith.constant 1 : index
    %c2_303 = arith.constant 2 : index
    %c0_304 = arith.constant 0 : index
    %346 = vector.load %arg7[%c1_302, %c2_303, %c0_304] : memref<18x6x128xf32, #tpu.memory_space<vmem>>, vector<16x4x128xf32>
    %347 = vector.shape_cast %346 : vector<16x4x128xf32> to vector<64x128xf32>
    %c9_i32_305 = arith.constant 9 : i32
    %348 = arith.muli %294, %c9_i32_305 : i32
    %c3_i32_306 = arith.constant 3 : i32
    %349 = arith.addi %348, %c3_i32_306 : i32
    %c2_i32_307 = arith.constant 2 : i32
    %350 = arith.addi %349, %c2_i32_307 : i32
    %351 = arith.index_cast %350 : i32 to index
    %c0_308 = arith.constant 0 : index
    %c0_309 = arith.constant 0 : index
    %352 = vector.load %arg2[%351, %c0_308, %c0_309] : memref<63x128x128xf32, #tpu.memory_space<vmem>>, vector<1x128x128xf32>
    %353 = vector.shape_cast %352 : vector<1x128x128xf32> to vector<128x128xf32>
    %cst_310 = arith.constant dense<0.000000e+00> : vector<64x128xf32>
    %354 = tpu.matmul %347, %353, %cst_310 {dimension_numbers = #tpu.dot_dimension_numbers<[1], [0], [0], [1], [0, 0, 1, 1], [], []>} : vector<64x128xf32>, vector<128x128xf32>, vector<64x128xf32> -> vector<64x128xf32>
    %355 = arith.addf %345, %354 : vector<64x128xf32>
    %c2_311 = arith.constant 2 : index
    %c0_312 = arith.constant 0 : index
    %c0_313 = arith.constant 0 : index
    %356 = vector.load %arg7[%c2_311, %c0_312, %c0_313] : memref<18x6x128xf32, #tpu.memory_space<vmem>>, vector<16x4x128xf32>
    %357 = vector.shape_cast %356 : vector<16x4x128xf32> to vector<64x128xf32>
    %c9_i32_314 = arith.constant 9 : i32
    %358 = arith.muli %294, %c9_i32_314 : i32
    %c6_i32_315 = arith.constant 6 : i32
    %359 = arith.addi %358, %c6_i32_315 : i32
    %c0_i32_316 = arith.constant 0 : i32
    %360 = arith.addi %359, %c0_i32_316 : i32
    %361 = arith.index_cast %360 : i32 to index
    %c0_317 = arith.constant 0 : index
    %c0_318 = arith.constant 0 : index
    %362 = vector.load %arg2[%361, %c0_317, %c0_318] : memref<63x128x128xf32, #tpu.memory_space<vmem>>, vector<1x128x128xf32>
    %363 = vector.shape_cast %362 : vector<1x128x128xf32> to vector<128x128xf32>
    %cst_319 = arith.constant dense<0.000000e+00> : vector<64x128xf32>
    %364 = tpu.matmul %357, %363, %cst_319 {dimension_numbers = #tpu.dot_dimension_numbers<[1], [0], [0], [1], [0, 0, 1, 1], [], []>} : vector<64x128xf32>, vector<128x128xf32>, vector<64x128xf32> -> vector<64x128xf32>
    %365 = arith.addf %355, %364 : vector<64x128xf32>
    %c2_320 = arith.constant 2 : index
    %c1_321 = arith.constant 1 : index
    %c0_322 = arith.constant 0 : index
    %366 = vector.load %arg7[%c2_320, %c1_321, %c0_322] : memref<18x6x128xf32, #tpu.memory_space<vmem>>, vector<16x4x128xf32>
    %367 = vector.shape_cast %366 : vector<16x4x128xf32> to vector<64x128xf32>
    %c9_i32_323 = arith.constant 9 : i32
    %368 = arith.muli %294, %c9_i32_323 : i32
    %c6_i32_324 = arith.constant 6 : i32
    %369 = arith.addi %368, %c6_i32_324 : i32
    %c1_i32_325 = arith.constant 1 : i32
    %370 = arith.addi %369, %c1_i32_325 : i32
    %371 = arith.index_cast %370 : i32 to index
    %c0_326 = arith.constant 0 : index
    %c0_327 = arith.constant 0 : index
    %372 = vector.load %arg2[%371, %c0_326, %c0_327] : memref<63x128x128xf32, #tpu.memory_space<vmem>>, vector<1x128x128xf32>
    %373 = vector.shape_cast %372 : vector<1x128x128xf32> to vector<128x128xf32>
    %cst_328 = arith.constant dense<0.000000e+00> : vector<64x128xf32>
    %374 = tpu.matmul %367, %373, %cst_328 {dimension_numbers = #tpu.dot_dimension_numbers<[1], [0], [0], [1], [0, 0, 1, 1], [], []>} : vector<64x128xf32>, vector<128x128xf32>, vector<64x128xf32> -> vector<64x128xf32>
    %375 = arith.addf %365, %374 : vector<64x128xf32>
    %c2_329 = arith.constant 2 : index
    %c2_330 = arith.constant 2 : index
    %c0_331 = arith.constant 0 : index
    %376 = vector.load %arg7[%c2_329, %c2_330, %c0_331] : memref<18x6x128xf32, #tpu.memory_space<vmem>>, vector<16x4x128xf32>
    %377 = vector.shape_cast %376 : vector<16x4x128xf32> to vector<64x128xf32>
    %c9_i32_332 = arith.constant 9 : i32
    %378 = arith.muli %294, %c9_i32_332 : i32
    %c6_i32_333 = arith.constant 6 : i32
    %379 = arith.addi %378, %c6_i32_333 : i32
    %c2_i32_334 = arith.constant 2 : i32
    %380 = arith.addi %379, %c2_i32_334 : i32
    %381 = arith.index_cast %380 : i32 to index
    %c0_335 = arith.constant 0 : index
    %c0_336 = arith.constant 0 : index
    %382 = vector.load %arg2[%381, %c0_335, %c0_336] : memref<63x128x128xf32, #tpu.memory_space<vmem>>, vector<1x128x128xf32>
    %383 = vector.shape_cast %382 : vector<1x128x128xf32> to vector<128x128xf32>
    %cst_337 = arith.constant dense<0.000000e+00> : vector<64x128xf32>
    %384 = tpu.matmul %377, %383, %cst_337 {dimension_numbers = #tpu.dot_dimension_numbers<[1], [0], [0], [1], [0, 0, 1, 1], [], []>} : vector<64x128xf32>, vector<128x128xf32>, vector<64x128xf32> -> vector<64x128xf32>
    %385 = arith.addf %375, %384 : vector<64x128xf32>
    %386 = arith.index_cast %294 : i32 to index
    %c0_338 = arith.constant 0 : index
    %c0_339 = arith.constant 0 : index
    %387 = vector.load %arg3[%386, %c0_338, %c0_339] : memref<7x1x128xf32, #tpu.memory_space<vmem>>, vector<1x1x128xf32>
    %388 = vector.shape_cast %387 : vector<1x1x128xf32> to vector<1x128xf32>
    %389 = vector.broadcast %388 : vector<1x128xf32> to vector<64x128xf32>
    %390 = arith.mulf %385, %389 : vector<64x128xf32>
    %391 = arith.index_cast %294 : i32 to index
    %c0_340 = arith.constant 0 : index
    %c0_341 = arith.constant 0 : index
    %392 = vector.load %arg4[%391, %c0_340, %c0_341] : memref<7x1x128xf32, #tpu.memory_space<vmem>>, vector<1x1x128xf32>
    %393 = vector.shape_cast %392 : vector<1x1x128xf32> to vector<1x128xf32>
    %394 = vector.broadcast %393 : vector<1x128xf32> to vector<64x128xf32>
    %395 = arith.addf %390, %394 : vector<64x128xf32>
    %cst_342 = arith.constant 0.000000e+00 : f32
    %396 = vector.broadcast %cst_342 : f32 to vector<64x128xf32>
    %397 = arith.cmpf oge, %395, %396 : vector<64x128xf32>
    %398 = arith.index_cast %294 : i32 to index
    %c0_343 = arith.constant 0 : index
    %c0_344 = arith.constant 0 : index
    %399 = vector.load %arg5[%398, %c0_343, %c0_344] : memref<7x1x128xf32, #tpu.memory_space<vmem>>, vector<1x1x128xf32>
    %400 = vector.shape_cast %399 : vector<1x1x128xf32> to vector<1x128xf32>
    %401 = vector.broadcast %400 : vector<1x128xf32> to vector<64x128xf32>
    %402 = arith.mulf %395, %401 : vector<64x128xf32>
    %403 = arith.select %397, %395, %402 : vector<64x128xi1>, vector<64x128xf32>
    %404 = vector.shape_cast %403 : vector<64x128xf32> to vector<16x4x128xf32>
    %c1_345 = arith.constant 1 : index
    %c1_346 = arith.constant 1 : index
    %c0_347 = arith.constant 0 : index
    %405 = vector.load %arg7[%c1_345, %c1_346, %c0_347] : memref<18x6x128xf32, #tpu.memory_space<vmem>>, vector<16x4x128xf32>
    tpu.vector_store %arg7[%c1_345, %c1_346, %c0_347], %404 {strides = array<i32>} : memref<18x6x128xf32, #tpu.memory_space<vmem>>, vector<16x4x128xf32>,
    %c1_i32_348 = arith.constant 1 : i32
    %406 = arith.addi %294, %c1_i32_348 : i32
    %cst_349 = arith.constant 0.000000e+00 : f32
    %407 = vector.broadcast %cst_349 : f32 to vector<64x128xf32>
    %c0_350 = arith.constant 0 : index
    %c0_351 = arith.constant 0 : index
    %c0_352 = arith.constant 0 : index
    %408 = vector.load %arg7[%c0_350, %c0_351, %c0_352] : memref<18x6x128xf32, #tpu.memory_space<vmem>>, vector<16x4x128xf32>
    %409 = vector.shape_cast %408 : vector<16x4x128xf32> to vector<64x128xf32>
    %c9_i32_353 = arith.constant 9 : i32
    %410 = arith.muli %406, %c9_i32_353 : i32
    %c0_i32_354 = arith.constant 0 : i32
    %411 = arith.addi %410, %c0_i32_354 : i32
    %c0_i32_355 = arith.constant 0 : i32
    %412 = arith.addi %411, %c0_i32_355 : i32
    %413 = arith.index_cast %412 : i32 to index
    %c0_356 = arith.constant 0 : index
    %c0_357 = arith.constant 0 : index
    %414 = vector.load %arg2[%413, %c0_356, %c0_357] : memref<63x128x128xf32, #tpu.memory_space<vmem>>, vector<1x128x128xf32>
    %415 = vector.shape_cast %414 : vector<1x128x128xf32> to vector<128x128xf32>
    %cst_358 = arith.constant dense<0.000000e+00> : vector<64x128xf32>
    %416 = tpu.matmul %409, %415, %cst_358 {dimension_numbers = #tpu.dot_dimension_numbers<[1], [0], [0], [1], [0, 0, 1, 1], [], []>} : vector<64x128xf32>, vector<128x128xf32>, vector<64x128xf32> -> vector<64x128xf32>
    %417 = arith.addf %407, %416 : vector<64x128xf32>
    %c0_359 = arith.constant 0 : index
    %c1_360 = arith.constant 1 : index
    %c0_361 = arith.constant 0 : index
    %418 = vector.load %arg7[%c0_359, %c1_360, %c0_361] : memref<18x6x128xf32, #tpu.memory_space<vmem>>, vector<16x4x128xf32>
    %419 = vector.shape_cast %418 : vector<16x4x128xf32> to vector<64x128xf32>
    %c9_i32_362 = arith.constant 9 : i32
    %420 = arith.muli %406, %c9_i32_362 : i32
    %c0_i32_363 = arith.constant 0 : i32
    %421 = arith.addi %420, %c0_i32_363 : i32
    %c1_i32_364 = arith.constant 1 : i32
    %422 = arith.addi %421, %c1_i32_364 : i32
    %423 = arith.index_cast %422 : i32 to index
    %c0_365 = arith.constant 0 : index
    %c0_366 = arith.constant 0 : index
    %424 = vector.load %arg2[%423, %c0_365, %c0_366] : memref<63x128x128xf32, #tpu.memory_space<vmem>>, vector<1x128x128xf32>
    %425 = vector.shape_cast %424 : vector<1x128x128xf32> to vector<128x128xf32>
    %cst_367 = arith.constant dense<0.000000e+00> : vector<64x128xf32>
    %426 = tpu.matmul %419, %425, %cst_367 {dimension_numbers = #tpu.dot_dimension_numbers<[1], [0], [0], [1], [0, 0, 1, 1], [], []>} : vector<64x128xf32>, vector<128x128xf32>, vector<64x128xf32> -> vector<64x128xf32>
    %427 = arith.addf %417, %426 : vector<64x128xf32>
    %c0_368 = arith.constant 0 : index
    %c2_369 = arith.constant 2 : index
    %c0_370 = arith.constant 0 : index
    %428 = vector.load %arg7[%c0_368, %c2_369, %c0_370] : memref<18x6x128xf32, #tpu.memory_space<vmem>>, vector<16x4x128xf32>
    %429 = vector.shape_cast %428 : vector<16x4x128xf32> to vector<64x128xf32>
    %c9_i32_371 = arith.constant 9 : i32
    %430 = arith.muli %406, %c9_i32_371 : i32
    %c0_i32_372 = arith.constant 0 : i32
    %431 = arith.addi %430, %c0_i32_372 : i32
    %c2_i32_373 = arith.constant 2 : i32
    %432 = arith.addi %431, %c2_i32_373 : i32
    %433 = arith.index_cast %432 : i32 to index
    %c0_374 = arith.constant 0 : index
    %c0_375 = arith.constant 0 : index
    %434 = vector.load %arg2[%433, %c0_374, %c0_375] : memref<63x128x128xf32, #tpu.memory_space<vmem>>, vector<1x128x128xf32>
    %435 = vector.shape_cast %434 : vector<1x128x128xf32> to vector<128x128xf32>
    %cst_376 = arith.constant dense<0.000000e+00> : vector<64x128xf32>
    %436 = tpu.matmul %429, %435, %cst_376 {dimension_numbers = #tpu.dot_dimension_numbers<[1], [0], [0], [1], [0, 0, 1, 1], [], []>} : vector<64x128xf32>, vector<128x128xf32>, vector<64x128xf32> -> vector<64x128xf32>
    %437 = arith.addf %427, %436 : vector<64x128xf32>
    %c1_377 = arith.constant 1 : index
    %c0_378 = arith.constant 0 : index
    %c0_379 = arith.constant 0 : index
    %438 = vector.load %arg7[%c1_377, %c0_378, %c0_379] : memref<18x6x128xf32, #tpu.memory_space<vmem>>, vector<16x4x128xf32>
    %439 = vector.shape_cast %438 : vector<16x4x128xf32> to vector<64x128xf32>
    %c9_i32_380 = arith.constant 9 : i32
    %440 = arith.muli %406, %c9_i32_380 : i32
    %c3_i32_381 = arith.constant 3 : i32
    %441 = arith.addi %440, %c3_i32_381 : i32
    %c0_i32_382 = arith.constant 0 : i32
    %442 = arith.addi %441, %c0_i32_382 : i32
    %443 = arith.index_cast %442 : i32 to index
    %c0_383 = arith.constant 0 : index
    %c0_384 = arith.constant 0 : index
    %444 = vector.load %arg2[%443, %c0_383, %c0_384] : memref<63x128x128xf32, #tpu.memory_space<vmem>>, vector<1x128x128xf32>
    %445 = vector.shape_cast %444 : vector<1x128x128xf32> to vector<128x128xf32>
    %cst_385 = arith.constant dense<0.000000e+00> : vector<64x128xf32>
    %446 = tpu.matmul %439, %445, %cst_385 {dimension_numbers = #tpu.dot_dimension_numbers<[1], [0], [0], [1], [0, 0, 1, 1], [], []>} : vector<64x128xf32>, vector<128x128xf32>, vector<64x128xf32> -> vector<64x128xf32>
    %447 = arith.addf %437, %446 : vector<64x128xf32>
    %c1_386 = arith.constant 1 : index
    %c1_387 = arith.constant 1 : index
    %c0_388 = arith.constant 0 : index
    %448 = vector.load %arg7[%c1_386, %c1_387, %c0_388] : memref<18x6x128xf32, #tpu.memory_space<vmem>>, vector<16x4x128xf32>
    %449 = vector.shape_cast %448 : vector<16x4x128xf32> to vector<64x128xf32>
    %c9_i32_389 = arith.constant 9 : i32
    %450 = arith.muli %406, %c9_i32_389 : i32
    %c3_i32_390 = arith.constant 3 : i32
    %451 = arith.addi %450, %c3_i32_390 : i32
    %c1_i32_391 = arith.constant 1 : i32
    %452 = arith.addi %451, %c1_i32_391 : i32
    %453 = arith.index_cast %452 : i32 to index
    %c0_392 = arith.constant 0 : index
    %c0_393 = arith.constant 0 : index
    %454 = vector.load %arg2[%453, %c0_392, %c0_393] : memref<63x128x128xf32, #tpu.memory_space<vmem>>, vector<1x128x128xf32>
    %455 = vector.shape_cast %454 : vector<1x128x128xf32> to vector<128x128xf32>
    %cst_394 = arith.constant dense<0.000000e+00> : vector<64x128xf32>
    %456 = tpu.matmul %449, %455, %cst_394 {dimension_numbers = #tpu.dot_dimension_numbers<[1], [0], [0], [1], [0, 0, 1, 1], [], []>} : vector<64x128xf32>, vector<128x128xf32>, vector<64x128xf32> -> vector<64x128xf32>
    %457 = arith.addf %447, %456 : vector<64x128xf32>
    %c1_395 = arith.constant 1 : index
    %c2_396 = arith.constant 2 : index
    %c0_397 = arith.constant 0 : index
    %458 = vector.load %arg7[%c1_395, %c2_396, %c0_397] : memref<18x6x128xf32, #tpu.memory_space<vmem>>, vector<16x4x128xf32>
    %459 = vector.shape_cast %458 : vector<16x4x128xf32> to vector<64x128xf32>
    %c9_i32_398 = arith.constant 9 : i32
    %460 = arith.muli %406, %c9_i32_398 : i32
    %c3_i32_399 = arith.constant 3 : i32
    %461 = arith.addi %460, %c3_i32_399 : i32
    %c2_i32_400 = arith.constant 2 : i32
    %462 = arith.addi %461, %c2_i32_400 : i32
    %463 = arith.index_cast %462 : i32 to index
    %c0_401 = arith.constant 0 : index
    %c0_402 = arith.constant 0 : index
    %464 = vector.load %arg2[%463, %c0_401, %c0_402] : memref<63x128x128xf32, #tpu.memory_space<vmem>>, vector<1x128x128xf32>
    %465 = vector.shape_cast %464 : vector<1x128x128xf32> to vector<128x128xf32>
    %cst_403 = arith.constant dense<0.000000e+00> : vector<64x128xf32>
    %466 = tpu.matmul %459, %465, %cst_403 {dimension_numbers = #tpu.dot_dimension_numbers<[1], [0], [0], [1], [0, 0, 1, 1], [], []>} : vector<64x128xf32>, vector<128x128xf32>, vector<64x128xf32> -> vector<64x128xf32>
    %467 = arith.addf %457, %466 : vector<64x128xf32>
    %c2_404 = arith.constant 2 : index
    %c0_405 = arith.constant 0 : index
    %c0_406 = arith.constant 0 : index
    %468 = vector.load %arg7[%c2_404, %c0_405, %c0_406] : memref<18x6x128xf32, #tpu.memory_space<vmem>>, vector<16x4x128xf32>
    %469 = vector.shape_cast %468 : vector<16x4x128xf32> to vector<64x128xf32>
    %c9_i32_407 = arith.constant 9 : i32
    %470 = arith.muli %406, %c9_i32_407 : i32
    %c6_i32_408 = arith.constant 6 : i32
    %471 = arith.addi %470, %c6_i32_408 : i32
    %c0_i32_409 = arith.constant 0 : i32
    %472 = arith.addi %471, %c0_i32_409 : i32
    %473 = arith.index_cast %472 : i32 to index
    %c0_410 = arith.constant 0 : index
    %c0_411 = arith.constant 0 : index
    %474 = vector.load %arg2[%473, %c0_410, %c0_411] : memref<63x128x128xf32, #tpu.memory_space<vmem>>, vector<1x128x128xf32>
    %475 = vector.shape_cast %474 : vector<1x128x128xf32> to vector<128x128xf32>
    %cst_412 = arith.constant dense<0.000000e+00> : vector<64x128xf32>
    %476 = tpu.matmul %469, %475, %cst_412 {dimension_numbers = #tpu.dot_dimension_numbers<[1], [0], [0], [1], [0, 0, 1, 1], [], []>} : vector<64x128xf32>, vector<128x128xf32>, vector<64x128xf32> -> vector<64x128xf32>
    %477 = arith.addf %467, %476 : vector<64x128xf32>
    %c2_413 = arith.constant 2 : index
    %c1_414 = arith.constant 1 : index
    %c0_415 = arith.constant 0 : index
    %478 = vector.load %arg7[%c2_413, %c1_414, %c0_415] : memref<18x6x128xf32, #tpu.memory_space<vmem>>, vector<16x4x128xf32>
    %479 = vector.shape_cast %478 : vector<16x4x128xf32> to vector<64x128xf32>
    %c9_i32_416 = arith.constant 9 : i32
    %480 = arith.muli %406, %c9_i32_416 : i32
    %c6_i32_417 = arith.constant 6 : i32
    %481 = arith.addi %480, %c6_i32_417 : i32
    %c1_i32_418 = arith.constant 1 : i32
    %482 = arith.addi %481, %c1_i32_418 : i32
    %483 = arith.index_cast %482 : i32 to index
    %c0_419 = arith.constant 0 : index
    %c0_420 = arith.constant 0 : index
    %484 = vector.load %arg2[%483, %c0_419, %c0_420] : memref<63x128x128xf32, #tpu.memory_space<vmem>>, vector<1x128x128xf32>
    %485 = vector.shape_cast %484 : vector<1x128x128xf32> to vector<128x128xf32>
    %cst_421 = arith.constant dense<0.000000e+00> : vector<64x128xf32>
    %486 = tpu.matmul %479, %485, %cst_421 {dimension_numbers = #tpu.dot_dimension_numbers<[1], [0], [0], [1], [0, 0, 1, 1], [], []>} : vector<64x128xf32>, vector<128x128xf32>, vector<64x128xf32> -> vector<64x128xf32>
    %487 = arith.addf %477, %486 : vector<64x128xf32>
    %c2_422 = arith.constant 2 : index
    %c2_423 = arith.constant 2 : index
    %c0_424 = arith.constant 0 : index
    %488 = vector.load %arg7[%c2_422, %c2_423, %c0_424] : memref<18x6x128xf32, #tpu.memory_space<vmem>>, vector<16x4x128xf32>
    %489 = vector.shape_cast %488 : vector<16x4x128xf32> to vector<64x128xf32>
    %c9_i32_425 = arith.constant 9 : i32
    %490 = arith.muli %406, %c9_i32_425 : i32
    %c6_i32_426 = arith.constant 6 : i32
    %491 = arith.addi %490, %c6_i32_426 : i32
    %c2_i32_427 = arith.constant 2 : i32
    %492 = arith.addi %491, %c2_i32_427 : i32
    %493 = arith.index_cast %492 : i32 to index
    %c0_428 = arith.constant 0 : index
    %c0_429 = arith.constant 0 : index
    %494 = vector.load %arg2[%493, %c0_428, %c0_429] : memref<63x128x128xf32, #tpu.memory_space<vmem>>, vector<1x128x128xf32>
    %495 = vector.shape_cast %494 : vector<1x128x128xf32> to vector<128x128xf32>
    %cst_430 = arith.constant dense<0.000000e+00> : vector<64x128xf32>
    %496 = tpu.matmul %489, %495, %cst_430 {dimension_numbers = #tpu.dot_dimension_numbers<[1], [0], [0], [1], [0, 0, 1, 1], [], []>} : vector<64x128xf32>, vector<128x128xf32>, vector<64x128xf32> -> vector<64x128xf32>
    %497 = arith.addf %487, %496 : vector<64x128xf32>
    %498 = arith.index_cast %406 : i32 to index
    %c0_431 = arith.constant 0 : index
    %c0_432 = arith.constant 0 : index
    %499 = vector.load %arg3[%498, %c0_431, %c0_432] : memref<7x1x128xf32, #tpu.memory_space<vmem>>, vector<1x1x128xf32>
    %500 = vector.shape_cast %499 : vector<1x1x128xf32> to vector<1x128xf32>
    %501 = vector.broadcast %500 : vector<1x128xf32> to vector<64x128xf32>
    %502 = arith.mulf %497, %501 : vector<64x128xf32>
    %503 = arith.index_cast %406 : i32 to index
    %c0_433 = arith.constant 0 : index
    %c0_434 = arith.constant 0 : index
    %504 = vector.load %arg4[%503, %c0_433, %c0_434] : memref<7x1x128xf32, #tpu.memory_space<vmem>>, vector<1x1x128xf32>
    %505 = vector.shape_cast %504 : vector<1x1x128xf32> to vector<1x128xf32>
    %506 = vector.broadcast %505 : vector<1x128xf32> to vector<64x128xf32>
    %507 = arith.addf %502, %506 : vector<64x128xf32>
    %508 = arith.addf %507, %290 : vector<64x128xf32>
    %509 = vector.shape_cast %508 : vector<64x128xf32> to vector<16x4x128xf32>
    %c1_435 = arith.constant 1 : index
    %c1_436 = arith.constant 1 : index
    %c0_437 = arith.constant 0 : index
    %510 = vector.load %arg7[%c1_435, %c1_436, %c0_437] : memref<18x6x128xf32, #tpu.memory_space<vmem>>, vector<16x4x128xf32>
    tpu.vector_store %arg7[%c1_435, %c1_436, %c0_437], %509 {strides = array<i32>} : memref<18x6x128xf32, #tpu.memory_space<vmem>>, vector<16x4x128xf32>,
    %c2_i32_438 = arith.constant 2 : i32
    %cst_439 = arith.constant 0.000000e+00 : f32
    %511 = vector.broadcast %cst_439 : f32 to vector<64x128xf32>
    %c0_440 = arith.constant 0 : index
    %c0_441 = arith.constant 0 : index
    %c0_442 = arith.constant 0 : index
    %512 = vector.load %arg7[%c0_440, %c0_441, %c0_442] : memref<18x6x128xf32, #tpu.memory_space<vmem>>, vector<16x4x128xf32>
    %513 = vector.shape_cast %512 : vector<16x4x128xf32> to vector<64x128xf32>
    %c45 = arith.constant 45 : index
    %c0_443 = arith.constant 0 : index
    %c0_444 = arith.constant 0 : index
    %514 = vector.load %arg2[%c45, %c0_443, %c0_444] : memref<63x128x128xf32, #tpu.memory_space<vmem>>, vector<1x128x128xf32>
    %515 = vector.shape_cast %514 : vector<1x128x128xf32> to vector<128x128xf32>
    %cst_445 = arith.constant dense<0.000000e+00> : vector<64x128xf32>
    %516 = tpu.matmul %513, %515, %cst_445 {dimension_numbers = #tpu.dot_dimension_numbers<[1], [0], [0], [1], [0, 0, 1, 1], [], []>} : vector<64x128xf32>, vector<128x128xf32>, vector<64x128xf32> -> vector<64x128xf32>
    %517 = arith.addf %511, %516 : vector<64x128xf32>
    %c0_446 = arith.constant 0 : index
    %c1_447 = arith.constant 1 : index
    %c0_448 = arith.constant 0 : index
    %518 = vector.load %arg7[%c0_446, %c1_447, %c0_448] : memref<18x6x128xf32, #tpu.memory_space<vmem>>, vector<16x4x128xf32>
    %519 = vector.shape_cast %518 : vector<16x4x128xf32> to vector<64x128xf32>
    %c46 = arith.constant 46 : index
    %c0_449 = arith.constant 0 : index
    %c0_450 = arith.constant 0 : index
    %520 = vector.load %arg2[%c46, %c0_449, %c0_450] : memref<63x128x128xf32, #tpu.memory_space<vmem>>, vector<1x128x128xf32>
    %521 = vector.shape_cast %520 : vector<1x128x128xf32> to vector<128x128xf32>
    %cst_451 = arith.constant dense<0.000000e+00> : vector<64x128xf32>
    %522 = tpu.matmul %519, %521, %cst_451 {dimension_numbers = #tpu.dot_dimension_numbers<[1], [0], [0], [1], [0, 0, 1, 1], [], []>} : vector<64x128xf32>, vector<128x128xf32>, vector<64x128xf32> -> vector<64x128xf32>
    %523 = arith.addf %517, %522 : vector<64x128xf32>
    %c0_452 = arith.constant 0 : index
    %c2_453 = arith.constant 2 : index
    %c0_454 = arith.constant 0 : index
    %524 = vector.load %arg7[%c0_452, %c2_453, %c0_454] : memref<18x6x128xf32, #tpu.memory_space<vmem>>, vector<16x4x128xf32>
    %525 = vector.shape_cast %524 : vector<16x4x128xf32> to vector<64x128xf32>
    %c47 = arith.constant 47 : index
    %c0_455 = arith.constant 0 : index
    %c0_456 = arith.constant 0 : index
    %526 = vector.load %arg2[%c47, %c0_455, %c0_456] : memref<63x128x128xf32, #tpu.memory_space<vmem>>, vector<1x128x128xf32>
    %527 = vector.shape_cast %526 : vector<1x128x128xf32> to vector<128x128xf32>
    %cst_457 = arith.constant dense<0.000000e+00> : vector<64x128xf32>
    %528 = tpu.matmul %525, %527, %cst_457 {dimension_numbers = #tpu.dot_dimension_numbers<[1], [0], [0], [1], [0, 0, 1, 1], [], []>} : vector<64x128xf32>, vector<128x128xf32>, vector<64x128xf32> -> vector<64x128xf32>
    %529 = arith.addf %523, %528 : vector<64x128xf32>
    %c1_458 = arith.constant 1 : index
    %c0_459 = arith.constant 0 : index
    %c0_460 = arith.constant 0 : index
    %530 = vector.load %arg7[%c1_458, %c0_459, %c0_460] : memref<18x6x128xf32, #tpu.memory_space<vmem>>, vector<16x4x128xf32>
    %531 = vector.shape_cast %530 : vector<16x4x128xf32> to vector<64x128xf32>
    %c48 = arith.constant 48 : index
    %c0_461 = arith.constant 0 : index
    %c0_462 = arith.constant 0 : index
    %532 = vector.load %arg2[%c48, %c0_461, %c0_462] : memref<63x128x128xf32, #tpu.memory_space<vmem>>, vector<1x128x128xf32>
    %533 = vector.shape_cast %532 : vector<1x128x128xf32> to vector<128x128xf32>
    %cst_463 = arith.constant dense<0.000000e+00> : vector<64x128xf32>
    %534 = tpu.matmul %531, %533, %cst_463 {dimension_numbers = #tpu.dot_dimension_numbers<[1], [0], [0], [1], [0, 0, 1, 1], [], []>} : vector<64x128xf32>, vector<128x128xf32>, vector<64x128xf32> -> vector<64x128xf32>
    %535 = arith.addf %529, %534 : vector<64x128xf32>
    %c1_464 = arith.constant 1 : index
    %c1_465 = arith.constant 1 : index
    %c0_466 = arith.constant 0 : index
    %536 = vector.load %arg7[%c1_464, %c1_465, %c0_466] : memref<18x6x128xf32, #tpu.memory_space<vmem>>, vector<16x4x128xf32>
    %537 = vector.shape_cast %536 : vector<16x4x128xf32> to vector<64x128xf32>
    %c49 = arith.constant 49 : index
    %c0_467 = arith.constant 0 : index
    %c0_468 = arith.constant 0 : index
    %538 = vector.load %arg2[%c49, %c0_467, %c0_468] : memref<63x128x128xf32, #tpu.memory_space<vmem>>, vector<1x128x128xf32>
    %539 = vector.shape_cast %538 : vector<1x128x128xf32> to vector<128x128xf32>
    %cst_469 = arith.constant dense<0.000000e+00> : vector<64x128xf32>
    %540 = tpu.matmul %537, %539, %cst_469 {dimension_numbers = #tpu.dot_dimension_numbers<[1], [0], [0], [1], [0, 0, 1, 1], [], []>} : vector<64x128xf32>, vector<128x128xf32>, vector<64x128xf32> -> vector<64x128xf32>
    %541 = arith.addf %535, %540 : vector<64x128xf32>
    %c1_470 = arith.constant 1 : index
    %c2_471 = arith.constant 2 : index
    %c0_472 = arith.constant 0 : index
    %542 = vector.load %arg7[%c1_470, %c2_471, %c0_472] : memref<18x6x128xf32, #tpu.memory_space<vmem>>, vector<16x4x128xf32>
    %543 = vector.shape_cast %542 : vector<16x4x128xf32> to vector<64x128xf32>
    %c50 = arith.constant 50 : index
    %c0_473 = arith.constant 0 : index
    %c0_474 = arith.constant 0 : index
    %544 = vector.load %arg2[%c50, %c0_473, %c0_474] : memref<63x128x128xf32, #tpu.memory_space<vmem>>, vector<1x128x128xf32>
    %545 = vector.shape_cast %544 : vector<1x128x128xf32> to vector<128x128xf32>
    %cst_475 = arith.constant dense<0.000000e+00> : vector<64x128xf32>
    %546 = tpu.matmul %543, %545, %cst_475 {dimension_numbers = #tpu.dot_dimension_numbers<[1], [0], [0], [1], [0, 0, 1, 1], [], []>} : vector<64x128xf32>, vector<128x128xf32>, vector<64x128xf32> -> vector<64x128xf32>
    %547 = arith.addf %541, %546 : vector<64x128xf32>
    %c2_476 = arith.constant 2 : index
    %c0_477 = arith.constant 0 : index
    %c0_478 = arith.constant 0 : index
    %548 = vector.load %arg7[%c2_476, %c0_477, %c0_478] : memref<18x6x128xf32, #tpu.memory_space<vmem>>, vector<16x4x128xf32>
    %549 = vector.shape_cast %548 : vector<16x4x128xf32> to vector<64x128xf32>
    %c51 = arith.constant 51 : index
    %c0_479 = arith.constant 0 : index
    %c0_480 = arith.constant 0 : index
    %550 = vector.load %arg2[%c51, %c0_479, %c0_480] : memref<63x128x128xf32, #tpu.memory_space<vmem>>, vector<1x128x128xf32>
    %551 = vector.shape_cast %550 : vector<1x128x128xf32> to vector<128x128xf32>
    %cst_481 = arith.constant dense<0.000000e+00> : vector<64x128xf32>
    %552 = tpu.matmul %549, %551, %cst_481 {dimension_numbers = #tpu.dot_dimension_numbers<[1], [0], [0], [1], [0, 0, 1, 1], [], []>} : vector<64x128xf32>, vector<128x128xf32>, vector<64x128xf32> -> vector<64x128xf32>
    %553 = arith.addf %547, %552 : vector<64x128xf32>
    %c2_482 = arith.constant 2 : index
    %c1_483 = arith.constant 1 : index
    %c0_484 = arith.constant 0 : index
    %554 = vector.load %arg7[%c2_482, %c1_483, %c0_484] : memref<18x6x128xf32, #tpu.memory_space<vmem>>, vector<16x4x128xf32>
    %555 = vector.shape_cast %554 : vector<16x4x128xf32> to vector<64x128xf32>
    %c52 = arith.constant 52 : index
    %c0_485 = arith.constant 0 : index
    %c0_486 = arith.constant 0 : index
    %556 = vector.load %arg2[%c52, %c0_485, %c0_486] : memref<63x128x128xf32, #tpu.memory_space<vmem>>, vector<1x128x128xf32>
    %557 = vector.shape_cast %556 : vector<1x128x128xf32> to vector<128x128xf32>
    %cst_487 = arith.constant dense<0.000000e+00> : vector<64x128xf32>
    %558 = tpu.matmul %555, %557, %cst_487 {dimension_numbers = #tpu.dot_dimension_numbers<[1], [0], [0], [1], [0, 0, 1, 1], [], []>} : vector<64x128xf32>, vector<128x128xf32>, vector<64x128xf32> -> vector<64x128xf32>
    %559 = arith.addf %553, %558 : vector<64x128xf32>
    %c2_488 = arith.constant 2 : index
    %c2_489 = arith.constant 2 : index
    %c0_490 = arith.constant 0 : index
    %560 = vector.load %arg7[%c2_488, %c2_489, %c0_490] : memref<18x6x128xf32, #tpu.memory_space<vmem>>, vector<16x4x128xf32>
    %561 = vector.shape_cast %560 : vector<16x4x128xf32> to vector<64x128xf32>
    %c53 = arith.constant 53 : index
    %c0_491 = arith.constant 0 : index
    %c0_492 = arith.constant 0 : index
    %562 = vector.load %arg2[%c53, %c0_491, %c0_492] : memref<63x128x128xf32, #tpu.memory_space<vmem>>, vector<1x128x128xf32>
    %563 = vector.shape_cast %562 : vector<1x128x128xf32> to vector<128x128xf32>
    %cst_493 = arith.constant dense<0.000000e+00> : vector<64x128xf32>
    %564 = tpu.matmul %561, %563, %cst_493 {dimension_numbers = #tpu.dot_dimension_numbers<[1], [0], [0], [1], [0, 0, 1, 1], [], []>} : vector<64x128xf32>, vector<128x128xf32>, vector<64x128xf32> -> vector<64x128xf32>
    %565 = arith.addf %559, %564 : vector<64x128xf32>
    %c5_494 = arith.constant 5 : index
    %c0_495 = arith.constant 0 : index
    %c0_496 = arith.constant 0 : index
    %566 = vector.load %arg3[%c5_494, %c0_495, %c0_496] : memref<7x1x128xf32, #tpu.memory_space<vmem>>, vector<1x1x128xf32>
    %567 = vector.shape_cast %566 : vector<1x1x128xf32> to vector<1x128xf32>
    %568 = vector.broadcast %567 : vector<1x128xf32> to vector<64x128xf32>
    %569 = arith.mulf %565, %568 : vector<64x128xf32>
    %c5_497 = arith.constant 5 : index
    %c0_498 = arith.constant 0 : index
    %c0_499 = arith.constant 0 : index
    %570 = vector.load %arg4[%c5_497, %c0_498, %c0_499] : memref<7x1x128xf32, #tpu.memory_space<vmem>>, vector<1x1x128xf32>
    %571 = vector.shape_cast %570 : vector<1x1x128xf32> to vector<1x128xf32>
    %572 = vector.broadcast %571 : vector<1x128xf32> to vector<64x128xf32>
    %573 = arith.addf %569, %572 : vector<64x128xf32>
    %574 = arith.addf %573, %72 : vector<64x128xf32>
    %575 = vector.shape_cast %574 : vector<64x128xf32> to vector<16x4x128xf32>
    %c1_500 = arith.constant 1 : index
    %c1_501 = arith.constant 1 : index
    %c0_502 = arith.constant 0 : index
    %576 = vector.load %arg7[%c1_500, %c1_501, %c0_502] : memref<18x6x128xf32, #tpu.memory_space<vmem>>, vector<16x4x128xf32>
    tpu.vector_store %arg7[%c1_500, %c1_501, %c0_502], %575 {strides = array<i32>} : memref<18x6x128xf32, #tpu.memory_space<vmem>>, vector<16x4x128xf32>,
    %cst_503 = arith.constant 0.000000e+00 : f32
    %577 = vector.broadcast %cst_503 : f32 to vector<64x128xf32>
    %c0_504 = arith.constant 0 : index
    %c0_505 = arith.constant 0 : index
    %c0_506 = arith.constant 0 : index
    %578 = vector.load %arg7[%c0_504, %c0_505, %c0_506] : memref<18x6x128xf32, #tpu.memory_space<vmem>>, vector<16x4x128xf32>
    %579 = vector.shape_cast %578 : vector<16x4x128xf32> to vector<64x128xf32>
    %c54 = arith.constant 54 : index
    %c0_507 = arith.constant 0 : index
    %c0_508 = arith.constant 0 : index
    %580 = vector.load %arg2[%c54, %c0_507, %c0_508] : memref<63x128x128xf32, #tpu.memory_space<vmem>>, vector<1x128x128xf32>
    %581 = vector.shape_cast %580 : vector<1x128x128xf32> to vector<128x128xf32>
    %cst_509 = arith.constant dense<0.000000e+00> : vector<64x128xf32>
    %582 = tpu.matmul %579, %581, %cst_509 {dimension_numbers = #tpu.dot_dimension_numbers<[1], [0], [0], [1], [0, 0, 1, 1], [], []>} : vector<64x128xf32>, vector<128x128xf32>, vector<64x128xf32> -> vector<64x128xf32>
    %583 = arith.addf %577, %582 : vector<64x128xf32>
    %c0_510 = arith.constant 0 : index
    %c1_511 = arith.constant 1 : index
    %c0_512 = arith.constant 0 : index
    %584 = vector.load %arg7[%c0_510, %c1_511, %c0_512] : memref<18x6x128xf32, #tpu.memory_space<vmem>>, vector<16x4x128xf32>
    %585 = vector.shape_cast %584 : vector<16x4x128xf32> to vector<64x128xf32>
    %c55 = arith.constant 55 : index
    %c0_513 = arith.constant 0 : index
    %c0_514 = arith.constant 0 : index
    %586 = vector.load %arg2[%c55, %c0_513, %c0_514] : memref<63x128x128xf32, #tpu.memory_space<vmem>>, vector<1x128x128xf32>
    %587 = vector.shape_cast %586 : vector<1x128x128xf32> to vector<128x128xf32>
    %cst_515 = arith.constant dense<0.000000e+00> : vector<64x128xf32>
    %588 = tpu.matmul %585, %587, %cst_515 {dimension_numbers = #tpu.dot_dimension_numbers<[1], [0], [0], [1], [0, 0, 1, 1], [], []>} : vector<64x128xf32>, vector<128x128xf32>, vector<64x128xf32> -> vector<64x128xf32>
    %589 = arith.addf %583, %588 : vector<64x128xf32>
    %c0_516 = arith.constant 0 : index
    %c2_517 = arith.constant 2 : index
    %c0_518 = arith.constant 0 : index
    %590 = vector.load %arg7[%c0_516, %c2_517, %c0_518] : memref<18x6x128xf32, #tpu.memory_space<vmem>>, vector<16x4x128xf32>
    %591 = vector.shape_cast %590 : vector<16x4x128xf32> to vector<64x128xf32>
    %c56 = arith.constant 56 : index
    %c0_519 = arith.constant 0 : index
    %c0_520 = arith.constant 0 : index
    %592 = vector.load %arg2[%c56, %c0_519, %c0_520] : memref<63x128x128xf32, #tpu.memory_space<vmem>>, vector<1x128x128xf32>
    %593 = vector.shape_cast %592 : vector<1x128x128xf32> to vector<128x128xf32>
    %cst_521 = arith.constant dense<0.000000e+00> : vector<64x128xf32>
    %594 = tpu.matmul %591, %593, %cst_521 {dimension_numbers = #tpu.dot_dimension_numbers<[1], [0], [0], [1], [0, 0, 1, 1], [], []>} : vector<64x128xf32>, vector<128x128xf32>, vector<64x128xf32> -> vector<64x128xf32>
    %595 = arith.addf %589, %594 : vector<64x128xf32>
    %c1_522 = arith.constant 1 : index
    %c0_523 = arith.constant 0 : index
    %c0_524 = arith.constant 0 : index
    %596 = vector.load %arg7[%c1_522, %c0_523, %c0_524] : memref<18x6x128xf32, #tpu.memory_space<vmem>>, vector<16x4x128xf32>
    %597 = vector.shape_cast %596 : vector<16x4x128xf32> to vector<64x128xf32>
    %c57 = arith.constant 57 : index
    %c0_525 = arith.constant 0 : index
    %c0_526 = arith.constant 0 : index
    %598 = vector.load %arg2[%c57, %c0_525, %c0_526] : memref<63x128x128xf32, #tpu.memory_space<vmem>>, vector<1x128x128xf32>
    %599 = vector.shape_cast %598 : vector<1x128x128xf32> to vector<128x128xf32>
    %cst_527 = arith.constant dense<0.000000e+00> : vector<64x128xf32>
    %600 = tpu.matmul %597, %599, %cst_527 {dimension_numbers = #tpu.dot_dimension_numbers<[1], [0], [0], [1], [0, 0, 1, 1], [], []>} : vector<64x128xf32>, vector<128x128xf32>, vector<64x128xf32> -> vector<64x128xf32>
    %601 = arith.addf %595, %600 : vector<64x128xf32>
    %c1_528 = arith.constant 1 : index
    %c1_529 = arith.constant 1 : index
    %c0_530 = arith.constant 0 : index
    %602 = vector.load %arg7[%c1_528, %c1_529, %c0_530] : memref<18x6x128xf32, #tpu.memory_space<vmem>>, vector<16x4x128xf32>
    %603 = vector.shape_cast %602 : vector<16x4x128xf32> to vector<64x128xf32>
    %c58 = arith.constant 58 : index
    %c0_531 = arith.constant 0 : index
    %c0_532 = arith.constant 0 : index
    %604 = vector.load %arg2[%c58, %c0_531, %c0_532] : memref<63x128x128xf32, #tpu.memory_space<vmem>>, vector<1x128x128xf32>
    %605 = vector.shape_cast %604 : vector<1x128x128xf32> to vector<128x128xf32>
    %cst_533 = arith.constant dense<0.000000e+00> : vector<64x128xf32>
    %606 = tpu.matmul %603, %605, %cst_533 {dimension_numbers = #tpu.dot_dimension_numbers<[1], [0], [0], [1], [0, 0, 1, 1], [], []>} : vector<64x128xf32>, vector<128x128xf32>, vector<64x128xf32> -> vector<64x128xf32>
    %607 = arith.addf %601, %606 : vector<64x128xf32>
    %c1_534 = arith.constant 1 : index
    %c2_535 = arith.constant 2 : index
    %c0_536 = arith.constant 0 : index
    %608 = vector.load %arg7[%c1_534, %c2_535, %c0_536] : memref<18x6x128xf32, #tpu.memory_space<vmem>>, vector<16x4x128xf32>
    %609 = vector.shape_cast %608 : vector<16x4x128xf32> to vector<64x128xf32>
    %c59 = arith.constant 59 : index
    %c0_537 = arith.constant 0 : index
    %c0_538 = arith.constant 0 : index
    %610 = vector.load %arg2[%c59, %c0_537, %c0_538] : memref<63x128x128xf32, #tpu.memory_space<vmem>>, vector<1x128x128xf32>
    %611 = vector.shape_cast %610 : vector<1x128x128xf32> to vector<128x128xf32>
    %cst_539 = arith.constant dense<0.000000e+00> : vector<64x128xf32>
    %612 = tpu.matmul %609, %611, %cst_539 {dimension_numbers = #tpu.dot_dimension_numbers<[1], [0], [0], [1], [0, 0, 1, 1], [], []>} : vector<64x128xf32>, vector<128x128xf32>, vector<64x128xf32> -> vector<64x128xf32>
    %613 = arith.addf %607, %612 : vector<64x128xf32>
    %c2_540 = arith.constant 2 : index
    %c0_541 = arith.constant 0 : index
    %c0_542 = arith.constant 0 : index
    %614 = vector.load %arg7[%c2_540, %c0_541, %c0_542] : memref<18x6x128xf32, #tpu.memory_space<vmem>>, vector<16x4x128xf32>
    %615 = vector.shape_cast %614 : vector<16x4x128xf32> to vector<64x128xf32>
    %c60 = arith.constant 60 : index
    %c0_543 = arith.constant 0 : index
    %c0_544 = arith.constant 0 : index
    %616 = vector.load %arg2[%c60, %c0_543, %c0_544] : memref<63x128x128xf32, #tpu.memory_space<vmem>>, vector<1x128x128xf32>
    %617 = vector.shape_cast %616 : vector<1x128x128xf32> to vector<128x128xf32>
    %cst_545 = arith.constant dense<0.000000e+00> : vector<64x128xf32>
    %618 = tpu.matmul %615, %617, %cst_545 {dimension_numbers = #tpu.dot_dimension_numbers<[1], [0], [0], [1], [0, 0, 1, 1], [], []>} : vector<64x128xf32>, vector<128x128xf32>, vector<64x128xf32> -> vector<64x128xf32>
    %619 = arith.addf %613, %618 : vector<64x128xf32>
    %c2_546 = arith.constant 2 : index
    %c1_547 = arith.constant 1 : index
    %c0_548 = arith.constant 0 : index
    %620 = vector.load %arg7[%c2_546, %c1_547, %c0_548] : memref<18x6x128xf32, #tpu.memory_space<vmem>>, vector<16x4x128xf32>
    %621 = vector.shape_cast %620 : vector<16x4x128xf32> to vector<64x128xf32>
    %c61 = arith.constant 61 : index
    %c0_549 = arith.constant 0 : index
    %c0_550 = arith.constant 0 : index
    %622 = vector.load %arg2[%c61, %c0_549, %c0_550] : memref<63x128x128xf32, #tpu.memory_space<vmem>>, vector<1x128x128xf32>
    %623 = vector.shape_cast %622 : vector<1x128x128xf32> to vector<128x128xf32>
    %cst_551 = arith.constant dense<0.000000e+00> : vector<64x128xf32>
    %624 = tpu.matmul %621, %623, %cst_551 {dimension_numbers = #tpu.dot_dimension_numbers<[1], [0], [0], [1], [0, 0, 1, 1], [], []>} : vector<64x128xf32>, vector<128x128xf32>, vector<64x128xf32> -> vector<64x128xf32>
    %625 = arith.addf %619, %624 : vector<64x128xf32>
    %c2_552 = arith.constant 2 : index
    %c2_553 = arith.constant 2 : index
    %c0_554 = arith.constant 0 : index
    %626 = vector.load %arg7[%c2_552, %c2_553, %c0_554] : memref<18x6x128xf32, #tpu.memory_space<vmem>>, vector<16x4x128xf32>
    %627 = vector.shape_cast %626 : vector<16x4x128xf32> to vector<64x128xf32>
    %c62 = arith.constant 62 : index
    %c0_555 = arith.constant 0 : index
    %c0_556 = arith.constant 0 : index
    %628 = vector.load %arg2[%c62, %c0_555, %c0_556] : memref<63x128x128xf32, #tpu.memory_space<vmem>>, vector<1x128x128xf32>
    %629 = vector.shape_cast %628 : vector<1x128x128xf32> to vector<128x128xf32>
    %cst_557 = arith.constant dense<0.000000e+00> : vector<64x128xf32>
    %630 = tpu.matmul %627, %629, %cst_557 {dimension_numbers = #tpu.dot_dimension_numbers<[1], [0], [0], [1], [0, 0, 1, 1], [], []>} : vector<64x128xf32>, vector<128x128xf32>, vector<64x128xf32> -> vector<64x128xf32>
    %631 = arith.addf %625, %630 : vector<64x128xf32>
    %c6_558 = arith.constant 6 : index
    %c0_559 = arith.constant 0 : index
    %c0_560 = arith.constant 0 : index
    %632 = vector.load %arg3[%c6_558, %c0_559, %c0_560] : memref<7x1x128xf32, #tpu.memory_space<vmem>>, vector<1x1x128xf32>
    %633 = vector.shape_cast %632 : vector<1x1x128xf32> to vector<1x128xf32>
    %634 = vector.broadcast %633 : vector<1x128xf32> to vector<64x128xf32>
    %635 = arith.mulf %631, %634 : vector<64x128xf32>
    %c6_561 = arith.constant 6 : index
    %c0_562 = arith.constant 0 : index
    %c0_563 = arith.constant 0 : index
    %636 = vector.load %arg4[%c6_561, %c0_562, %c0_563] : memref<7x1x128xf32, #tpu.memory_space<vmem>>, vector<1x1x128xf32>
    %637 = vector.shape_cast %636 : vector<1x1x128xf32> to vector<1x128xf32>
    %638 = vector.broadcast %637 : vector<1x128xf32> to vector<64x128xf32>
    %639 = arith.addf %635, %638 : vector<64x128xf32>
    %c0_564 = arith.constant 0 : index
    %c0_565 = arith.constant 0 : index
    %c0_566 = arith.constant 0 : index
    %640 = vector.load %arg6[%c0_564, %c0_565, %c0_566] : memref<1x64x128xf32, #tpu.memory_space<vmem>>, vector<1x64x128xf32>
    %641 = vector.shape_cast %640 : vector<1x64x128xf32> to vector<64x128xf32>
    %642 = vector.shape_cast %639 : vector<64x128xf32> to vector<1x64x128xf32>
    tpu.vector_store %arg6[%c0_564, %c0_565, %c0_566], %642 {strides = array<i32>} : memref<1x64x128xf32, #tpu.memory_space<vmem>>, vector<1x64x128xf32>,
    return
  }
  func.func @transform_0(%arg0: i32) -> (i32, i32, i32, i32) {
    %c0_i32 = arith.constant 0 : i32
    %c0_i32_0 = arith.constant 0 : i32
    %c0_i32_1 = arith.constant 0 : i32
    %c0_i32_2 = arith.constant 0 : i32
    return %arg0, %c0_i32, %c0_i32_0, %c0_i32_1 : i32, i32, i32, i32
  }
  func.func @transform_1(%arg0: i32) -> (i32, i32, i32) {
    %c0_i32 = arith.constant 0 : i32
    %c0_i32_0 = arith.constant 0 : i32
    %c0_i32_1 = arith.constant 0 : i32
    %c0_i32_2 = arith.constant 0 : i32
    return %c0_i32, %c0_i32_0, %c0_i32_1 : i32, i32, i32
  }
  func.func @transform_2(%arg0: i32) -> (i32, i32, i32) {
    %c0_i32 = arith.constant 0 : i32
    %c0_i32_0 = arith.constant 0 : i32
    %c0_i32_1 = arith.constant 0 : i32
    %c0_i32_2 = arith.constant 0 : i32
    return %c0_i32, %c0_i32_0, %c0_i32_1 : i32, i32, i32
  }
  func.func @transform_3(%arg0: i32) -> (i32, i32, i32) {
    %c0_i32 = arith.constant 0 : i32
    %c0_i32_0 = arith.constant 0 : i32
    %c0_i32_1 = arith.constant 0 : i32
    %c0_i32_2 = arith.constant 0 : i32
    return %c0_i32, %c0_i32_0, %c0_i32_1 : i32, i32, i32
  }
  func.func @transform_4(%arg0: i32) -> (i32, i32, i32) {
    %c0_i32 = arith.constant 0 : i32
    %c0_i32_0 = arith.constant 0 : i32
    %c0_i32_1 = arith.constant 0 : i32
    %c0_i32_2 = arith.constant 0 : i32
    return %c0_i32, %c0_i32_0, %c0_i32_1 : i32, i32, i32
  }
  func.func @transform_5(%arg0: i32) -> (i32, i32, i32) {
    %c0_i32 = arith.constant 0 : i32
    %c0_i32_0 = arith.constant 0 : i32
    %c0_i32_1 = arith.constant 0 : i32
    return %arg0, %c0_i32, %c0_i32_0 : i32, i32, i32
  }
}

</mosaic_0001>

<llo_original>
// kernel: tile.51
$region0: #{tile.51}
  #allocation0 [shape = 's32[1]{0}', space=sflag, size = 0x4, scoped, tag = 'scoped memory for tile.51']
  %s0 = inlined_call_operand.vmem [shape: f32[32], index: 0, kind: input, shape index: {}]
  %s1 = inlined_call_operand.vmem [shape: f32[4,32], index: 1, kind: output, shape index: {}]
  // Predicated region
  $region2: #{tile.51} parent=0 // pred_check
    _
  $region3: #{tile.51} parent=0 // pred_check_branch
    %3 = sbr.rel (0) target = $region5
  $region4: #{tile.51} parent=0 // pred_region
    _
  $region5: #{tile.51} parent=0 // pred_fallthru
    _
  %v4 = vld [vmem:[%s0] ss:$0 sm:$0xff]
  %5 = vst [vmem:[%s1] sm:$0xf] %v4

// kernel: tile.91
$region0: #{tile.91}
  %s0 = inlined_call_operand.vmem [shape: f32[4,32], index: 0, kind: input, shape index: {}]
  %s1 = inlined_call_operand.vmem [shape: f32[1,1,128], index: 1, kind: output, shape index: {}]
  $region1: #{tile.91} parent=0
    #allocation0 [shape = 'u8[4096]{0}', space=vmem, size = 0x1000, scoped, tag = 'scoped mem for output reshape']
    #allocation1 [shape = 'u8[4096]{0}', space=vmem, size = 0x1000, scoped, tag = 'scoped mem for input reshape']
    %s3 = ssub.s32 16, 1
    %v4 = vld [vmem:[%s0] sm:%s3]
    %5 = vst [vmem:[#allocation1] sm:%s3] %v4
    %v6 = vld [vmem:[#allocation1] sm:$0x1]
    %vm7 = vcmask 261120
    %8 = vst.msk [vmem:[#allocation0] sm:$0x1] %vm7, %v6
    %s9 = scalar_lea.vmem [#allocation1], 3
    %v10 = vld [vmem:[%s9] sm:$0x1]
    %11 = vrot.lane.b32.xlu0 %v10, 96
    %v12 = vpop.permute.xlu0 %11
    %vm13 = vcmask 1048320
    %14 = vst.msk [vmem:[#allocation0] sm:$0x1] %vm13, %v12
    %s15 = scalar_lea.vmem [#allocation1], 2
    %v16 = vld [vmem:[%s15] sm:$0x1]
    %17 = vrot.lane.b32.xlu0 %v16, 64
    %v18 = vpop.permute.xlu0 %17
    %vm19 = vcmask 785920
    %20 = vst.msk [vmem:[#allocation0] sm:$0x1] %vm19, %v18
    %s21 = scalar_lea.vmem [#allocation1], 1
    %v22 = vld [vmem:[%s21] sm:$0x1]
    %23 = vrot.lane.b32.xlu0 %v22, 32
    %v24 = vpop.permute.xlu0 %23
    %vm25 = vcmask 523520
    %26 = vst.msk [vmem:[#allocation0] sm:$0x1] %vm25, %v24
    %s28 = ssub.s32 2, 1
    %v29 = vld [vmem:[#allocation0] sm:%s28]
    %s31 = ssub.s32 2, 1
    %32 = vst [vmem:[%s1] sm:%s31] %v29

// kernel: srresnet_forward_pallas.1
$region0: #{srresnet_forward_pallas.1}
  #allocation0 [shape = 'u32[]', space=smem, size = 0x4, offset = 0x4, fixed_abs, tag = 'smem constant byte address 0x4 - core index']
  #allocation1 [shape = 'u32[72,128]{1,0:T(1,128)}', space=vmem, size = 0x9000, scoped, tag = 'internal scratch']
  #allocation2 [shape = 'f32[18,6,128]{2,1,0:T(8,128)}', space=vmem, size = 0x12000, scoped, tag = 'scratch operand']
  %s0 = inlined_call_operand.vmem [shape: f32[2,18,6,128], index: 0, kind: input, shape index: {}]
  %s1 = inlined_call_operand.vmem [shape: f32[63,128,128], index: 1, kind: input, shape index: {}]
  %s2 = inlined_call_operand.vmem [shape: f32[7,1,128], index: 2, kind: input, shape index: {}]
  %s3 = inlined_call_operand.vmem [shape: f32[7,1,128], index: 3, kind: input, shape index: {}]
  %s4 = inlined_call_operand.vmem [shape: f32[7,1,128], index: 4, kind: input, shape index: {}]
  %s5 = inlined_call_operand.vmem [shape: f32[2,64,128], index: 5, kind: output, shape index: {}]
  %s6 = sld [smem:[#allocation0]]
  $region53: #{srresnet_forward_pallas.1} parent=0
    _
  %s8 = ssub.s32 1, %s6
  %s9 = scalar_select 0, %s8, %s6
  loop: start=0, step=1, limit=4
  $region2: #{srresnet_forward_pallas.1} parent=0 // loop_pre_header
    _
  $region3: #{srresnet_forward_pallas.1} parent=0 // loop_header
    %s11 = sphi 0, %s15
    %p12 = scmp.ge.s32.totalorder %s11, 4
    %s21 = sphi 0, %s23
    %s24 = sphi 0, %s21
    %s25 = sphi 0, %s24
    %s41 = sphi 0, %s25
    %s45 = sphi 0, %s45
    %s47 = sphi 0, %s45
    %s48 = sphi 0, %s47
    %s62 = sphi 0, %s48
    %s66 = sphi 0, %s66
    %s68 = sphi 0, %s66
    %s69 = sphi 0, %s68
    %s83 = sphi 0, %s69
    %s87 = sphi 0, %s87
    %s89 = sphi 0, %s87
    %s90 = sphi 0, %s89
    %s104 = sphi 0, %s90
    %s108 = sphi 0, %s108
    %s110 = sphi 0, %s108
    %s111 = sphi 0, %s110
    %s125 = sphi 0, %s111
    %s131 = sphi 0, %s133
    %s134 = sphi 0, %s131
    %s135 = sphi 0, %s134
    %s151 = sphi 0, %s135
  $region4: #{srresnet_forward_pallas.1} parent=0 // loop_header_branch
    %14 = sbr.rel (%p12) target = $region8
  $region5: #{srresnet_forward_pallas.1} parent=0 // loop_body
    %s16 = ssub.s32 %s11, 1
    %s17 = ssub.s32 %s11, 2
    %s18 = sadd.s32 %s11, 1
    %s19 = ssub.s32 %s11, %s18
    %p20 = scmp.eq.s32.totalorder %s19, 0
    %s22 = sadd.s32 %s21, 1
    %s23 = scalar_select %p20, %s21, %s22
    %p26 = pneg %p20
    %p27 = scmp.eq.s32.totalorder %s11, 1
    %p28 = por %p26, %p27
    %p29 = scmp.ne.s32.totalorder %s21, %s24
    %p30 = scmp.eq.s32.totalorder %s11, 0
    %p31 = por %p29, %p30
    %p32 = scmp.ne.s32.totalorder %s21, %s24
    %p33 = scmp.eq.s32.totalorder %s16, 1
    %p34 = por %p32, %p33
    %p35 = scmp.ne.s32.totalorder %s24, %s25
    %p36 = scmp.eq.s32.totalorder %s16, 0
    %p37 = por %p35, %p36
    %p38 = scmp.ne.s32.totalorder %s24, %s25
    %p39 = scmp.eq.s32.totalorder %s17, 1
    %p40 = por %p38, %p39
    %p42 = scmp.ne.s32.totalorder %s25, %s41
    %p43 = scmp.eq.s32.totalorder %s17, 0
    %p44 = por %p42, %p43
    %s46 = sadd.s32 %s45, 1
    %p49 = scmp.eq.s32.totalorder %s11, 1
    %p50 = scmp.ne.s32.totalorder %s45, %s47
    %p51 = scmp.eq.s32.totalorder %s11, 0
    %p52 = por %p50, %p51
    %p53 = scmp.ne.s32.totalorder %s45, %s47
    %p54 = scmp.eq.s32.totalorder %s16, 1
    %p55 = por %p53, %p54
    %p56 = scmp.ne.s32.totalorder %s47, %s48
    %p57 = scmp.eq.s32.totalorder %s16, 0
    %p58 = por %p56, %p57
    %p59 = scmp.ne.s32.totalorder %s47, %s48
    %p60 = scmp.eq.s32.totalorder %s17, 1
    %p61 = por %p59, %p60
    %p63 = scmp.ne.s32.totalorder %s48, %s62
    %p64 = scmp.eq.s32.totalorder %s17, 0
    %p65 = por %p63, %p64
    %s67 = sadd.s32 %s66, 1
    %p70 = scmp.eq.s32.totalorder %s11, 1
    %p71 = scmp.ne.s32.totalorder %s66, %s68
    %p72 = scmp.eq.s32.totalorder %s11, 0
    %p73 = por %p71, %p72
    %p74 = scmp.ne.s32.totalorder %s66, %s68
    %p75 = scmp.eq.s32.totalorder %s16, 1
    %p76 = por %p74, %p75
    %p77 = scmp.ne.s32.totalorder %s68, %s69
    %p78 = scmp.eq.s32.totalorder %s16, 0
    %p79 = por %p77, %p78
    %p80 = scmp.ne.s32.totalorder %s68, %s69
    %p81 = scmp.eq.s32.totalorder %s17, 1
    %p82 = por %p80, %p81
    %p84 = scmp.ne.s32.totalorder %s69, %s83
    %p85 = scmp.eq.s32.totalorder %s17, 0
    %p86 = por %p84, %p85
    %s88 = sadd.s32 %s87, 1
    %p91 = scmp.eq.s32.totalorder %s11, 1
    %p92 = scmp.ne.s32.totalorder %s87, %s89
    %p93 = scmp.eq.s32.totalorder %s11, 0
    %p94 = por %p92, %p93
    %p95 = scmp.ne.s32.totalorder %s87, %s89
    %p96 = scmp.eq.s32.totalorder %s16, 1
    %p97 = por %p95, %p96
    %p98 = scmp.ne.s32.totalorder %s89, %s90
    %p99 = scmp.eq.s32.totalorder %s16, 0
    %p100 = por %p98, %p99
    %p101 = scmp.ne.s32.totalorder %s89, %s90
    %p102 = scmp.eq.s32.totalorder %s17, 1
    %p103 = por %p101, %p102
    %p105 = scmp.ne.s32.totalorder %s90, %s104
    %p106 = scmp.eq.s32.totalorder %s17, 0
    %p107 = por %p105, %p106
    %s109 = sadd.s32 %s108, 1
    %p112 = scmp.eq.s32.totalorder %s11, 1
    %p113 = scmp.ne.s32.totalorder %s108, %s110
    %p114 = scmp.eq.s32.totalorder %s11, 0
    %p115 = por %p113, %p114
    %p116 = scmp.ne.s32.totalorder %s108, %s110
    %p117 = scmp.eq.s32.totalorder %s16, 1
    %p118 = por %p116, %p117
    %p119 = scmp.ne.s32.totalorder %s110, %s111
    %p120 = scmp.eq.s32.totalorder %s16, 0
    %p121 = por %p119, %p120
    %p122 = scmp.ne.s32.totalorder %s110, %s111
    %p123 = scmp.eq.s32.totalorder %s17, 1
    %p124 = por %p122, %p123
    %p126 = scmp.ne.s32.totalorder %s111, %s125
    %p127 = scmp.eq.s32.totalorder %s17, 0
    %p128 = por %p126, %p127
    %s129 = ssub.s32 %s11, %s18
    %p130 = scmp.eq.s32.totalorder %s129, 0
    %s132 = sadd.s32 %s131, 1
    %s133 = scalar_select %p130, %s131, %s132
    %p136 = pneg %p130
    %p137 = scmp.eq.s32.totalorder %s11, 1
    %p138 = por %p136, %p137
    %p139 = scmp.ne.s32.totalorder %s131, %s134
    %p140 = scmp.eq.s32.totalorder %s11, 0
    %p141 = por %p139, %p140
    %p142 = scmp.ne.s32.totalorder %s131, %s134
    %p143 = scmp.eq.s32.totalorder %s16, 1
    %p144 = por %p142, %p143
    %p145 = scmp.ne.s32.totalorder %s134, %s135
    %p146 = scmp.eq.s32.totalorder %s16, 0
    %p147 = por %p145, %p146
    %p148 = scmp.ne.s32.totalorder %s134, %s135
    %p149 = scmp.eq.s32.totalorder %s17, 1
    %p150 = por %p148, %p149
    %p152 = scmp.ne.s32.totalorder %s135, %s151
    %p153 = scmp.eq.s32.totalorder %s17, 0
    %p154 = por %p152, %p153
    %p155 = scmp.le.s32.totalorder 1, %s11
    %p156 = scmp.lt.s32.totalorder %s11, 3
    %p157 = pnand %p155, %p156
    %p158 = pneg %p157
    // Predicated region
    $region9: #{srresnet_forward_pallas.1} parent=5 // pred_check
      _
    $region10: #{srresnet_forward_pallas.1} parent=5 // pred_check_branch
      %160 = sbr.rel (%p157) target = $region12
    $region11: #{srresnet_forward_pallas.1} parent=5 // pred_region
      %s161 = ssub.s32 %s11, 1
      // Predicated region
      $region13: #{srresnet_forward_pallas.1} parent=11 // pred_check
        %p162 = pneg %p58
      $region14: #{srresnet_forward_pallas.1} parent=11 // pred_check_branch
        %164 = sbr.rel (%p162) target = $region16
      $region15: #{srresnet_forward_pallas.1} parent=11 // pred_region
        _
      $region16: #{srresnet_forward_pallas.1} parent=11 // pred_fallthru
        _
      // Predicated region
      $region17: #{srresnet_forward_pallas.1} parent=11 // pred_check
        %p165 = pneg %p79
      $region18: #{srresnet_forward_pallas.1} parent=11 // pred_check_branch
        %167 = sbr.rel (%p165) target = $region20
      $region19: #{srresnet_forward_pallas.1} parent=11 // pred_region
        _
      $region20: #{srresnet_forward_pallas.1} parent=11 // pred_fallthru
        _
      // Predicated region
      $region21: #{srresnet_forward_pallas.1} parent=11 // pred_check
        %p168 = pneg %p100
      $region22: #{srresnet_forward_pallas.1} parent=11 // pred_check_branch
        %170 = sbr.rel (%p168) target = $region24
      $region23: #{srresnet_forward_pallas.1} parent=11 // pred_region
        _
      $region24: #{srresnet_forward_pallas.1} parent=11 // pred_fallthru
        _
      // Predicated region
      $region25: #{srresnet_forward_pallas.1} parent=11 // pred_check
        %p171 = pneg %p121
      $region26: #{srresnet_forward_pallas.1} parent=11 // pred_check_branch
        %173 = sbr.rel (%p171) target = $region28
      $region27: #{srresnet_forward_pallas.1} parent=11 // pred_region
        _
      $region28: #{srresnet_forward_pallas.1} parent=11 // pred_fallthru
        _
    $region12: #{srresnet_forward_pallas.1} parent=5 // pred_fallthru
      _
    %p174 = scmp.lt.s32.totalorder %s11, 2
    // Predicated region
    $region29: #{srresnet_forward_pallas.1} parent=5 // pred_check
      %p175 = pneg %p174
    $region30: #{srresnet_forward_pallas.1} parent=5 // pred_check_branch
      %177 = sbr.rel (%p175) target = $region32
    $region31: #{srresnet_forward_pallas.1} parent=5 // pred_region
      // Predicated region
      $region33: #{srresnet_forward_pallas.1} parent=31 // pred_check
        %p178 = pneg %p31
      $region34: #{srresnet_forward_pallas.1} parent=31 // pred_check_branch
        %180 = sbr.rel (%p178) target = $region36
      $region35: #{srresnet_forward_pallas.1} parent=31 // pred_region
        %p181 = scmp.lt.s32.totalorder %s11, 1
        %s182 = scalar_select %p181, %s11, 1
        %s183 = smul.addr %s182, 18
        %s184 = smul.addr %s183, 8
        %s185 = scalar_lea.vmem %s0, %s184
      $region36: #{srresnet_forward_pallas.1} parent=31 // pred_fallthru
        _
    $region32: #{srresnet_forward_pallas.1} parent=5 // pred_fallthru
      _
    %p186 = scmp.le.s32.totalorder 1, %s11
    %p187 = scmp.lt.s32.totalorder %s11, 3
    %p188 = pnand %p186, %p187
    %p189 = pneg %p188
    // Predicated region
    $region37: #{srresnet_forward_pallas.1} parent=5 // pred_check
      _
    $region38: #{srresnet_forward_pallas.1} parent=5 // pred_check_branch
      %191 = sbr.rel (%p188) target = $region40
    $region39: #{srresnet_forward_pallas.1} parent=5 // pred_region
      %s192 = ssub.s32 %s11, 1
      %p193 = scmp.lt.s32.totalorder %s16, 1
      %s194 = scalar_select %p193, %s16, 1
      %s195 = smul.addr %s194, 18
      %s196 = smul.addr %s195, 8
      %s197 = scalar_lea.vmem %s0, %s196
      %p198 = pneg %p37
      %p199 = pneg %p34
      %p200 = pneg %p58
      %p201 = pneg %p55
      %p202 = pneg %p79
      %p203 = pneg %p76
      %p204 = pneg %p100
      %p205 = pneg %p97
      %p206 = pneg %p121
      %p207 = pneg %p118
      %p208 = pneg %p147
      %p209 = pneg %p144
      %p210 = scmp.lt.s32.totalorder %s16, 1
      %s211 = scalar_select %p210, %s16, 1
      %s212 = smul.addr %s211, 8
      %s213 = smul.addr %s212, 8
      %s214 = scalar_lea.vmem %s5, %s213
      %p215 = scmp.lt.s32.totalorder %s16, 1
      %s216 = scalar_select %p215, %s16, 1
      %s217 = smul.addr %s216, 18
      %s218 = smul.addr %s217, 8
      %s219 = scalar_lea.vmem %s0, %s218
      %p220 = scmp.lt.s32.totalorder %s16, 1
      %s221 = scalar_select %p220, %s16, 1
      %s222 = smul.addr %s221, 8
      %s223 = smul.addr %s222, 8
      %s224 = scalar_lea.vmem %s5, %s223
      %v225 = vld [vmem:[%s219] sm:$0x3f]
      %v226 = vld [vmem:[%s219 + $0x8] sm:$0x3f]
      %v227 = vld [vmem:[%s219 + $0x10] sm:$0x3f]
      %v228 = vld [vmem:[%s219 + $0x18] sm:$0x3f]
      %v229 = vld [vmem:[%s219 + $0x20] sm:$0x3f]
      %v230 = vld [vmem:[%s219 + $0x28] sm:$0x3f]
      %v231 = vld [vmem:[%s219 + $0x30] sm:$0x3f]
      %v232 = vld [vmem:[%s219 + $0x38] sm:$0x3f]
      %v233 = vld [vmem:[%s219 + $0x40] sm:$0x3f]
      %v234 = vld [vmem:[%s219 + $0x48] sm:$0x3f]
      %v235 = vld [vmem:[%s219 + $0x50] sm:$0x3f]
      %v236 = vld [vmem:[%s219 + $0x58] sm:$0x3f]
      %v237 = vld [vmem:[%s219 + $0x60] sm:$0x3f]
      %v238 = vld [vmem:[%s219 + $0x68] sm:$0x3f]
      %v239 = vld [vmem:[%s219 + $0x70] sm:$0x3f]
      %v240 = vld [vmem:[%s219 + $0x78] sm:$0x3f]
      %v241 = vld [vmem:[%s219 + $0x80] sm:$0x3f]
      %v242 = vld [vmem:[%s219 + $0x88] sm:$0x3f]
      %243 = vst [vmem:[#allocation2] sm:$0x3f] %v225
      %244 = vst [vmem:[#allocation2 + $0x8] sm:$0x3f] %v226
      %245 = vst [vmem:[#allocation2 + $0x10] sm:$0x3f] %v227
      %246 = vst [vmem:[#allocation2 + $0x18] sm:$0x3f] %v228
      %247 = vst [vmem:[#allocation2 + $0x20] sm:$0x3f] %v229
      %248 = vst [vmem:[#allocation2 + $0x28] sm:$0x3f] %v230
      %249 = vst [vmem:[#allocation2 + $0x30] sm:$0x3f] %v231
      %250 = vst [vmem:[#allocation2 + $0x38] sm:$0x3f] %v232
      %251 = vst [vmem:[#allocation2 + $0x40] sm:$0x3f] %v233
      %252 = vst [vmem:[#allocation2 + $0x48] sm:$0x3f] %v234
      %253 = vst [vmem:[#allocation2 + $0x50] sm:$0x3f] %v235
      %254 = vst [vmem:[#allocation2 + $0x58] sm:$0x3f] %v236
      %255 = vst [vmem:[#allocation2 + $0x60] sm:$0x3f] %v237
      %256 = vst [vmem:[#allocation2 + $0x68] sm:$0x3f] %v238
      %257 = vst [vmem:[#allocation2 + $0x70] sm:$0x3f] %v239
      %258 = vst [vmem:[#allocation2 + $0x78] sm:$0x3f] %v240
      %259 = vst [vmem:[#allocation2 + $0x80] sm:$0x3f] %v241
      %260 = vst [vmem:[#allocation2 + $0x88] sm:$0x3f] %v242
      %v261 = vld [vmem:[#allocation2] sm:$0xf]
      %v262 = vld [vmem:[#allocation2 + $0x8] sm:$0xf]
      %v263 = vld [vmem:[#allocation2 + $0x10] sm:$0xf]
      %v264 = vld [vmem:[#allocation2 + $0x18] sm:$0xf]
      %v265 = vld [vmem:[#allocation2 + $0x20] sm:$0xf]
      %v266 = vld [vmem:[#allocation2 + $0x28] sm:$0xf]
      %v267 = vld [vmem:[#allocation2 + $0x30] sm:$0xf]
      %v268 = vld [vmem:[#allocation2 + $0x38] sm:$0xf]
      %v269 = vld [vmem:[#allocation2 + $0x40] sm:$0xf]
      %v270 = vld [vmem:[#allocation2 + $0x48] sm:$0xf]
      %v271 = vld [vmem:[#allocation2 + $0x50] sm:$0xf]
      %v272 = vld [vmem:[#allocation2 + $0x58] sm:$0xf]
      %v273 = vld [vmem:[#allocation2 + $0x60] sm:$0xf]
      %v274 = vld [vmem:[#allocation2 + $0x68] sm:$0xf]
      %v275 = vld [vmem:[#allocation2 + $0x70] sm:$0xf]
      %v276 = vld [vmem:[#allocation2 + $0x78] sm:$0xf]
      %v277 = vld [vmem:[%s1] sm:$0xff]
      %v278 = vld [vmem:[%s1 + $0x8] sm:$0xff]
      %v279 = vld [vmem:[%s1 + $0x10] sm:$0xff]
      %v280 = vld [vmem:[%s1 + $0x18] sm:$0xff]
      %v281 = vld [vmem:[%s1 + $0x20] sm:$0xff]
      %v282 = vld [vmem:[%s1 + $0x28] sm:$0xff]
      %v283 = vld [vmem:[%s1 + $0x30] sm:$0xff]
      %v284 = vld [vmem:[%s1 + $0x38] sm:$0xff]
      %v285 = vld [vmem:[%s1 + $0x40] sm:$0xff]
      %v286 = vld [vmem:[%s1 + $0x48] sm:$0xff]
      %v287 = vld [vmem:[%s1 + $0x50] sm:$0xff]
      %v288 = vld [vmem:[%s1 + $0x58] sm:$0xff]
      %v289 = vld [vmem:[%s1 + $0x60] sm:$0xff]
      %v290 = vld [vmem:[%s1 + $0x68] sm:$0xff]
      %v291 = vld [vmem:[%s1 + $0x70] sm:$0xff]
      %v292 = vld [vmem:[%s1 + $0x78] sm:$0xff]
      %v293 = vld [vmem:[#allocation2 + $0x1] sm:$0xf]
      %v294 = vld [vmem:[#allocation2 + $0x9] sm:$0xf]
      %v295 = vld [vmem:[#allocation2 + $0x11] sm:$0xf]
      %v296 = vld [vmem:[#allocation2 + $0x19] sm:$0xf]
      %v297 = vld [vmem:[#allocation2 + $0x21] sm:$0xf]
      %v298 = vld [vmem:[#allocation2 + $0x29] sm:$0xf]
      %v299 = vld [vmem:[#allocation2 + $0x31] sm:$0xf]
      %v300 = vld [vmem:[#allocation2 + $0x39] sm:$0xf]
      %v301 = vld [vmem:[#allocation2 + $0x41] sm:$0xf]
      %v302 = vld [vmem:[#allocation2 + $0x49] sm:$0xf]
      %v303 = vld [vmem:[#allocation2 + $0x51] sm:$0xf]
      %v304 = vld [vmem:[#allocation2 + $0x59] sm:$0xf]
      %v305 = vld [vmem:[#allocation2 + $0x61] sm:$0xf]
      %v306 = vld [vmem:[#allocation2 + $0x69] sm:$0xf]
      %v307 = vld [vmem:[#allocation2 + $0x71] sm:$0xf]
      %v308 = vld [vmem:[#allocation2 + $0x79] sm:$0xf]
      %s309 = scalar_lea.vmem %s1, 128
      %v310 = vld [vmem:[%s309] sm:$0xff]
      %v311 = vld [vmem:[%s309 + $0x8] sm:$0xff]
      %v312 = vld [vmem:[%s309 + $0x10] sm:$0xff]
      %v313 = vld [vmem:[%s309 + $0x18] sm:$0xff]
      %v314 = vld [vmem:[%s309 + $0x20] sm:$0xff]
      %v315 = vld [vmem:[%s309 + $0x28] sm:$0xff]
      %v316 = vld [vmem:[%s309 + $0x30] sm:$0xff]
      %v317 = vld [vmem:[%s309 + $0x38] sm:$0xff]
      %v318 = vld [vmem:[%s309 + $0x40] sm:$0xff]
      %v319 = vld [vmem:[%s309 + $0x48] sm:$0xff]
      %v320 = vld [vmem:[%s309 + $0x50] sm:$0xff]
      %v321 = vld [vmem:[%s309 + $0x58] sm:$0xff]
      %v322 = vld [vmem:[%s309 + $0x60] sm:$0xff]
      %v323 = vld [vmem:[%s309 + $0x68] sm:$0xff]
      %v324 = vld [vmem:[%s309 + $0x70] sm:$0xff]
      %v325 = vld [vmem:[%s309 + $0x78] sm:$0xff]
      %342 = vst [vmem:[#allocation1] ss:$2 sm:$0xff] %v293
      %s343 = scalar_lea.vmem [#allocation1], 1
      %344 = vst [vmem:[%s343] ss:$2 sm:$0xff] %v294
      %s345 = scalar_lea.vmem [#allocation1], 16
      %346 = vst [vmem:[%s345] ss:$2 sm:$0xff] %v295
      %s347 = scalar_lea.vmem [#allocation1], 17
      %348 = vst [vmem:[%s347] ss:$2 sm:$0xff] %v296
      %s349 = scalar_lea.vmem [#allocation1], 32
      %350 = vst [vmem:[%s349] ss:$2 sm:$0xff] %v297
      %s351 = scalar_lea.vmem [#allocation1], 33
      %352 = vst [vmem:[%s351] ss:$2 sm:$0xff] %v298
      %s353 = scalar_lea.vmem [#allocation1], 48
      %354 = vst [vmem:[%s353] ss:$2 sm:$0xff] %v299
      %s355 = scalar_lea.vmem [#allocation1], 49
      %356 = vst [vmem:[%s355] ss:$2 sm:$0xff] %v300
      %v357 = vld.sshfl [vmem:[#allocation1] sm:$0xff pattern:$0x75316420]
      %v358 = vld.sshfl [vmem:[#allocation1 + $0x10] sm:$0xff pattern:$0x75316420]
      %v359 = vld.sshfl [vmem:[#allocation1 + $0x20] sm:$0xff pattern:$0x75316420]
      %v360 = vld.sshfl [vmem:[#allocation1 + $0x30] sm:$0xff pattern:$0x75316420]
      %361 = vst [vmem:[#allocation1] ss:$2 sm:$0xff] %v301
      %362 = vst [vmem:[%s343] ss:$2 sm:$0xff] %v302
      %363 = vst [vmem:[%s345] ss:$2 sm:$0xff] %v303
      %364 = vst [vmem:[%s347] ss:$2 sm:$0xff] %v304
      %365 = vst [vmem:[%s349] ss:$2 sm:$0xff] %v305
      %366 = vst [vmem:[%s351] ss:$2 sm:$0xff] %v306
      %367 = vst [vmem:[%s353] ss:$2 sm:$0xff] %v307
      %368 = vst [vmem:[%s355] ss:$2 sm:$0xff] %v308
      %v369 = vld.sshfl [vmem:[#allocation1] sm:$0xff pattern:$0x75316420]
      %v370 = vld.sshfl [vmem:[#allocation1 + $0x10] sm:$0xff pattern:$0x75316420]
      %v371 = vld.sshfl [vmem:[#allocation1 + $0x20] sm:$0xff pattern:$0x75316420]
      %v372 = vld.sshfl [vmem:[#allocation1 + $0x30] sm:$0xff pattern:$0x75316420]
      %381 = vmatpush.msra.mxu0 %v325
      %382 = vmatpush.msra.mxu0 %v324
      %383 = vmatpush.msra.mxu0 %v323
      %384 = vmatpush.msra.mxu0 %v322
      %385 = vmatpush.msra.mxu0 %v321
      %386 = vmatpush.msra.mxu0 %v320
      %387 = vmatpush.msra.mxu0 %v319
      %388 = vmatpush.msra.mxu0 %v318
      %389 = vmatpush.msra.mxu0 %v317
      %390 = vmatpush.msra.mxu0 %v316
      %391 = vmatpush.msra.mxu0 %v315
      %392 = vmatpush.msra.mxu0 %v314
      %393 = vmatpush.msra.mxu0 %v313
      %394 = vmatpush.msra.mxu0 %v312
      %395 = vmatpush.msra.mxu0 %v311
      %396 = vmatpush.msra.mxu0 %v310
      %397 = vmatmul.f32.gmra.mxu0 %v357
      %v398 = vpop.f32.mrf.mxu0
      %v399 = vadd.f32 0.0, %v398
      %400 = vmatmul.f32.gmra.mxu0 %v358
      %v401 = vpop.f32.mrf.mxu0
      %v402 = vadd.f32 0.0, %v401
      %403 = vmatmul.f32.gmra.mxu0 %v359
      %v404 = vpop.f32.mrf.mxu0
      %v405 = vadd.f32 0.0, %v404
      %406 = vmatmul.f32.gmra.mxu0 %v360
      %v407 = vpop.f32.mrf.mxu0
      %v408 = vadd.f32 0.0, %v407
      %409 = vmatmul.f32.gmra.mxu0 %v369
      %v410 = vpop.f32.mrf.mxu0
      %v411 = vadd.f32 0.0, %v410
      %412 = vmatmul.f32.gmra.mxu0 %v370
      %v413 = vpop.f32.mrf.mxu0
      %v414 = vadd.f32 0.0, %v413
      %415 = vmatmul.f32.gmra.mxu0 %v371
      %v416 = vpop.f32.mrf.mxu0
      %v417 = vadd.f32 0.0, %v416
      %418 = vmatmul.f32.gmra.mxu0 %v372
      %v419 = vpop.f32.mrf.mxu0
      %v420 = vadd.f32 0.0, %v419
      %421 = vdwg.mxu0
      %438 = vst [vmem:[#allocation1] ss:$2 sm:$0xff] %v261
      %s439 = scalar_lea.vmem [#allocation1], 1
      %440 = vst [vmem:[%s439] ss:$2 sm:$0xff] %v262
      %s441 = scalar_lea.vmem [#allocation1], 16
      %442 = vst [vmem:[%s441] ss:$2 sm:$0xff] %v263
      %s443 = scalar_lea.vmem [#allocation1], 17
      %444 = vst [vmem:[%s443] ss:$2 sm:$0xff] %v264
      %s445 = scalar_lea.vmem [#allocation1], 32
      %446 = vst [vmem:[%s445] ss:$2 sm:$0xff] %v265
      %s447 = scalar_lea.vmem [#allocation1], 33
      %448 = vst [vmem:[%s447] ss:$2 sm:$0xff] %v266
      %s449 = scalar_lea.vmem [#allocation1], 48
      %450 = vst [vmem:[%s449] ss:$2 sm:$0xff] %v267
      %s451 = scalar_lea.vmem [#allocation1], 49
      %452 = vst [vmem:[%s451] ss:$2 sm:$0xff] %v268
      %v453 = vld.sshfl [vmem:[#allocation1] sm:$0xff pattern:$0x75316420]
      %v454 = vld.sshfl [vmem:[#allocation1 + $0x10] sm:$0xff pattern:$0x75316420]
      %v455 = vld.sshfl [vmem:[#allocation1 + $0x20] sm:$0xff pattern:$0x75316420]
      %v456 = vld.sshfl [vmem:[#allocation1 + $0x30] sm:$0xff pattern:$0x75316420]
      %457 = vst [vmem:[#allocation1] ss:$2 sm:$0xff] %v269
      %458 = vst [vmem:[%s439] ss:$2 sm:$0xff] %v270
      %459 = vst [vmem:[%s441] ss:$2 sm:$0xff] %v271
      %460 = vst [vmem:[%s443] ss:$2 sm:$0xff] %v272
      %461 = vst [vmem:[%s445] ss:$2 sm:$0xff] %v273
      %462 = vst [vmem:[%s447] ss:$2 sm:$0xff] %v274
      %463 = vst [vmem:[%s449] ss:$2 sm:$0xff] %v275
      %464 = vst [vmem:[%s451] ss:$2 sm:$0xff] %v276
      %v465 = vld.sshfl [vmem:[#allocation1] sm:$0xff pattern:$0x75316420]
      %v466 = vld.sshfl [vmem:[#allocation1 + $0x10] sm:$0xff pattern:$0x75316420]
      %v467 = vld.sshfl [vmem:[#allocation1 + $0x20] sm:$0xff pattern:$0x75316420]
      %v468 = vld.sshfl [vmem:[#allocation1 + $0x30] sm:$0xff pattern:$0x75316420]
      %477 = vmatpush.msra.mxu0 %v292
      %478 = vmatpush.msra.mxu0 %v291
      %479 = vmatpush.msra.mxu0 %v290
      %480 = vmatpush.msra.mxu0 %v289
      %481 = vmatpush.msra.mxu0 %v288
      %482 = vmatpush.msra.mxu0 %v287
      %483 = vmatpush.msra.mxu0 %v286
      %484 = vmatpush.msra.mxu0 %v285
      %485 = vmatpush.msra.mxu0 %v284
      %486 = vmatpush.msra.mxu0 %v283
      %487 = vmatpush.msra.mxu0 %v282
      %488 = vmatpush.msra.mxu0 %v281
      %489 = vmatpush.msra.mxu0 %v280
      %490 = vmatpush.msra.mxu0 %v279
      %491 = vmatpush.msra.mxu0 %v278
      %492 = vmatpush.msra.mxu0 %v277
      %493 = vmatmul.f32.gmra.mxu0 %v453
      %v494 = vpop.f32.mrf.mxu0
      %v495 = vadd.f32 %v399, %v494
      %496 = vmatmul.f32.gmra.mxu0 %v454
      %v497 = vpop.f32.mrf.mxu0
      %v498 = vadd.f32 %v402, %v497
      %499 = vmatmul.f32.gmra.mxu0 %v455
      %v500 = vpop.f32.mrf.mxu0
      %v501 = vadd.f32 %v405, %v500
      %502 = vmatmul.f32.gmra.mxu0 %v456
      %v503 = vpop.f32.mrf.mxu0
      %v504 = vadd.f32 %v408, %v503
      %505 = vmatmul.f32.gmra.mxu0 %v465
      %v506 = vpop.f32.mrf.mxu0
      %v507 = vadd.f32 %v411, %v506
      %508 = vmatmul.f32.gmra.mxu0 %v466
      %v509 = vpop.f32.mrf.mxu0
      %v510 = vadd.f32 %v414, %v509
      %511 = vmatmul.f32.gmra.mxu0 %v467
      %v512 = vpop.f32.mrf.mxu0
      %v513 = vadd.f32 %v417, %v512
      %514 = vmatmul.f32.gmra.mxu0 %v468
      %v515 = vpop.f32.mrf.mxu0
      %v516 = vadd.f32 %v420, %v515
      %517 = vdwg.mxu0
      %v518 = vld [vmem:[#allocation2 + $0x2] sm:$0xf]
      %v519 = vld [vmem:[#allocation2 + $0xa] sm:$0xf]
      %v520 = vld [vmem:[#allocation2 + $0x12] sm:$0xf]
      %v521 = vld [vmem:[#allocation2 + $0x1a] sm:$0xf]
      %v522 = vld [vmem:[#allocation2 + $0x22] sm:$0xf]
      %v523 = vld [vmem:[#allocation2 + $0x2a] sm:$0xf]
      %v524 = vld [vmem:[#allocation2 + $0x32] sm:$0xf]
      %v525 = vld [vmem:[#allocation2 + $0x3a] sm:$0xf]
      %v526 = vld [vmem:[#allocation2 + $0x42] sm:$0xf]
      %v527 = vld [vmem:[#allocation2 + $0x4a] sm:$0xf]
      %v528 = vld [vmem:[#allocation2 + $0x52] sm:$0xf]
      %v529 = vld [vmem:[#allocation2 + $0x5a] sm:$0xf]
      %v530 = vld [vmem:[#allocation2 + $0x62] sm:$0xf]
      %v531 = vld [vmem:[#allocation2 + $0x6a] sm:$0xf]
      %v532 = vld [vmem:[#allocation2 + $0x72] sm:$0xf]
      %v533 = vld [vmem:[#allocation2 + $0x7a] sm:$0xf]
      %s534 = scalar_lea.vmem %s1, 256
      %v535 = vld [vmem:[%s534] sm:$0xff]
      %v536 = vld [vmem:[%s534 + $0x8] sm:$0xff]
      %v537 = vld [vmem:[%s534 + $0x10] sm:$0xff]
      %v538 = vld [vmem:[%s534 + $0x18] sm:$0xff]
      %v539 = vld [vmem:[%s534 + $0x20] sm:$0xff]
      %v540 = vld [vmem:[%s534 + $0x28] sm:$0xff]
      %v541 = vld [vmem:[%s534 + $0x30] sm:$0xff]
      %v542 = vld [vmem:[%s534 + $0x38] sm:$0xff]
      %v543 = vld [vmem:[%s534 + $0x40] sm:$0xff]
      %v544 = vld [vmem:[%s534 + $0x48] sm:$0xff]
      %v545 = vld [vmem:[%s534 + $0x50] sm:$0xff]
      %v546 = vld [vmem:[%s534 + $0x58] sm:$0xff]
      %v547 = vld [vmem:[%s534 + $0x60] sm:$0xff]
      %v548 = vld [vmem:[%s534 + $0x68] sm:$0xff]
      %v549 = vld [vmem:[%s534 + $0x70] sm:$0xff]
      %v550 = vld [vmem:[%s534 + $0x78] sm:$0xff]
      %567 = vst [vmem:[#allocation1] ss:$2 sm:$0xff] %v518
      %s568 = scalar_lea.vmem [#allocation1], 1
      %569 = vst [vmem:[%s568] ss:$2 sm:$0xff] %v519
      %s570 = scalar_lea.vmem [#allocation1], 16
      %571 = vst [vmem:[%s570] ss:$2 sm:$0xff] %v520
      %s572 = scalar_lea.vmem [#allocation1], 17
      %573 = vst [vmem:[%s572] ss:$2 sm:$0xff] %v521
      %s574 = scalar_lea.vmem [#allocation1], 32
      %575 = vst [vmem:[%s574] ss:$2 sm:$0xff] %v522
      %s576 = scalar_lea.vmem [#allocation1], 33
      %577 = vst [vmem:[%s576] ss:$2 sm:$0xff] %v523
      %s578 = scalar_lea.vmem [#allocation1], 48
      %579 = vst [vmem:[%s578] ss:$2 sm:$0xff] %v524
      %s580 = scalar_lea.vmem [#allocation1], 49
      %581 = vst [vmem:[%s580] ss:$2 sm:$0xff] %v525
      %v582 = vld.sshfl [vmem:[#allocation1] sm:$0xff pattern:$0x75316420]
      %v583 = vld.sshfl [vmem:[#allocation1 + $0x10] sm:$0xff pattern:$0x75316420]
      %v584 = vld.sshfl [vmem:[#allocation1 + $0x20] sm:$0xff pattern:$0x75316420]
      %v585 = vld.sshfl [vmem:[#allocation1 + $0x30] sm:$0xff pattern:$0x75316420]
      %586 = vst [vmem:[#allocation1] ss:$2 sm:$0xff] %v526
      %587 = vst [vmem:[%s568] ss:$2 sm:$0xff] %v527
      %588 = vst [vmem:[%s570] ss:$2 sm:$0xff] %v528
      %589 = vst [vmem:[%s572] ss:$2 sm:$0xff] %v529
      %590 = vst [vmem:[%s574] ss:$2 sm:$0xff] %v530
      %591 = vst [vmem:[%s576] ss:$2 sm:$0xff] %v531
      %592 = vst [vmem:[%s578] ss:$2 sm:$0xff] %v532
      %593 = vst [vmem:[%s580] ss:$2 sm:$0xff] %v533
      %v594 = vld.sshfl [vmem:[#allocation1] sm:$0xff pattern:$0x75316420]
      %v595 = vld.sshfl [vmem:[#allocation1 + $0x10] sm:$0xff pattern:$0x75316420]
      %v596 = vld.sshfl [vmem:[#allocation1 + $0x20] sm:$0xff pattern:$0x75316420]
      %v597 = vld.sshfl [vmem:[#allocation1 + $0x30] sm:$0xff pattern:$0x75316420]
      %606 = vmatpush.msra.mxu0 %v550
      %607 = vmatpush.msra.mxu0 %v549
      %608 = vmatpush.msra.mxu0 %v548
      %609 = vmatpush.msra.mxu0 %v547
      %610 = vmatpush.msra.mxu0 %v546
      %611 = vmatpush.msra.mxu0 %v545
      %612 = vmatpush.msra.mxu0 %v544
      %613 = vmatpush.msra.mxu0 %v543
      %614 = vmatpush.msra.mxu0 %v542
      %615 = vmatpush.msra.mxu0 %v541
      %616 = vmatpush.msra.mxu0 %v540
      %617 = vmatpush.msra.mxu0 %v539
      %618 = vmatpush.msra.mxu0 %v538
      %619 = vmatpush.msra.mxu0 %v537
      %620 = vmatpush.msra.mxu0 %v536
      %621 = vmatpush.msra.mxu0 %v535
      %622 = vmatmul.f32.gmra.mxu0 %v582
      %v623 = vpop.f32.mrf.mxu0
      %v624 = vadd.f32 0.0, %v623
      %625 = vmatmul.f32.gmra.mxu0 %v583
      %v626 = vpop.f32.mrf.mxu0
      %v627 = vadd.f32 0.0, %v626
      %628 = vmatmul.f32.gmra.mxu0 %v584
      %v629 = vpop.f32.mrf.mxu0
      %v630 = vadd.f32 0.0, %v629
      %631 = vmatmul.f32.gmra.mxu0 %v585
      %v632 = vpop.f32.mrf.mxu0
      %v633 = vadd.f32 0.0, %v632
      %634 = vmatmul.f32.gmra.mxu0 %v594
      %v635 = vpop.f32.mrf.mxu0
      %v636 = vadd.f32 0.0, %v635
      %637 = vmatmul.f32.gmra.mxu0 %v595
      %v638 = vpop.f32.mrf.mxu0
      %v639 = vadd.f32 0.0, %v638
      %640 = vmatmul.f32.gmra.mxu0 %v596
      %v641 = vpop.f32.mrf.mxu0
      %v642 = vadd.f32 0.0, %v641
      %643 = vmatmul.f32.gmra.mxu0 %v597
      %v644 = vpop.f32.mrf.mxu0
      %v645 = vadd.f32 0.0, %v644
      %646 = vdwg.mxu0
      %v647 = vadd.f32 %v495, %v624
      %v648 = vadd.f32 %v498, %v627
      %v649 = vadd.f32 %v501, %v630
      %v650 = vadd.f32 %v504, %v633
      %v651 = vadd.f32 %v507, %v636
      %v652 = vadd.f32 %v510, %v639
      %v653 = vadd.f32 %v513, %v642
      %v654 = vadd.f32 %v516, %v645
      %s655 = scalar_lea.vmem [#allocation2], 8
      %v656 = vld [vmem:[%s655] sm:$0xf]
      %v657 = vld [vmem:[%s655 + $0x8] sm:$0xf]
      %v658 = vld [vmem:[%s655 + $0x10] sm:$0xf]
      %v659 = vld [vmem:[%s655 + $0x18] sm:$0xf]
      %v660 = vld [vmem:[%s655 + $0x20] sm:$0xf]
      %v661 = vld [vmem:[%s655 + $0x28] sm:$0xf]
      %v662 = vld [vmem:[%s655 + $0x30] sm:$0xf]
      %v663 = vld [vmem:[%s655 + $0x38] sm:$0xf]
      %v664 = vld [vmem:[%s655 + $0x40] sm:$0xf]
      %v665 = vld [vmem:[%s655 + $0x48] sm:$0xf]
      %v666 = vld [vmem:[%s655 + $0x50] sm:$0xf]
      %v667 = vld [vmem:[%s655 + $0x58] sm:$0xf]
      %v668 = vld [vmem:[%s655 + $0x60] sm:$0xf]
      %v669 = vld [vmem:[%s655 + $0x68] sm:$0xf]
      %v670 = vld [vmem:[%s655 + $0x70] sm:$0xf]
      %v671 = vld [vmem:[%s655 + $0x78] sm:$0xf]
      %s672 = scalar_lea.vmem %s1, 384
      %v673 = vld [vmem:[%s672] sm:$0xff]
      %v674 = vld [vmem:[%s672 + $0x8] sm:$0xff]
      %v675 = vld [vmem:[%s672 + $0x10] sm:$0xff]
      %v676 = vld [vmem:[%s672 + $0x18] sm:$0xff]
      %v677 = vld [vmem:[%s672 + $0x20] sm:$0xff]
      %v678 = vld [vmem:[%s672 + $0x28] sm:$0xff]
      %v679 = vld [vmem:[%s672 + $0x30] sm:$0xff]
      %v680 = vld [vmem:[%s672 + $0x38] sm:$0xff]
      %v681 = vld [vmem:[%s672 + $0x40] sm:$0xff]
      %v682 = vld [vmem:[%s672 + $0x48] sm:$0xff]
      %v683 = vld [vmem:[%s672 + $0x50] sm:$0xff]
      %v684 = vld [vmem:[%s672 + $0x58] sm:$0xff]
      %v685 = vld [vmem:[%s672 + $0x60] sm:$0xff]
      %v686 = vld [vmem:[%s672 + $0x68] sm:$0xff]
      %v687 = vld [vmem:[%s672 + $0x70] sm:$0xff]
      %v688 = vld [vmem:[%s672 + $0x78] sm:$0xff]
      %705 = vst [vmem:[#allocation1] ss:$2 sm:$0xff] %v656
      %s706 = scalar_lea.vmem [#allocation1], 1
      %707 = vst [vmem:[%s706] ss:$2 sm:$0xff] %v657
      %s708 = scalar_lea.vmem [#allocation1], 16
      %709 = vst [vmem:[%s708] ss:$2 sm:$0xff] %v658
      %s710 = scalar_lea.vmem [#allocation1], 17
      %711 = vst [vmem:[%s710] ss:$2 sm:$0xff] %v659
      %s712 = scalar_lea.vmem [#allocation1], 32
      %713 = vst [vmem:[%s712] ss:$2 sm:$0xff] %v660
      %s714 = scalar_lea.vmem [#allocation1], 33
      %715 = vst [vmem:[%s714] ss:$2 sm:$0xff] %v661
      %s716 = scalar_lea.vmem [#allocation1], 48
      %717 = vst [vmem:[%s716] ss:$2 sm:$0xff] %v662
      %s718 = scalar_lea.vmem [#allocation1], 49
      %719 = vst [vmem:[%s718] ss:$2 sm:$0xff] %v663
      %v720 = vld.sshfl [vmem:[#allocation1] sm:$0xff pattern:$0x75316420]
      %v721 = vld.sshfl [vmem:[#allocation1 + $0x10] sm:$0xff pattern:$0x75316420]
      %v722 = vld.sshfl [vmem:[#allocation1 + $0x20] sm:$0xff pattern:$0x75316420]
      %v723 = vld.sshfl [vmem:[#allocation1 + $0x30] sm:$0xff pattern:$0x75316420]
      %724 = vst [vmem:[#allocation1] ss:$2 sm:$0xff] %v664
      %725 = vst [vmem:[%s706] ss:$2 sm:$0xff] %v665
      %726 = vst [vmem:[%s708] ss:$2 sm:$0xff] %v666
      %727 = vst [vmem:[%s710] ss:$2 sm:$0xff] %v667
      %728 = vst [vmem:[%s712] ss:$2 sm:$0xff] %v668
      %729 = vst [vmem:[%s714] ss:$2 sm:$0xff] %v669
      %730 = vst [vmem:[%s716] ss:$2 sm:$0xff] %v670
      %731 = vst [vmem:[%s718] ss:$2 sm:$0xff] %v671
      %v732 = vld.sshfl [vmem:[#allocation1] sm:$0xff pattern:$0x75316420]
      %v733 = vld.sshfl [vmem:[#allocation1 + $0x10] sm:$0xff pattern:$0x75316420]
      %v734 = vld.sshfl [vmem:[#allocation1 + $0x20] sm:$0xff pattern:$0x75316420]
      %v735 = vld.sshfl [vmem:[#allocation1 + $0x30] sm:$0xff pattern:$0x75316420]
      %744 = vmatpush.msra.mxu0 %v688
      %745 = vmatpush.msra.mxu0 %v687
      %746 = vmatpush.msra.mxu0 %v686
      %747 = vmatpush.msra.mxu0 %v685
      %748 = vmatpush.msra.mxu0 %v684
      %749 = vmatpush.msra.mxu0 %v683
      %750 = vmatpush.msra.mxu0 %v682
      %751 = vmatpush.msra.mxu0 %v681
      %752 = vmatpush.msra.mxu0 %v680
      %753 = vmatpush.msra.mxu0 %v679
      %754 = vmatpush.msra.mxu0 %v678
      %755 = vmatpush.msra.mxu0 %v677
      %756 = vmatpush.msra.mxu0 %v676
      %757 = vmatpush.msra.mxu0 %v675
      %758 = vmatpush.msra.mxu0 %v674
      %759 = vmatpush.msra.mxu0 %v673
      %760 = vmatmul.f32.gmra.mxu0 %v720
      %v761 = vpop.f32.mrf.mxu0
      %v762 = vadd.f32 0.0, %v761
      %763 = vmatmul.f32.gmra.mxu0 %v721
      %v764 = vpop.f32.mrf.mxu0
      %v765 = vadd.f32 0.0, %v764
      %766 = vmatmul.f32.gmra.mxu0 %v722
      %v767 = vpop.f32.mrf.mxu0
      %v768 = vadd.f32 0.0, %v767
      %769 = vmatmul.f32.gmra.mxu0 %v723
      %v770 = vpop.f32.mrf.mxu0
      %v771 = vadd.f32 0.0, %v770
      %772 = vmatmul.f32.gmra.mxu0 %v732
      %v773 = vpop.f32.mrf.mxu0
      %v774 = vadd.f32 0.0, %v773
      %775 = vmatmul.f32.gmra.mxu0 %v733
      %v776 = vpop.f32.mrf.mxu0
      %v777 = vadd.f32 0.0, %v776
      %778 = vmatmul.f32.gmra.mxu0 %v734
      %v779 = vpop.f32.mrf.mxu0
      %v780 = vadd.f32 0.0, %v779
      %781 = vmatmul.f32.gmra.mxu0 %v735
      %v782 = vpop.f32.mrf.mxu0
      %v783 = vadd.f32 0.0, %v782
      %784 = vdwg.mxu0
      %v785 = vadd.f32 %v647, %v762
      %v786 = vadd.f32 %v648, %v765
      %v787 = vadd.f32 %v649, %v768
      %v788 = vadd.f32 %v650, %v771
      %v789 = vadd.f32 %v651, %v774
      %v790 = vadd.f32 %v652, %v777
      %v791 = vadd.f32 %v653, %v780
      %v792 = vadd.f32 %v654, %v783
      %v793 = vld [vmem:[%s655 + $0x1] sm:$0xf]
      %v794 = vld [vmem:[%s655 + $0x9] sm:$0xf]
      %v795 = vld [vmem:[%s655 + $0x11] sm:$0xf]
      %v796 = vld [vmem:[%s655 + $0x19] sm:$0xf]
      %v797 = vld [vmem:[%s655 + $0x21] sm:$0xf]
      %v798 = vld [vmem:[%s655 + $0x29] sm:$0xf]
      %v799 = vld [vmem:[%s655 + $0x31] sm:$0xf]
      %v800 = vld [vmem:[%s655 + $0x39] sm:$0xf]
      %v801 = vld [vmem:[%s655 + $0x41] sm:$0xf]
      %v802 = vld [vmem:[%s655 + $0x49] sm:$0xf]
      %v803 = vld [vmem:[%s655 + $0x51] sm:$0xf]
      %v804 = vld [vmem:[%s655 + $0x59] sm:$0xf]
      %v805 = vld [vmem:[%s655 + $0x61] sm:$0xf]
      %v806 = vld [vmem:[%s655 + $0x69] sm:$0xf]
      %v807 = vld [vmem:[%s655 + $0x71] sm:$0xf]
      %v808 = vld [vmem:[%s655 + $0x79] sm:$0xf]
      %s809 = scalar_lea.vmem %s1, 512
      %v810 = vld [vmem:[%s809] sm:$0xff]
      %v811 = vld [vmem:[%s809 + $0x8] sm:$0xff]
      %v812 = vld [vmem:[%s809 + $0x10] sm:$0xff]
      %v813 = vld [vmem:[%s809 + $0x18] sm:$0xff]
      %v814 = vld [vmem:[%s809 + $0x20] sm:$0xff]
      %v815 = vld [vmem:[%s809 + $0x28] sm:$0xff]
      %v816 = vld [vmem:[%s809 + $0x30] sm:$0xff]
      %v817 = vld [vmem:[%s809 + $0x38] sm:$0xff]
      %v818 = vld [vmem:[%s809 + $0x40] sm:$0xff]
      %v819 = vld [vmem:[%s809 + $0x48] sm:$0xff]
      %v820 = vld [vmem:[%s809 + $0x50] sm:$0xff]
      %v821 = vld [vmem:[%s809 + $0x58] sm:$0xff]
      %v822 = vld [vmem:[%s809 + $0x60] sm:$0xff]
      %v823 = vld [vmem:[%s809 + $0x68] sm:$0xff]
      %v824 = vld [vmem:[%s809 + $0x70] sm:$0xff]
      %v825 = vld [vmem:[%s809 + $0x78] sm:$0xff]
      %842 = vst [vmem:[#allocation1] ss:$2 sm:$0xff] %v793
      %s843 = scalar_lea.vmem [#allocation1], 1
      %844 = vst [vmem:[%s843] ss:$2 sm:$0xff] %v794
      %s845 = scalar_lea.vmem [#allocation1], 16
      %846 = vst [vmem:[%s845] ss:$2 sm:$0xff] %v795
      %s847 = scalar_lea.vmem [#allocation1], 17
      %848 = vst [vmem:[%s847] ss:$2 sm:$0xff] %v796
      %s849 = scalar_lea.vmem [#allocation1], 32
      %850 = vst [vmem:[%s849] ss:$2 sm:$0xff] %v797
      %s851 = scalar_lea.vmem [#allocation1], 33
      %852 = vst [vmem:[%s851] ss:$2 sm:$0xff] %v798
      %s853 = scalar_lea.vmem [#allocation1], 48
      %854 = vst [vmem:[%s853] ss:$2 sm:$0xff] %v799
      %s855 = scalar_lea.vmem [#allocation1], 49
      %856 = vst [vmem:[%s855] ss:$2 sm:$0xff] %v800
      %v857 = vld.sshfl [vmem:[#allocation1] sm:$0xff pattern:$0x75316420]
      %v858 = vld.sshfl [vmem:[#allocation1 + $0x10] sm:$0xff pattern:$0x75316420]
      %v859 = vld.sshfl [vmem:[#allocation1 + $0x20] sm:$0xff pattern:$0x75316420]
      %v860 = vld.sshfl [vmem:[#allocation1 + $0x30] sm:$0xff pattern:$0x75316420]
      %861 = vst [vmem:[#allocation1] ss:$2 sm:$0xff] %v801
      %862 = vst [vmem:[%s843] ss:$2 sm:$0xff] %v802
      %863 = vst [vmem:[%s845] ss:$2 sm:$0xff] %v803
      %864 = vst [vmem:[%s847] ss:$2 sm:$0xff] %v804
      %865 = vst [vmem:[%s849] ss:$2 sm:$0xff] %v805
      %866 = vst [vmem:[%s851] ss:$2 sm:$0xff] %v806
      %867 = vst [vmem:[%s853] ss:$2 sm:$0xff] %v807
      %868 = vst [vmem:[%s855] ss:$2 sm:$0xff] %v808
      %v869 = vld.sshfl [vmem:[#allocation1] sm:$0xff pattern:$0x75316420]
      %v870 = vld.sshfl [vmem:[#allocation1 + $0x10] sm:$0xff pattern:$0x75316420]
      %v871 = vld.sshfl [vmem:[#allocation1 + $0x20] sm:$0xff pattern:$0x75316420]
      %v872 = vld.sshfl [vmem:[#allocation1 + $0x30] sm:$0xff pattern:$0x75316420]
      %881 = vmatpush.msra.mxu0 %v825
      %882 = vmatpush.msra.mxu0 %v824
      %883 = vmatpush.msra.mxu0 %v823
      %884 = vmatpush.msra.mxu0 %v822
      %885 = vmatpush.msra.mxu0 %v821
      %886 = vmatpush.msra.mxu0 %v820
      %887 = vmatpush.msra.mxu0 %v819
      %888 = vmatpush.msra.mxu0 %v818
      %889 = vmatpush.msra.mxu0 %v817
      %890 = vmatpush.msra.mxu0 %v816
      %891 = vmatpush.msra.mxu0 %v815
      %892 = vmatpush.msra.mxu0 %v814
      %893 = vmatpush.msra.mxu0 %v813
      %894 = vmatpush.msra.mxu0 %v812
      %895 = vmatpush.msra.mxu0 %v811
      %896 = vmatpush.msra.mxu0 %v810
      %897 = vmatmul.f32.gmra.mxu0 %v857
      %v898 = vpop.f32.mrf.mxu0
      %v899 = vadd.f32 0.0, %v898
      %900 = vmatmul.f32.gmra.mxu0 %v858
      %v901 = vpop.f32.mrf.mxu0
      %v902 = vadd.f32 0.0, %v901
      %903 = vmatmul.f32.gmra.mxu0 %v859
      %v904 = vpop.f32.mrf.mxu0
      %v905 = vadd.f32 0.0, %v904
      %906 = vmatmul.f32.gmra.mxu0 %v860
      %v907 = vpop.f32.mrf.mxu0
      %v908 = vadd.f32 0.0, %v907
      %909 = vmatmul.f32.gmra.mxu0 %v869
      %v910 = vpop.f32.mrf.mxu0
      %v911 = vadd.f32 0.0, %v910
      %912 = vmatmul.f32.gmra.mxu0 %v870
      %v913 = vpop.f32.mrf.mxu0
      %v914 = vadd.f32 0.0, %v913
      %915 = vmatmul.f32.gmra.mxu0 %v871
      %v916 = vpop.f32.mrf.mxu0
      %v917 = vadd.f32 0.0, %v916
      %918 = vmatmul.f32.gmra.mxu0 %v872
      %v919 = vpop.f32.mrf.mxu0
      %v920 = vadd.f32 0.0, %v919
      %921 = vdwg.mxu0
      %v922 = vadd.f32 %v785, %v899
      %v923 = vadd.f32 %v786, %v902
      %v924 = vadd.f32 %v787, %v905
      %v925 = vadd.f32 %v788, %v908
      %v926 = vadd.f32 %v789, %v911
      %v927 = vadd.f32 %v790, %v914
      %v928 = vadd.f32 %v791, %v917
      %v929 = vadd.f32 %v792, %v920
      %v930 = vld [vmem:[%s655 + $0x2] sm:$0xf]
      %v931 = vld [vmem:[%s655 + $0xa] sm:$0xf]
      %v932 = vld [vmem:[%s655 + $0x12] sm:$0xf]
      %v933 = vld [vmem:[%s655 + $0x1a] sm:$0xf]
      %v934 = vld [vmem:[%s655 + $0x22] sm:$0xf]
      %v935 = vld [vmem:[%s655 + $0x2a] sm:$0xf]
      %v936 = vld [vmem:[%s655 + $0x32] sm:$0xf]
      %v937 = vld [vmem:[%s655 + $0x3a] sm:$0xf]
      %v938 = vld [vmem:[%s655 + $0x42] sm:$0xf]
      %v939 = vld [vmem:[%s655 + $0x4a] sm:$0xf]
      %v940 = vld [vmem:[%s655 + $0x52] sm:$0xf]
      %v941 = vld [vmem:[%s655 + $0x5a] sm:$0xf]
      %v942 = vld [vmem:[%s655 + $0x62] sm:$0xf]
      %v943 = vld [vmem:[%s655 + $0x6a] sm:$0xf]
      %v944 = vld [vmem:[%s655 + $0x72] sm:$0xf]
      %v945 = vld [vmem:[%s655 + $0x7a] sm:$0xf]
      %s946 = scalar_lea.vmem %s1, 640
      %v947 = vld [vmem:[%s946] sm:$0xff]
      %v948 = vld [vmem:[%s946 + $0x8] sm:$0xff]
      %v949 = vld [vmem:[%s946 + $0x10] sm:$0xff]
      %v950 = vld [vmem:[%s946 + $0x18] sm:$0xff]
      %v951 = vld [vmem:[%s946 + $0x20] sm:$0xff]
      %v952 = vld [vmem:[%s946 + $0x28] sm:$0xff]
      %v953 = vld [vmem:[%s946 + $0x30] sm:$0xff]
      %v954 = vld [vmem:[%s946 + $0x38] sm:$0xff]
      %v955 = vld [vmem:[%s946 + $0x40] sm:$0xff]
      %v956 = vld [vmem:[%s946 + $0x48] sm:$0xff]
      %v957 = vld [vmem:[%s946 + $0x50] sm:$0xff]
      %v958 = vld [vmem:[%s946 + $0x58] sm:$0xff]
      %v959 = vld [vmem:[%s946 + $0x60] sm:$0xff]
      %v960 = vld [vmem:[%s946 + $0x68] sm:$0xff]
      %v961 = vld [vmem:[%s946 + $0x70] sm:$0xff]
      %v962 = vld [vmem:[%s946 + $0x78] sm:$0xff]
      %979 = vst [vmem:[#allocation1] ss:$2 sm:$0xff] %v930
      %s980 = scalar_lea.vmem [#allocation1], 1
      %981 = vst [vmem:[%s980] ss:$2 sm:$0xff] %v931
      %s982 = scalar_lea.vmem [#allocation1], 16
      %983 = vst [vmem:[%s982] ss:$2 sm:$0xff] %v932
      %s984 = scalar_lea.vmem [#allocation1], 17
      %985 = vst [vmem:[%s984] ss:$2 sm:$0xff] %v933
      %s986 = scalar_lea.vmem [#allocation1], 32
      %987 = vst [vmem:[%s986] ss:$2 sm:$0xff] %v934
      %s988 = scalar_lea.vmem [#allocation1], 33
      %989 = vst [vmem:[%s988] ss:$2 sm:$0xff] %v935
      %s990 = scalar_lea.vmem [#allocation1], 48
      %991 = vst [vmem:[%s990] ss:$2 sm:$0xff] %v936
      %s992 = scalar_lea.vmem [#allocation1], 49
      %993 = vst [vmem:[%s992] ss:$2 sm:$0xff] %v937
      %v994 = vld.sshfl [vmem:[#allocation1] sm:$0xff pattern:$0x75316420]
      %v995 = vld.sshfl [vmem:[#allocation1 + $0x10] sm:$0xff pattern:$0x75316420]
      %v996 = vld.sshfl [vmem:[#allocation1 + $0x20] sm:$0xff pattern:$0x75316420]
      %v997 = vld.sshfl [vmem:[#allocation1 + $0x30] sm:$0xff pattern:$0x75316420]
      %998 = vst [vmem:[#allocation1] ss:$2 sm:$0xff] %v938
      %999 = vst [vmem:[%s980] ss:$2 sm:$0xff] %v939
      %1000 = vst [vmem:[%s982] ss:$2 sm:$0xff] %v940
      %1001 = vst [vmem:[%s984] ss:$2 sm:$0xff] %v941
      %1002 = vst [vmem:[%s986] ss:$2 sm:$0xff] %v942
      %1003 = vst [vmem:[%s988] ss:$2 sm:$0xff] %v943
      %1004 = vst [vmem:[%s990] ss:$2 sm:$0xff] %v944
      %1005 = vst [vmem:[%s992] ss:$2 sm:$0xff] %v945
      %v1006 = vld.sshfl [vmem:[#allocation1] sm:$0xff pattern:$0x75316420]
      %v1007 = vld.sshfl [vmem:[#allocation1 + $0x10] sm:$0xff pattern:$0x75316420]
      %v1008 = vld.sshfl [vmem:[#allocation1 + $0x20] sm:$0xff pattern:$0x75316420]
      %v1009 = vld.sshfl [vmem:[#allocation1 + $0x30] sm:$0xff pattern:$0x75316420]
      %1018 = vmatpush.msra.mxu0 %v962
      %1019 = vmatpush.msra.mxu0 %v961
      %1020 = vmatpush.msra.mxu0 %v960
      %1021 = vmatpush.msra.mxu0 %v959
      %1022 = vmatpush.msra.mxu0 %v958
      %1023 = vmatpush.msra.mxu0 %v957
      %1024 = vmatpush.msra.mxu0 %v956
      %1025 = vmatpush.msra.mxu0 %v955
      %1026 = vmatpush.msra.mxu0 %v954
      %1027 = vmatpush.msra.mxu0 %v953
      %1028 = vmatpush.msra.mxu0 %v952
      %1029 = vmatpush.msra.mxu0 %v951
      %1030 = vmatpush.msra.mxu0 %v950
      %1031 = vmatpush.msra.mxu0 %v949
      %1032 = vmatpush.msra.mxu0 %v948
      %1033 = vmatpush.msra.mxu0 %v947
      %1034 = vmatmul.f32.gmra.mxu0 %v994
      %v1035 = vpop.f32.mrf.mxu0
      %v1036 = vadd.f32 0.0, %v1035
      %1037 = vmatmul.f32.gmra.mxu0 %v995
      %v1038 = vpop.f32.mrf.mxu0
      %v1039 = vadd.f32 0.0, %v1038
      %1040 = vmatmul.f32.gmra.mxu0 %v996
      %v1041 = vpop.f32.mrf.mxu0
      %v1042 = vadd.f32 0.0, %v1041
      %1043 = vmatmul.f32.gmra.mxu0 %v997
      %v1044 = vpop.f32.mrf.mxu0
      %v1045 = vadd.f32 0.0, %v1044
      %1046 = vmatmul.f32.gmra.mxu0 %v1006
      %v1047 = vpop.f32.mrf.mxu0
      %v1048 = vadd.f32 0.0, %v1047
      %1049 = vmatmul.f32.gmra.mxu0 %v1007
      %v1050 = vpop.f32.mrf.mxu0
      %v1051 = vadd.f32 0.0, %v1050
      %1052 = vmatmul.f32.gmra.mxu0 %v1008
      %v1053 = vpop.f32.mrf.mxu0
      %v1054 = vadd.f32 0.0, %v1053
      %1055 = vmatmul.f32.gmra.mxu0 %v1009
      %v1056 = vpop.f32.mrf.mxu0
      %v1057 = vadd.f32 0.0, %v1056
      %1058 = vdwg.mxu0
      %v1059 = vadd.f32 %v922, %v1036
      %v1060 = vadd.f32 %v923, %v1039
      %v1061 = vadd.f32 %v924, %v1042
      %v1062 = vadd.f32 %v925, %v1045
      %v1063 = vadd.f32 %v926, %v1048
      %v1064 = vadd.f32 %v927, %v1051
      %v1065 = vadd.f32 %v928, %v1054
      %v1066 = vadd.f32 %v929, %v1057
      %s1067 = scalar_lea.vmem [#allocation2], 16
      %v1068 = vld [vmem:[%s1067] sm:$0xf]
      %v1069 = vld [vmem:[%s1067 + $0x8] sm:$0xf]
      %v1070 = vld [vmem:[%s1067 + $0x10] sm:$0xf]
      %v1071 = vld [vmem:[%s1067 + $0x18] sm:$0xf]
      %v1072 = vld [vmem:[%s1067 + $0x20] sm:$0xf]
      %v1073 = vld [vmem:[%s1067 + $0x28] sm:$0xf]
      %v1074 = vld [vmem:[%s1067 + $0x30] sm:$0xf]
      %v1075 = vld [vmem:[%s1067 + $0x38] sm:$0xf]
      %v1076 = vld [vmem:[%s1067 + $0x40] sm:$0xf]
      %v1077 = vld [vmem:[%s1067 + $0x48] sm:$0xf]
      %v1078 = vld [vmem:[%s1067 + $0x50] sm:$0xf]
      %v1079 = vld [vmem:[%s1067 + $0x58] sm:$0xf]
      %v1080 = vld [vmem:[%s1067 + $0x60] sm:$0xf]
      %v1081 = vld [vmem:[%s1067 + $0x68] sm:$0xf]
      %v1082 = vld [vmem:[%s1067 + $0x70] sm:$0xf]
      %v1083 = vld [vmem:[%s1067 + $0x78] sm:$0xf]
      %s1084 = scalar_lea.vmem %s1, 768
      %v1085 = vld [vmem:[%s1084] sm:$0xff]
      %v1086 = vld [vmem:[%s1084 + $0x8] sm:$0xff]
      %v1087 = vld [vmem:[%s1084 + $0x10] sm:$0xff]
      %v1088 = vld [vmem:[%s1084 + $0x18] sm:$0xff]
      %v1089 = vld [vmem:[%s1084 + $0x20] sm:$0xff]
      %v1090 = vld [vmem:[%s1084 + $0x28] sm:$0xff]
      %v1091 = vld [vmem:[%s1084 + $0x30] sm:$0xff]
      %v1092 = vld [vmem:[%s1084 + $0x38] sm:$0xff]
      %v1093 = vld [vmem:[%s1084 + $0x40] sm:$0xff]
      %v1094 = vld [vmem:[%s1084 + $0x48] sm:$0xff]
      %v1095 = vld [vmem:[%s1084 + $0x50] sm:$0xff]
      %v1096 = vld [vmem:[%s1084 + $0x58] sm:$0xff]
      %v1097 = vld [vmem:[%s1084 + $0x60] sm:$0xff]
      %v1098 = vld [vmem:[%s1084 + $0x68] sm:$0xff]
      %v1099 = vld [vmem:[%s1084 + $0x70] sm:$0xff]
      %v1100 = vld [vmem:[%s1084 + $0x78] sm:$0xff]
      %1117 = vst [vmem:[#allocation1] ss:$2 sm:$0xff] %v1068
      %s1118 = scalar_lea.vmem [#allocation1], 1
      %1119 = vst [vmem:[%s1118] ss:$2 sm:$0xff] %v1069
      %s1120 = scalar_lea.vmem [#allocation1], 16
      %1121 = vst [vmem:[%s1120] ss:$2 sm:$0xff] %v1070
      %s1122 = scalar_lea.vmem [#allocation1], 17
      %1123 = vst [vmem:[%s1122] ss:$2 sm:$0xff] %v1071
      %s1124 = scalar_lea.vmem [#allocation1], 32
      %1125 = vst [vmem:[%s1124] ss:$2 sm:$0xff] %v1072
      %s1126 = scalar_lea.vmem [#allocation1], 33
      %1127 = vst [vmem:[%s1126] ss:$2 sm:$0xff] %v1073
      %s1128 = scalar_lea.vmem [#allocation1], 48
      %1129 = vst [vmem:[%s1128] ss:$2 sm:$0xff] %v1074
      %s1130 = scalar_lea.vmem [#allocation1], 49
      %1131 = vst [vmem:[%s1130] ss:$2 sm:$0xff] %v1075
      %v1132 = vld.sshfl [vmem:[#allocation1] sm:$0xff pattern:$0x75316420]
      %v1133 = vld.sshfl [vmem:[#allocation1 + $0x10] sm:$0xff pattern:$0x75316420]
      %v1134 = vld.sshfl [vmem:[#allocation1 + $0x20] sm:$0xff pattern:$0x75316420]
      %v1135 = vld.sshfl [vmem:[#allocation1 + $0x30] sm:$0xff pattern:$0x75316420]
      %1136 = vst [vmem:[#allocation1] ss:$2 sm:$0xff] %v1076
      %1137 = vst [vmem:[%s1118] ss:$2 sm:$0xff] %v1077
      %1138 = vst [vmem:[%s1120] ss:$2 sm:$0xff] %v1078
      %1139 = vst [vmem:[%s1122] ss:$2 sm:$0xff] %v1079
      %1140 = vst [vmem:[%s1124] ss:$2 sm:$0xff] %v1080
      %1141 = vst [vmem:[%s1126] ss:$2 sm:$0xff] %v1081
      %1142 = vst [vmem:[%s1128] ss:$2 sm:$0xff] %v1082
      %1143 = vst [vmem:[%s1130] ss:$2 sm:$0xff] %v1083
      %v1144 = vld.sshfl [vmem:[#allocation1] sm:$0xff pattern:$0x75316420]
      %v1145 = vld.sshfl [vmem:[#allocation1 + $0x10] sm:$0xff pattern:$0x75316420]
      %v1146 = vld.sshfl [vmem:[#allocation1 + $0x20] sm:$0xff pattern:$0x75316420]
      %v1147 = vld.sshfl [vmem:[#allocation1 + $0x30] sm:$0xff pattern:$0x75316420]
      %1156 = vmatpush.msra.mxu0 %v1100
      %1157 = vmatpush.msra.mxu0 %v1099
      %1158 = vmatpush.msra.mxu0 %v1098
      %1159 = vmatpush.msra.mxu0 %v1097
      %1160 = vmatpush.msra.mxu0 %v1096
      %1161 = vmatpush.msra.mxu0 %v1095
      %1162 = vmatpush.msra.mxu0 %v1094
      %1163 = vmatpush.msra.mxu0 %v1093
      %1164 = vmatpush.msra.mxu0 %v1092
      %1165 = vmatpush.msra.mxu0 %v1091
      %1166 = vmatpush.msra.mxu0 %v1090
      %1167 = vmatpush.msra.mxu0 %v1089
      %1168 = vmatpush.msra.mxu0 %v1088
      %1169 = vmatpush.msra.mxu0 %v1087
      %1170 = vmatpush.msra.mxu0 %v1086
      %1171 = vmatpush.msra.mxu0 %v1085
      %1172 = vmatmul.f32.gmra.mxu0 %v1132
      %v1173 = vpop.f32.mrf.mxu0
      %v1174 = vadd.f32 0.0, %v1173
      %1175 = vmatmul.f32.gmra.mxu0 %v1133
      %v1176 = vpop.f32.mrf.mxu0
      %v1177 = vadd.f32 0.0, %v1176
      %1178 = vmatmul.f32.gmra.mxu0 %v1134
      %v1179 = vpop.f32.mrf.mxu0
      %v1180 = vadd.f32 0.0, %v1179
      %1181 = vmatmul.f32.gmra.mxu0 %v1135
      %v1182 = vpop.f32.mrf.mxu0
      %v1183 = vadd.f32 0.0, %v1182
      %1184 = vmatmul.f32.gmra.mxu0 %v1144
      %v1185 = vpop.f32.mrf.mxu0
      %v1186 = vadd.f32 0.0, %v1185
      %1187 = vmatmul.f32.gmra.mxu0 %v1145
      %v1188 = vpop.f32.mrf.mxu0
      %v1189 = vadd.f32 0.0, %v1188
      %1190 = vmatmul.f32.gmra.mxu0 %v1146
      %v1191 = vpop.f32.mrf.mxu0
      %v1192 = vadd.f32 0.0, %v1191
      %1193 = vmatmul.f32.gmra.mxu0 %v1147
      %v1194 = vpop.f32.mrf.mxu0
      %v1195 = vadd.f32 0.0, %v1194
      %1196 = vdwg.mxu0
      %v1197 = vadd.f32 %v1059, %v1174
      %v1198 = vadd.f32 %v1060, %v1177
      %v1199 = vadd.f32 %v1061, %v1180
      %v1200 = vadd.f32 %v1062, %v1183
      %v1201 = vadd.f32 %v1063, %v1186
      %v1202 = vadd.f32 %v1064, %v1189
      %v1203 = vadd.f32 %v1065, %v1192
      %v1204 = vadd.f32 %v1066, %v1195
      %v1205 = vld [vmem:[%s1067 + $0x1] sm:$0xf]
      %v1206 = vld [vmem:[%s1067 + $0x9] sm:$0xf]
      %v1207 = vld [vmem:[%s1067 + $0x11] sm:$0xf]
      %v1208 = vld [vmem:[%s1067 + $0x19] sm:$0xf]
      %v1209 = vld [vmem:[%s1067 + $0x21] sm:$0xf]
      %v1210 = vld [vmem:[%s1067 + $0x29] sm:$0xf]
      %v1211 = vld [vmem:[%s1067 + $0x31] sm:$0xf]
      %v1212 = vld [vmem:[%s1067 + $0x39] sm:$0xf]
      %v1213 = vld [vmem:[%s1067 + $0x41] sm:$0xf]
      %v1214 = vld [vmem:[%s1067 + $0x49] sm:$0xf]
      %v1215 = vld [vmem:[%s1067 + $0x51] sm:$0xf]
      %v1216 = vld [vmem:[%s1067 + $0x59] sm:$0xf]
      %v1217 = vld [vmem:[%s1067 + $0x61] sm:$0xf]
      %v1218 = vld [vmem:[%s1067 + $0x69] sm:$0xf]
      %v1219 = vld [vmem:[%s1067 + $0x71] sm:$0xf]
      %v1220 = vld [vmem:[%s1067 + $0x79] sm:$0xf]
      %s1221 = scalar_lea.vmem %s1, 896
      %v1222 = vld [vmem:[%s1221] sm:$0xff]
      %v1223 = vld [vmem:[%s1221 + $0x8] sm:$0xff]
      %v1224 = vld [vmem:[%s1221 + $0x10] sm:$0xff]
      %v1225 = vld [vmem:[%s1221 + $0x18] sm:$0xff]
      %v1226 = vld [vmem:[%s1221 + $0x20] sm:$0xff]
      %v1227 = vld [vmem:[%s1221 + $0x28] sm:$0xff]
      %v1228 = vld [vmem:[%s1221 + $0x30] sm:$0xff]
      %v1229 = vld [vmem:[%s1221 + $0x38] sm:$0xff]
      %v1230 = vld [vmem:[%s1221 + $0x40] sm:$0xff]
      %v1231 = vld [vmem:[%s1221 + $0x48] sm:$0xff]
      %v1232 = vld [vmem:[%s1221 + $0x50] sm:$0xff]
      %v1233 = vld [vmem:[%s1221 + $0x58] sm:$0xff]
      %v1234 = vld [vmem:[%s1221 + $0x60] sm:$0xff]
      %v1235 = vld [vmem:[%s1221 + $0x68] sm:$0xff]
      %v1236 = vld [vmem:[%s1221 + $0x70] sm:$0xff]
      %v1237 = vld [vmem:[%s1221 + $0x78] sm:$0xff]
      %1254 = vst [vmem:[#allocation1] ss:$2 sm:$0xff] %v1205
      %s1255 = scalar_lea.vmem [#allocation1], 1
      %1256 = vst [vmem:[%s1255] ss:$2 sm:$0xff] %v1206
      %s1257 = scalar_lea.vmem [#allocation1], 16
      %1258 = vst [vmem:[%s1257] ss:$2 sm:$0xff] %v1207
      %s1259 = scalar_lea.vmem [#allocation1], 17
      %1260 = vst [vmem:[%s1259] ss:$2 sm:$0xff] %v1208
      %s1261 = scalar_lea.vmem [#allocation1], 32
      %1262 = vst [vmem:[%s1261] ss:$2 sm:$0xff] %v1209
      %s1263 = scalar_lea.vmem [#allocation1], 33
      %1264 = vst [vmem:[%s1263] ss:$2 sm:$0xff] %v1210
      %s1265 = scalar_lea.vmem [#allocation1], 48
      %1266 = vst [vmem:[%s1265] ss:$2 sm:$0xff] %v1211
      %s1267 = scalar_lea.vmem [#allocation1], 49
      %1268 = vst [vmem:[%s1267] ss:$2 sm:$0xff] %v1212
      %v1269 = vld.sshfl [vmem:[#allocation1] sm:$0xff pattern:$0x75316420]
      %v1270 = vld.sshfl [vmem:[#allocation1 + $0x10] sm:$0xff pattern:$0x75316420]
      %v1271 = vld.sshfl [vmem:[#allocation1 + $0x20] sm:$0xff pattern:$0x75316420]
      %v1272 = vld.sshfl [vmem:[#allocation1 + $0x30] sm:$0xff pattern:$0x75316420]
      %1273 = vst [vmem:[#allocation1] ss:$2 sm:$0xff] %v1213
      %1274 = vst [vmem:[%s1255] ss:$2 sm:$0xff] %v1214
      %1275 = vst [vmem:[%s1257] ss:$2 sm:$0xff] %v1215
      %1276 = vst [vmem:[%s1259] ss:$2 sm:$0xff] %v1216
      %1277 = vst [vmem:[%s1261] ss:$2 sm:$0xff] %v1217
      %1278 = vst [vmem:[%s1263] ss:$2 sm:$0xff] %v1218
      %1279 = vst [vmem:[%s1265] ss:$2 sm:$0xff] %v1219
      %1280 = vst [vmem:[%s1267] ss:$2 sm:$0xff] %v1220
      %v1281 = vld.sshfl [vmem:[#allocation1] sm:$0xff pattern:$0x75316420]
      %v1282 = vld.sshfl [vmem:[#allocation1 + $0x10] sm:$0xff pattern:$0x75316420]
      %v1283 = vld.sshfl [vmem:[#allocation1 + $0x20] sm:$0xff pattern:$0x75316420]
      %v1284 = vld.sshfl [vmem:[#allocation1 + $0x30] sm:$0xff pattern:$0x75316420]
      %1293 = vmatpush.msra.mxu0 %v1237
      %1294 = vmatpush.msra.mxu0 %v1236
      %1295 = vmatpush.msra.mxu0 %v1235
      %1296 = vmatpush.msra.mxu0 %v1234
      %1297 = vmatpush.msra.mxu0 %v1233
      %1298 = vmatpush.msra.mxu0 %v1232
      %1299 = vmatpush.msra.mxu0 %v1231
      %1300 = vmatpush.msra.mxu0 %v1230
      %1301 = vmatpush.msra.mxu0 %v1229
      %1302 = vmatpush.msra.mxu0 %v1228
      %1303 = vmatpush.msra.mxu0 %v1227
      %1304 = vmatpush.msra.mxu0 %v1226
      %1305 = vmatpush.msra.mxu0 %v1225
      %1306 = vmatpush.msra.mxu0 %v1224
      %1307 = vmatpush.msra.mxu0 %v1223
      %1308 = vmatpush.msra.mxu0 %v1222
      %1309 = vmatmul.f32.gmra.mxu0 %v1269
      %v1310 = vpop.f32.mrf.mxu0
      %v1311 = vadd.f32 0.0, %v1310
      %1312 = vmatmul.f32.gmra.mxu0 %v1270
      %v1313 = vpop.f32.mrf.mxu0
      %v1314 = vadd.f32 0.0, %v1313
      %1315 = vmatmul.f32.gmra.mxu0 %v1271
      %v1316 = vpop.f32.mrf.mxu0
      %v1317 = vadd.f32 0.0, %v1316
      %1318 = vmatmul.f32.gmra.mxu0 %v1272
      %v1319 = vpop.f32.mrf.mxu0
      %v1320 = vadd.f32 0.0, %v1319
      %1321 = vmatmul.f32.gmra.mxu0 %v1281
      %v1322 = vpop.f32.mrf.mxu0
      %v1323 = vadd.f32 0.0, %v1322
      %1324 = vmatmul.f32.gmra.mxu0 %v1282
      %v1325 = vpop.f32.mrf.mxu0
      %v1326 = vadd.f32 0.0, %v1325
      %1327 = vmatmul.f32.gmra.mxu0 %v1283
      %v1328 = vpop.f32.mrf.mxu0
      %v1329 = vadd.f32 0.0, %v1328
      %1330 = vmatmul.f32.gmra.mxu0 %v1284
      %v1331 = vpop.f32.mrf.mxu0
      %v1332 = vadd.f32 0.0, %v1331
      %1333 = vdwg.mxu0
      %v1334 = vadd.f32 %v1197, %v1311
      %v1335 = vadd.f32 %v1198, %v1314
      %v1336 = vadd.f32 %v1199, %v1317
      %v1337 = vadd.f32 %v1200, %v1320
      %v1338 = vadd.f32 %v1201, %v1323
      %v1339 = vadd.f32 %v1202, %v1326
      %v1340 = vadd.f32 %v1203, %v1329
      %v1341 = vadd.f32 %v1204, %v1332
      %v1342 = vld [vmem:[%s1067 + $0x2] sm:$0xf]
      %v1343 = vld [vmem:[%s1067 + $0xa] sm:$0xf]
      %v1344 = vld [vmem:[%s1067 + $0x12] sm:$0xf]
      %v1345 = vld [vmem:[%s1067 + $0x1a] sm:$0xf]
      %v1346 = vld [vmem:[%s1067 + $0x22] sm:$0xf]
      %v1347 = vld [vmem:[%s1067 + $0x2a] sm:$0xf]
      %v1348 = vld [vmem:[%s1067 + $0x32] sm:$0xf]
      %v1349 = vld [vmem:[%s1067 + $0x3a] sm:$0xf]
      %v1350 = vld [vmem:[%s1067 + $0x42] sm:$0xf]
      %v1351 = vld [vmem:[%s1067 + $0x4a] sm:$0xf]
      %v1352 = vld [vmem:[%s1067 + $0x52] sm:$0xf]
      %v1353 = vld [vmem:[%s1067 + $0x5a] sm:$0xf]
      %v1354 = vld [vmem:[%s1067 + $0x62] sm:$0xf]
      %v1355 = vld [vmem:[%s1067 + $0x6a] sm:$0xf]
      %v1356 = vld [vmem:[%s1067 + $0x72] sm:$0xf]
      %v1357 = vld [vmem:[%s1067 + $0x7a] sm:$0xf]
      %s1358 = scalar_lea.vmem %s1, 1024
      %v1359 = vld [vmem:[%s1358] sm:$0xff]
      %v1360 = vld [vmem:[%s1358 + $0x8] sm:$0xff]
      %v1361 = vld [vmem:[%s1358 + $0x10] sm:$0xff]
      %v1362 = vld [vmem:[%s1358 + $0x18] sm:$0xff]
      %v1363 = vld [vmem:[%s1358 + $0x20] sm:$0xff]
      %v1364 = vld [vmem:[%s1358 + $0x28] sm:$0xff]
      %v1365 = vld [vmem:[%s1358 + $0x30] sm:$0xff]
      %v1366 = vld [vmem:[%s1358 + $0x38] sm:$0xff]
      %v1367 = vld [vmem:[%s1358 + $0x40] sm:$0xff]
      %v1368 = vld [vmem:[%s1358 + $0x48] sm:$0xff]
      %v1369 = vld [vmem:[%s1358 + $0x50] sm:$0xff]
      %v1370 = vld [vmem:[%s1358 + $0x58] sm:$0xff]
      %v1371 = vld [vmem:[%s1358 + $0x60] sm:$0xff]
      %v1372 = vld [vmem:[%s1358 + $0x68] sm:$0xff]
      %v1373 = vld [vmem:[%s1358 + $0x70] sm:$0xff]
      %v1374 = vld [vmem:[%s1358 + $0x78] sm:$0xff]
      %1391 = vst [vmem:[#allocation1] ss:$2 sm:$0xff] %v1342
      %s1392 = scalar_lea.vmem [#allocation1], 1
      %1393 = vst [vmem:[%s1392] ss:$2 sm:$0xff] %v1343
      %s1394 = scalar_lea.vmem [#allocation1], 16
      %1395 = vst [vmem:[%s1394] ss:$2 sm:$0xff] %v1344
      %s1396 = scalar_lea.vmem [#allocation1], 17
      %1397 = vst [vmem:[%s1396] ss:$2 sm:$0xff] %v1345
      %s1398 = scalar_lea.vmem [#allocation1], 32
      %1399 = vst [vmem:[%s1398] ss:$2 sm:$0xff] %v1346
      %s1400 = scalar_lea.vmem [#allocation1], 33
      %1401 = vst [vmem:[%s1400] ss:$2 sm:$0xff] %v1347
      %s1402 = scalar_lea.vmem [#allocation1], 48
      %1403 = vst [vmem:[%s1402] ss:$2 sm:$0xff] %v1348
      %s1404 = scalar_lea.vmem [#allocation1], 49
      %1405 = vst [vmem:[%s1404] ss:$2 sm:$0xff] %v1349
      %v1406 = vld.sshfl [vmem:[#allocation1] sm:$0xff pattern:$0x75316420]
      %v1407 = vld.sshfl [vmem:[#allocation1 + $0x10] sm:$0xff pattern:$0x75316420]
      %v1408 = vld.sshfl [vmem:[#allocation1 + $0x20] sm:$0xff pattern:$0x75316420]
      %v1409 = vld.sshfl [vmem:[#allocation1 + $0x30] sm:$0xff pattern:$0x75316420]
      %1410 = vst [vmem:[#allocation1] ss:$2 sm:$0xff] %v1350
      %1411 = vst [vmem:[%s1392] ss:$2 sm:$0xff] %v1351
      %1412 = vst [vmem:[%s1394] ss:$2 sm:$0xff] %v1352
      %1413 = vst [vmem:[%s1396] ss:$2 sm:$0xff] %v1353
      %1414 = vst [vmem:[%s1398] ss:$2 sm:$0xff] %v1354
      %1415 = vst [vmem:[%s1400] ss:$2 sm:$0xff] %v1355
      %1416 = vst [vmem:[%s1402] ss:$2 sm:$0xff] %v1356
      %1417 = vst [vmem:[%s1404] ss:$2 sm:$0xff] %v1357
      %v1418 = vld.sshfl [vmem:[#allocation1] sm:$0xff pattern:$0x75316420]
      %v1419 = vld.sshfl [vmem:[#allocation1 + $0x10] sm:$0xff pattern:$0x75316420]
      %v1420 = vld.sshfl [vmem:[#allocation1 + $0x20] sm:$0xff pattern:$0x75316420]
      %v1421 = vld.sshfl [vmem:[#allocation1 + $0x30] sm:$0xff pattern:$0x75316420]
      %1430 = vmatpush.msra.mxu0 %v1374
      %1431 = vmatpush.msra.mxu0 %v1373
      %1432 = vmatpush.msra.mxu0 %v1372
      %1433 = vmatpush.msra.mxu0 %v1371
      %1434 = vmatpush.msra.mxu0 %v1370
      %1435 = vmatpush.msra.mxu0 %v1369
      %1436 = vmatpush.msra.mxu0 %v1368
      %1437 = vmatpush.msra.mxu0 %v1367
      %1438 = vmatpush.msra.mxu0 %v1366
      %1439 = vmatpush.msra.mxu0 %v1365
      %1440 = vmatpush.msra.mxu0 %v1364
      %1441 = vmatpush.msra.mxu0 %v1363
      %1442 = vmatpush.msra.mxu0 %v1362
      %1443 = vmatpush.msra.mxu0 %v1361
      %1444 = vmatpush.msra.mxu0 %v1360
      %1445 = vmatpush.msra.mxu0 %v1359
      %1446 = vmatmul.f32.gmra.mxu0 %v1406
      %v1447 = vpop.f32.mrf.mxu0
      %v1448 = vadd.f32 0.0, %v1447
      %1449 = vmatmul.f32.gmra.mxu0 %v1407
      %v1450 = vpop.f32.mrf.mxu0
      %v1451 = vadd.f32 0.0, %v1450
      %1452 = vmatmul.f32.gmra.mxu0 %v1408
      %v1453 = vpop.f32.mrf.mxu0
      %v1454 = vadd.f32 0.0, %v1453
      %1455 = vmatmul.f32.gmra.mxu0 %v1409
      %v1456 = vpop.f32.mrf.mxu0
      %v1457 = vadd.f32 0.0, %v1456
      %1458 = vmatmul.f32.gmra.mxu0 %v1418
      %v1459 = vpop.f32.mrf.mxu0
      %v1460 = vadd.f32 0.0, %v1459
      %1461 = vmatmul.f32.gmra.mxu0 %v1419
      %v1462 = vpop.f32.mrf.mxu0
      %v1463 = vadd.f32 0.0, %v1462
      %1464 = vmatmul.f32.gmra.mxu0 %v1420
      %v1465 = vpop.f32.mrf.mxu0
      %v1466 = vadd.f32 0.0, %v1465
      %1467 = vmatmul.f32.gmra.mxu0 %v1421
      %v1468 = vpop.f32.mrf.mxu0
      %v1469 = vadd.f32 0.0, %v1468
      %1470 = vdwg.mxu0
      %v1471 = vadd.f32 %v1334, %v1448
      %v1472 = vadd.f32 %v1335, %v1451
      %v1473 = vadd.f32 %v1336, %v1454
      %v1474 = vadd.f32 %v1337, %v1457
      %v1475 = vadd.f32 %v1338, %v1460
      %v1476 = vadd.f32 %v1339, %v1463
      %v1477 = vadd.f32 %v1340, %v1466
      %v1478 = vadd.f32 %v1341, %v1469
      %v1479 = vld [vmem:[%s2] sm:$0x1]
      %v1481 = vperm.slane %v1479, 0
      %v1483 = vmul.f32 %v1471, %v1481
      %v1484 = vmul.f32 %v1472, %v1481
      %v1485 = vmul.f32 %v1473, %v1481
      %v1486 = vmul.f32 %v1474, %v1481
      %v1487 = vmul.f32 %v1475, %v1481
      %v1488 = vmul.f32 %v1476, %v1481
      %v1489 = vmul.f32 %v1477, %v1481
      %v1490 = vmul.f32 %v1478, %v1481
      %v1491 = vld [vmem:[%s3] sm:$0x1]
      %v1493 = vperm.slane %v1491, 0
      %v1495 = vadd.f32 %v1483, %v1493
      %v1496 = vadd.f32 %v1484, %v1493
      %v1497 = vadd.f32 %v1485, %v1493
      %v1498 = vadd.f32 %v1486, %v1493
      %v1499 = vadd.f32 %v1487, %v1493
      %v1500 = vadd.f32 %v1488, %v1493
      %v1501 = vadd.f32 %v1489, %v1493
      %v1502 = vadd.f32 %v1490, %v1493
      %vm1503 = vcmp.ge.f32.partialorder %v1495, 0.0
      %vm1504 = vcmp.ge.f32.partialorder %v1496, 0.0
      %vm1505 = vcmp.ge.f32.partialorder %v1497, 0.0
      %vm1506 = vcmp.ge.f32.partialorder %v1498, 0.0
      %vm1507 = vcmp.ge.f32.partialorder %v1499, 0.0
      %vm1508 = vcmp.ge.f32.partialorder %v1500, 0.0
      %vm1509 = vcmp.ge.f32.partialorder %v1501, 0.0
      %vm1510 = vcmp.ge.f32.partialorder %v1502, 0.0
      %v1511 = vld [vmem:[%s4] sm:$0x1]
      %v1513 = vperm.slane %v1511, 0
      %v1515 = vmul.f32 %v1495, %v1513
      %v1516 = vmul.f32 %v1496, %v1513
      %v1517 = vmul.f32 %v1497, %v1513
      %v1518 = vmul.f32 %v1498, %v1513
      %v1519 = vmul.f32 %v1499, %v1513
      %v1520 = vmul.f32 %v1500, %v1513
      %v1521 = vmul.f32 %v1501, %v1513
      %v1522 = vmul.f32 %v1502, %v1513
      %v1523 = vsel %vm1503, %v1495, %v1515
      %v1524 = vsel %vm1504, %v1496, %v1516
      %v1525 = vsel %vm1505, %v1497, %v1517
      %v1526 = vsel %vm1506, %v1498, %v1518
      %v1527 = vsel %vm1507, %v1499, %v1519
      %v1528 = vsel %vm1508, %v1500, %v1520
      %v1529 = vsel %vm1509, %v1501, %v1521
      %v1530 = vsel %vm1510, %v1502, %v1522
      %v1539 = vrot.slane %v1523, 4
      %v1540 = vrot.slane %v1524, 4
      %v1541 = vrot.slane %v1525, 4
      %v1542 = vrot.slane %v1526, 4
      %v1543 = vrot.slane %v1527, 4
      %v1544 = vrot.slane %v1528, 4
      %v1545 = vrot.slane %v1529, 4
      %v1546 = vrot.slane %v1530, 4
      %1555 = vst [vmem:[%s655 + $0x1] sm:$0xf] %v1523
      %1556 = vst [vmem:[%s655 + $0x9] sm:$0xf] %v1539
      %1557 = vst [vmem:[%s655 + $0x11] sm:$0xf] %v1524
      %1558 = vst [vmem:[%s655 + $0x19] sm:$0xf] %v1540
      %1559 = vst [vmem:[%s655 + $0x21] sm:$0xf] %v1525
      %1560 = vst [vmem:[%s655 + $0x29] sm:$0xf] %v1541
      %1561 = vst [vmem:[%s655 + $0x31] sm:$0xf] %v1526
      %1562 = vst [vmem:[%s655 + $0x39] sm:$0xf] %v1542
      %1563 = vst [vmem:[%s655 + $0x41] sm:$0xf] %v1527
      %1564 = vst [vmem:[%s655 + $0x49] sm:$0xf] %v1543
      %1565 = vst [vmem:[%s655 + $0x51] sm:$0xf] %v1528
      %1566 = vst [vmem:[%s655 + $0x59] sm:$0xf] %v1544
      %1567 = vst [vmem:[%s655 + $0x61] sm:$0xf] %v1529
      %1568 = vst [vmem:[%s655 + $0x69] sm:$0xf] %v1545
      %1569 = vst [vmem:[%s655 + $0x71] sm:$0xf] %v1530
      %1570 = vst [vmem:[%s655 + $0x79] sm:$0xf] %v1546
      %v1571 = vld [vmem:[#allocation2] sm:$0xf]
      %v1572 = vld [vmem:[#allocation2 + $0x8] sm:$0xf]
      %v1573 = vld [vmem:[#allocation2 + $0x10] sm:$0xf]
      %v1574 = vld [vmem:[#allocation2 + $0x18] sm:$0xf]
      %v1575 = vld [vmem:[#allocation2 + $0x20] sm:$0xf]
      %v1576 = vld [vmem:[#allocation2 + $0x28] sm:$0xf]
      %v1577 = vld [vmem:[#allocation2 + $0x30] sm:$0xf]
      %v1578 = vld [vmem:[#allocation2 + $0x38] sm:$0xf]
      %v1579 = vld [vmem:[#allocation2 + $0x40] sm:$0xf]
      %v1580 = vld [vmem:[#allocation2 + $0x48] sm:$0xf]
      %v1581 = vld [vmem:[#allocation2 + $0x50] sm:$0xf]
      %v1582 = vld [vmem:[#allocation2 + $0x58] sm:$0xf]
      %v1583 = vld [vmem:[#allocation2 + $0x60] sm:$0xf]
      %v1584 = vld [vmem:[#allocation2 + $0x68] sm:$0xf]
      %v1585 = vld [vmem:[#allocation2 + $0x70] sm:$0xf]
      %v1586 = vld [vmem:[#allocation2 + $0x78] sm:$0xf]
      %s1587 = scalar_lea.vmem %s1, 1152
      %v1588 = vld [vmem:[%s1587] sm:$0xff]
      %v1589 = vld [vmem:[%s1587 + $0x8] sm:$0xff]
      %v1590 = vld [vmem:[%s1587 + $0x10] sm:$0xff]
      %v1591 = vld [vmem:[%s1587 + $0x18] sm:$0xff]
      %v1592 = vld [vmem:[%s1587 + $0x20] sm:$0xff]
      %v1593 = vld [vmem:[%s1587 + $0x28] sm:$0xff]
      %v1594 = vld [vmem:[%s1587 + $0x30] sm:$0xff]
      %v1595 = vld [vmem:[%s1587 + $0x38] sm:$0xff]
      %v1596 = vld [vmem:[%s1587 + $0x40] sm:$0xff]
      %v1597 = vld [vmem:[%s1587 + $0x48] sm:$0xff]
      %v1598 = vld [vmem:[%s1587 + $0x50] sm:$0xff]
      %v1599 = vld [vmem:[%s1587 + $0x58] sm:$0xff]
      %v1600 = vld [vmem:[%s1587 + $0x60] sm:$0xff]
      %v1601 = vld [vmem:[%s1587 + $0x68] sm:$0xff]
      %v1602 = vld [vmem:[%s1587 + $0x70] sm:$0xff]
      %v1603 = vld [vmem:[%s1587 + $0x78] sm:$0xff]
      %v1604 = vld [vmem:[#allocation2 + $0x1] sm:$0xf]
      %v1605 = vld [vmem:[#allocation2 + $0x9] sm:$0xf]
      %v1606 = vld [vmem:[#allocation2 + $0x11] sm:$0xf]
      %v1607 = vld [vmem:[#allocation2 + $0x19] sm:$0xf]
      %v1608 = vld [vmem:[#allocation2 + $0x21] sm:$0xf]
      %v1609 = vld [vmem:[#allocation2 + $0x29] sm:$0xf]
      %v1610 = vld [vmem:[#allocation2 + $0x31] sm:$0xf]
      %v1611 = vld [vmem:[#allocation2 + $0x39] sm:$0xf]
      %v1612 = vld [vmem:[#allocation2 + $0x41] sm:$0xf]
      %v1613 = vld [vmem:[#allocation2 + $0x49] sm:$0xf]
      %v1614 = vld [vmem:[#allocation2 + $0x51] sm:$0xf]
      %v1615 = vld [vmem:[#allocation2 + $0x59] sm:$0xf]
      %v1616 = vld [vmem:[#allocation2 + $0x61] sm:$0xf]
      %v1617 = vld [vmem:[#allocation2 + $0x69] sm:$0xf]
      %v1618 = vld [vmem:[#allocation2 + $0x71] sm:$0xf]
      %v1619 = vld [vmem:[#allocation2 + $0x79] sm:$0xf]
      %s1620 = scalar_lea.vmem %s1, 1280
      %v1621 = vld [vmem:[%s1620] sm:$0xff]
      %v1622 = vld [vmem:[%s1620 + $0x8] sm:$0xff]
      %v1623 = vld [vmem:[%s1620 + $0x10] sm:$0xff]
      %v1624 = vld [vmem:[%s1620 + $0x18] sm:$0xff]
      %v1625 = vld [vmem:[%s1620 + $0x20] sm:$0xff]
      %v1626 = vld [vmem:[%s1620 + $0x28] sm:$0xff]
      %v1627 = vld [vmem:[%s1620 + $0x30] sm:$0xff]
      %v1628 = vld [vmem:[%s1620 + $0x38] sm:$0xff]
      %v1629 = vld [vmem:[%s1620 + $0x40] sm:$0xff]
      %v1630 = vld [vmem:[%s1620 + $0x48] sm:$0xff]
      %v1631 = vld [vmem:[%s1620 + $0x50] sm:$0xff]
      %v1632 = vld [vmem:[%s1620 + $0x58] sm:$0xff]
      %v1633 = vld [vmem:[%s1620 + $0x60] sm:$0xff]
      %v1634 = vld [vmem:[%s1620 + $0x68] sm:$0xff]
      %v1635 = vld [vmem:[%s1620 + $0x70] sm:$0xff]
      %v1636 = vld [vmem:[%s1620 + $0x78] sm:$0xff]
      %1653 = vst [vmem:[#allocation1] ss:$2 sm:$0xff] %v1604
      %s1654 = scalar_lea.vmem [#allocation1], 1
      %1655 = vst [vmem:[%s1654] ss:$2 sm:$0xff] %v1605
      %s1656 = scalar_lea.vmem [#allocation1], 16
      %1657 = vst [vmem:[%s1656] ss:$2 sm:$0xff] %v1606
      %s1658 = scalar_lea.vmem [#allocation1], 17
      %1659 = vst [vmem:[%s1658] ss:$2 sm:$0xff] %v1607
      %s1660 = scalar_lea.vmem [#allocation1], 32
      %1661 = vst [vmem:[%s1660] ss:$2 sm:$0xff] %v1608
      %s1662 = scalar_lea.vmem [#allocation1], 33
      %1663 = vst [vmem:[%s1662] ss:$2 sm:$0xff] %v1609
      %s1664 = scalar_lea.vmem [#allocation1], 48
      %1665 = vst [vmem:[%s1664] ss:$2 sm:$0xff] %v1610
      %s1666 = scalar_lea.vmem [#allocation1], 49
      %1667 = vst [vmem:[%s1666] ss:$2 sm:$0xff] %v1611
      %v1668 = vld.sshfl [vmem:[#allocation1] sm:$0xff pattern:$0x75316420]
      %v1669 = vld.sshfl [vmem:[#allocation1 + $0x10] sm:$0xff pattern:$0x75316420]
      %v1670 = vld.sshfl [vmem:[#allocation1 + $0x20] sm:$0xff pattern:$0x75316420]
      %v1671 = vld.sshfl [vmem:[#allocation1 + $0x30] sm:$0xff pattern:$0x75316420]
      %1672 = vst [vmem:[#allocation1] ss:$2 sm:$0xff] %v1612
      %1673 = vst [vmem:[%s1654] ss:$2 sm:$0xff] %v1613
      %1674 = vst [vmem:[%s1656] ss:$2 sm:$0xff] %v1614
      %1675 = vst [vmem:[%s1658] ss:$2 sm:$0xff] %v1615
      %1676 = vst [vmem:[%s1660] ss:$2 sm:$0xff] %v1616
      %1677 = vst [vmem:[%s1662] ss:$2 sm:$0xff] %v1617
      %1678 = vst [vmem:[%s1664] ss:$2 sm:$0xff] %v1618
      %1679 = vst [vmem:[%s1666] ss:$2 sm:$0xff] %v1619
      %v1680 = vld.sshfl [vmem:[#allocation1] sm:$0xff pattern:$0x75316420]
      %v1681 = vld.sshfl [vmem:[#allocation1 + $0x10] sm:$0xff pattern:$0x75316420]
      %v1682 = vld.sshfl [vmem:[#allocation1 + $0x20] sm:$0xff pattern:$0x75316420]
      %v1683 = vld.sshfl [vmem:[#allocation1 + $0x30] sm:$0xff pattern:$0x75316420]
      %1692 = vmatpush.msra.mxu0 %v1636
      %1693 = vmatpush.msra.mxu0 %v1635
      %1694 = vmatpush.msra.mxu0 %v1634
      %1695 = vmatpush.msra.mxu0 %v1633
      %1696 = vmatpush.msra.mxu0 %v1632
      %1697 = vmatpush.msra.mxu0 %v1631
      %1698 = vmatpush.msra.mxu0 %v1630
      %1699 = vmatpush.msra.mxu0 %v1629
      %1700 = vmatpush.msra.mxu0 %v1628
      %1701 = vmatpush.msra.mxu0 %v1627
      %1702 = vmatpush.msra.mxu0 %v1626
      %1703 = vmatpush.msra.mxu0 %v1625
      %1704 = vmatpush.msra.mxu0 %v1624
      %1705 = vmatpush.msra.mxu0 %v1623
      %1706 = vmatpush.msra.mxu0 %v1622
      %1707 = vmatpush.msra.mxu0 %v1621
      %1708 = vmatmul.f32.gmra.mxu0 %v1668
      %v1709 = vpop.f32.mrf.mxu0
      %v1710 = vadd.f32 0.0, %v1709
      %1711 = vmatmul.f32.gmra.mxu0 %v1669
      %v1712 = vpop.f32.mrf.mxu0
      %v1713 = vadd.f32 0.0, %v1712
      %1714 = vmatmul.f32.gmra.mxu0 %v1670
      %v1715 = vpop.f32.mrf.mxu0
      %v1716 = vadd.f32 0.0, %v1715
      %1717 = vmatmul.f32.gmra.mxu0 %v1671
      %v1718 = vpop.f32.mrf.mxu0
      %v1719 = vadd.f32 0.0, %v1718
      %1720 = vmatmul.f32.gmra.mxu0 %v1680
      %v1721 = vpop.f32.mrf.mxu0
      %v1722 = vadd.f32 0.0, %v1721
      %1723 = vmatmul.f32.gmra.mxu0 %v1681
      %v1724 = vpop.f32.mrf.mxu0
      %v1725 = vadd.f32 0.0, %v1724
      %1726 = vmatmul.f32.gmra.mxu0 %v1682
      %v1727 = vpop.f32.mrf.mxu0
      %v1728 = vadd.f32 0.0, %v1727
      %1729 = vmatmul.f32.gmra.mxu0 %v1683
      %v1730 = vpop.f32.mrf.mxu0
      %v1731 = vadd.f32 0.0, %v1730
      %1732 = vdwg.mxu0
      %1749 = vst [vmem:[#allocation1] ss:$2 sm:$0xff] %v1571
      %s1750 = scalar_lea.vmem [#allocation1], 1
      %1751 = vst [vmem:[%s1750] ss:$2 sm:$0xff] %v1572
      %s1752 = scalar_lea.vmem [#allocation1], 16
      %1753 = vst [vmem:[%s1752] ss:$2 sm:$0xff] %v1573
      %s1754 = scalar_lea.vmem [#allocation1], 17
      %1755 = vst [vmem:[%s1754] ss:$2 sm:$0xff] %v1574
      %s1756 = scalar_lea.vmem [#allocation1], 32
      %1757 = vst [vmem:[%s1756] ss:$2 sm:$0xff] %v1575
      %s1758 = scalar_lea.vmem [#allocation1], 33
      %1759 = vst [vmem:[%s1758] ss:$2 sm:$0xff] %v1576
      %s1760 = scalar_lea.vmem [#allocation1], 48
      %1761 = vst [vmem:[%s1760] ss:$2 sm:$0xff] %v1577
      %s1762 = scalar_lea.vmem [#allocation1], 49
      %1763 = vst [vmem:[%s1762] ss:$2 sm:$0xff] %v1578
      %v1764 = vld.sshfl [vmem:[#allocation1] sm:$0xff pattern:$0x75316420]
      %v1765 = vld.sshfl [vmem:[#allocation1 + $0x10] sm:$0xff pattern:$0x75316420]
      %v1766 = vld.sshfl [vmem:[#allocation1 + $0x20] sm:$0xff pattern:$0x75316420]
      %v1767 = vld.sshfl [vmem:[#allocation1 + $0x30] sm:$0xff pattern:$0x75316420]
      %1768 = vst [vmem:[#allocation1] ss:$2 sm:$0xff] %v1579
      %1769 = vst [vmem:[%s1750] ss:$2 sm:$0xff] %v1580
      %1770 = vst [vmem:[%s1752] ss:$2 sm:$0xff] %v1581
      %1771 = vst [vmem:[%s1754] ss:$2 sm:$0xff] %v1582
      %1772 = vst [vmem:[%s1756] ss:$2 sm:$0xff] %v1583
      %1773 = vst [vmem:[%s1758] ss:$2 sm:$0xff] %v1584
      %1774 = vst [vmem:[%s1760] ss:$2 sm:$0xff] %v1585
      %1775 = vst [vmem:[%s1762] ss:$2 sm:$0xff] %v1586
      %v1776 = vld.sshfl [vmem:[#allocation1] sm:$0xff pattern:$0x75316420]
      %v1777 = vld.sshfl [vmem:[#allocation1 + $0x10] sm:$0xff pattern:$0x75316420]
      %v1778 = vld.sshfl [vmem:[#allocation1 + $0x20] sm:$0xff pattern:$0x75316420]
      %v1779 = vld.sshfl [vmem:[#allocation1 + $0x30] sm:$0xff pattern:$0x75316420]
      %1788 = vmatpush.msra.mxu0 %v1603
      %1789 = vmatpush.msra.mxu0 %v1602
      %1790 = vmatpush.msra.mxu0 %v1601
      %1791 = vmatpush.msra.mxu0 %v1600
      %1792 = vmatpush.msra.mxu0 %v1599
      %1793 = vmatpush.msra.mxu0 %v1598
      %1794 = vmatpush.msra.mxu0 %v1597
      %1795 = vmatpush.msra.mxu0 %v1596
      %1796 = vmatpush.msra.mxu0 %v1595
      %1797 = vmatpush.msra.mxu0 %v1594
      %1798 = vmatpush.msra.mxu0 %v1593
      %1799 = vmatpush.msra.mxu0 %v1592
      %1800 = vmatpush.msra.mxu0 %v1591
      %1801 = vmatpush.msra.mxu0 %v1590
      %1802 = vmatpush.msra.mxu0 %v1589
      %1803 = vmatpush.msra.mxu0 %v1588
      %1804 = vmatmul.f32.gmra.mxu0 %v1764
      %v1805 = vpop.f32.mrf.mxu0
      %v1806 = vadd.f32 %v1710, %v1805
      %1807 = vmatmul.f32.gmra.mxu0 %v1765
      %v1808 = vpop.f32.mrf.mxu0
      %v1809 = vadd.f32 %v1713, %v1808
      %1810 = vmatmul.f32.gmra.mxu0 %v1766
      %v1811 = vpop.f32.mrf.mxu0
      %v1812 = vadd.f32 %v1716, %v1811
      %1813 = vmatmul.f32.gmra.mxu0 %v1767
      %v1814 = vpop.f32.mrf.mxu0
      %v1815 = vadd.f32 %v1719, %v1814
      %1816 = vmatmul.f32.gmra.mxu0 %v1776
      %v1817 = vpop.f32.mrf.mxu0
      %v1818 = vadd.f32 %v1722, %v1817
      %1819 = vmatmul.f32.gmra.mxu0 %v1777
      %v1820 = vpop.f32.mrf.mxu0
      %v1821 = vadd.f32 %v1725, %v1820
      %1822 = vmatmul.f32.gmra.mxu0 %v1778
      %v1823 = vpop.f32.mrf.mxu0
      %v1824 = vadd.f32 %v1728, %v1823
      %1825 = vmatmul.f32.gmra.mxu0 %v1779
      %v1826 = vpop.f32.mrf.mxu0
      %v1827 = vadd.f32 %v1731, %v1826
      %1828 = vdwg.mxu0
      %v1829 = vld [vmem:[#allocation2 + $0x2] sm:$0xf]
      %v1830 = vld [vmem:[#allocation2 + $0xa] sm:$0xf]
      %v1831 = vld [vmem:[#allocation2 + $0x12] sm:$0xf]
      %v1832 = vld [vmem:[#allocation2 + $0x1a] sm:$0xf]
      %v1833 = vld [vmem:[#allocation2 + $0x22] sm:$0xf]
      %v1834 = vld [vmem:[#allocation2 + $0x2a] sm:$0xf]
      %v1835 = vld [vmem:[#allocation2 + $0x32] sm:$0xf]
      %v1836 = vld [vmem:[#allocation2 + $0x3a] sm:$0xf]
      %v1837 = vld [vmem:[#allocation2 + $0x42] sm:$0xf]
      %v1838 = vld [vmem:[#allocation2 + $0x4a] sm:$0xf]
      %v1839 = vld [vmem:[#allocation2 + $0x52] sm:$0xf]
      %v1840 = vld [vmem:[#allocation2 + $0x5a] sm:$0xf]
      %v1841 = vld [vmem:[#allocation2 + $0x62] sm:$0xf]
      %v1842 = vld [vmem:[#allocation2 + $0x6a] sm:$0xf]
      %v1843 = vld [vmem:[#allocation2 + $0x72] sm:$0xf]
      %v1844 = vld [vmem:[#allocation2 + $0x7a] sm:$0xf]
      %s1845 = scalar_lea.vmem %s1, 1408
      %v1846 = vld [vmem:[%s1845] sm:$0xff]
      %v1847 = vld [vmem:[%s1845 + $0x8] sm:$0xff]
      %v1848 = vld [vmem:[%s1845 + $0x10] sm:$0xff]
      %v1849 = vld [vmem:[%s1845 + $0x18] sm:$0xff]
      %v1850 = vld [vmem:[%s1845 + $0x20] sm:$0xff]
      %v1851 = vld [vmem:[%s1845 + $0x28] sm:$0xff]
      %v1852 = vld [vmem:[%s1845 + $0x30] sm:$0xff]
      %v1853 = vld [vmem:[%s1845 + $0x38] sm:$0xff]
      %v1854 = vld [vmem:[%s1845 + $0x40] sm:$0xff]
      %v1855 = vld [vmem:[%s1845 + $0x48] sm:$0xff]
      %v1856 = vld [vmem:[%s1845 + $0x50] sm:$0xff]
      %v1857 = vld [vmem:[%s1845 + $0x58] sm:$0xff]
      %v1858 = vld [vmem:[%s1845 + $0x60] sm:$0xff]
      %v1859 = vld [vmem:[%s1845 + $0x68] sm:$0xff]
      %v1860 = vld [vmem:[%s1845 + $0x70] sm:$0xff]
      %v1861 = vld [vmem:[%s1845 + $0x78] sm:$0xff]
      %1878 = vst [vmem:[#allocation1] ss:$2 sm:$0xff] %v1829
      %s1879 = scalar_lea.vmem [#allocation1], 1
      %1880 = vst [vmem:[%s1879] ss:$2 sm:$0xff] %v1830
      %s1881 = scalar_lea.vmem [#allocation1], 16
      %1882 = vst [vmem:[%s1881] ss:$2 sm:$0xff] %v1831
      %s1883 = scalar_lea.vmem [#allocation1], 17
      %1884 = vst [vmem:[%s1883] ss:$2 sm:$0xff] %v1832
      %s1885 = scalar_lea.vmem [#allocation1], 32
      %1886 = vst [vmem:[%s1885] ss:$2 sm:$0xff] %v1833
      %s1887 = scalar_lea.vmem [#allocation1], 33
      %1888 = vst [vmem:[%s1887] ss:$2 sm:$0xff] %v1834
      %s1889 = scalar_lea.vmem [#allocation1], 48
      %1890 = vst [vmem:[%s1889] ss:$2 sm:$0xff] %v1835
      %s1891 = scalar_lea.vmem [#allocation1], 49
      %1892 = vst [vmem:[%s1891] ss:$2 sm:$0xff] %v1836
      %v1893 = vld.sshfl [vmem:[#allocation1] sm:$0xff pattern:$0x75316420]
      %v1894 = vld.sshfl [vmem:[#allocation1 + $0x10] sm:$0xff pattern:$0x75316420]
      %v1895 = vld.sshfl [vmem:[#allocation1 + $0x20] sm:$0xff pattern:$0x75316420]
      %v1896 = vld.sshfl [vmem:[#allocation1 + $0x30] sm:$0xff pattern:$0x75316420]
      %1897 = vst [vmem:[#allocation1] ss:$2 sm:$0xff] %v1837
      %1898 = vst [vmem:[%s1879] ss:$2 sm:$0xff] %v1838
      %1899 = vst [vmem:[%s1881] ss:$2 sm:$0xff] %v1839
      %1900 = vst [vmem:[%s1883] ss:$2 sm:$0xff] %v1840
      %1901 = vst [vmem:[%s1885] ss:$2 sm:$0xff] %v1841
      %1902 = vst [vmem:[%s1887] ss:$2 sm:$0xff] %v1842
      %1903 = vst [vmem:[%s1889] ss:$2 sm:$0xff] %v1843
      %1904 = vst [vmem:[%s1891] ss:$2 sm:$0xff] %v1844
      %v1905 = vld.sshfl [vmem:[#allocation1] sm:$0xff pattern:$0x75316420]
      %v1906 = vld.sshfl [vmem:[#allocation1 + $0x10] sm:$0xff pattern:$0x75316420]
      %v1907 = vld.sshfl [vmem:[#allocation1 + $0x20] sm:$0xff pattern:$0x75316420]
      %v1908 = vld.sshfl [vmem:[#allocation1 + $0x30] sm:$0xff pattern:$0x75316420]
      %1917 = vmatpush.msra.mxu0 %v1861
      %1918 = vmatpush.msra.mxu0 %v1860
      %1919 = vmatpush.msra.mxu0 %v1859
      %1920 = vmatpush.msra.mxu0 %v1858
      %1921 = vmatpush.msra.mxu0 %v1857
      %1922 = vmatpush.msra.mxu0 %v1856
      %1923 = vmatpush.msra.mxu0 %v1855
      %1924 = vmatpush.msra.mxu0 %v1854
      %1925 = vmatpush.msra.mxu0 %v1853
      %1926 = vmatpush.msra.mxu0 %v1852
      %1927 = vmatpush.msra.mxu0 %v1851
      %1928 = vmatpush.msra.mxu0 %v1850
      %1929 = vmatpush.msra.mxu0 %v1849
      %1930 = vmatpush.msra.mxu0 %v1848
      %1931 = vmatpush.msra.mxu0 %v1847
      %1932 = vmatpush.msra.mxu0 %v1846
      %1933 = vmatmul.f32.gmra.mxu0 %v1893
      %v1934 = vpop.f32.mrf.mxu0
      %v1935 = vadd.f32 0.0, %v1934
      %1936 = vmatmul.f32.gmra.mxu0 %v1894
      %v1937 = vpop.f32.mrf.mxu0
      %v1938 = vadd.f32 0.0, %v1937
      %1939 = vmatmul.f32.gmra.mxu0 %v1895
      %v1940 = vpop.f32.mrf.mxu0
      %v1941 = vadd.f32 0.0, %v1940
      %1942 = vmatmul.f32.gmra.mxu0 %v1896
      %v1943 = vpop.f32.mrf.mxu0
      %v1944 = vadd.f32 0.0, %v1943
      %1945 = vmatmul.f32.gmra.mxu0 %v1905
      %v1946 = vpop.f32.mrf.mxu0
      %v1947 = vadd.f32 0.0, %v1946
      %1948 = vmatmul.f32.gmra.mxu0 %v1906
      %v1949 = vpop.f32.mrf.mxu0
      %v1950 = vadd.f32 0.0, %v1949
      %1951 = vmatmul.f32.gmra.mxu0 %v1907
      %v1952 = vpop.f32.mrf.mxu0
      %v1953 = vadd.f32 0.0, %v1952
      %1954 = vmatmul.f32.gmra.mxu0 %v1908
      %v1955 = vpop.f32.mrf.mxu0
      %v1956 = vadd.f32 0.0, %v1955
      %1957 = vdwg.mxu0
      %v1958 = vadd.f32 %v1806, %v1935
      %v1959 = vadd.f32 %v1809, %v1938
      %v1960 = vadd.f32 %v1812, %v1941
      %v1961 = vadd.f32 %v1815, %v1944
      %v1962 = vadd.f32 %v1818, %v1947
      %v1963 = vadd.f32 %v1821, %v1950
      %v1964 = vadd.f32 %v1824, %v1953
      %v1965 = vadd.f32 %v1827, %v1956
      %v1966 = vld [vmem:[%s655] sm:$0xf]
      %v1967 = vld [vmem:[%s655 + $0x8] sm:$0xf]
      %v1968 = vld [vmem:[%s655 + $0x10] sm:$0xf]
      %v1969 = vld [vmem:[%s655 + $0x18] sm:$0xf]
      %v1970 = vld [vmem:[%s655 + $0x20] sm:$0xf]
      %v1971 = vld [vmem:[%s655 + $0x28] sm:$0xf]
      %v1972 = vld [vmem:[%s655 + $0x30] sm:$0xf]
      %v1973 = vld [vmem:[%s655 + $0x38] sm:$0xf]
      %v1974 = vld [vmem:[%s655 + $0x40] sm:$0xf]
      %v1975 = vld [vmem:[%s655 + $0x48] sm:$0xf]
      %v1976 = vld [vmem:[%s655 + $0x50] sm:$0xf]
      %v1977 = vld [vmem:[%s655 + $0x58] sm:$0xf]
      %v1978 = vld [vmem:[%s655 + $0x60] sm:$0xf]
      %v1979 = vld [vmem:[%s655 + $0x68] sm:$0xf]
      %v1980 = vld [vmem:[%s655 + $0x70] sm:$0xf]
      %v1981 = vld [vmem:[%s655 + $0x78] sm:$0xf]
      %s1982 = scalar_lea.vmem %s1, 1536
      %v1983 = vld [vmem:[%s1982] sm:$0xff]
      %v1984 = vld [vmem:[%s1982 + $0x8] sm:$0xff]
      %v1985 = vld [vmem:[%s1982 + $0x10] sm:$0xff]
      %v1986 = vld [vmem:[%s1982 + $0x18] sm:$0xff]
      %v1987 = vld [vmem:[%s1982 + $0x20] sm:$0xff]
      %v1988 = vld [vmem:[%s1982 + $0x28] sm:$0xff]
      %v1989 = vld [vmem:[%s1982 + $0x30] sm:$0xff]
      %v1990 = vld [vmem:[%s1982 + $0x38] sm:$0xff]
      %v1991 = vld [vmem:[%s1982 + $0x40] sm:$0xff]
      %v1992 = vld [vmem:[%s1982 + $0x48] sm:$0xff]
      %v1993 = vld [vmem:[%s1982 + $0x50] sm:$0xff]
      %v1994 = vld [vmem:[%s1982 + $0x58] sm:$0xff]
      %v1995 = vld [vmem:[%s1982 + $0x60] sm:$0xff]
      %v1996 = vld [vmem:[%s1982 + $0x68] sm:$0xff]
      %v1997 = vld [vmem:[%s1982 + $0x70] sm:$0xff]
      %v1998 = vld [vmem:[%s1982 + $0x78] sm:$0xff]
      %2015 = vst [vmem:[#allocation1] ss:$2 sm:$0xff] %v1966
      %s2016 = scalar_lea.vmem [#allocation1], 1
      %2017 = vst [vmem:[%s2016] ss:$2 sm:$0xff] %v1967
      %s2018 = scalar_lea.vmem [#allocation1], 16
      %2019 = vst [vmem:[%s2018] ss:$2 sm:$0xff] %v1968
      %s2020 = scalar_lea.vmem [#allocation1], 17
      %2021 = vst [vmem:[%s2020] ss:$2 sm:$0xff] %v1969
      %s2022 = scalar_lea.vmem [#allocation1], 32
      %2023 = vst [vmem:[%s2022] ss:$2 sm:$0xff] %v1970
      %s2024 = scalar_lea.vmem [#allocation1], 33
      %2025 = vst [vmem:[%s2024] ss:$2 sm:$0xff] %v1971
      %s2026 = scalar_lea.vmem [#allocation1], 48
      %2027 = vst [vmem:[%s2026] ss:$2 sm:$0xff] %v1972
      %s2028 = scalar_lea.vmem [#allocation1], 49
      %2029 = vst [vmem:[%s2028] ss:$2 sm:$0xff] %v1973
      %v2030 = vld.sshfl [vmem:[#allocation1] sm:$0xff pattern:$0x75316420]
      %v2031 = vld.sshfl [vmem:[#allocation1 + $0x10] sm:$0xff pattern:$0x75316420]
      %v2032 = vld.sshfl [vmem:[#allocation1 + $0x20] sm:$0xff pattern:$0x75316420]
      %v2033 = vld.sshfl [vmem:[#allocation1 + $0x30] sm:$0xff pattern:$0x75316420]
      %2034 = vst [vmem:[#allocation1] ss:$2 sm:$0xff] %v1974
      %2035 = vst [vmem:[%s2016] ss:$2 sm:$0xff] %v1975
      %2036 = vst [vmem:[%s2018] ss:$2 sm:$0xff] %v1976
      %2037 = vst [vmem:[%s2020] ss:$2 sm:$0xff] %v1977
      %2038 = vst [vmem:[%s2022] ss:$2 sm:$0xff] %v1978
      %2039 = vst [vmem:[%s2024] ss:$2 sm:$0xff] %v1979
      %2040 = vst [vmem:[%s2026] ss:$2 sm:$0xff] %v1980
      %2041 = vst [vmem:[%s2028] ss:$2 sm:$0xff] %v1981
      %v2042 = vld.sshfl [vmem:[#allocation1] sm:$0xff pattern:$0x75316420]
      %v2043 = vld.sshfl [vmem:[#allocation1 + $0x10] sm:$0xff pattern:$0x75316420]
      %v2044 = vld.sshfl [vmem:[#allocation1 + $0x20] sm:$0xff pattern:$0x75316420]
      %v2045 = vld.sshfl [vmem:[#allocation1 + $0x30] sm:$0xff pattern:$0x75316420]
      %2054 = vmatpush.msra.mxu0 %v1998
      %2055 = vmatpush.msra.mxu0 %v1997
      %2056 = vmatpush.msra.mxu0 %v1996
      %2057 = vmatpush.msra.mxu0 %v1995
      %2058 = vmatpush.msra.mxu0 %v1994
      %2059 = vmatpush.msra.mxu0 %v1993
      %2060 = vmatpush.msra.mxu0 %v1992
      %2061 = vmatpush.msra.mxu0 %v1991
      %2062 = vmatpush.msra.mxu0 %v1990
      %2063 = vmatpush.msra.mxu0 %v1989
      %2064 = vmatpush.msra.mxu0 %v1988
      %2065 = vmatpush.msra.mxu0 %v1987
      %2066 = vmatpush.msra.mxu0 %v1986
      %2067 = vmatpush.msra.mxu0 %v1985
      %2068 = vmatpush.msra.mxu0 %v1984
      %2069 = vmatpush.msra.mxu0 %v1983
      %2070 = vmatmul.f32.gmra.mxu0 %v2030
      %v2071 = vpop.f32.mrf.mxu0
      %v2072 = vadd.f32 0.0, %v2071
      %2073 = vmatmul.f32.gmra.mxu0 %v2031
      %v2074 = vpop.f32.mrf.mxu0
      %v2075 = vadd.f32 0.0, %v2074
      %2076 = vmatmul.f32.gmra.mxu0 %v2032
      %v2077 = vpop.f32.mrf.mxu0
      %v2078 = vadd.f32 0.0, %v2077
      %2079 = vmatmul.f32.gmra.mxu0 %v2033
      %v2080 = vpop.f32.mrf.mxu0
      %v2081 = vadd.f32 0.0, %v2080
      %2082 = vmatmul.f32.gmra.mxu0 %v2042
      %v2083 = vpop.f32.mrf.mxu0
      %v2084 = vadd.f32 0.0, %v2083
      %2085 = vmatmul.f32.gmra.mxu0 %v2043
      %v2086 = vpop.f32.mrf.mxu0
      %v2087 = vadd.f32 0.0, %v2086
      %2088 = vmatmul.f32.gmra.mxu0 %v2044
      %v2089 = vpop.f32.mrf.mxu0
      %v2090 = vadd.f32 0.0, %v2089
      %2091 = vmatmul.f32.gmra.mxu0 %v2045
      %v2092 = vpop.f32.mrf.mxu0
      %v2093 = vadd.f32 0.0, %v2092
      %2094 = vdwg.mxu0
      %v2095 = vadd.f32 %v1958, %v2072
      %v2096 = vadd.f32 %v1959, %v2075
      %v2097 = vadd.f32 %v1960, %v2078
      %v2098 = vadd.f32 %v1961, %v2081
      %v2099 = vadd.f32 %v1962, %v2084
      %v2100 = vadd.f32 %v1963, %v2087
      %v2101 = vadd.f32 %v1964, %v2090
      %v2102 = vadd.f32 %v1965, %v2093
      %v2103 = vld [vmem:[%s655 + $0x1] sm:$0xf]
      %v2104 = vld [vmem:[%s655 + $0x9] sm:$0xf]
      %v2105 = vld [vmem:[%s655 + $0x11] sm:$0xf]
      %v2106 = vld [vmem:[%s655 + $0x19] sm:$0xf]
      %v2107 = vld [vmem:[%s655 + $0x21] sm:$0xf]
      %v2108 = vld [vmem:[%s655 + $0x29] sm:$0xf]
      %v2109 = vld [vmem:[%s655 + $0x31] sm:$0xf]
      %v2110 = vld [vmem:[%s655 + $0x39] sm:$0xf]
      %v2111 = vld [vmem:[%s655 + $0x41] sm:$0xf]
      %v2112 = vld [vmem:[%s655 + $0x49] sm:$0xf]
      %v2113 = vld [vmem:[%s655 + $0x51] sm:$0xf]
      %v2114 = vld [vmem:[%s655 + $0x59] sm:$0xf]
      %v2115 = vld [vmem:[%s655 + $0x61] sm:$0xf]
      %v2116 = vld [vmem:[%s655 + $0x69] sm:$0xf]
      %v2117 = vld [vmem:[%s655 + $0x71] sm:$0xf]
      %v2118 = vld [vmem:[%s655 + $0x79] sm:$0xf]
      %s2119 = scalar_lea.vmem %s1, 1664
      %v2120 = vld [vmem:[%s2119] sm:$0xff]
      %v2121 = vld [vmem:[%s2119 + $0x8] sm:$0xff]
      %v2122 = vld [vmem:[%s2119 + $0x10] sm:$0xff]
      %v2123 = vld [vmem:[%s2119 + $0x18] sm:$0xff]
      %v2124 = vld [vmem:[%s2119 + $0x20] sm:$0xff]
      %v2125 = vld [vmem:[%s2119 + $0x28] sm:$0xff]
      %v2126 = vld [vmem:[%s2119 + $0x30] sm:$0xff]
      %v2127 = vld [vmem:[%s2119 + $0x38] sm:$0xff]
      %v2128 = vld [vmem:[%s2119 + $0x40] sm:$0xff]
      %v2129 = vld [vmem:[%s2119 + $0x48] sm:$0xff]
      %v2130 = vld [vmem:[%s2119 + $0x50] sm:$0xff]
      %v2131 = vld [vmem:[%s2119 + $0x58] sm:$0xff]
      %v2132 = vld [vmem:[%s2119 + $0x60] sm:$0xff]
      %v2133 = vld [vmem:[%s2119 + $0x68] sm:$0xff]
      %v2134 = vld [vmem:[%s2119 + $0x70] sm:$0xff]
      %v2135 = vld [vmem:[%s2119 + $0x78] sm:$0xff]
      %2152 = vst [vmem:[#allocation1] ss:$2 sm:$0xff] %v2103
      %s2153 = scalar_lea.vmem [#allocation1], 1
      %2154 = vst [vmem:[%s2153] ss:$2 sm:$0xff] %v2104
      %s2155 = scalar_lea.vmem [#allocation1], 16
      %2156 = vst [vmem:[%s2155] ss:$2 sm:$0xff] %v2105
      %s2157 = scalar_lea.vmem [#allocation1], 17
      %2158 = vst [vmem:[%s2157] ss:$2 sm:$0xff] %v2106
      %s2159 = scalar_lea.vmem [#allocation1], 32
      %2160 = vst [vmem:[%s2159] ss:$2 sm:$0xff] %v2107
      %s2161 = scalar_lea.vmem [#allocation1], 33
      %2162 = vst [vmem:[%s2161] ss:$2 sm:$0xff] %v2108
      %s2163 = scalar_lea.vmem [#allocation1], 48
      %2164 = vst [vmem:[%s2163] ss:$2 sm:$0xff] %v2109
      %s2165 = scalar_lea.vmem [#allocation1], 49
      %2166 = vst [vmem:[%s2165] ss:$2 sm:$0xff] %v2110
      %v2167 = vld.sshfl [vmem:[#allocation1] sm:$0xff pattern:$0x75316420]
      %v2168 = vld.sshfl [vmem:[#allocation1 + $0x10] sm:$0xff pattern:$0x75316420]
      %v2169 = vld.sshfl [vmem:[#allocation1 + $0x20] sm:$0xff pattern:$0x75316420]
      %v2170 = vld.sshfl [vmem:[#allocation1 + $0x30] sm:$0xff pattern:$0x75316420]
      %2171 = vst [vmem:[#allocation1] ss:$2 sm:$0xff] %v2111
      %2172 = vst [vmem:[%s2153] ss:$2 sm:$0xff] %v2112
      %2173 = vst [vmem:[%s2155] ss:$2 sm:$0xff] %v2113
      %2174 = vst [vmem:[%s2157] ss:$2 sm:$0xff] %v2114
      %2175 = vst [vmem:[%s2159] ss:$2 sm:$0xff] %v2115
      %2176 = vst [vmem:[%s2161] ss:$2 sm:$0xff] %v2116
      %2177 = vst [vmem:[%s2163] ss:$2 sm:$0xff] %v2117
      %2178 = vst [vmem:[%s2165] ss:$2 sm:$0xff] %v2118
      %v2179 = vld.sshfl [vmem:[#allocation1] sm:$0xff pattern:$0x75316420]
      %v2180 = vld.sshfl [vmem:[#allocation1 + $0x10] sm:$0xff pattern:$0x75316420]
      %v2181 = vld.sshfl [vmem:[#allocation1 + $0x20] sm:$0xff pattern:$0x75316420]
      %v2182 = vld.sshfl [vmem:[#allocation1 + $0x30] sm:$0xff pattern:$0x75316420]
      %2191 = vmatpush.msra.mxu0 %v2135
      %2192 = vmatpush.msra.mxu0 %v2134
      %2193 = vmatpush.msra.mxu0 %v2133
      %2194 = vmatpush.msra.mxu0 %v2132
      %2195 = vmatpush.msra.mxu0 %v2131
      %2196 = vmatpush.msra.mxu0 %v2130
      %2197 = vmatpush.msra.mxu0 %v2129
      %2198 = vmatpush.msra.mxu0 %v2128
      %2199 = vmatpush.msra.mxu0 %v2127
      %2200 = vmatpush.msra.mxu0 %v2126
      %2201 = vmatpush.msra.mxu0 %v2125
      %2202 = vmatpush.msra.mxu0 %v2124
      %2203 = vmatpush.msra.mxu0 %v2123
      %2204 = vmatpush.msra.mxu0 %v2122
      %2205 = vmatpush.msra.mxu0 %v2121
      %2206 = vmatpush.msra.mxu0 %v2120
      %2207 = vmatmul.f32.gmra.mxu0 %v2167
      %v2208 = vpop.f32.mrf.mxu0
      %v2209 = vadd.f32 0.0, %v2208
      %2210 = vmatmul.f32.gmra.mxu0 %v2168
      %v2211 = vpop.f32.mrf.mxu0
      %v2212 = vadd.f32 0.0, %v2211
      %2213 = vmatmul.f32.gmra.mxu0 %v2169
      %v2214 = vpop.f32.mrf.mxu0
      %v2215 = vadd.f32 0.0, %v2214
      %2216 = vmatmul.f32.gmra.mxu0 %v2170
      %v2217 = vpop.f32.mrf.mxu0
      %v2218 = vadd.f32 0.0, %v2217
      %2219 = vmatmul.f32.gmra.mxu0 %v2179
      %v2220 = vpop.f32.mrf.mxu0
      %v2221 = vadd.f32 0.0, %v2220
      %2222 = vmatmul.f32.gmra.mxu0 %v2180
      %v2223 = vpop.f32.mrf.mxu0
      %v2224 = vadd.f32 0.0, %v2223
      %2225 = vmatmul.f32.gmra.mxu0 %v2181
      %v2226 = vpop.f32.mrf.mxu0
      %v2227 = vadd.f32 0.0, %v2226
      %2228 = vmatmul.f32.gmra.mxu0 %v2182
      %v2229 = vpop.f32.mrf.mxu0
      %v2230 = vadd.f32 0.0, %v2229
      %2231 = vdwg.mxu0
      %v2232 = vadd.f32 %v2095, %v2209
      %v2233 = vadd.f32 %v2096, %v2212
      %v2234 = vadd.f32 %v2097, %v2215
      %v2235 = vadd.f32 %v2098, %v2218
      %v2236 = vadd.f32 %v2099, %v2221
      %v2237 = vadd.f32 %v2100, %v2224
      %v2238 = vadd.f32 %v2101, %v2227
      %v2239 = vadd.f32 %v2102, %v2230
      %v2240 = vld [vmem:[%s655 + $0x2] sm:$0xf]
      %v2241 = vld [vmem:[%s655 + $0xa] sm:$0xf]
      %v2242 = vld [vmem:[%s655 + $0x12] sm:$0xf]
      %v2243 = vld [vmem:[%s655 + $0x1a] sm:$0xf]
      %v2244 = vld [vmem:[%s655 + $0x22] sm:$0xf]
      %v2245 = vld [vmem:[%s655 + $0x2a] sm:$0xf]
      %v2246 = vld [vmem:[%s655 + $0x32] sm:$0xf]
      %v2247 = vld [vmem:[%s655 + $0x3a] sm:$0xf]
      %v2248 = vld [vmem:[%s655 + $0x42] sm:$0xf]
      %v2249 = vld [vmem:[%s655 + $0x4a] sm:$0xf]
      %v2250 = vld [vmem:[%s655 + $0x52] sm:$0xf]
      %v2251 = vld [vmem:[%s655 + $0x5a] sm:$0xf]
      %v2252 = vld [vmem:[%s655 + $0x62] sm:$0xf]
      %v2253 = vld [vmem:[%s655 + $0x6a] sm:$0xf]
      %v2254 = vld [vmem:[%s655 + $0x72] sm:$0xf]
      %v2255 = vld [vmem:[%s655 + $0x7a] sm:$0xf]
      %s2256 = scalar_lea.vmem %s1, 1792
      %v2257 = vld [vmem:[%s2256] sm:$0xff]
      %v2258 = vld [vmem:[%s2256 + $0x8] sm:$0xff]
      %v2259 = vld [vmem:[%s2256 + $0x10] sm:$0xff]
      %v2260 = vld [vmem:[%s2256 + $0x18] sm:$0xff]
      %v2261 = vld [vmem:[%s2256 + $0x20] sm:$0xff]
      %v2262 = vld [vmem:[%s2256 + $0x28] sm:$0xff]
      %v2263 = vld [vmem:[%s2256 + $0x30] sm:$0xff]
      %v2264 = vld [vmem:[%s2256 + $0x38] sm:$0xff]
      %v2265 = vld [vmem:[%s2256 + $0x40] sm:$0xff]
      %v2266 = vld [vmem:[%s2256 + $0x48] sm:$0xff]
      %v2267 = vld [vmem:[%s2256 + $0x50] sm:$0xff]
      %v2268 = vld [vmem:[%s2256 + $0x58] sm:$0xff]
      %v2269 = vld [vmem:[%s2256 + $0x60] sm:$0xff]
      %v2270 = vld [vmem:[%s2256 + $0x68] sm:$0xff]
      %v2271 = vld [vmem:[%s2256 + $0x70] sm:$0xff]
      %v2272 = vld [vmem:[%s2256 + $0x78] sm:$0xff]
      %2289 = vst [vmem:[#allocation1] ss:$2 sm:$0xff] %v2240
      %s2290 = scalar_lea.vmem [#allocation1], 1
      %2291 = vst [vmem:[%s2290] ss:$2 sm:$0xff] %v2241
      %s2292 = scalar_lea.vmem [#allocation1], 16
      %2293 = vst [vmem:[%s2292] ss:$2 sm:$0xff] %v2242
      %s2294 = scalar_lea.vmem [#allocation1], 17
      %2295 = vst [vmem:[%s2294] ss:$2 sm:$0xff] %v2243
      %s2296 = scalar_lea.vmem [#allocation1], 32
      %2297 = vst [vmem:[%s2296] ss:$2 sm:$0xff] %v2244
      %s2298 = scalar_lea.vmem [#allocation1], 33
      %2299 = vst [vmem:[%s2298] ss:$2 sm:$0xff] %v2245
      %s2300 = scalar_lea.vmem [#allocation1], 48
      %2301 = vst [vmem:[%s2300] ss:$2 sm:$0xff] %v2246
      %s2302 = scalar_lea.vmem [#allocation1], 49
      %2303 = vst [vmem:[%s2302] ss:$2 sm:$0xff] %v2247
      %v2304 = vld.sshfl [vmem:[#allocation1] sm:$0xff pattern:$0x75316420]
      %v2305 = vld.sshfl [vmem:[#allocation1 + $0x10] sm:$0xff pattern:$0x75316420]
      %v2306 = vld.sshfl [vmem:[#allocation1 + $0x20] sm:$0xff pattern:$0x75316420]
      %v2307 = vld.sshfl [vmem:[#allocation1 + $0x30] sm:$0xff pattern:$0x75316420]
      %2308 = vst [vmem:[#allocation1] ss:$2 sm:$0xff] %v2248
      %2309 = vst [vmem:[%s2290] ss:$2 sm:$0xff] %v2249
      %2310 = vst [vmem:[%s2292] ss:$2 sm:$0xff] %v2250
      %2311 = vst [vmem:[%s2294] ss:$2 sm:$0xff] %v2251
      %2312 = vst [vmem:[%s2296] ss:$2 sm:$0xff] %v2252
      %2313 = vst [vmem:[%s2298] ss:$2 sm:$0xff] %v2253
      %2314 = vst [vmem:[%s2300] ss:$2 sm:$0xff] %v2254
      %2315 = vst [vmem:[%s2302] ss:$2 sm:$0xff] %v2255
      %v2316 = vld.sshfl [vmem:[#allocation1] sm:$0xff pattern:$0x75316420]
      %v2317 = vld.sshfl [vmem:[#allocation1 + $0x10] sm:$0xff pattern:$0x75316420]
      %v2318 = vld.sshfl [vmem:[#allocation1 + $0x20] sm:$0xff pattern:$0x75316420]
      %v2319 = vld.sshfl [vmem:[#allocation1 + $0x30] sm:$0xff pattern:$0x75316420]
      %2328 = vmatpush.msra.mxu0 %v2272
      %2329 = vmatpush.msra.mxu0 %v2271
      %2330 = vmatpush.msra.mxu0 %v2270
      %2331 = vmatpush.msra.mxu0 %v2269
      %2332 = vmatpush.msra.mxu0 %v2268
      %2333 = vmatpush.msra.mxu0 %v2267
      %2334 = vmatpush.msra.mxu0 %v2266
      %2335 = vmatpush.msra.mxu0 %v2265
      %2336 = vmatpush.msra.mxu0 %v2264
      %2337 = vmatpush.msra.mxu0 %v2263
      %2338 = vmatpush.msra.mxu0 %v2262
      %2339 = vmatpush.msra.mxu0 %v2261
      %2340 = vmatpush.msra.mxu0 %v2260
      %2341 = vmatpush.msra.mxu0 %v2259
      %2342 = vmatpush.msra.mxu0 %v2258
      %2343 = vmatpush.msra.mxu0 %v2257
      %2344 = vmatmul.f32.gmra.mxu0 %v2304
      %v2345 = vpop.f32.mrf.mxu0
      %v2346 = vadd.f32 0.0, %v2345
      %2347 = vmatmul.f32.gmra.mxu0 %v2305
      %v2348 = vpop.f32.mrf.mxu0
      %v2349 = vadd.f32 0.0, %v2348
      %2350 = vmatmul.f32.gmra.mxu0 %v2306
      %v2351 = vpop.f32.mrf.mxu0
      %v2352 = vadd.f32 0.0, %v2351
      %2353 = vmatmul.f32.gmra.mxu0 %v2307
      %v2354 = vpop.f32.mrf.mxu0
      %v2355 = vadd.f32 0.0, %v2354
      %2356 = vmatmul.f32.gmra.mxu0 %v2316
      %v2357 = vpop.f32.mrf.mxu0
      %v2358 = vadd.f32 0.0, %v2357
      %2359 = vmatmul.f32.gmra.mxu0 %v2317
      %v2360 = vpop.f32.mrf.mxu0
      %v2361 = vadd.f32 0.0, %v2360
      %2362 = vmatmul.f32.gmra.mxu0 %v2318
      %v2363 = vpop.f32.mrf.mxu0
      %v2364 = vadd.f32 0.0, %v2363
      %2365 = vmatmul.f32.gmra.mxu0 %v2319
      %v2366 = vpop.f32.mrf.mxu0
      %v2367 = vadd.f32 0.0, %v2366
      %2368 = vdwg.mxu0
      %v2369 = vadd.f32 %v2232, %v2346
      %v2370 = vadd.f32 %v2233, %v2349
      %v2371 = vadd.f32 %v2234, %v2352
      %v2372 = vadd.f32 %v2235, %v2355
      %v2373 = vadd.f32 %v2236, %v2358
      %v2374 = vadd.f32 %v2237, %v2361
      %v2375 = vadd.f32 %v2238, %v2364
      %v2376 = vadd.f32 %v2239, %v2367
      %v2377 = vld [vmem:[%s1067] sm:$0xf]
      %v2378 = vld [vmem:[%s1067 + $0x8] sm:$0xf]
      %v2379 = vld [vmem:[%s1067 + $0x10] sm:$0xf]
      %v2380 = vld [vmem:[%s1067 + $0x18] sm:$0xf]
      %v2381 = vld [vmem:[%s1067 + $0x20] sm:$0xf]
      %v2382 = vld [vmem:[%s1067 + $0x28] sm:$0xf]
      %v2383 = vld [vmem:[%s1067 + $0x30] sm:$0xf]
      %v2384 = vld [vmem:[%s1067 + $0x38] sm:$0xf]
      %v2385 = vld [vmem:[%s1067 + $0x40] sm:$0xf]
      %v2386 = vld [vmem:[%s1067 + $0x48] sm:$0xf]
      %v2387 = vld [vmem:[%s1067 + $0x50] sm:$0xf]
      %v2388 = vld [vmem:[%s1067 + $0x58] sm:$0xf]
      %v2389 = vld [vmem:[%s1067 + $0x60] sm:$0xf]
      %v2390 = vld [vmem:[%s1067 + $0x68] sm:$0xf]
      %v2391 = vld [vmem:[%s1067 + $0x70] sm:$0xf]
      %v2392 = vld [vmem:[%s1067 + $0x78] sm:$0xf]
      %s2393 = scalar_lea.vmem %s1, 1920
      %v2394 = vld [vmem:[%s2393] sm:$0xff]
      %v2395 = vld [vmem:[%s2393 + $0x8] sm:$0xff]
      %v2396 = vld [vmem:[%s2393 + $0x10] sm:$0xff]
      %v2397 = vld [vmem:[%s2393 + $0x18] sm:$0xff]
      %v2398 = vld [vmem:[%s2393 + $0x20] sm:$0xff]
      %v2399 = vld [vmem:[%s2393 + $0x28] sm:$0xff]
      %v2400 = vld [vmem:[%s2393 + $0x30] sm:$0xff]
      %v2401 = vld [vmem:[%s2393 + $0x38] sm:$0xff]
      %v2402 = vld [vmem:[%s2393 + $0x40] sm:$0xff]
      %v2403 = vld [vmem:[%s2393 + $0x48] sm:$0xff]
      %v2404 = vld [vmem:[%s2393 + $0x50] sm:$0xff]
      %v2405 = vld [vmem:[%s2393 + $0x58] sm:$0xff]
      %v2406 = vld [vmem:[%s2393 + $0x60] sm:$0xff]
      %v2407 = vld [vmem:[%s2393 + $0x68] sm:$0xff]
      %v2408 = vld [vmem:[%s2393 + $0x70] sm:$0xff]
      %v2409 = vld [vmem:[%s2393 + $0x78] sm:$0xff]
      %2426 = vst [vmem:[#allocation1] ss:$2 sm:$0xff] %v2377
      %s2427 = scalar_lea.vmem [#allocation1], 1
      %2428 = vst [vmem:[%s2427] ss:$2 sm:$0xff] %v2378
      %s2429 = scalar_lea.vmem [#allocation1], 16
      %2430 = vst [vmem:[%s2429] ss:$2 sm:$0xff] %v2379
      %s2431 = scalar_lea.vmem [#allocation1], 17
      %2432 = vst [vmem:[%s2431] ss:$2 sm:$0xff] %v2380
      %s2433 = scalar_lea.vmem [#allocation1], 32
      %2434 = vst [vmem:[%s2433] ss:$2 sm:$0xff] %v2381
      %s2435 = scalar_lea.vmem [#allocation1], 33
      %2436 = vst [vmem:[%s2435] ss:$2 sm:$0xff] %v2382
      %s2437 = scalar_lea.vmem [#allocation1], 48
      %2438 = vst [vmem:[%s2437] ss:$2 sm:$0xff] %v2383
      %s2439 = scalar_lea.vmem [#allocation1], 49
      %2440 = vst [vmem:[%s2439] ss:$2 sm:$0xff] %v2384
      %v2441 = vld.sshfl [vmem:[#allocation1] sm:$0xff pattern:$0x75316420]
      %v2442 = vld.sshfl [vmem:[#allocation1 + $0x10] sm:$0xff pattern:$0x75316420]
      %v2443 = vld.sshfl [vmem:[#allocation1 + $0x20] sm:$0xff pattern:$0x75316420]
      %v2444 = vld.sshfl [vmem:[#allocation1 + $0x30] sm:$0xff pattern:$0x75316420]
      %2445 = vst [vmem:[#allocation1] ss:$2 sm:$0xff] %v2385
      %2446 = vst [vmem:[%s2427] ss:$2 sm:$0xff] %v2386
      %2447 = vst [vmem:[%s2429] ss:$2 sm:$0xff] %v2387
      %2448 = vst [vmem:[%s2431] ss:$2 sm:$0xff] %v2388
      %2449 = vst [vmem:[%s2433] ss:$2 sm:$0xff] %v2389
      %2450 = vst [vmem:[%s2435] ss:$2 sm:$0xff] %v2390
      %2451 = vst [vmem:[%s2437] ss:$2 sm:$0xff] %v2391
      %2452 = vst [vmem:[%s2439] ss:$2 sm:$0xff] %v2392
      %v2453 = vld.sshfl [vmem:[#allocation1] sm:$0xff pattern:$0x75316420]
      %v2454 = vld.sshfl [vmem:[#allocation1 + $0x10] sm:$0xff pattern:$0x75316420]
      %v2455 = vld.sshfl [vmem:[#allocation1 + $0x20] sm:$0xff pattern:$0x75316420]
      %v2456 = vld.sshfl [vmem:[#allocation1 + $0x30] sm:$0xff pattern:$0x75316420]
      %2465 = vmatpush.msra.mxu0 %v2409
      %2466 = vmatpush.msra.mxu0 %v2408
      %2467 = vmatpush.msra.mxu0 %v2407
      %2468 = vmatpush.msra.mxu0 %v2406
      %2469 = vmatpush.msra.mxu0 %v2405
      %2470 = vmatpush.msra.mxu0 %v2404
      %2471 = vmatpush.msra.mxu0 %v2403
      %2472 = vmatpush.msra.mxu0 %v2402
      %2473 = vmatpush.msra.mxu0 %v2401
      %2474 = vmatpush.msra.mxu0 %v2400
      %2475 = vmatpush.msra.mxu0 %v2399
      %2476 = vmatpush.msra.mxu0 %v2398
      %2477 = vmatpush.msra.mxu0 %v2397
      %2478 = vmatpush.msra.mxu0 %v2396
      %2479 = vmatpush.msra.mxu0 %v2395
      %2480 = vmatpush.msra.mxu0 %v2394
      %2481 = vmatmul.f32.gmra.mxu0 %v2441
      %v2482 = vpop.f32.mrf.mxu0
      %v2483 = vadd.f32 0.0, %v2482
      %2484 = vmatmul.f32.gmra.mxu0 %v2442
      %v2485 = vpop.f32.mrf.mxu0
      %v2486 = vadd.f32 0.0, %v2485
      %2487 = vmatmul.f32.gmra.mxu0 %v2443
      %v2488 = vpop.f32.mrf.mxu0
      %v2489 = vadd.f32 0.0, %v2488
      %2490 = vmatmul.f32.gmra.mxu0 %v2444
      %v2491 = vpop.f32.mrf.mxu0
      %v2492 = vadd.f32 0.0, %v2491
      %2493 = vmatmul.f32.gmra.mxu0 %v2453
      %v2494 = vpop.f32.mrf.mxu0
      %v2495 = vadd.f32 0.0, %v2494
      %2496 = vmatmul.f32.gmra.mxu0 %v2454
      %v2497 = vpop.f32.mrf.mxu0
      %v2498 = vadd.f32 0.0, %v2497
      %2499 = vmatmul.f32.gmra.mxu0 %v2455
      %v2500 = vpop.f32.mrf.mxu0
      %v2501 = vadd.f32 0.0, %v2500
      %2502 = vmatmul.f32.gmra.mxu0 %v2456
      %v2503 = vpop.f32.mrf.mxu0
      %v2504 = vadd.f32 0.0, %v2503
      %2505 = vdwg.mxu0
      %v2506 = vadd.f32 %v2369, %v2483
      %v2507 = vadd.f32 %v2370, %v2486
      %v2508 = vadd.f32 %v2371, %v2489
      %v2509 = vadd.f32 %v2372, %v2492
      %v2510 = vadd.f32 %v2373, %v2495
      %v2511 = vadd.f32 %v2374, %v2498
      %v2512 = vadd.f32 %v2375, %v2501
      %v2513 = vadd.f32 %v2376, %v2504
      %v2514 = vld [vmem:[%s1067 + $0x1] sm:$0xf]
      %v2515 = vld [vmem:[%s1067 + $0x9] sm:$0xf]
      %v2516 = vld [vmem:[%s1067 + $0x11] sm:$0xf]
      %v2517 = vld [vmem:[%s1067 + $0x19] sm:$0xf]
      %v2518 = vld [vmem:[%s1067 + $0x21] sm:$0xf]
      %v2519 = vld [vmem:[%s1067 + $0x29] sm:$0xf]
      %v2520 = vld [vmem:[%s1067 + $0x31] sm:$0xf]
      %v2521 = vld [vmem:[%s1067 + $0x39] sm:$0xf]
      %v2522 = vld [vmem:[%s1067 + $0x41] sm:$0xf]
      %v2523 = vld [vmem:[%s1067 + $0x49] sm:$0xf]
      %v2524 = vld [vmem:[%s1067 + $0x51] sm:$0xf]
      %v2525 = vld [vmem:[%s1067 + $0x59] sm:$0xf]
      %v2526 = vld [vmem:[%s1067 + $0x61] sm:$0xf]
      %v2527 = vld [vmem:[%s1067 + $0x69] sm:$0xf]
      %v2528 = vld [vmem:[%s1067 + $0x71] sm:$0xf]
      %v2529 = vld [vmem:[%s1067 + $0x79] sm:$0xf]
      %s2530 = scalar_lea.vmem %s1, 2048
      %v2531 = vld [vmem:[%s2530] sm:$0xff]
      %v2532 = vld [vmem:[%s2530 + $0x8] sm:$0xff]
      %v2533 = vld [vmem:[%s2530 + $0x10] sm:$0xff]
      %v2534 = vld [vmem:[%s2530 + $0x18] sm:$0xff]
      %v2535 = vld [vmem:[%s2530 + $0x20] sm:$0xff]
      %v2536 = vld [vmem:[%s2530 + $0x28] sm:$0xff]
      %v2537 = vld [vmem:[%s2530 + $0x30] sm:$0xff]
      %v2538 = vld [vmem:[%s2530 + $0x38] sm:$0xff]
      %v2539 = vld [vmem:[%s2530 + $0x40] sm:$0xff]
      %v2540 = vld [vmem:[%s2530 + $0x48] sm:$0xff]
      %v2541 = vld [vmem:[%s2530 + $0x50] sm:$0xff]
      %v2542 = vld [vmem:[%s2530 + $0x58] sm:$0xff]
      %v2543 = vld [vmem:[%s2530 + $0x60] sm:$0xff]
      %v2544 = vld [vmem:[%s2530 + $0x68] sm:$0xff]
      %v2545 = vld [vmem:[%s2530 + $0x70] sm:$0xff]
      %v2546 = vld [vmem:[%s2530 + $0x78] sm:$0xff]
      %2563 = vst [vmem:[#allocation1] ss:$2 sm:$0xff] %v2514
      %s2564 = scalar_lea.vmem [#allocation1], 1
      %2565 = vst [vmem:[%s2564] ss:$2 sm:$0xff] %v2515
      %s2566 = scalar_lea.vmem [#allocation1], 16
      %2567 = vst [vmem:[%s2566] ss:$2 sm:$0xff] %v2516
      %s2568 = scalar_lea.vmem [#allocation1], 17
      %2569 = vst [vmem:[%s2568] ss:$2 sm:$0xff] %v2517
      %s2570 = scalar_lea.vmem [#allocation1], 32
      %2571 = vst [vmem:[%s2570] ss:$2 sm:$0xff] %v2518
      %s2572 = scalar_lea.vmem [#allocation1], 33
      %2573 = vst [vmem:[%s2572] ss:$2 sm:$0xff] %v2519
      %s2574 = scalar_lea.vmem [#allocation1], 48
      %2575 = vst [vmem:[%s2574] ss:$2 sm:$0xff] %v2520
      %s2576 = scalar_lea.vmem [#allocation1], 49
      %2577 = vst [vmem:[%s2576] ss:$2 sm:$0xff] %v2521
      %v2578 = vld.sshfl [vmem:[#allocation1] sm:$0xff pattern:$0x75316420]
      %v2579 = vld.sshfl [vmem:[#allocation1 + $0x10] sm:$0xff pattern:$0x75316420]
      %v2580 = vld.sshfl [vmem:[#allocation1 + $0x20] sm:$0xff pattern:$0x75316420]
      %v2581 = vld.sshfl [vmem:[#allocation1 + $0x30] sm:$0xff pattern:$0x75316420]
      %2582 = vst [vmem:[#allocation1] ss:$2 sm:$0xff] %v2522
      %2583 = vst [vmem:[%s2564] ss:$2 sm:$0xff] %v2523
      %2584 = vst [vmem:[%s2566] ss:$2 sm:$0xff] %v2524
      %2585 = vst [vmem:[%s2568] ss:$2 sm:$0xff] %v2525
      %2586 = vst [vmem:[%s2570] ss:$2 sm:$0xff] %v2526
      %2587 = vst [vmem:[%s2572] ss:$2 sm:$0xff] %v2527
      %2588 = vst [vmem:[%s2574] ss:$2 sm:$0xff] %v2528
      %2589 = vst [vmem:[%s2576] ss:$2 sm:$0xff] %v2529
      %v2590 = vld.sshfl [vmem:[#allocation1] sm:$0xff pattern:$0x75316420]
      %v2591 = vld.sshfl [vmem:[#allocation1 + $0x10] sm:$0xff pattern:$0x75316420]
      %v2592 = vld.sshfl [vmem:[#allocation1 + $0x20] sm:$0xff pattern:$0x75316420]
      %v2593 = vld.sshfl [vmem:[#allocation1 + $0x30] sm:$0xff pattern:$0x75316420]
      %2602 = vmatpush.msra.mxu0 %v2546
      %2603 = vmatpush.msra.mxu0 %v2545
      %2604 = vmatpush.msra.mxu0 %v2544
      %2605 = vmatpush.msra.mxu0 %v2543
      %2606 = vmatpush.msra.mxu0 %v2542
      %2607 = vmatpush.msra.mxu0 %v2541
      %2608 = vmatpush.msra.mxu0 %v2540
      %2609 = vmatpush.msra.mxu0 %v2539
      %2610 = vmatpush.msra.mxu0 %v2538
      %2611 = vmatpush.msra.mxu0 %v2537
      %2612 = vmatpush.msra.mxu0 %v2536
      %2613 = vmatpush.msra.mxu0 %v2535
      %2614 = vmatpush.msra.mxu0 %v2534
      %2615 = vmatpush.msra.mxu0 %v2533
      %2616 = vmatpush.msra.mxu0 %v2532
      %2617 = vmatpush.msra.mxu0 %v2531
      %2618 = vmatmul.f32.gmra.mxu0 %v2578
      %v2619 = vpop.f32.mrf.mxu0
      %v2620 = vadd.f32 0.0, %v2619
      %2621 = vmatmul.f32.gmra.mxu0 %v2579
      %v2622 = vpop.f32.mrf.mxu0
      %v2623 = vadd.f32 0.0, %v2622
      %2624 = vmatmul.f32.gmra.mxu0 %v2580
      %v2625 = vpop.f32.mrf.mxu0
      %v2626 = vadd.f32 0.0, %v2625
      %2627 = vmatmul.f32.gmra.mxu0 %v2581
      %v2628 = vpop.f32.mrf.mxu0
      %v2629 = vadd.f32 0.0, %v2628
      %2630 = vmatmul.f32.gmra.mxu0 %v2590
      %v2631 = vpop.f32.mrf.mxu0
      %v2632 = vadd.f32 0.0, %v2631
      %2633 = vmatmul.f32.gmra.mxu0 %v2591
      %v2634 = vpop.f32.mrf.mxu0
      %v2635 = vadd.f32 0.0, %v2634
      %2636 = vmatmul.f32.gmra.mxu0 %v2592
      %v2637 = vpop.f32.mrf.mxu0
      %v2638 = vadd.f32 0.0, %v2637
      %2639 = vmatmul.f32.gmra.mxu0 %v2593
      %v2640 = vpop.f32.mrf.mxu0
      %v2641 = vadd.f32 0.0, %v2640
      %2642 = vdwg.mxu0
      %v2643 = vadd.f32 %v2506, %v2620
      %v2644 = vadd.f32 %v2507, %v2623
      %v2645 = vadd.f32 %v2508, %v2626
      %v2646 = vadd.f32 %v2509, %v2629
      %v2647 = vadd.f32 %v2510, %v2632
      %v2648 = vadd.f32 %v2511, %v2635
      %v2649 = vadd.f32 %v2512, %v2638
      %v2650 = vadd.f32 %v2513, %v2641
      %v2651 = vld [vmem:[%s1067 + $0x2] sm:$0xf]
      %v2652 = vld [vmem:[%s1067 + $0xa] sm:$0xf]
      %v2653 = vld [vmem:[%s1067 + $0x12] sm:$0xf]
      %v2654 = vld [vmem:[%s1067 + $0x1a] sm:$0xf]
      %v2655 = vld [vmem:[%s1067 + $0x22] sm:$0xf]
      %v2656 = vld [vmem:[%s1067 + $0x2a] sm:$0xf]
      %v2657 = vld [vmem:[%s1067 + $0x32] sm:$0xf]
      %v2658 = vld [vmem:[%s1067 + $0x3a] sm:$0xf]
      %v2659 = vld [vmem:[%s1067 + $0x42] sm:$0xf]
      %v2660 = vld [vmem:[%s1067 + $0x4a] sm:$0xf]
      %v2661 = vld [vmem:[%s1067 + $0x52] sm:$0xf]
      %v2662 = vld [vmem:[%s1067 + $0x5a] sm:$0xf]
      %v2663 = vld [vmem:[%s1067 + $0x62] sm:$0xf]
      %v2664 = vld [vmem:[%s1067 + $0x6a] sm:$0xf]
      %v2665 = vld [vmem:[%s1067 + $0x72] sm:$0xf]
      %v2666 = vld [vmem:[%s1067 + $0x7a] sm:$0xf]
      %s2667 = scalar_lea.vmem %s1, 2176
      %v2668 = vld [vmem:[%s2667] sm:$0xff]
      %v2669 = vld [vmem:[%s2667 + $0x8] sm:$0xff]
      %v2670 = vld [vmem:[%s2667 + $0x10] sm:$0xff]
      %v2671 = vld [vmem:[%s2667 + $0x18] sm:$0xff]
      %v2672 = vld [vmem:[%s2667 + $0x20] sm:$0xff]
      %v2673 = vld [vmem:[%s2667 + $0x28] sm:$0xff]
      %v2674 = vld [vmem:[%s2667 + $0x30] sm:$0xff]
      %v2675 = vld [vmem:[%s2667 + $0x38] sm:$0xff]
      %v2676 = vld [vmem:[%s2667 + $0x40] sm:$0xff]
      %v2677 = vld [vmem:[%s2667 + $0x48] sm:$0xff]
      %v2678 = vld [vmem:[%s2667 + $0x50] sm:$0xff]
      %v2679 = vld [vmem:[%s2667 + $0x58] sm:$0xff]
      %v2680 = vld [vmem:[%s2667 + $0x60] sm:$0xff]
      %v2681 = vld [vmem:[%s2667 + $0x68] sm:$0xff]
      %v2682 = vld [vmem:[%s2667 + $0x70] sm:$0xff]
      %v2683 = vld [vmem:[%s2667 + $0x78] sm:$0xff]
      %2700 = vst [vmem:[#allocation1] ss:$2 sm:$0xff] %v2651
      %s2701 = scalar_lea.vmem [#allocation1], 1
      %2702 = vst [vmem:[%s2701] ss:$2 sm:$0xff] %v2652
      %s2703 = scalar_lea.vmem [#allocation1], 16
      %2704 = vst [vmem:[%s2703] ss:$2 sm:$0xff] %v2653
      %s2705 = scalar_lea.vmem [#allocation1], 17
      %2706 = vst [vmem:[%s2705] ss:$2 sm:$0xff] %v2654
      %s2707 = scalar_lea.vmem [#allocation1], 32
      %2708 = vst [vmem:[%s2707] ss:$2 sm:$0xff] %v2655
      %s2709 = scalar_lea.vmem [#allocation1], 33
      %2710 = vst [vmem:[%s2709] ss:$2 sm:$0xff] %v2656
      %s2711 = scalar_lea.vmem [#allocation1], 48
      %2712 = vst [vmem:[%s2711] ss:$2 sm:$0xff] %v2657
      %s2713 = scalar_lea.vmem [#allocation1], 49
      %2714 = vst [vmem:[%s2713] ss:$2 sm:$0xff] %v2658
      %v2715 = vld.sshfl [vmem:[#allocation1] sm:$0xff pattern:$0x75316420]
      %v2716 = vld.sshfl [vmem:[#allocation1 + $0x10] sm:$0xff pattern:$0x75316420]
      %v2717 = vld.sshfl [vmem:[#allocation1 + $0x20] sm:$0xff pattern:$0x75316420]
      %v2718 = vld.sshfl [vmem:[#allocation1 + $0x30] sm:$0xff pattern:$0x75316420]
      %2719 = vst [vmem:[#allocation1] ss:$2 sm:$0xff] %v2659
      %2720 = vst [vmem:[%s2701] ss:$2 sm:$0xff] %v2660
      %2721 = vst [vmem:[%s2703] ss:$2 sm:$0xff] %v2661
      %2722 = vst [vmem:[%s2705] ss:$2 sm:$0xff] %v2662
      %2723 = vst [vmem:[%s2707] ss:$2 sm:$0xff] %v2663
      %2724 = vst [vmem:[%s2709] ss:$2 sm:$0xff] %v2664
      %2725 = vst [vmem:[%s2711] ss:$2 sm:$0xff] %v2665
      %2726 = vst [vmem:[%s2713] ss:$2 sm:$0xff] %v2666
      %v2727 = vld.sshfl [vmem:[#allocation1] sm:$0xff pattern:$0x75316420]
      %v2728 = vld.sshfl [vmem:[#allocation1 + $0x10] sm:$0xff pattern:$0x75316420]
      %v2729 = vld.sshfl [vmem:[#allocation1 + $0x20] sm:$0xff pattern:$0x75316420]
      %v2730 = vld.sshfl [vmem:[#allocation1 + $0x30] sm:$0xff pattern:$0x75316420]
      %2739 = vmatpush.msra.mxu0 %v2683
      %2740 = vmatpush.msra.mxu0 %v2682
      %2741 = vmatpush.msra.mxu0 %v2681
      %2742 = vmatpush.msra.mxu0 %v2680
      %2743 = vmatpush.msra.mxu0 %v2679
      %2744 = vmatpush.msra.mxu0 %v2678
      %2745 = vmatpush.msra.mxu0 %v2677
      %2746 = vmatpush.msra.mxu0 %v2676
      %2747 = vmatpush.msra.mxu0 %v2675
      %2748 = vmatpush.msra.mxu0 %v2674
      %2749 = vmatpush.msra.mxu0 %v2673
      %2750 = vmatpush.msra.mxu0 %v2672
      %2751 = vmatpush.msra.mxu0 %v2671
      %2752 = vmatpush.msra.mxu0 %v2670
      %2753 = vmatpush.msra.mxu0 %v2669
      %2754 = vmatpush.msra.mxu0 %v2668
      %2755 = vmatmul.f32.gmra.mxu0 %v2715
      %v2756 = vpop.f32.mrf.mxu0
      %v2757 = vadd.f32 0.0, %v2756
      %2758 = vmatmul.f32.gmra.mxu0 %v2716
      %v2759 = vpop.f32.mrf.mxu0
      %v2760 = vadd.f32 0.0, %v2759
      %2761 = vmatmul.f32.gmra.mxu0 %v2717
      %v2762 = vpop.f32.mrf.mxu0
      %v2763 = vadd.f32 0.0, %v2762
      %2764 = vmatmul.f32.gmra.mxu0 %v2718
      %v2765 = vpop.f32.mrf.mxu0
      %v2766 = vadd.f32 0.0, %v2765
      %2767 = vmatmul.f32.gmra.mxu0 %v2727
      %v2768 = vpop.f32.mrf.mxu0
      %v2769 = vadd.f32 0.0, %v2768
      %2770 = vmatmul.f32.gmra.mxu0 %v2728
      %v2771 = vpop.f32.mrf.mxu0
      %v2772 = vadd.f32 0.0, %v2771
      %2773 = vmatmul.f32.gmra.mxu0 %v2729
      %v2774 = vpop.f32.mrf.mxu0
      %v2775 = vadd.f32 0.0, %v2774
      %2776 = vmatmul.f32.gmra.mxu0 %v2730
      %v2777 = vpop.f32.mrf.mxu0
      %v2778 = vadd.f32 0.0, %v2777
      %2779 = vdwg.mxu0
      %v2780 = vadd.f32 %v2643, %v2757
      %v2781 = vadd.f32 %v2644, %v2760
      %v2782 = vadd.f32 %v2645, %v2763
      %v2783 = vadd.f32 %v2646, %v2766
      %v2784 = vadd.f32 %v2647, %v2769
      %v2785 = vadd.f32 %v2648, %v2772
      %v2786 = vadd.f32 %v2649, %v2775
      %v2787 = vadd.f32 %v2650, %v2778
      %s2788 = scalar_lea.vmem %s2, 1
      %v2789 = vld [vmem:[%s2788] sm:$0x1]
      %v2791 = vperm.slane %v2789, 0
      %v2793 = vmul.f32 %v2780, %v2791
      %v2794 = vmul.f32 %v2781, %v2791
      %v2795 = vmul.f32 %v2782, %v2791
      %v2796 = vmul.f32 %v2783, %v2791
      %v2797 = vmul.f32 %v2784, %v2791
      %v2798 = vmul.f32 %v2785, %v2791
      %v2799 = vmul.f32 %v2786, %v2791
      %v2800 = vmul.f32 %v2787, %v2791
      %s2801 = scalar_lea.vmem %s3, 1
      %v2802 = vld [vmem:[%s2801] sm:$0x1]
      %v2804 = vperm.slane %v2802, 0
      %v2806 = vadd.f32 %v2793, %v2804
      %v2807 = vadd.f32 %v2794, %v2804
      %v2808 = vadd.f32 %v2795, %v2804
      %v2809 = vadd.f32 %v2796, %v2804
      %v2810 = vadd.f32 %v2797, %v2804
      %v2811 = vadd.f32 %v2798, %v2804
      %v2812 = vadd.f32 %v2799, %v2804
      %v2813 = vadd.f32 %v2800, %v2804
      %vm2814 = vcmp.ge.f32.partialorder %v2806, 0.0
      %vm2815 = vcmp.ge.f32.partialorder %v2807, 0.0
      %vm2816 = vcmp.ge.f32.partialorder %v2808, 0.0
      %vm2817 = vcmp.ge.f32.partialorder %v2809, 0.0
      %vm2818 = vcmp.ge.f32.partialorder %v2810, 0.0
      %vm2819 = vcmp.ge.f32.partialorder %v2811, 0.0
      %vm2820 = vcmp.ge.f32.partialorder %v2812, 0.0
      %vm2821 = vcmp.ge.f32.partialorder %v2813, 0.0
      %s2822 = scalar_lea.vmem %s4, 1
      %v2823 = vld [vmem:[%s2822] sm:$0x1]
      %v2825 = vperm.slane %v2823, 0
      %v2827 = vmul.f32 %v2806, %v2825
      %v2828 = vmul.f32 %v2807, %v2825
      %v2829 = vmul.f32 %v2808, %v2825
      %v2830 = vmul.f32 %v2809, %v2825
      %v2831 = vmul.f32 %v2810, %v2825
      %v2832 = vmul.f32 %v2811, %v2825
      %v2833 = vmul.f32 %v2812, %v2825
      %v2834 = vmul.f32 %v2813, %v2825
      %v2835 = vsel %vm2814, %v2806, %v2827
      %v2836 = vsel %vm2815, %v2807, %v2828
      %v2837 = vsel %vm2816, %v2808, %v2829
      %v2838 = vsel %vm2817, %v2809, %v2830
      %v2839 = vsel %vm2818, %v2810, %v2831
      %v2840 = vsel %vm2819, %v2811, %v2832
      %v2841 = vsel %vm2820, %v2812, %v2833
      %v2842 = vsel %vm2821, %v2813, %v2834
      %v2851 = vrot.slane %v2835, 4
      %v2852 = vrot.slane %v2836, 4
      %v2853 = vrot.slane %v2837, 4
      %v2854 = vrot.slane %v2838, 4
      %v2855 = vrot.slane %v2839, 4
      %v2856 = vrot.slane %v2840, 4
      %v2857 = vrot.slane %v2841, 4
      %v2858 = vrot.slane %v2842, 4
      %2867 = vst [vmem:[%s655 + $0x1] sm:$0xf] %v2835
      %2868 = vst [vmem:[%s655 + $0x9] sm:$0xf] %v2851
      %2869 = vst [vmem:[%s655 + $0x11] sm:$0xf] %v2836
      %2870 = vst [vmem:[%s655 + $0x19] sm:$0xf] %v2852
      %2871 = vst [vmem:[%s655 + $0x21] sm:$0xf] %v2837
      %2872 = vst [vmem:[%s655 + $0x29] sm:$0xf] %v2853
      %2873 = vst [vmem:[%s655 + $0x31] sm:$0xf] %v2838
      %2874 = vst [vmem:[%s655 + $0x39] sm:$0xf] %v2854
      %2875 = vst [vmem:[%s655 + $0x41] sm:$0xf] %v2839
      %2876 = vst [vmem:[%s655 + $0x49] sm:$0xf] %v2855
      %2877 = vst [vmem:[%s655 + $0x51] sm:$0xf] %v2840
      %2878 = vst [vmem:[%s655 + $0x59] sm:$0xf] %v2856
      %2879 = vst [vmem:[%s655 + $0x61] sm:$0xf] %v2841
      %2880 = vst [vmem:[%s655 + $0x69] sm:$0xf] %v2857
      %2881 = vst [vmem:[%s655 + $0x71] sm:$0xf] %v2842
      %2882 = vst [vmem:[%s655 + $0x79] sm:$0xf] %v2858
      %v2883 = vld [vmem:[#allocation2] sm:$0xf]
      %v2884 = vld [vmem:[#allocation2 + $0x8] sm:$0xf]
      %v2885 = vld [vmem:[#allocation2 + $0x10] sm:$0xf]
      %v2886 = vld [vmem:[#allocation2 + $0x18] sm:$0xf]
      %v2887 = vld [vmem:[#allocation2 + $0x20] sm:$0xf]
      %v2888 = vld [vmem:[#allocation2 + $0x28] sm:$0xf]
      %v2889 = vld [vmem:[#allocation2 + $0x30] sm:$0xf]
      %v2890 = vld [vmem:[#allocation2 + $0x38] sm:$0xf]
      %v2891 = vld [vmem:[#allocation2 + $0x40] sm:$0xf]
      %v2892 = vld [vmem:[#allocation2 + $0x48] sm:$0xf]
      %v2893 = vld [vmem:[#allocation2 + $0x50] sm:$0xf]
      %v2894 = vld [vmem:[#allocation2 + $0x58] sm:$0xf]
      %v2895 = vld [vmem:[#allocation2 + $0x60] sm:$0xf]
      %v2896 = vld [vmem:[#allocation2 + $0x68] sm:$0xf]
      %v2897 = vld [vmem:[#allocation2 + $0x70] sm:$0xf]
      %v2898 = vld [vmem:[#allocation2 + $0x78] sm:$0xf]
      %s2899 = scalar_lea.vmem %s1, 2304
      %v2900 = vld [vmem:[%s2899] sm:$0xff]
      %v2901 = vld [vmem:[%s2899 + $0x8] sm:$0xff]
      %v2902 = vld [vmem:[%s2899 + $0x10] sm:$0xff]
      %v2903 = vld [vmem:[%s2899 + $0x18] sm:$0xff]
      %v2904 = vld [vmem:[%s2899 + $0x20] sm:$0xff]
      %v2905 = vld [vmem:[%s2899 + $0x28] sm:$0xff]
      %v2906 = vld [vmem:[%s2899 + $0x30] sm:$0xff]
      %v2907 = vld [vmem:[%s2899 + $0x38] sm:$0xff]
      %v2908 = vld [vmem:[%s2899 + $0x40] sm:$0xff]
      %v2909 = vld [vmem:[%s2899 + $0x48] sm:$0xff]
      %v2910 = vld [vmem:[%s2899 + $0x50] sm:$0xff]
      %v2911 = vld [vmem:[%s2899 + $0x58] sm:$0xff]
      %v2912 = vld [vmem:[%s2899 + $0x60] sm:$0xff]
      %v2913 = vld [vmem:[%s2899 + $0x68] sm:$0xff]
      %v2914 = vld [vmem:[%s2899 + $0x70] sm:$0xff]
      %v2915 = vld [vmem:[%s2899 + $0x78] sm:$0xff]
      %v2916 = vld [vmem:[#allocation2 + $0x1] sm:$0xf]
      %v2917 = vld [vmem:[#allocation2 + $0x9] sm:$0xf]
      %v2918 = vld [vmem:[#allocation2 + $0x11] sm:$0xf]
      %v2919 = vld [vmem:[#allocation2 + $0x19] sm:$0xf]
      %v2920 = vld [vmem:[#allocation2 + $0x21] sm:$0xf]
      %v2921 = vld [vmem:[#allocation2 + $0x29] sm:$0xf]
      %v2922 = vld [vmem:[#allocation2 + $0x31] sm:$0xf]
      %v2923 = vld [vmem:[#allocation2 + $0x39] sm:$0xf]
      %v2924 = vld [vmem:[#allocation2 + $0x41] sm:$0xf]
      %v2925 = vld [vmem:[#allocation2 + $0x49] sm:$0xf]
      %v2926 = vld [vmem:[#allocation2 + $0x51] sm:$0xf]
      %v2927 = vld [vmem:[#allocation2 + $0x59] sm:$0xf]
      %v2928 = vld [vmem:[#allocation2 + $0x61] sm:$0xf]
      %v2929 = vld [vmem:[#allocation2 + $0x69] sm:$0xf]
      %v2930 = vld [vmem:[#allocation2 + $0x71] sm:$0xf]
      %v2931 = vld [vmem:[#allocation2 + $0x79] sm:$0xf]
      %s2932 = scalar_lea.vmem %s1, 2432
      %v2933 = vld [vmem:[%s2932] sm:$0xff]
      %v2934 = vld [vmem:[%s2932 + $0x8] sm:$0xff]
      %v2935 = vld [vmem:[%s2932 + $0x10] sm:$0xff]
      %v2936 = vld [vmem:[%s2932 + $0x18] sm:$0xff]
      %v2937 = vld [vmem:[%s2932 + $0x20] sm:$0xff]
      %v2938 = vld [vmem:[%s2932 + $0x28] sm:$0xff]
      %v2939 = vld [vmem:[%s2932 + $0x30] sm:$0xff]
      %v2940 = vld [vmem:[%s2932 + $0x38] sm:$0xff]
      %v2941 = vld [vmem:[%s2932 + $0x40] sm:$0xff]
      %v2942 = vld [vmem:[%s2932 + $0x48] sm:$0xff]
      %v2943 = vld [vmem:[%s2932 + $0x50] sm:$0xff]
      %v2944 = vld [vmem:[%s2932 + $0x58] sm:$0xff]
      %v2945 = vld [vmem:[%s2932 + $0x60] sm:$0xff]
      %v2946 = vld [vmem:[%s2932 + $0x68] sm:$0xff]
      %v2947 = vld [vmem:[%s2932 + $0x70] sm:$0xff]
      %v2948 = vld [vmem:[%s2932 + $0x78] sm:$0xff]
      %2965 = vst [vmem:[#allocation1] ss:$2 sm:$0xff] %v2916
      %s2966 = scalar_lea.vmem [#allocation1], 1
      %2967 = vst [vmem:[%s2966] ss:$2 sm:$0xff] %v2917
      %s2968 = scalar_lea.vmem [#allocation1], 16
      %2969 = vst [vmem:[%s2968] ss:$2 sm:$0xff] %v2918
      %s2970 = scalar_lea.vmem [#allocation1], 17
      %2971 = vst [vmem:[%s2970] ss:$2 sm:$0xff] %v2919
      %s2972 = scalar_lea.vmem [#allocation1], 32
      %2973 = vst [vmem:[%s2972] ss:$2 sm:$0xff] %v2920
      %s2974 = scalar_lea.vmem [#allocation1], 33
      %2975 = vst [vmem:[%s2974] ss:$2 sm:$0xff] %v2921
      %s2976 = scalar_lea.vmem [#allocation1], 48
      %2977 = vst [vmem:[%s2976] ss:$2 sm:$0xff] %v2922
      %s2978 = scalar_lea.vmem [#allocation1], 49
      %2979 = vst [vmem:[%s2978] ss:$2 sm:$0xff] %v2923
      %v2980 = vld.sshfl [vmem:[#allocation1] sm:$0xff pattern:$0x75316420]
      %v2981 = vld.sshfl [vmem:[#allocation1 + $0x10] sm:$0xff pattern:$0x75316420]
      %v2982 = vld.sshfl [vmem:[#allocation1 + $0x20] sm:$0xff pattern:$0x75316420]
      %v2983 = vld.sshfl [vmem:[#allocation1 + $0x30] sm:$0xff pattern:$0x75316420]
      %2984 = vst [vmem:[#allocation1] ss:$2 sm:$0xff] %v2924
      %2985 = vst [vmem:[%s2966] ss:$2 sm:$0xff] %v2925
      %2986 = vst [vmem:[%s2968] ss:$2 sm:$0xff] %v2926
      %2987 = vst [vmem:[%s2970] ss:$2 sm:$0xff] %v2927
      %2988 = vst [vmem:[%s2972] ss:$2 sm:$0xff] %v2928
      %2989 = vst [vmem:[%s2974] ss:$2 sm:$0xff] %v2929
      %2990 = vst [vmem:[%s2976] ss:$2 sm:$0xff] %v2930
      %2991 = vst [vmem:[%s2978] ss:$2 sm:$0xff] %v2931
      %v2992 = vld.sshfl [vmem:[#allocation1] sm:$0xff pattern:$0x75316420]
      %v2993 = vld.sshfl [vmem:[#allocation1 + $0x10] sm:$0xff pattern:$0x75316420]
      %v2994 = vld.sshfl [vmem:[#allocation1 + $0x20] sm:$0xff pattern:$0x75316420]
      %v2995 = vld.sshfl [vmem:[#allocation1 + $0x30] sm:$0xff pattern:$0x75316420]
      %3004 = vmatpush.msra.mxu0 %v2948
      %3005 = vmatpush.msra.mxu0 %v2947
      %3006 = vmatpush.msra.mxu0 %v2946
      %3007 = vmatpush.msra.mxu0 %v2945
      %3008 = vmatpush.msra.mxu0 %v2944
      %3009 = vmatpush.msra.mxu0 %v2943
      %3010 = vmatpush.msra.mxu0 %v2942
      %3011 = vmatpush.msra.mxu0 %v2941
      %3012 = vmatpush.msra.mxu0 %v2940
      %3013 = vmatpush.msra.mxu0 %v2939
      %3014 = vmatpush.msra.mxu0 %v2938
      %3015 = vmatpush.msra.mxu0 %v2937
      %3016 = vmatpush.msra.mxu0 %v2936
      %3017 = vmatpush.msra.mxu0 %v2935
      %3018 = vmatpush.msra.mxu0 %v2934
      %3019 = vmatpush.msra.mxu0 %v2933
      %3020 = vmatmul.f32.gmra.mxu0 %v2980
      %v3021 = vpop.f32.mrf.mxu0
      %v3022 = vadd.f32 0.0, %v3021
      %3023 = vmatmul.f32.gmra.mxu0 %v2981
      %v3024 = vpop.f32.mrf.mxu0
      %v3025 = vadd.f32 0.0, %v3024
      %3026 = vmatmul.f32.gmra.mxu0 %v2982
      %v3027 = vpop.f32.mrf.mxu0
      %v3028 = vadd.f32 0.0, %v3027
      %3029 = vmatmul.f32.gmra.mxu0 %v2983
      %v3030 = vpop.f32.mrf.mxu0
      %v3031 = vadd.f32 0.0, %v3030
      %3032 = vmatmul.f32.gmra.mxu0 %v2992
      %v3033 = vpop.f32.mrf.mxu0
      %v3034 = vadd.f32 0.0, %v3033
      %3035 = vmatmul.f32.gmra.mxu0 %v2993
      %v3036 = vpop.f32.mrf.mxu0
      %v3037 = vadd.f32 0.0, %v3036
      %3038 = vmatmul.f32.gmra.mxu0 %v2994
      %v3039 = vpop.f32.mrf.mxu0
      %v3040 = vadd.f32 0.0, %v3039
      %3041 = vmatmul.f32.gmra.mxu0 %v2995
      %v3042 = vpop.f32.mrf.mxu0
      %v3043 = vadd.f32 0.0, %v3042
      %3044 = vdwg.mxu0
      %3061 = vst [vmem:[#allocation1] ss:$2 sm:$0xff] %v2883
      %s3062 = scalar_lea.vmem [#allocation1], 1
      %3063 = vst [vmem:[%s3062] ss:$2 sm:$0xff] %v2884
      %s3064 = scalar_lea.vmem [#allocation1], 16
      %3065 = vst [vmem:[%s3064] ss:$2 sm:$0xff] %v2885
      %s3066 = scalar_lea.vmem [#allocation1], 17
      %3067 = vst [vmem:[%s3066] ss:$2 sm:$0xff] %v2886
      %s3068 = scalar_lea.vmem [#allocation1], 32
      %3069 = vst [vmem:[%s3068] ss:$2 sm:$0xff] %v2887
      %s3070 = scalar_lea.vmem [#allocation1], 33
      %3071 = vst [vmem:[%s3070] ss:$2 sm:$0xff] %v2888
      %s3072 = scalar_lea.vmem [#allocation1], 48
      %3073 = vst [vmem:[%s3072] ss:$2 sm:$0xff] %v2889
      %s3074 = scalar_lea.vmem [#allocation1], 49
      %3075 = vst [vmem:[%s3074] ss:$2 sm:$0xff] %v2890
      %v3076 = vld.sshfl [vmem:[#allocation1] sm:$0xff pattern:$0x75316420]
      %v3077 = vld.sshfl [vmem:[#allocation1 + $0x10] sm:$0xff pattern:$0x75316420]
      %v3078 = vld.sshfl [vmem:[#allocation1 + $0x20] sm:$0xff pattern:$0x75316420]
      %v3079 = vld.sshfl [vmem:[#allocation1 + $0x30] sm:$0xff pattern:$0x75316420]
      %3080 = vst [vmem:[#allocation1] ss:$2 sm:$0xff] %v2891
      %3081 = vst [vmem:[%s3062] ss:$2 sm:$0xff] %v2892
      %3082 = vst [vmem:[%s3064] ss:$2 sm:$0xff] %v2893
      %3083 = vst [vmem:[%s3066] ss:$2 sm:$0xff] %v2894
      %3084 = vst [vmem:[%s3068] ss:$2 sm:$0xff] %v2895
      %3085 = vst [vmem:[%s3070] ss:$2 sm:$0xff] %v2896
      %3086 = vst [vmem:[%s3072] ss:$2 sm:$0xff] %v2897
      %3087 = vst [vmem:[%s3074] ss:$2 sm:$0xff] %v2898
      %v3088 = vld.sshfl [vmem:[#allocation1] sm:$0xff pattern:$0x75316420]
      %v3089 = vld.sshfl [vmem:[#allocation1 + $0x10] sm:$0xff pattern:$0x75316420]
      %v3090 = vld.sshfl [vmem:[#allocation1 + $0x20] sm:$0xff pattern:$0x75316420]
      %v3091 = vld.sshfl [vmem:[#allocation1 + $0x30] sm:$0xff pattern:$0x75316420]
      %3100 = vmatpush.msra.mxu0 %v2915
      %3101 = vmatpush.msra.mxu0 %v2914
      %3102 = vmatpush.msra.mxu0 %v2913
      %3103 = vmatpush.msra.mxu0 %v2912
      %3104 = vmatpush.msra.mxu0 %v2911
      %3105 = vmatpush.msra.mxu0 %v2910
      %3106 = vmatpush.msra.mxu0 %v2909
      %3107 = vmatpush.msra.mxu0 %v2908
      %3108 = vmatpush.msra.mxu0 %v2907
      %3109 = vmatpush.msra.mxu0 %v2906
      %3110 = vmatpush.msra.mxu0 %v2905
      %3111 = vmatpush.msra.mxu0 %v2904
      %3112 = vmatpush.msra.mxu0 %v2903
      %3113 = vmatpush.msra.mxu0 %v2902
      %3114 = vmatpush.msra.mxu0 %v2901
      %3115 = vmatpush.msra.mxu0 %v2900
      %3116 = vmatmul.f32.gmra.mxu0 %v3076
      %v3117 = vpop.f32.mrf.mxu0
      %v3118 = vadd.f32 %v3022, %v3117
      %3119 = vmatmul.f32.gmra.mxu0 %v3077
      %v3120 = vpop.f32.mrf.mxu0
      %v3121 = vadd.f32 %v3025, %v3120
      %3122 = vmatmul.f32.gmra.mxu0 %v3078
      %v3123 = vpop.f32.mrf.mxu0
      %v3124 = vadd.f32 %v3028, %v3123
      %3125 = vmatmul.f32.gmra.mxu0 %v3079
      %v3126 = vpop.f32.mrf.mxu0
      %v3127 = vadd.f32 %v3031, %v3126
      %3128 = vmatmul.f32.gmra.mxu0 %v3088
      %v3129 = vpop.f32.mrf.mxu0
      %v3130 = vadd.f32 %v3034, %v3129
      %3131 = vmatmul.f32.gmra.mxu0 %v3089
      %v3132 = vpop.f32.mrf.mxu0
      %v3133 = vadd.f32 %v3037, %v3132
      %3134 = vmatmul.f32.gmra.mxu0 %v3090
      %v3135 = vpop.f32.mrf.mxu0
      %v3136 = vadd.f32 %v3040, %v3135
      %3137 = vmatmul.f32.gmra.mxu0 %v3091
      %v3138 = vpop.f32.mrf.mxu0
      %v3139 = vadd.f32 %v3043, %v3138
      %3140 = vdwg.mxu0
      %v3141 = vld [vmem:[#allocation2 + $0x2] sm:$0xf]
      %v3142 = vld [vmem:[#allocation2 + $0xa] sm:$0xf]
      %v3143 = vld [vmem:[#allocation2 + $0x12] sm:$0xf]
      %v3144 = vld [vmem:[#allocation2 + $0x1a] sm:$0xf]
      %v3145 = vld [vmem:[#allocation2 + $0x22] sm:$0xf]
      %v3146 = vld [vmem:[#allocation2 + $0x2a] sm:$0xf]
      %v3147 = vld [vmem:[#allocation2 + $0x32] sm:$0xf]
      %v3148 = vld [vmem:[#allocation2 + $0x3a] sm:$0xf]
      %v3149 = vld [vmem:[#allocation2 + $0x42] sm:$0xf]
      %v3150 = vld [vmem:[#allocation2 + $0x4a] sm:$0xf]
      %v3151 = vld [vmem:[#allocation2 + $0x52] sm:$0xf]
      %v3152 = vld [vmem:[#allocation2 + $0x5a] sm:$0xf]
      %v3153 = vld [vmem:[#allocation2 + $0x62] sm:$0xf]
      %v3154 = vld [vmem:[#allocation2 + $0x6a] sm:$0xf]
      %v3155 = vld [vmem:[#allocation2 + $0x72] sm:$0xf]
      %v3156 = vld [vmem:[#allocation2 + $0x7a] sm:$0xf]
      %s3157 = scalar_lea.vmem %s1, 2560
      %v3158 = vld [vmem:[%s3157] sm:$0xff]
      %v3159 = vld [vmem:[%s3157 + $0x8] sm:$0xff]
      %v3160 = vld [vmem:[%s3157 + $0x10] sm:$0xff]
      %v3161 = vld [vmem:[%s3157 + $0x18] sm:$0xff]
      %v3162 = vld [vmem:[%s3157 + $0x20] sm:$0xff]
      %v3163 = vld [vmem:[%s3157 + $0x28] sm:$0xff]
      %v3164 = vld [vmem:[%s3157 + $0x30] sm:$0xff]
      %v3165 = vld [vmem:[%s3157 + $0x38] sm:$0xff]
      %v3166 = vld [vmem:[%s3157 + $0x40] sm:$0xff]
      %v3167 = vld [vmem:[%s3157 + $0x48] sm:$0xff]
      %v3168 = vld [vmem:[%s3157 + $0x50] sm:$0xff]
      %v3169 = vld [vmem:[%s3157 + $0x58] sm:$0xff]
      %v3170 = vld [vmem:[%s3157 + $0x60] sm:$0xff]
      %v3171 = vld [vmem:[%s3157 + $0x68] sm:$0xff]
      %v3172 = vld [vmem:[%s3157 + $0x70] sm:$0xff]
      %v3173 = vld [vmem:[%s3157 + $0x78] sm:$0xff]
      %3190 = vst [vmem:[#allocation1] ss:$2 sm:$0xff] %v3141
      %s3191 = scalar_lea.vmem [#allocation1], 1
      %3192 = vst [vmem:[%s3191] ss:$2 sm:$0xff] %v3142
      %s3193 = scalar_lea.vmem [#allocation1], 16
      %3194 = vst [vmem:[%s3193] ss:$2 sm:$0xff] %v3143
      %s3195 = scalar_lea.vmem [#allocation1], 17
      %3196 = vst [vmem:[%s3195] ss:$2 sm:$0xff] %v3144
      %s3197 = scalar_lea.vmem [#allocation1], 32
      %3198 = vst [vmem:[%s3197] ss:$2 sm:$0xff] %v3145
      %s3199 = scalar_lea.vmem [#allocation1], 33
      %3200 = vst [vmem:[%s3199] ss:$2 sm:$0xff] %v3146
      %s3201 = scalar_lea.vmem [#allocation1], 48
      %3202 = vst [vmem:[%s3201] ss:$2 sm:$0xff] %v3147
      %s3203 = scalar_lea.vmem [#allocation1], 49
      %3204 = vst [vmem:[%s3203] ss:$2 sm:$0xff] %v3148
      %v3205 = vld.sshfl [vmem:[#allocation1] sm:$0xff pattern:$0x75316420]
      %v3206 = vld.sshfl [vmem:[#allocation1 + $0x10] sm:$0xff pattern:$0x75316420]
      %v3207 = vld.sshfl [vmem:[#allocation1 + $0x20] sm:$0xff pattern:$0x75316420]
      %v3208 = vld.sshfl [vmem:[#allocation1 + $0x30] sm:$0xff pattern:$0x75316420]
      %3209 = vst [vmem:[#allocation1] ss:$2 sm:$0xff] %v3149
      %3210 = vst [vmem:[%s3191] ss:$2 sm:$0xff] %v3150
      %3211 = vst [vmem:[%s3193] ss:$2 sm:$0xff] %v3151
      %3212 = vst [vmem:[%s3195] ss:$2 sm:$0xff] %v3152
      %3213 = vst [vmem:[%s3197] ss:$2 sm:$0xff] %v3153
      %3214 = vst [vmem:[%s3199] ss:$2 sm:$0xff] %v3154
      %3215 = vst [vmem:[%s3201] ss:$2 sm:$0xff] %v3155
      %3216 = vst [vmem:[%s3203] ss:$2 sm:$0xff] %v3156
      %v3217 = vld.sshfl [vmem:[#allocation1] sm:$0xff pattern:$0x75316420]
      %v3218 = vld.sshfl [vmem:[#allocation1 + $0x10] sm:$0xff pattern:$0x75316420]
      %v3219 = vld.sshfl [vmem:[#allocation1 + $0x20] sm:$0xff pattern:$0x75316420]
      %v3220 = vld.sshfl [vmem:[#allocation1 + $0x30] sm:$0xff pattern:$0x75316420]
      %3229 = vmatpush.msra.mxu0 %v3173
      %3230 = vmatpush.msra.mxu0 %v3172
      %3231 = vmatpush.msra.mxu0 %v3171
      %3232 = vmatpush.msra.mxu0 %v3170
      %3233 = vmatpush.msra.mxu0 %v3169
      %3234 = vmatpush.msra.mxu0 %v3168
      %3235 = vmatpush.msra.mxu0 %v3167
      %3236 = vmatpush.msra.mxu0 %v3166
      %3237 = vmatpush.msra.mxu0 %v3165
      %3238 = vmatpush.msra.mxu0 %v3164
      %3239 = vmatpush.msra.mxu0 %v3163
      %3240 = vmatpush.msra.mxu0 %v3162
      %3241 = vmatpush.msra.mxu0 %v3161
      %3242 = vmatpush.msra.mxu0 %v3160
      %3243 = vmatpush.msra.mxu0 %v3159
      %3244 = vmatpush.msra.mxu0 %v3158
      %3245 = vmatmul.f32.gmra.mxu0 %v3205
      %v3246 = vpop.f32.mrf.mxu0
      %v3247 = vadd.f32 0.0, %v3246
      %3248 = vmatmul.f32.gmra.mxu0 %v3206
      %v3249 = vpop.f32.mrf.mxu0
      %v3250 = vadd.f32 0.0, %v3249
      %3251 = vmatmul.f32.gmra.mxu0 %v3207
      %v3252 = vpop.f32.mrf.mxu0
      %v3253 = vadd.f32 0.0, %v3252
      %3254 = vmatmul.f32.gmra.mxu0 %v3208
      %v3255 = vpop.f32.mrf.mxu0
      %v3256 = vadd.f32 0.0, %v3255
      %3257 = vmatmul.f32.gmra.mxu0 %v3217
      %v3258 = vpop.f32.mrf.mxu0
      %v3259 = vadd.f32 0.0, %v3258
      %3260 = vmatmul.f32.gmra.mxu0 %v3218
      %v3261 = vpop.f32.mrf.mxu0
      %v3262 = vadd.f32 0.0, %v3261
      %3263 = vmatmul.f32.gmra.mxu0 %v3219
      %v3264 = vpop.f32.mrf.mxu0
      %v3265 = vadd.f32 0.0, %v3264
      %3266 = vmatmul.f32.gmra.mxu0 %v3220
      %v3267 = vpop.f32.mrf.mxu0
      %v3268 = vadd.f32 0.0, %v3267
      %3269 = vdwg.mxu0
      %v3270 = vadd.f32 %v3118, %v3247
      %v3271 = vadd.f32 %v3121, %v3250
      %v3272 = vadd.f32 %v3124, %v3253
      %v3273 = vadd.f32 %v3127, %v3256
      %v3274 = vadd.f32 %v3130, %v3259
      %v3275 = vadd.f32 %v3133, %v3262
      %v3276 = vadd.f32 %v3136, %v3265
      %v3277 = vadd.f32 %v3139, %v3268
      %v3278 = vld [vmem:[%s655] sm:$0xf]
      %v3279 = vld [vmem:[%s655 + $0x8] sm:$0xf]
      %v3280 = vld [vmem:[%s655 + $0x10] sm:$0xf]
      %v3281 = vld [vmem:[%s655 + $0x18] sm:$0xf]
      %v3282 = vld [vmem:[%s655 + $0x20] sm:$0xf]
      %v3283 = vld [vmem:[%s655 + $0x28] sm:$0xf]
      %v3284 = vld [vmem:[%s655 + $0x30] sm:$0xf]
      %v3285 = vld [vmem:[%s655 + $0x38] sm:$0xf]
      %v3286 = vld [vmem:[%s655 + $0x40] sm:$0xf]
      %v3287 = vld [vmem:[%s655 + $0x48] sm:$0xf]
      %v3288 = vld [vmem:[%s655 + $0x50] sm:$0xf]
      %v3289 = vld [vmem:[%s655 + $0x58] sm:$0xf]
      %v3290 = vld [vmem:[%s655 + $0x60] sm:$0xf]
      %v3291 = vld [vmem:[%s655 + $0x68] sm:$0xf]
      %v3292 = vld [vmem:[%s655 + $0x70] sm:$0xf]
      %v3293 = vld [vmem:[%s655 + $0x78] sm:$0xf]
      %s3294 = scalar_lea.vmem %s1, 2688
      %v3295 = vld [vmem:[%s3294] sm:$0xff]
      %v3296 = vld [vmem:[%s3294 + $0x8] sm:$0xff]
      %v3297 = vld [vmem:[%s3294 + $0x10] sm:$0xff]
      %v3298 = vld [vmem:[%s3294 + $0x18] sm:$0xff]
      %v3299 = vld [vmem:[%s3294 + $0x20] sm:$0xff]
      %v3300 = vld [vmem:[%s3294 + $0x28] sm:$0xff]
      %v3301 = vld [vmem:[%s3294 + $0x30] sm:$0xff]
      %v3302 = vld [vmem:[%s3294 + $0x38] sm:$0xff]
      %v3303 = vld [vmem:[%s3294 + $0x40] sm:$0xff]
      %v3304 = vld [vmem:[%s3294 + $0x48] sm:$0xff]
      %v3305 = vld [vmem:[%s3294 + $0x50] sm:$0xff]
      %v3306 = vld [vmem:[%s3294 + $0x58] sm:$0xff]
      %v3307 = vld [vmem:[%s3294 + $0x60] sm:$0xff]
      %v3308 = vld [vmem:[%s3294 + $0x68] sm:$0xff]
      %v3309 = vld [vmem:[%s3294 + $0x70] sm:$0xff]
      %v3310 = vld [vmem:[%s3294 + $0x78] sm:$0xff]
      %3327 = vst [vmem:[#allocation1] ss:$2 sm:$0xff] %v3278
      %s3328 = scalar_lea.vmem [#allocation1], 1
      %3329 = vst [vmem:[%s3328] ss:$2 sm:$0xff] %v3279
      %s3330 = scalar_lea.vmem [#allocation1], 16
      %3331 = vst [vmem:[%s3330] ss:$2 sm:$0xff] %v3280
      %s3332 = scalar_lea.vmem [#allocation1], 17
      %3333 = vst [vmem:[%s3332] ss:$2 sm:$0xff] %v3281
      %s3334 = scalar_lea.vmem [#allocation1], 32
      %3335 = vst [vmem:[%s3334] ss:$2 sm:$0xff] %v3282
      %s3336 = scalar_lea.vmem [#allocation1], 33
      %3337 = vst [vmem:[%s3336] ss:$2 sm:$0xff] %v3283
      %s3338 = scalar_lea.vmem [#allocation1], 48
      %3339 = vst [vmem:[%s3338] ss:$2 sm:$0xff] %v3284
      %s3340 = scalar_lea.vmem [#allocation1], 49
      %3341 = vst [vmem:[%s3340] ss:$2 sm:$0xff] %v3285
      %v3342 = vld.sshfl [vmem:[#allocation1] sm:$0xff pattern:$0x75316420]
      %v3343 = vld.sshfl [vmem:[#allocation1 + $0x10] sm:$0xff pattern:$0x75316420]
      %v3344 = vld.sshfl [vmem:[#allocation1 + $0x20] sm:$0xff pattern:$0x75316420]
      %v3345 = vld.sshfl [vmem:[#allocation1 + $0x30] sm:$0xff pattern:$0x75316420]
      %3346 = vst [vmem:[#allocation1] ss:$2 sm:$0xff] %v3286
      %3347 = vst [vmem:[%s3328] ss:$2 sm:$0xff] %v3287
      %3348 = vst [vmem:[%s3330] ss:$2 sm:$0xff] %v3288
      %3349 = vst [vmem:[%s3332] ss:$2 sm:$0xff] %v3289
      %3350 = vst [vmem:[%s3334] ss:$2 sm:$0xff] %v3290
      %3351 = vst [vmem:[%s3336] ss:$2 sm:$0xff] %v3291
      %3352 = vst [vmem:[%s3338] ss:$2 sm:$0xff] %v3292
      %3353 = vst [vmem:[%s3340] ss:$2 sm:$0xff] %v3293
      %v3354 = vld.sshfl [vmem:[#allocation1] sm:$0xff pattern:$0x75316420]
      %v3355 = vld.sshfl [vmem:[#allocation1 + $0x10] sm:$0xff pattern:$0x75316420]
      %v3356 = vld.sshfl [vmem:[#allocation1 + $0x20] sm:$0xff pattern:$0x75316420]
      %v3357 = vld.sshfl [vmem:[#allocation1 + $0x30] sm:$0xff pattern:$0x75316420]
      %3366 = vmatpush.msra.mxu0 %v3310
      %3367 = vmatpush.msra.mxu0 %v3309
      %3368 = vmatpush.msra.mxu0 %v3308
      %3369 = vmatpush.msra.mxu0 %v3307
      %3370 = vmatpush.msra.mxu0 %v3306
      %3371 = vmatpush.msra.mxu0 %v3305
      %3372 = vmatpush.msra.mxu0 %v3304
      %3373 = vmatpush.msra.mxu0 %v3303
      %3374 = vmatpush.msra.mxu0 %v3302
      %3375 = vmatpush.msra.mxu0 %v3301
      %3376 = vmatpush.msra.mxu0 %v3300
      %3377 = vmatpush.msra.mxu0 %v3299
      %3378 = vmatpush.msra.mxu0 %v3298
      %3379 = vmatpush.msra.mxu0 %v3297
      %3380 = vmatpush.msra.mxu0 %v3296
      %3381 = vmatpush.msra.mxu0 %v3295
      %3382 = vmatmul.f32.gmra.mxu0 %v3342
      %v3383 = vpop.f32.mrf.mxu0
      %v3384 = vadd.f32 0.0, %v3383
      %3385 = vmatmul.f32.gmra.mxu0 %v3343
      %v3386 = vpop.f32.mrf.mxu0
      %v3387 = vadd.f32 0.0, %v3386
      %3388 = vmatmul.f32.gmra.mxu0 %v3344
      %v3389 = vpop.f32.mrf.mxu0
      %v3390 = vadd.f32 0.0, %v3389
      %3391 = vmatmul.f32.gmra.mxu0 %v3345
      %v3392 = vpop.f32.mrf.mxu0
      %v3393 = vadd.f32 0.0, %v3392
      %3394 = vmatmul.f32.gmra.mxu0 %v3354
      %v3395 = vpop.f32.mrf.mxu0
      %v3396 = vadd.f32 0.0, %v3395
      %3397 = vmatmul.f32.gmra.mxu0 %v3355
      %v3398 = vpop.f32.mrf.mxu0
      %v3399 = vadd.f32 0.0, %v3398
      %3400 = vmatmul.f32.gmra.mxu0 %v3356
      %v3401 = vpop.f32.mrf.mxu0
      %v3402 = vadd.f32 0.0, %v3401
      %3403 = vmatmul.f32.gmra.mxu0 %v3357
      %v3404 = vpop.f32.mrf.mxu0
      %v3405 = vadd.f32 0.0, %v3404
      %3406 = vdwg.mxu0
      %v3407 = vadd.f32 %v3270, %v3384
      %v3408 = vadd.f32 %v3271, %v3387
      %v3409 = vadd.f32 %v3272, %v3390
      %v3410 = vadd.f32 %v3273, %v3393
      %v3411 = vadd.f32 %v3274, %v3396
      %v3412 = vadd.f32 %v3275, %v3399
      %v3413 = vadd.f32 %v3276, %v3402
      %v3414 = vadd.f32 %v3277, %v3405
      %v3415 = vld [vmem:[%s655 + $0x1] sm:$0xf]
      %v3416 = vld [vmem:[%s655 + $0x9] sm:$0xf]
      %v3417 = vld [vmem:[%s655 + $0x11] sm:$0xf]
      %v3418 = vld [vmem:[%s655 + $0x19] sm:$0xf]
      %v3419 = vld [vmem:[%s655 + $0x21] sm:$0xf]
      %v3420 = vld [vmem:[%s655 + $0x29] sm:$0xf]
      %v3421 = vld [vmem:[%s655 + $0x31] sm:$0xf]
      %v3422 = vld [vmem:[%s655 + $0x39] sm:$0xf]
      %v3423 = vld [vmem:[%s655 + $0x41] sm:$0xf]
      %v3424 = vld [vmem:[%s655 + $0x49] sm:$0xf]
      %v3425 = vld [vmem:[%s655 + $0x51] sm:$0xf]
      %v3426 = vld [vmem:[%s655 + $0x59] sm:$0xf]
      %v3427 = vld [vmem:[%s655 + $0x61] sm:$0xf]
      %v3428 = vld [vmem:[%s655 + $0x69] sm:$0xf]
      %v3429 = vld [vmem:[%s655 + $0x71] sm:$0xf]
      %v3430 = vld [vmem:[%s655 + $0x79] sm:$0xf]
      %s3431 = scalar_lea.vmem %s1, 2816
      %v3432 = vld [vmem:[%s3431] sm:$0xff]
      %v3433 = vld [vmem:[%s3431 + $0x8] sm:$0xff]
      %v3434 = vld [vmem:[%s3431 + $0x10] sm:$0xff]
      %v3435 = vld [vmem:[%s3431 + $0x18] sm:$0xff]
      %v3436 = vld [vmem:[%s3431 + $0x20] sm:$0xff]
      %v3437 = vld [vmem:[%s3431 + $0x28] sm:$0xff]
      %v3438 = vld [vmem:[%s3431 + $0x30] sm:$0xff]
      %v3439 = vld [vmem:[%s3431 + $0x38] sm:$0xff]
      %v3440 = vld [vmem:[%s3431 + $0x40] sm:$0xff]
      %v3441 = vld [vmem:[%s3431 + $0x48] sm:$0xff]
      %v3442 = vld [vmem:[%s3431 + $0x50] sm:$0xff]
      %v3443 = vld [vmem:[%s3431 + $0x58] sm:$0xff]
      %v3444 = vld [vmem:[%s3431 + $0x60] sm:$0xff]
      %v3445 = vld [vmem:[%s3431 + $0x68] sm:$0xff]
      %v3446 = vld [vmem:[%s3431 + $0x70] sm:$0xff]
      %v3447 = vld [vmem:[%s3431 + $0x78] sm:$0xff]
      %3464 = vst [vmem:[#allocation1] ss:$2 sm:$0xff] %v3415
      %s3465 = scalar_lea.vmem [#allocation1], 1
      %3466 = vst [vmem:[%s3465] ss:$2 sm:$0xff] %v3416
      %s3467 = scalar_lea.vmem [#allocation1], 16
      %3468 = vst [vmem:[%s3467] ss:$2 sm:$0xff] %v3417
      %s3469 = scalar_lea.vmem [#allocation1], 17
      %3470 = vst [vmem:[%s3469] ss:$2 sm:$0xff] %v3418
      %s3471 = scalar_lea.vmem [#allocation1], 32
      %3472 = vst [vmem:[%s3471] ss:$2 sm:$0xff] %v3419
      %s3473 = scalar_lea.vmem [#allocation1], 33
      %3474 = vst [vmem:[%s3473] ss:$2 sm:$0xff] %v3420
      %s3475 = scalar_lea.vmem [#allocation1], 48
      %3476 = vst [vmem:[%s3475] ss:$2 sm:$0xff] %v3421
      %s3477 = scalar_lea.vmem [#allocation1], 49
      %3478 = vst [vmem:[%s3477] ss:$2 sm:$0xff] %v3422
      %v3479 = vld.sshfl [vmem:[#allocation1] sm:$0xff pattern:$0x75316420]
      %v3480 = vld.sshfl [vmem:[#allocation1 + $0x10] sm:$0xff pattern:$0x75316420]
      %v3481 = vld.sshfl [vmem:[#allocation1 + $0x20] sm:$0xff pattern:$0x75316420]
      %v3482 = vld.sshfl [vmem:[#allocation1 + $0x30] sm:$0xff pattern:$0x75316420]
      %3483 = vst [vmem:[#allocation1] ss:$2 sm:$0xff] %v3423
      %3484 = vst [vmem:[%s3465] ss:$2 sm:$0xff] %v3424
      %3485 = vst [vmem:[%s3467] ss:$2 sm:$0xff] %v3425
      %3486 = vst [vmem:[%s3469] ss:$2 sm:$0xff] %v3426
      %3487 = vst [vmem:[%s3471] ss:$2 sm:$0xff] %v3427
      %3488 = vst [vmem:[%s3473] ss:$2 sm:$0xff] %v3428
      %3489 = vst [vmem:[%s3475] ss:$2 sm:$0xff] %v3429
      %3490 = vst [vmem:[%s3477] ss:$2 sm:$0xff] %v3430
      %v3491 = vld.sshfl [vmem:[#allocation1] sm:$0xff pattern:$0x75316420]
      %v3492 = vld.sshfl [vmem:[#allocation1 + $0x10] sm:$0xff pattern:$0x75316420]
      %v3493 = vld.sshfl [vmem:[#allocation1 + $0x20] sm:$0xff pattern:$0x75316420]
      %v3494 = vld.sshfl [vmem:[#allocation1 + $0x30] sm:$0xff pattern:$0x75316420]
      %3503 = vmatpush.msra.mxu0 %v3447
      %3504 = vmatpush.msra.mxu0 %v3446
      %3505 = vmatpush.msra.mxu0 %v3445
      %3506 = vmatpush.msra.mxu0 %v3444
      %3507 = vmatpush.msra.mxu0 %v3443
      %3508 = vmatpush.msra.mxu0 %v3442
      %3509 = vmatpush.msra.mxu0 %v3441
      %3510 = vmatpush.msra.mxu0 %v3440
      %3511 = vmatpush.msra.mxu0 %v3439
      %3512 = vmatpush.msra.mxu0 %v3438
      %3513 = vmatpush.msra.mxu0 %v3437
      %3514 = vmatpush.msra.mxu0 %v3436
      %3515 = vmatpush.msra.mxu0 %v3435
      %3516 = vmatpush.msra.mxu0 %v3434
      %3517 = vmatpush.msra.mxu0 %v3433
      %3518 = vmatpush.msra.mxu0 %v3432
      %3519 = vmatmul.f32.gmra.mxu0 %v3479
      %v3520 = vpop.f32.mrf.mxu0
      %v3521 = vadd.f32 0.0, %v3520
      %3522 = vmatmul.f32.gmra.mxu0 %v3480
      %v3523 = vpop.f32.mrf.mxu0
      %v3524 = vadd.f32 0.0, %v3523
      %3525 = vmatmul.f32.gmra.mxu0 %v3481
      %v3526 = vpop.f32.mrf.mxu0
      %v3527 = vadd.f32 0.0, %v3526
      %3528 = vmatmul.f32.gmra.mxu0 %v3482
      %v3529 = vpop.f32.mrf.mxu0
      %v3530 = vadd.f32 0.0, %v3529
      %3531 = vmatmul.f32.gmra.mxu0 %v3491
      %v3532 = vpop.f32.mrf.mxu0
      %v3533 = vadd.f32 0.0, %v3532
      %3534 = vmatmul.f32.gmra.mxu0 %v3492
      %v3535 = vpop.f32.mrf.mxu0
      %v3536 = vadd.f32 0.0, %v3535
      %3537 = vmatmul.f32.gmra.mxu0 %v3493
      %v3538 = vpop.f32.mrf.mxu0
      %v3539 = vadd.f32 0.0, %v3538
      %3540 = vmatmul.f32.gmra.mxu0 %v3494
      %v3541 = vpop.f32.mrf.mxu0
      %v3542 = vadd.f32 0.0, %v3541
      %3543 = vdwg.mxu0
      %v3544 = vadd.f32 %v3407, %v3521
      %v3545 = vadd.f32 %v3408, %v3524
      %v3546 = vadd.f32 %v3409, %v3527
      %v3547 = vadd.f32 %v3410, %v3530
      %v3548 = vadd.f32 %v3411, %v3533
      %v3549 = vadd.f32 %v3412, %v3536
      %v3550 = vadd.f32 %v3413, %v3539
      %v3551 = vadd.f32 %v3414, %v3542
      %v3552 = vld [vmem:[%s655 + $0x2] sm:$0xf]
      %v3553 = vld [vmem:[%s655 + $0xa] sm:$0xf]
      %v3554 = vld [vmem:[%s655 + $0x12] sm:$0xf]
      %v3555 = vld [vmem:[%s655 + $0x1a] sm:$0xf]
      %v3556 = vld [vmem:[%s655 + $0x22] sm:$0xf]
      %v3557 = vld [vmem:[%s655 + $0x2a] sm:$0xf]
      %v3558 = vld [vmem:[%s655 + $0x32] sm:$0xf]
      %v3559 = vld [vmem:[%s655 + $0x3a] sm:$0xf]
      %v3560 = vld [vmem:[%s655 + $0x42] sm:$0xf]
      %v3561 = vld [vmem:[%s655 + $0x4a] sm:$0xf]
      %v3562 = vld [vmem:[%s655 + $0x52] sm:$0xf]
      %v3563 = vld [vmem:[%s655 + $0x5a] sm:$0xf]
      %v3564 = vld [vmem:[%s655 + $0x62] sm:$0xf]
      %v3565 = vld [vmem:[%s655 + $0x6a] sm:$0xf]
      %v3566 = vld [vmem:[%s655 + $0x72] sm:$0xf]
      %v3567 = vld [vmem:[%s655 + $0x7a] sm:$0xf]
      %s3568 = scalar_lea.vmem %s1, 2944
      %v3569 = vld [vmem:[%s3568] sm:$0xff]
      %v3570 = vld [vmem:[%s3568 + $0x8] sm:$0xff]
      %v3571 = vld [vmem:[%s3568 + $0x10] sm:$0xff]
      %v3572 = vld [vmem:[%s3568 + $0x18] sm:$0xff]
      %v3573 = vld [vmem:[%s3568 + $0x20] sm:$0xff]
      %v3574 = vld [vmem:[%s3568 + $0x28] sm:$0xff]
      %v3575 = vld [vmem:[%s3568 + $0x30] sm:$0xff]
      %v3576 = vld [vmem:[%s3568 + $0x38] sm:$0xff]
      %v3577 = vld [vmem:[%s3568 + $0x40] sm:$0xff]
      %v3578 = vld [vmem:[%s3568 + $0x48] sm:$0xff]
      %v3579 = vld [vmem:[%s3568 + $0x50] sm:$0xff]
      %v3580 = vld [vmem:[%s3568 + $0x58] sm:$0xff]
      %v3581 = vld [vmem:[%s3568 + $0x60] sm:$0xff]
      %v3582 = vld [vmem:[%s3568 + $0x68] sm:$0xff]
      %v3583 = vld [vmem:[%s3568 + $0x70] sm:$0xff]
      %v3584 = vld [vmem:[%s3568 + $0x78] sm:$0xff]
      %3601 = vst [vmem:[#allocation1] ss:$2 sm:$0xff] %v3552
      %s3602 = scalar_lea.vmem [#allocation1], 1
      %3603 = vst [vmem:[%s3602] ss:$2 sm:$0xff] %v3553
      %s3604 = scalar_lea.vmem [#allocation1], 16
      %3605 = vst [vmem:[%s3604] ss:$2 sm:$0xff] %v3554
      %s3606 = scalar_lea.vmem [#allocation1], 17
      %3607 = vst [vmem:[%s3606] ss:$2 sm:$0xff] %v3555
      %s3608 = scalar_lea.vmem [#allocation1], 32
      %3609 = vst [vmem:[%s3608] ss:$2 sm:$0xff] %v3556
      %s3610 = scalar_lea.vmem [#allocation1], 33
      %3611 = vst [vmem:[%s3610] ss:$2 sm:$0xff] %v3557
      %s3612 = scalar_lea.vmem [#allocation1], 48
      %3613 = vst [vmem:[%s3612] ss:$2 sm:$0xff] %v3558
      %s3614 = scalar_lea.vmem [#allocation1], 49
      %3615 = vst [vmem:[%s3614] ss:$2 sm:$0xff] %v3559
      %v3616 = vld.sshfl [vmem:[#allocation1] sm:$0xff pattern:$0x75316420]
      %v3617 = vld.sshfl [vmem:[#allocation1 + $0x10] sm:$0xff pattern:$0x75316420]
      %v3618 = vld.sshfl [vmem:[#allocation1 + $0x20] sm:$0xff pattern:$0x75316420]
      %v3619 = vld.sshfl [vmem:[#allocation1 + $0x30] sm:$0xff pattern:$0x75316420]
      %3620 = vst [vmem:[#allocation1] ss:$2 sm:$0xff] %v3560
      %3621 = vst [vmem:[%s3602] ss:$2 sm:$0xff] %v3561
      %3622 = vst [vmem:[%s3604] ss:$2 sm:$0xff] %v3562
      %3623 = vst [vmem:[%s3606] ss:$2 sm:$0xff] %v3563
      %3624 = vst [vmem:[%s3608] ss:$2 sm:$0xff] %v3564
      %3625 = vst [vmem:[%s3610] ss:$2 sm:$0xff] %v3565
      %3626 = vst [vmem:[%s3612] ss:$2 sm:$0xff] %v3566
      %3627 = vst [vmem:[%s3614] ss:$2 sm:$0xff] %v3567
      %v3628 = vld.sshfl [vmem:[#allocation1] sm:$0xff pattern:$0x75316420]
      %v3629 = vld.sshfl [vmem:[#allocation1 + $0x10] sm:$0xff pattern:$0x75316420]
      %v3630 = vld.sshfl [vmem:[#allocation1 + $0x20] sm:$0xff pattern:$0x75316420]
      %v3631 = vld.sshfl [vmem:[#allocation1 + $0x30] sm:$0xff pattern:$0x75316420]
      %3640 = vmatpush.msra.mxu0 %v3584
      %3641 = vmatpush.msra.mxu0 %v3583
      %3642 = vmatpush.msra.mxu0 %v3582
      %3643 = vmatpush.msra.mxu0 %v3581
      %3644 = vmatpush.msra.mxu0 %v3580
      %3645 = vmatpush.msra.mxu0 %v3579
      %3646 = vmatpush.msra.mxu0 %v3578
      %3647 = vmatpush.msra.mxu0 %v3577
      %3648 = vmatpush.msra.mxu0 %v3576
      %3649 = vmatpush.msra.mxu0 %v3575
      %3650 = vmatpush.msra.mxu0 %v3574
      %3651 = vmatpush.msra.mxu0 %v3573
      %3652 = vmatpush.msra.mxu0 %v3572
      %3653 = vmatpush.msra.mxu0 %v3571
      %3654 = vmatpush.msra.mxu0 %v3570
      %3655 = vmatpush.msra.mxu0 %v3569
      %3656 = vmatmul.f32.gmra.mxu0 %v3616
      %v3657 = vpop.f32.mrf.mxu0
      %v3658 = vadd.f32 0.0, %v3657
      %3659 = vmatmul.f32.gmra.mxu0 %v3617
      %v3660 = vpop.f32.mrf.mxu0
      %v3661 = vadd.f32 0.0, %v3660
      %3662 = vmatmul.f32.gmra.mxu0 %v3618
      %v3663 = vpop.f32.mrf.mxu0
      %v3664 = vadd.f32 0.0, %v3663
      %3665 = vmatmul.f32.gmra.mxu0 %v3619
      %v3666 = vpop.f32.mrf.mxu0
      %v3667 = vadd.f32 0.0, %v3666
      %3668 = vmatmul.f32.gmra.mxu0 %v3628
      %v3669 = vpop.f32.mrf.mxu0
      %v3670 = vadd.f32 0.0, %v3669
      %3671 = vmatmul.f32.gmra.mxu0 %v3629
      %v3672 = vpop.f32.mrf.mxu0
      %v3673 = vadd.f32 0.0, %v3672
      %3674 = vmatmul.f32.gmra.mxu0 %v3630
      %v3675 = vpop.f32.mrf.mxu0
      %v3676 = vadd.f32 0.0, %v3675
      %3677 = vmatmul.f32.gmra.mxu0 %v3631
      %v3678 = vpop.f32.mrf.mxu0
      %v3679 = vadd.f32 0.0, %v3678
      %3680 = vdwg.mxu0
      %v3681 = vadd.f32 %v3544, %v3658
      %v3682 = vadd.f32 %v3545, %v3661
      %v3683 = vadd.f32 %v3546, %v3664
      %v3684 = vadd.f32 %v3547, %v3667
      %v3685 = vadd.f32 %v3548, %v3670
      %v3686 = vadd.f32 %v3549, %v3673
      %v3687 = vadd.f32 %v3550, %v3676
      %v3688 = vadd.f32 %v3551, %v3679
      %v3689 = vld [vmem:[%s1067] sm:$0xf]
      %v3690 = vld [vmem:[%s1067 + $0x8] sm:$0xf]
      %v3691 = vld [vmem:[%s1067 + $0x10] sm:$0xf]
      %v3692 = vld [vmem:[%s1067 + $0x18] sm:$0xf]
      %v3693 = vld [vmem:[%s1067 + $0x20] sm:$0xf]
      %v3694 = vld [vmem:[%s1067 + $0x28] sm:$0xf]
      %v3695 = vld [vmem:[%s1067 + $0x30] sm:$0xf]
      %v3696 = vld [vmem:[%s1067 + $0x38] sm:$0xf]
      %v3697 = vld [vmem:[%s1067 + $0x40] sm:$0xf]
      %v3698 = vld [vmem:[%s1067 + $0x48] sm:$0xf]
      %v3699 = vld [vmem:[%s1067 + $0x50] sm:$0xf]
      %v3700 = vld [vmem:[%s1067 + $0x58] sm:$0xf]
      %v3701 = vld [vmem:[%s1067 + $0x60] sm:$0xf]
      %v3702 = vld [vmem:[%s1067 + $0x68] sm:$0xf]
      %v3703 = vld [vmem:[%s1067 + $0x70] sm:$0xf]
      %v3704 = vld [vmem:[%s1067 + $0x78] sm:$0xf]
      %s3705 = scalar_lea.vmem %s1, 3072
      %v3706 = vld [vmem:[%s3705] sm:$0xff]
      %v3707 = vld [vmem:[%s3705 + $0x8] sm:$0xff]
      %v3708 = vld [vmem:[%s3705 + $0x10] sm:$0xff]
      %v3709 = vld [vmem:[%s3705 + $0x18] sm:$0xff]
      %v3710 = vld [vmem:[%s3705 + $0x20] sm:$0xff]
      %v3711 = vld [vmem:[%s3705 + $0x28] sm:$0xff]
      %v3712 = vld [vmem:[%s3705 + $0x30] sm:$0xff]
      %v3713 = vld [vmem:[%s3705 + $0x38] sm:$0xff]
      %v3714 = vld [vmem:[%s3705 + $0x40] sm:$0xff]
      %v3715 = vld [vmem:[%s3705 + $0x48] sm:$0xff]
      %v3716 = vld [vmem:[%s3705 + $0x50] sm:$0xff]
      %v3717 = vld [vmem:[%s3705 + $0x58] sm:$0xff]
      %v3718 = vld [vmem:[%s3705 + $0x60] sm:$0xff]
      %v3719 = vld [vmem:[%s3705 + $0x68] sm:$0xff]
      %v3720 = vld [vmem:[%s3705 + $0x70] sm:$0xff]
      %v3721 = vld [vmem:[%s3705 + $0x78] sm:$0xff]
      %3738 = vst [vmem:[#allocation1] ss:$2 sm:$0xff] %v3689
      %s3739 = scalar_lea.vmem [#allocation1], 1
      %3740 = vst [vmem:[%s3739] ss:$2 sm:$0xff] %v3690
      %s3741 = scalar_lea.vmem [#allocation1], 16
      %3742 = vst [vmem:[%s3741] ss:$2 sm:$0xff] %v3691
      %s3743 = scalar_lea.vmem [#allocation1], 17
      %3744 = vst [vmem:[%s3743] ss:$2 sm:$0xff] %v3692
      %s3745 = scalar_lea.vmem [#allocation1], 32
      %3746 = vst [vmem:[%s3745] ss:$2 sm:$0xff] %v3693
      %s3747 = scalar_lea.vmem [#allocation1], 33
      %3748 = vst [vmem:[%s3747] ss:$2 sm:$0xff] %v3694
      %s3749 = scalar_lea.vmem [#allocation1], 48
      %3750 = vst [vmem:[%s3749] ss:$2 sm:$0xff] %v3695
      %s3751 = scalar_lea.vmem [#allocation1], 49
      %3752 = vst [vmem:[%s3751] ss:$2 sm:$0xff] %v3696
      %v3753 = vld.sshfl [vmem:[#allocation1] sm:$0xff pattern:$0x75316420]
      %v3754 = vld.sshfl [vmem:[#allocation1 + $0x10] sm:$0xff pattern:$0x75316420]
      %v3755 = vld.sshfl [vmem:[#allocation1 + $0x20] sm:$0xff pattern:$0x75316420]
      %v3756 = vld.sshfl [vmem:[#allocation1 + $0x30] sm:$0xff pattern:$0x75316420]
      %3757 = vst [vmem:[#allocation1] ss:$2 sm:$0xff] %v3697
      %3758 = vst [vmem:[%s3739] ss:$2 sm:$0xff] %v3698
      %3759 = vst [vmem:[%s3741] ss:$2 sm:$0xff] %v3699
      %3760 = vst [vmem:[%s3743] ss:$2 sm:$0xff] %v3700
      %3761 = vst [vmem:[%s3745] ss:$2 sm:$0xff] %v3701
      %3762 = vst [vmem:[%s3747] ss:$2 sm:$0xff] %v3702
      %3763 = vst [vmem:[%s3749] ss:$2 sm:$0xff] %v3703
      %3764 = vst [vmem:[%s3751] ss:$2 sm:$0xff] %v3704
      %v3765 = vld.sshfl [vmem:[#allocation1] sm:$0xff pattern:$0x75316420]
      %v3766 = vld.sshfl [vmem:[#allocation1 + $0x10] sm:$0xff pattern:$0x75316420]
      %v3767 = vld.sshfl [vmem:[#allocation1 + $0x20] sm:$0xff pattern:$0x75316420]
      %v3768 = vld.sshfl [vmem:[#allocation1 + $0x30] sm:$0xff pattern:$0x75316420]
      %3777 = vmatpush.msra.mxu0 %v3721
      %3778 = vmatpush.msra.mxu0 %v3720
      %3779 = vmatpush.msra.mxu0 %v3719
      %3780 = vmatpush.msra.mxu0 %v3718
      %3781 = vmatpush.msra.mxu0 %v3717
      %3782 = vmatpush.msra.mxu0 %v3716
      %3783 = vmatpush.msra.mxu0 %v3715
      %3784 = vmatpush.msra.mxu0 %v3714
      %3785 = vmatpush.msra.mxu0 %v3713
      %3786 = vmatpush.msra.mxu0 %v3712
      %3787 = vmatpush.msra.mxu0 %v3711
      %3788 = vmatpush.msra.mxu0 %v3710
      %3789 = vmatpush.msra.mxu0 %v3709
      %3790 = vmatpush.msra.mxu0 %v3708
      %3791 = vmatpush.msra.mxu0 %v3707
      %3792 = vmatpush.msra.mxu0 %v3706
      %3793 = vmatmul.f32.gmra.mxu0 %v3753
      %v3794 = vpop.f32.mrf.mxu0
      %v3795 = vadd.f32 0.0, %v3794
      %3796 = vmatmul.f32.gmra.mxu0 %v3754
      %v3797 = vpop.f32.mrf.mxu0
      %v3798 = vadd.f32 0.0, %v3797
      %3799 = vmatmul.f32.gmra.mxu0 %v3755
      %v3800 = vpop.f32.mrf.mxu0
      %v3801 = vadd.f32 0.0, %v3800
      %3802 = vmatmul.f32.gmra.mxu0 %v3756
      %v3803 = vpop.f32.mrf.mxu0
      %v3804 = vadd.f32 0.0, %v3803
      %3805 = vmatmul.f32.gmra.mxu0 %v3765
      %v3806 = vpop.f32.mrf.mxu0
      %v3807 = vadd.f32 0.0, %v3806
      %3808 = vmatmul.f32.gmra.mxu0 %v3766
      %v3809 = vpop.f32.mrf.mxu0
      %v3810 = vadd.f32 0.0, %v3809
      %3811 = vmatmul.f32.gmra.mxu0 %v3767
      %v3812 = vpop.f32.mrf.mxu0
      %v3813 = vadd.f32 0.0, %v3812
      %3814 = vmatmul.f32.gmra.mxu0 %v3768
      %v3815 = vpop.f32.mrf.mxu0
      %v3816 = vadd.f32 0.0, %v3815
      %3817 = vdwg.mxu0
      %v3818 = vadd.f32 %v3681, %v3795
      %v3819 = vadd.f32 %v3682, %v3798
      %v3820 = vadd.f32 %v3683, %v3801
      %v3821 = vadd.f32 %v3684, %v3804
      %v3822 = vadd.f32 %v3685, %v3807
      %v3823 = vadd.f32 %v3686, %v3810
      %v3824 = vadd.f32 %v3687, %v3813
      %v3825 = vadd.f32 %v3688, %v3816
      %v3826 = vld [vmem:[%s1067 + $0x1] sm:$0xf]
      %v3827 = vld [vmem:[%s1067 + $0x9] sm:$0xf]
      %v3828 = vld [vmem:[%s1067 + $0x11] sm:$0xf]
      %v3829 = vld [vmem:[%s1067 + $0x19] sm:$0xf]
      %v3830 = vld [vmem:[%s1067 + $0x21] sm:$0xf]
      %v3831 = vld [vmem:[%s1067 + $0x29] sm:$0xf]
      %v3832 = vld [vmem:[%s1067 + $0x31] sm:$0xf]
      %v3833 = vld [vmem:[%s1067 + $0x39] sm:$0xf]
      %v3834 = vld [vmem:[%s1067 + $0x41] sm:$0xf]
      %v3835 = vld [vmem:[%s1067 + $0x49] sm:$0xf]
      %v3836 = vld [vmem:[%s1067 + $0x51] sm:$0xf]
      %v3837 = vld [vmem:[%s1067 + $0x59] sm:$0xf]
      %v3838 = vld [vmem:[%s1067 + $0x61] sm:$0xf]
      %v3839 = vld [vmem:[%s1067 + $0x69] sm:$0xf]
      %v3840 = vld [vmem:[%s1067 + $0x71] sm:$0xf]
      %v3841 = vld [vmem:[%s1067 + $0x79] sm:$0xf]
      %s3842 = scalar_lea.vmem %s1, 3200
      %v3843 = vld [vmem:[%s3842] sm:$0xff]
      %v3844 = vld [vmem:[%s3842 + $0x8] sm:$0xff]
      %v3845 = vld [vmem:[%s3842 + $0x10] sm:$0xff]
      %v3846 = vld [vmem:[%s3842 + $0x18] sm:$0xff]
      %v3847 = vld [vmem:[%s3842 + $0x20] sm:$0xff]
      %v3848 = vld [vmem:[%s3842 + $0x28] sm:$0xff]
      %v3849 = vld [vmem:[%s3842 + $0x30] sm:$0xff]
      %v3850 = vld [vmem:[%s3842 + $0x38] sm:$0xff]
      %v3851 = vld [vmem:[%s3842 + $0x40] sm:$0xff]
      %v3852 = vld [vmem:[%s3842 + $0x48] sm:$0xff]
      %v3853 = vld [vmem:[%s3842 + $0x50] sm:$0xff]
      %v3854 = vld [vmem:[%s3842 + $0x58] sm:$0xff]
      %v3855 = vld [vmem:[%s3842 + $0x60] sm:$0xff]
      %v3856 = vld [vmem:[%s3842 + $0x68] sm:$0xff]
      %v3857 = vld [vmem:[%s3842 + $0x70] sm:$0xff]
      %v3858 = vld [vmem:[%s3842 + $0x78] sm:$0xff]
      %3875 = vst [vmem:[#allocation1] ss:$2 sm:$0xff] %v3826
      %s3876 = scalar_lea.vmem [#allocation1], 1
      %3877 = vst [vmem:[%s3876] ss:$2 sm:$0xff] %v3827
      %s3878 = scalar_lea.vmem [#allocation1], 16
      %3879 = vst [vmem:[%s3878] ss:$2 sm:$0xff] %v3828
      %s3880 = scalar_lea.vmem [#allocation1], 17
      %3881 = vst [vmem:[%s3880] ss:$2 sm:$0xff] %v3829
      %s3882 = scalar_lea.vmem [#allocation1], 32
      %3883 = vst [vmem:[%s3882] ss:$2 sm:$0xff] %v3830
      %s3884 = scalar_lea.vmem [#allocation1], 33
      %3885 = vst [vmem:[%s3884] ss:$2 sm:$0xff] %v3831
      %s3886 = scalar_lea.vmem [#allocation1], 48
      %3887 = vst [vmem:[%s3886] ss:$2 sm:$0xff] %v3832
      %s3888 = scalar_lea.vmem [#allocation1], 49
      %3889 = vst [vmem:[%s3888] ss:$2 sm:$0xff] %v3833
      %v3890 = vld.sshfl [vmem:[#allocation1] sm:$0xff pattern:$0x75316420]
      %v3891 = vld.sshfl [vmem:[#allocation1 + $0x10] sm:$0xff pattern:$0x75316420]
      %v3892 = vld.sshfl [vmem:[#allocation1 + $0x20] sm:$0xff pattern:$0x75316420]
      %v3893 = vld.sshfl [vmem:[#allocation1 + $0x30] sm:$0xff pattern:$0x75316420]
      %3894 = vst [vmem:[#allocation1] ss:$2 sm:$0xff] %v3834
      %3895 = vst [vmem:[%s3876] ss:$2 sm:$0xff] %v3835
      %3896 = vst [vmem:[%s3878] ss:$2 sm:$0xff] %v3836
      %3897 = vst [vmem:[%s3880] ss:$2 sm:$0xff] %v3837
      %3898 = vst [vmem:[%s3882] ss:$2 sm:$0xff] %v3838
      %3899 = vst [vmem:[%s3884] ss:$2 sm:$0xff] %v3839
      %3900 = vst [vmem:[%s3886] ss:$2 sm:$0xff] %v3840
      %3901 = vst [vmem:[%s3888] ss:$2 sm:$0xff] %v3841
      %v3902 = vld.sshfl [vmem:[#allocation1] sm:$0xff pattern:$0x75316420]
      %v3903 = vld.sshfl [vmem:[#allocation1 + $0x10] sm:$0xff pattern:$0x75316420]
      %v3904 = vld.sshfl [vmem:[#allocation1 + $0x20] sm:$0xff pattern:$0x75316420]
      %v3905 = vld.sshfl [vmem:[#allocation1 + $0x30] sm:$0xff pattern:$0x75316420]
      %3914 = vmatpush.msra.mxu0 %v3858
      %3915 = vmatpush.msra.mxu0 %v3857
      %3916 = vmatpush.msra.mxu0 %v3856
      %3917 = vmatpush.msra.mxu0 %v3855
      %3918 = vmatpush.msra.mxu0 %v3854
      %3919 = vmatpush.msra.mxu0 %v3853
      %3920 = vmatpush.msra.mxu0 %v3852
      %3921 = vmatpush.msra.mxu0 %v3851
      %3922 = vmatpush.msra.mxu0 %v3850
      %3923 = vmatpush.msra.mxu0 %v3849
      %3924 = vmatpush.msra.mxu0 %v3848
      %3925 = vmatpush.msra.mxu0 %v3847
      %3926 = vmatpush.msra.mxu0 %v3846
      %3927 = vmatpush.msra.mxu0 %v3845
      %3928 = vmatpush.msra.mxu0 %v3844
      %3929 = vmatpush.msra.mxu0 %v3843
      %3930 = vmatmul.f32.gmra.mxu0 %v3890
      %v3931 = vpop.f32.mrf.mxu0
      %v3932 = vadd.f32 0.0, %v3931
      %3933 = vmatmul.f32.gmra.mxu0 %v3891
      %v3934 = vpop.f32.mrf.mxu0
      %v3935 = vadd.f32 0.0, %v3934
      %3936 = vmatmul.f32.gmra.mxu0 %v3892
      %v3937 = vpop.f32.mrf.mxu0
      %v3938 = vadd.f32 0.0, %v3937
      %3939 = vmatmul.f32.gmra.mxu0 %v3893
      %v3940 = vpop.f32.mrf.mxu0
      %v3941 = vadd.f32 0.0, %v3940
      %3942 = vmatmul.f32.gmra.mxu0 %v3902
      %v3943 = vpop.f32.mrf.mxu0
      %v3944 = vadd.f32 0.0, %v3943
      %3945 = vmatmul.f32.gmra.mxu0 %v3903
      %v3946 = vpop.f32.mrf.mxu0
      %v3947 = vadd.f32 0.0, %v3946
      %3948 = vmatmul.f32.gmra.mxu0 %v3904
      %v3949 = vpop.f32.mrf.mxu0
      %v3950 = vadd.f32 0.0, %v3949
      %3951 = vmatmul.f32.gmra.mxu0 %v3905
      %v3952 = vpop.f32.mrf.mxu0
      %v3953 = vadd.f32 0.0, %v3952
      %3954 = vdwg.mxu0
      %v3955 = vadd.f32 %v3818, %v3932
      %v3956 = vadd.f32 %v3819, %v3935
      %v3957 = vadd.f32 %v3820, %v3938
      %v3958 = vadd.f32 %v3821, %v3941
      %v3959 = vadd.f32 %v3822, %v3944
      %v3960 = vadd.f32 %v3823, %v3947
      %v3961 = vadd.f32 %v3824, %v3950
      %v3962 = vadd.f32 %v3825, %v3953
      %v3963 = vld [vmem:[%s1067 + $0x2] sm:$0xf]
      %v3964 = vld [vmem:[%s1067 + $0xa] sm:$0xf]
      %v3965 = vld [vmem:[%s1067 + $0x12] sm:$0xf]
      %v3966 = vld [vmem:[%s1067 + $0x1a] sm:$0xf]
      %v3967 = vld [vmem:[%s1067 + $0x22] sm:$0xf]
      %v3968 = vld [vmem:[%s1067 + $0x2a] sm:$0xf]
      %v3969 = vld [vmem:[%s1067 + $0x32] sm:$0xf]
      %v3970 = vld [vmem:[%s1067 + $0x3a] sm:$0xf]
      %v3971 = vld [vmem:[%s1067 + $0x42] sm:$0xf]
      %v3972 = vld [vmem:[%s1067 + $0x4a] sm:$0xf]
      %v3973 = vld [vmem:[%s1067 + $0x52] sm:$0xf]
      %v3974 = vld [vmem:[%s1067 + $0x5a] sm:$0xf]
      %v3975 = vld [vmem:[%s1067 + $0x62] sm:$0xf]
      %v3976 = vld [vmem:[%s1067 + $0x6a] sm:$0xf]
      %v3977 = vld [vmem:[%s1067 + $0x72] sm:$0xf]
      %v3978 = vld [vmem:[%s1067 + $0x7a] sm:$0xf]
      %s3979 = scalar_lea.vmem %s1, 3328
      %v3980 = vld [vmem:[%s3979] sm:$0xff]
      %v3981 = vld [vmem:[%s3979 + $0x8] sm:$0xff]
      %v3982 = vld [vmem:[%s3979 + $0x10] sm:$0xff]
      %v3983 = vld [vmem:[%s3979 + $0x18] sm:$0xff]
      %v3984 = vld [vmem:[%s3979 + $0x20] sm:$0xff]
      %v3985 = vld [vmem:[%s3979 + $0x28] sm:$0xff]
      %v3986 = vld [vmem:[%s3979 + $0x30] sm:$0xff]
      %v3987 = vld [vmem:[%s3979 + $0x38] sm:$0xff]
      %v3988 = vld [vmem:[%s3979 + $0x40] sm:$0xff]
      %v3989 = vld [vmem:[%s3979 + $0x48] sm:$0xff]
      %v3990 = vld [vmem:[%s3979 + $0x50] sm:$0xff]
      %v3991 = vld [vmem:[%s3979 + $0x58] sm:$0xff]
      %v3992 = vld [vmem:[%s3979 + $0x60] sm:$0xff]
      %v3993 = vld [vmem:[%s3979 + $0x68] sm:$0xff]
      %v3994 = vld [vmem:[%s3979 + $0x70] sm:$0xff]
      %v3995 = vld [vmem:[%s3979 + $0x78] sm:$0xff]
      %4012 = vst [vmem:[#allocation1] ss:$2 sm:$0xff] %v3963
      %s4013 = scalar_lea.vmem [#allocation1], 1
      %4014 = vst [vmem:[%s4013] ss:$2 sm:$0xff] %v3964
      %s4015 = scalar_lea.vmem [#allocation1], 16
      %4016 = vst [vmem:[%s4015] ss:$2 sm:$0xff] %v3965
      %s4017 = scalar_lea.vmem [#allocation1], 17
      %4018 = vst [vmem:[%s4017] ss:$2 sm:$0xff] %v3966
      %s4019 = scalar_lea.vmem [#allocation1], 32
      %4020 = vst [vmem:[%s4019] ss:$2 sm:$0xff] %v3967
      %s4021 = scalar_lea.vmem [#allocation1], 33
      %4022 = vst [vmem:[%s4021] ss:$2 sm:$0xff] %v3968
      %s4023 = scalar_lea.vmem [#allocation1], 48
      %4024 = vst [vmem:[%s4023] ss:$2 sm:$0xff] %v3969
      %s4025 = scalar_lea.vmem [#allocation1], 49
      %4026 = vst [vmem:[%s4025] ss:$2 sm:$0xff] %v3970
      %v4027 = vld.sshfl [vmem:[#allocation1] sm:$0xff pattern:$0x75316420]
      %v4028 = vld.sshfl [vmem:[#allocation1 + $0x10] sm:$0xff pattern:$0x75316420]
      %v4029 = vld.sshfl [vmem:[#allocation1 + $0x20] sm:$0xff pattern:$0x75316420]
      %v4030 = vld.sshfl [vmem:[#allocation1 + $0x30] sm:$0xff pattern:$0x75316420]
      %4031 = vst [vmem:[#allocation1] ss:$2 sm:$0xff] %v3971
      %4032 = vst [vmem:[%s4013] ss:$2 sm:$0xff] %v3972
      %4033 = vst [vmem:[%s4015] ss:$2 sm:$0xff] %v3973
      %4034 = vst [vmem:[%s4017] ss:$2 sm:$0xff] %v3974
      %4035 = vst [vmem:[%s4019] ss:$2 sm:$0xff] %v3975
      %4036 = vst [vmem:[%s4021] ss:$2 sm:$0xff] %v3976
      %4037 = vst [vmem:[%s4023] ss:$2 sm:$0xff] %v3977
      %4038 = vst [vmem:[%s4025] ss:$2 sm:$0xff] %v3978
      %v4039 = vld.sshfl [vmem:[#allocation1] sm:$0xff pattern:$0x75316420]
      %v4040 = vld.sshfl [vmem:[#allocation1 + $0x10] sm:$0xff pattern:$0x75316420]
      %v4041 = vld.sshfl [vmem:[#allocation1 + $0x20] sm:$0xff pattern:$0x75316420]
      %v4042 = vld.sshfl [vmem:[#allocation1 + $0x30] sm:$0xff pattern:$0x75316420]
      %4051 = vmatpush.msra.mxu0 %v3995
      %4052 = vmatpush.msra.mxu0 %v3994
      %4053 = vmatpush.msra.mxu0 %v3993
      %4054 = vmatpush.msra.mxu0 %v3992
      %4055 = vmatpush.msra.mxu0 %v3991
      %4056 = vmatpush.msra.mxu0 %v3990
      %4057 = vmatpush.msra.mxu0 %v3989
      %4058 = vmatpush.msra.mxu0 %v3988
      %4059 = vmatpush.msra.mxu0 %v3987
      %4060 = vmatpush.msra.mxu0 %v3986
      %4061 = vmatpush.msra.mxu0 %v3985
      %4062 = vmatpush.msra.mxu0 %v3984
      %4063 = vmatpush.msra.mxu0 %v3983
      %4064 = vmatpush.msra.mxu0 %v3982
      %4065 = vmatpush.msra.mxu0 %v3981
      %4066 = vmatpush.msra.mxu0 %v3980
      %4067 = vmatmul.f32.gmra.mxu0 %v4027
      %v4068 = vpop.f32.mrf.mxu0
      %v4069 = vadd.f32 0.0, %v4068
      %4070 = vmatmul.f32.gmra.mxu0 %v4028
      %v4071 = vpop.f32.mrf.mxu0
      %v4072 = vadd.f32 0.0, %v4071
      %4073 = vmatmul.f32.gmra.mxu0 %v4029
      %v4074 = vpop.f32.mrf.mxu0
      %v4075 = vadd.f32 0.0, %v4074
      %4076 = vmatmul.f32.gmra.mxu0 %v4030
      %v4077 = vpop.f32.mrf.mxu0
      %v4078 = vadd.f32 0.0, %v4077
      %4079 = vmatmul.f32.gmra.mxu0 %v4039
      %v4080 = vpop.f32.mrf.mxu0
      %v4081 = vadd.f32 0.0, %v4080
      %4082 = vmatmul.f32.gmra.mxu0 %v4040
      %v4083 = vpop.f32.mrf.mxu0
      %v4084 = vadd.f32 0.0, %v4083
      %4085 = vmatmul.f32.gmra.mxu0 %v4041
      %v4086 = vpop.f32.mrf.mxu0
      %v4087 = vadd.f32 0.0, %v4086
      %4088 = vmatmul.f32.gmra.mxu0 %v4042
      %v4089 = vpop.f32.mrf.mxu0
      %v4090 = vadd.f32 0.0, %v4089
      %4091 = vdwg.mxu0
      %v4092 = vadd.f32 %v3955, %v4069
      %v4093 = vadd.f32 %v3956, %v4072
      %v4094 = vadd.f32 %v3957, %v4075
      %v4095 = vadd.f32 %v3958, %v4078
      %v4096 = vadd.f32 %v3959, %v4081
      %v4097 = vadd.f32 %v3960, %v4084
      %v4098 = vadd.f32 %v3961, %v4087
      %v4099 = vadd.f32 %v3962, %v4090
      %s4100 = scalar_lea.vmem %s2, 2
      %v4101 = vld [vmem:[%s4100] sm:$0x1]
      %v4103 = vperm.slane %v4101, 0
      %v4105 = vmul.f32 %v4092, %v4103
      %v4106 = vmul.f32 %v4093, %v4103
      %v4107 = vmul.f32 %v4094, %v4103
      %v4108 = vmul.f32 %v4095, %v4103
      %v4109 = vmul.f32 %v4096, %v4103
      %v4110 = vmul.f32 %v4097, %v4103
      %v4111 = vmul.f32 %v4098, %v4103
      %v4112 = vmul.f32 %v4099, %v4103
      %s4113 = scalar_lea.vmem %s3, 2
      %v4114 = vld [vmem:[%s4113] sm:$0x1]
      %v4116 = vperm.slane %v4114, 0
      %v4118 = vadd.f32 %v4105, %v4116
      %v4119 = vadd.f32 %v4106, %v4116
      %v4120 = vadd.f32 %v4107, %v4116
      %v4121 = vadd.f32 %v4108, %v4116
      %v4122 = vadd.f32 %v4109, %v4116
      %v4123 = vadd.f32 %v4110, %v4116
      %v4124 = vadd.f32 %v4111, %v4116
      %v4125 = vadd.f32 %v4112, %v4116
      %v4126 = vadd.f32 %v4118, %v1523
      %v4127 = vadd.f32 %v4119, %v1524
      %v4128 = vadd.f32 %v4120, %v1525
      %v4129 = vadd.f32 %v4121, %v1526
      %v4130 = vadd.f32 %v4122, %v1527
      %v4131 = vadd.f32 %v4123, %v1528
      %v4132 = vadd.f32 %v4124, %v1529
      %v4133 = vadd.f32 %v4125, %v1530
      %v4142 = vrot.slane %v4126, 4
      %v4143 = vrot.slane %v4127, 4
      %v4144 = vrot.slane %v4128, 4
      %v4145 = vrot.slane %v4129, 4
      %v4146 = vrot.slane %v4130, 4
      %v4147 = vrot.slane %v4131, 4
      %v4148 = vrot.slane %v4132, 4
      %v4149 = vrot.slane %v4133, 4
      %4158 = vst [vmem:[%s655 + $0x1] sm:$0xf] %v4126
      %4159 = vst [vmem:[%s655 + $0x9] sm:$0xf] %v4142
      %4160 = vst [vmem:[%s655 + $0x11] sm:$0xf] %v4127
      %4161 = vst [vmem:[%s655 + $0x19] sm:$0xf] %v4143
      %4162 = vst [vmem:[%s655 + $0x21] sm:$0xf] %v4128
      %4163 = vst [vmem:[%s655 + $0x29] sm:$0xf] %v4144
      %4164 = vst [vmem:[%s655 + $0x31] sm:$0xf] %v4129
      %4165 = vst [vmem:[%s655 + $0x39] sm:$0xf] %v4145
      %4166 = vst [vmem:[%s655 + $0x41] sm:$0xf] %v4130
      %4167 = vst [vmem:[%s655 + $0x49] sm:$0xf] %v4146
      %4168 = vst [vmem:[%s655 + $0x51] sm:$0xf] %v4131
      %4169 = vst [vmem:[%s655 + $0x59] sm:$0xf] %v4147
      %4170 = vst [vmem:[%s655 + $0x61] sm:$0xf] %v4132
      %4171 = vst [vmem:[%s655 + $0x69] sm:$0xf] %v4148
      %4172 = vst [vmem:[%s655 + $0x71] sm:$0xf] %v4133
      %4173 = vst [vmem:[%s655 + $0x79] sm:$0xf] %v4149
      %v4174 = vld [vmem:[#allocation2] sm:$0xf]
      %v4175 = vld [vmem:[#allocation2 + $0x8] sm:$0xf]
      %v4176 = vld [vmem:[#allocation2 + $0x10] sm:$0xf]
      %v4177 = vld [vmem:[#allocation2 + $0x18] sm:$0xf]
      %v4178 = vld [vmem:[#allocation2 + $0x20] sm:$0xf]
      %v4179 = vld [vmem:[#allocation2 + $0x28] sm:$0xf]
      %v4180 = vld [vmem:[#allocation2 + $0x30] sm:$0xf]
      %v4181 = vld [vmem:[#allocation2 + $0x38] sm:$0xf]
      %v4182 = vld [vmem:[#allocation2 + $0x40] sm:$0xf]
      %v4183 = vld [vmem:[#allocation2 + $0x48] sm:$0xf]
      %v4184 = vld [vmem:[#allocation2 + $0x50] sm:$0xf]
      %v4185 = vld [vmem:[#allocation2 + $0x58] sm:$0xf]
      %v4186 = vld [vmem:[#allocation2 + $0x60] sm:$0xf]
      %v4187 = vld [vmem:[#allocation2 + $0x68] sm:$0xf]
      %v4188 = vld [vmem:[#allocation2 + $0x70] sm:$0xf]
      %v4189 = vld [vmem:[#allocation2 + $0x78] sm:$0xf]
      %s4190 = scalar_lea.vmem %s1, 3456
      %v4191 = vld [vmem:[%s4190] sm:$0xff]
      %v4192 = vld [vmem:[%s4190 + $0x8] sm:$0xff]
      %v4193 = vld [vmem:[%s4190 + $0x10] sm:$0xff]
      %v4194 = vld [vmem:[%s4190 + $0x18] sm:$0xff]
      %v4195 = vld [vmem:[%s4190 + $0x20] sm:$0xff]
      %v4196 = vld [vmem:[%s4190 + $0x28] sm:$0xff]
      %v4197 = vld [vmem:[%s4190 + $0x30] sm:$0xff]
      %v4198 = vld [vmem:[%s4190 + $0x38] sm:$0xff]
      %v4199 = vld [vmem:[%s4190 + $0x40] sm:$0xff]
      %v4200 = vld [vmem:[%s4190 + $0x48] sm:$0xff]
      %v4201 = vld [vmem:[%s4190 + $0x50] sm:$0xff]
      %v4202 = vld [vmem:[%s4190 + $0x58] sm:$0xff]
      %v4203 = vld [vmem:[%s4190 + $0x60] sm:$0xff]
      %v4204 = vld [vmem:[%s4190 + $0x68] sm:$0xff]
      %v4205 = vld [vmem:[%s4190 + $0x70] sm:$0xff]
      %v4206 = vld [vmem:[%s4190 + $0x78] sm:$0xff]
      %v4207 = vld [vmem:[#allocation2 + $0x1] sm:$0xf]
      %v4208 = vld [vmem:[#allocation2 + $0x9] sm:$0xf]
      %v4209 = vld [vmem:[#allocation2 + $0x11] sm:$0xf]
      %v4210 = vld [vmem:[#allocation2 + $0x19] sm:$0xf]
      %v4211 = vld [vmem:[#allocation2 + $0x21] sm:$0xf]
      %v4212 = vld [vmem:[#allocation2 + $0x29] sm:$0xf]
      %v4213 = vld [vmem:[#allocation2 + $0x31] sm:$0xf]
      %v4214 = vld [vmem:[#allocation2 + $0x39] sm:$0xf]
      %v4215 = vld [vmem:[#allocation2 + $0x41] sm:$0xf]
      %v4216 = vld [vmem:[#allocation2 + $0x49] sm:$0xf]
      %v4217 = vld [vmem:[#allocation2 + $0x51] sm:$0xf]
      %v4218 = vld [vmem:[#allocation2 + $0x59] sm:$0xf]
      %v4219 = vld [vmem:[#allocation2 + $0x61] sm:$0xf]
      %v4220 = vld [vmem:[#allocation2 + $0x69] sm:$0xf]
      %v4221 = vld [vmem:[#allocation2 + $0x71] sm:$0xf]
      %v4222 = vld [vmem:[#allocation2 + $0x79] sm:$0xf]
      %s4223 = scalar_lea.vmem %s1, 3584
      %v4224 = vld [vmem:[%s4223] sm:$0xff]
      %v4225 = vld [vmem:[%s4223 + $0x8] sm:$0xff]
      %v4226 = vld [vmem:[%s4223 + $0x10] sm:$0xff]
      %v4227 = vld [vmem:[%s4223 + $0x18] sm:$0xff]
      %v4228 = vld [vmem:[%s4223 + $0x20] sm:$0xff]
      %v4229 = vld [vmem:[%s4223 + $0x28] sm:$0xff]
      %v4230 = vld [vmem:[%s4223 + $0x30] sm:$0xff]
      %v4231 = vld [vmem:[%s4223 + $0x38] sm:$0xff]
      %v4232 = vld [vmem:[%s4223 + $0x40] sm:$0xff]
      %v4233 = vld [vmem:[%s4223 + $0x48] sm:$0xff]
      %v4234 = vld [vmem:[%s4223 + $0x50] sm:$0xff]
      %v4235 = vld [vmem:[%s4223 + $0x58] sm:$0xff]
      %v4236 = vld [vmem:[%s4223 + $0x60] sm:$0xff]
      %v4237 = vld [vmem:[%s4223 + $0x68] sm:$0xff]
      %v4238 = vld [vmem:[%s4223 + $0x70] sm:$0xff]
      %v4239 = vld [vmem:[%s4223 + $0x78] sm:$0xff]
      %4256 = vst [vmem:[#allocation1] ss:$2 sm:$0xff] %v4207
      %s4257 = scalar_lea.vmem [#allocation1], 1
      %4258 = vst [vmem:[%s4257] ss:$2 sm:$0xff] %v4208
      %s4259 = scalar_lea.vmem [#allocation1], 16
      %4260 = vst [vmem:[%s4259] ss:$2 sm:$0xff] %v4209
      %s4261 = scalar_lea.vmem [#allocation1], 17
      %4262 = vst [vmem:[%s4261] ss:$2 sm:$0xff] %v4210
      %s4263 = scalar_lea.vmem [#allocation1], 32
      %4264 = vst [vmem:[%s4263] ss:$2 sm:$0xff] %v4211
      %s4265 = scalar_lea.vmem [#allocation1], 33
      %4266 = vst [vmem:[%s4265] ss:$2 sm:$0xff] %v4212
      %s4267 = scalar_lea.vmem [#allocation1], 48
      %4268 = vst [vmem:[%s4267] ss:$2 sm:$0xff] %v4213
      %s4269 = scalar_lea.vmem [#allocation1], 49
      %4270 = vst [vmem:[%s4269] ss:$2 sm:$0xff] %v4214
      %v4271 = vld.sshfl [vmem:[#allocation1] sm:$0xff pattern:$0x75316420]
      %v4272 = vld.sshfl [vmem:[#allocation1 + $0x10] sm:$0xff pattern:$0x75316420]
      %v4273 = vld.sshfl [vmem:[#allocation1 + $0x20] sm:$0xff pattern:$0x75316420]
      %v4274 = vld.sshfl [vmem:[#allocation1 + $0x30] sm:$0xff pattern:$0x75316420]
      %4275 = vst [vmem:[#allocation1] ss:$2 sm:$0xff] %v4215
      %4276 = vst [vmem:[%s4257] ss:$2 sm:$0xff] %v4216
      %4277 = vst [vmem:[%s4259] ss:$2 sm:$0xff] %v4217
      %4278 = vst [vmem:[%s4261] ss:$2 sm:$0xff] %v4218
      %4279 = vst [vmem:[%s4263] ss:$2 sm:$0xff] %v4219
      %4280 = vst [vmem:[%s4265] ss:$2 sm:$0xff] %v4220
      %4281 = vst [vmem:[%s4267] ss:$2 sm:$0xff] %v4221
      %4282 = vst [vmem:[%s4269] ss:$2 sm:$0xff] %v4222
      %v4283 = vld.sshfl [vmem:[#allocation1] sm:$0xff pattern:$0x75316420]
      %v4284 = vld.sshfl [vmem:[#allocation1 + $0x10] sm:$0xff pattern:$0x75316420]
      %v4285 = vld.sshfl [vmem:[#allocation1 + $0x20] sm:$0xff pattern:$0x75316420]
      %v4286 = vld.sshfl [vmem:[#allocation1 + $0x30] sm:$0xff pattern:$0x75316420]
      %4295 = vmatpush.msra.mxu0 %v4239
      %4296 = vmatpush.msra.mxu0 %v4238
      %4297 = vmatpush.msra.mxu0 %v4237
      %4298 = vmatpush.msra.mxu0 %v4236
      %4299 = vmatpush.msra.mxu0 %v4235
      %4300 = vmatpush.msra.mxu0 %v4234
      %4301 = vmatpush.msra.mxu0 %v4233
      %4302 = vmatpush.msra.mxu0 %v4232
      %4303 = vmatpush.msra.mxu0 %v4231
      %4304 = vmatpush.msra.mxu0 %v4230
      %4305 = vmatpush.msra.mxu0 %v4229
      %4306 = vmatpush.msra.mxu0 %v4228
      %4307 = vmatpush.msra.mxu0 %v4227
      %4308 = vmatpush.msra.mxu0 %v4226
      %4309 = vmatpush.msra.mxu0 %v4225
      %4310 = vmatpush.msra.mxu0 %v4224
      %4311 = vmatmul.f32.gmra.mxu0 %v4271
      %v4312 = vpop.f32.mrf.mxu0
      %v4313 = vadd.f32 0.0, %v4312
      %4314 = vmatmul.f32.gmra.mxu0 %v4272
      %v4315 = vpop.f32.mrf.mxu0
      %v4316 = vadd.f32 0.0, %v4315
      %4317 = vmatmul.f32.gmra.mxu0 %v4273
      %v4318 = vpop.f32.mrf.mxu0
      %v4319 = vadd.f32 0.0, %v4318
      %4320 = vmatmul.f32.gmra.mxu0 %v4274
      %v4321 = vpop.f32.mrf.mxu0
      %v4322 = vadd.f32 0.0, %v4321
      %4323 = vmatmul.f32.gmra.mxu0 %v4283
      %v4324 = vpop.f32.mrf.mxu0
      %v4325 = vadd.f32 0.0, %v4324
      %4326 = vmatmul.f32.gmra.mxu0 %v4284
      %v4327 = vpop.f32.mrf.mxu0
      %v4328 = vadd.f32 0.0, %v4327
      %4329 = vmatmul.f32.gmra.mxu0 %v4285
      %v4330 = vpop.f32.mrf.mxu0
      %v4331 = vadd.f32 0.0, %v4330
      %4332 = vmatmul.f32.gmra.mxu0 %v4286
      %v4333 = vpop.f32.mrf.mxu0
      %v4334 = vadd.f32 0.0, %v4333
      %4335 = vdwg.mxu0
      %4352 = vst [vmem:[#allocation1] ss:$2 sm:$0xff] %v4174
      %s4353 = scalar_lea.vmem [#allocation1], 1
      %4354 = vst [vmem:[%s4353] ss:$2 sm:$0xff] %v4175
      %s4355 = scalar_lea.vmem [#allocation1], 16
      %4356 = vst [vmem:[%s4355] ss:$2 sm:$0xff] %v4176
      %s4357 = scalar_lea.vmem [#allocation1], 17
      %4358 = vst [vmem:[%s4357] ss:$2 sm:$0xff] %v4177
      %s4359 = scalar_lea.vmem [#allocation1], 32
      %4360 = vst [vmem:[%s4359] ss:$2 sm:$0xff] %v4178
      %s4361 = scalar_lea.vmem [#allocation1], 33
      %4362 = vst [vmem:[%s4361] ss:$2 sm:$0xff] %v4179
      %s4363 = scalar_lea.vmem [#allocation1], 48
      %4364 = vst [vmem:[%s4363] ss:$2 sm:$0xff] %v4180
      %s4365 = scalar_lea.vmem [#allocation1], 49
      %4366 = vst [vmem:[%s4365] ss:$2 sm:$0xff] %v4181
      %v4367 = vld.sshfl [vmem:[#allocation1] sm:$0xff pattern:$0x75316420]
      %v4368 = vld.sshfl [vmem:[#allocation1 + $0x10] sm:$0xff pattern:$0x75316420]
      %v4369 = vld.sshfl [vmem:[#allocation1 + $0x20] sm:$0xff pattern:$0x75316420]
      %v4370 = vld.sshfl [vmem:[#allocation1 + $0x30] sm:$0xff pattern:$0x75316420]
      %4371 = vst [vmem:[#allocation1] ss:$2 sm:$0xff] %v4182
      %4372 = vst [vmem:[%s4353] ss:$2 sm:$0xff] %v4183
      %4373 = vst [vmem:[%s4355] ss:$2 sm:$0xff] %v4184
      %4374 = vst [vmem:[%s4357] ss:$2 sm:$0xff] %v4185
      %4375 = vst [vmem:[%s4359] ss:$2 sm:$0xff] %v4186
      %4376 = vst [vmem:[%s4361] ss:$2 sm:$0xff] %v4187
      %4377 = vst [vmem:[%s4363] ss:$2 sm:$0xff] %v4188
      %4378 = vst [vmem:[%s4365] ss:$2 sm:$0xff] %v4189
      %v4379 = vld.sshfl [vmem:[#allocation1] sm:$0xff pattern:$0x75316420]
      %v4380 = vld.sshfl [vmem:[#allocation1 + $0x10] sm:$0xff pattern:$0x75316420]
      %v4381 = vld.sshfl [vmem:[#allocation1 + $0x20] sm:$0xff pattern:$0x75316420]
      %v4382 = vld.sshfl [vmem:[#allocation1 + $0x30] sm:$0xff pattern:$0x75316420]
      %4391 = vmatpush.msra.mxu0 %v4206
      %4392 = vmatpush.msra.mxu0 %v4205
      %4393 = vmatpush.msra.mxu0 %v4204
      %4394 = vmatpush.msra.mxu0 %v4203
      %4395 = vmatpush.msra.mxu0 %v4202
      %4396 = vmatpush.msra.mxu0 %v4201
      %4397 = vmatpush.msra.mxu0 %v4200
      %4398 = vmatpush.msra.mxu0 %v4199
      %4399 = vmatpush.msra.mxu0 %v4198
      %4400 = vmatpush.msra.mxu0 %v4197
      %4401 = vmatpush.msra.mxu0 %v4196
      %4402 = vmatpush.msra.mxu0 %v4195
      %4403 = vmatpush.msra.mxu0 %v4194
      %4404 = vmatpush.msra.mxu0 %v4193
      %4405 = vmatpush.msra.mxu0 %v4192
      %4406 = vmatpush.msra.mxu0 %v4191
      %4407 = vmatmul.f32.gmra.mxu0 %v4367
      %v4408 = vpop.f32.mrf.mxu0
      %v4409 = vadd.f32 %v4313, %v4408
      %4410 = vmatmul.f32.gmra.mxu0 %v4368
      %v4411 = vpop.f32.mrf.mxu0
      %v4412 = vadd.f32 %v4316, %v4411
      %4413 = vmatmul.f32.gmra.mxu0 %v4369
      %v4414 = vpop.f32.mrf.mxu0
      %v4415 = vadd.f32 %v4319, %v4414
      %4416 = vmatmul.f32.gmra.mxu0 %v4370
      %v4417 = vpop.f32.mrf.mxu0
      %v4418 = vadd.f32 %v4322, %v4417
      %4419 = vmatmul.f32.gmra.mxu0 %v4379
      %v4420 = vpop.f32.mrf.mxu0
      %v4421 = vadd.f32 %v4325, %v4420
      %4422 = vmatmul.f32.gmra.mxu0 %v4380
      %v4423 = vpop.f32.mrf.mxu0
      %v4424 = vadd.f32 %v4328, %v4423
      %4425 = vmatmul.f32.gmra.mxu0 %v4381
      %v4426 = vpop.f32.mrf.mxu0
      %v4427 = vadd.f32 %v4331, %v4426
      %4428 = vmatmul.f32.gmra.mxu0 %v4382
      %v4429 = vpop.f32.mrf.mxu0
      %v4430 = vadd.f32 %v4334, %v4429
      %4431 = vdwg.mxu0
      %v4432 = vld [vmem:[#allocation2 + $0x2] sm:$0xf]
      %v4433 = vld [vmem:[#allocation2 + $0xa] sm:$0xf]
      %v4434 = vld [vmem:[#allocation2 + $0x12] sm:$0xf]
      %v4435 = vld [vmem:[#allocation2 + $0x1a] sm:$0xf]
      %v4436 = vld [vmem:[#allocation2 + $0x22] sm:$0xf]
      %v4437 = vld [vmem:[#allocation2 + $0x2a] sm:$0xf]
      %v4438 = vld [vmem:[#allocation2 + $0x32] sm:$0xf]
      %v4439 = vld [vmem:[#allocation2 + $0x3a] sm:$0xf]
      %v4440 = vld [vmem:[#allocation2 + $0x42] sm:$0xf]
      %v4441 = vld [vmem:[#allocation2 + $0x4a] sm:$0xf]
      %v4442 = vld [vmem:[#allocation2 + $0x52] sm:$0xf]
      %v4443 = vld [vmem:[#allocation2 + $0x5a] sm:$0xf]
      %v4444 = vld [vmem:[#allocation2 + $0x62] sm:$0xf]
      %v4445 = vld [vmem:[#allocation2 + $0x6a] sm:$0xf]
      %v4446 = vld [vmem:[#allocation2 + $0x72] sm:$0xf]
      %v4447 = vld [vmem:[#allocation2 + $0x7a] sm:$0xf]
      %s4448 = scalar_lea.vmem %s1, 3712
      %v4449 = vld [vmem:[%s4448] sm:$0xff]
      %v4450 = vld [vmem:[%s4448 + $0x8] sm:$0xff]
      %v4451 = vld [vmem:[%s4448 + $0x10] sm:$0xff]
      %v4452 = vld [vmem:[%s4448 + $0x18] sm:$0xff]
      %v4453 = vld [vmem:[%s4448 + $0x20] sm:$0xff]
      %v4454 = vld [vmem:[%s4448 + $0x28] sm:$0xff]
      %v4455 = vld [vmem:[%s4448 + $0x30] sm:$0xff]
      %v4456 = vld [vmem:[%s4448 + $0x38] sm:$0xff]
      %v4457 = vld [vmem:[%s4448 + $0x40] sm:$0xff]
      %v4458 = vld [vmem:[%s4448 + $0x48] sm:$0xff]
      %v4459 = vld [vmem:[%s4448 + $0x50] sm:$0xff]
      %v4460 = vld [vmem:[%s4448 + $0x58] sm:$0xff]
      %v4461 = vld [vmem:[%s4448 + $0x60] sm:$0xff]
      %v4462 = vld [vmem:[%s4448 + $0x68] sm:$0xff]
      %v4463 = vld [vmem:[%s4448 + $0x70] sm:$0xff]
      %v4464 = vld [vmem:[%s4448 + $0x78] sm:$0xff]
      %4481 = vst [vmem:[#allocation1] ss:$2 sm:$0xff] %v4432
      %s4482 = scalar_lea.vmem [#allocation1], 1
      %4483 = vst [vmem:[%s4482] ss:$2 sm:$0xff] %v4433
      %s4484 = scalar_lea.vmem [#allocation1], 16
      %4485 = vst [vmem:[%s4484] ss:$2 sm:$0xff] %v4434
      %s4486 = scalar_lea.vmem [#allocation1], 17
      %4487 = vst [vmem:[%s4486] ss:$2 sm:$0xff] %v4435
      %s4488 = scalar_lea.vmem [#allocation1], 32
      %4489 = vst [vmem:[%s4488] ss:$2 sm:$0xff] %v4436
      %s4490 = scalar_lea.vmem [#allocation1], 33
      %4491 = vst [vmem:[%s4490] ss:$2 sm:$0xff] %v4437
      %s4492 = scalar_lea.vmem [#allocation1], 48
      %4493 = vst [vmem:[%s4492] ss:$2 sm:$0xff] %v4438
      %s4494 = scalar_lea.vmem [#allocation1], 49
      %4495 = vst [vmem:[%s4494] ss:$2 sm:$0xff] %v4439
      %v4496 = vld.sshfl [vmem:[#allocation1] sm:$0xff pattern:$0x75316420]
      %v4497 = vld.sshfl [vmem:[#allocation1 + $0x10] sm:$0xff pattern:$0x75316420]
      %v4498 = vld.sshfl [vmem:[#allocation1 + $0x20] sm:$0xff pattern:$0x75316420]
      %v4499 = vld.sshfl [vmem:[#allocation1 + $0x30] sm:$0xff pattern:$0x75316420]
      %4500 = vst [vmem:[#allocation1] ss:$2 sm:$0xff] %v4440
      %4501 = vst [vmem:[%s4482] ss:$2 sm:$0xff] %v4441
      %4502 = vst [vmem:[%s4484] ss:$2 sm:$0xff] %v4442
      %4503 = vst [vmem:[%s4486] ss:$2 sm:$0xff] %v4443
      %4504 = vst [vmem:[%s4488] ss:$2 sm:$0xff] %v4444
      %4505 = vst [vmem:[%s4490] ss:$2 sm:$0xff] %v4445
      %4506 = vst [vmem:[%s4492] ss:$2 sm:$0xff] %v4446
      %4507 = vst [vmem:[%s4494] ss:$2 sm:$0xff] %v4447
      %v4508 = vld.sshfl [vmem:[#allocation1] sm:$0xff pattern:$0x75316420]
      %v4509 = vld.sshfl [vmem:[#allocation1 + $0x10] sm:$0xff pattern:$0x75316420]
      %v4510 = vld.sshfl [vmem:[#allocation1 + $0x20] sm:$0xff pattern:$0x75316420]
      %v4511 = vld.sshfl [vmem:[#allocation1 + $0x30] sm:$0xff pattern:$0x75316420]
      %4520 = vmatpush.msra.mxu0 %v4464
      %4521 = vmatpush.msra.mxu0 %v4463
      %4522 = vmatpush.msra.mxu0 %v4462
      %4523 = vmatpush.msra.mxu0 %v4461
      %4524 = vmatpush.msra.mxu0 %v4460
      %4525 = vmatpush.msra.mxu0 %v4459
      %4526 = vmatpush.msra.mxu0 %v4458
      %4527 = vmatpush.msra.mxu0 %v4457
      %4528 = vmatpush.msra.mxu0 %v4456
      %4529 = vmatpush.msra.mxu0 %v4455
      %4530 = vmatpush.msra.mxu0 %v4454
      %4531 = vmatpush.msra.mxu0 %v4453
      %4532 = vmatpush.msra.mxu0 %v4452
      %4533 = vmatpush.msra.mxu0 %v4451
      %4534 = vmatpush.msra.mxu0 %v4450
      %4535 = vmatpush.msra.mxu0 %v4449
      %4536 = vmatmul.f32.gmra.mxu0 %v4496
      %v4537 = vpop.f32.mrf.mxu0
      %v4538 = vadd.f32 0.0, %v4537
      %4539 = vmatmul.f32.gmra.mxu0 %v4497
      %v4540 = vpop.f32.mrf.mxu0
      %v4541 = vadd.f32 0.0, %v4540
      %4542 = vmatmul.f32.gmra.mxu0 %v4498
      %v4543 = vpop.f32.mrf.mxu0
      %v4544 = vadd.f32 0.0, %v4543
      %4545 = vmatmul.f32.gmra.mxu0 %v4499
      %v4546 = vpop.f32.mrf.mxu0
      %v4547 = vadd.f32 0.0, %v4546
      %4548 = vmatmul.f32.gmra.mxu0 %v4508
      %v4549 = vpop.f32.mrf.mxu0
      %v4550 = vadd.f32 0.0, %v4549
      %4551 = vmatmul.f32.gmra.mxu0 %v4509
      %v4552 = vpop.f32.mrf.mxu0
      %v4553 = vadd.f32 0.0, %v4552
      %4554 = vmatmul.f32.gmra.mxu0 %v4510
      %v4555 = vpop.f32.mrf.mxu0
      %v4556 = vadd.f32 0.0, %v4555
      %4557 = vmatmul.f32.gmra.mxu0 %v4511
      %v4558 = vpop.f32.mrf.mxu0
      %v4559 = vadd.f32 0.0, %v4558
      %4560 = vdwg.mxu0
      %v4561 = vadd.f32 %v4409, %v4538
      %v4562 = vadd.f32 %v4412, %v4541
      %v4563 = vadd.f32 %v4415, %v4544
      %v4564 = vadd.f32 %v4418, %v4547
      %v4565 = vadd.f32 %v4421, %v4550
      %v4566 = vadd.f32 %v4424, %v4553
      %v4567 = vadd.f32 %v4427, %v4556
      %v4568 = vadd.f32 %v4430, %v4559
      %v4569 = vld [vmem:[%s655] sm:$0xf]
      %v4570 = vld [vmem:[%s655 + $0x8] sm:$0xf]
      %v4571 = vld [vmem:[%s655 + $0x10] sm:$0xf]
      %v4572 = vld [vmem:[%s655 + $0x18] sm:$0xf]
      %v4573 = vld [vmem:[%s655 + $0x20] sm:$0xf]
      %v4574 = vld [vmem:[%s655 + $0x28] sm:$0xf]
      %v4575 = vld [vmem:[%s655 + $0x30] sm:$0xf]
      %v4576 = vld [vmem:[%s655 + $0x38] sm:$0xf]
      %v4577 = vld [vmem:[%s655 + $0x40] sm:$0xf]
      %v4578 = vld [vmem:[%s655 + $0x48] sm:$0xf]
      %v4579 = vld [vmem:[%s655 + $0x50] sm:$0xf]
      %v4580 = vld [vmem:[%s655 + $0x58] sm:$0xf]
      %v4581 = vld [vmem:[%s655 + $0x60] sm:$0xf]
      %v4582 = vld [vmem:[%s655 + $0x68] sm:$0xf]
      %v4583 = vld [vmem:[%s655 + $0x70] sm:$0xf]
      %v4584 = vld [vmem:[%s655 + $0x78] sm:$0xf]
      %s4585 = scalar_lea.vmem %s1, 3840
      %v4586 = vld [vmem:[%s4585] sm:$0xff]
      %v4587 = vld [vmem:[%s4585 + $0x8] sm:$0xff]
      %v4588 = vld [vmem:[%s4585 + $0x10] sm:$0xff]
      %v4589 = vld [vmem:[%s4585 + $0x18] sm:$0xff]
      %v4590 = vld [vmem:[%s4585 + $0x20] sm:$0xff]
      %v4591 = vld [vmem:[%s4585 + $0x28] sm:$0xff]
      %v4592 = vld [vmem:[%s4585 + $0x30] sm:$0xff]
      %v4593 = vld [vmem:[%s4585 + $0x38] sm:$0xff]
      %v4594 = vld [vmem:[%s4585 + $0x40] sm:$0xff]
      %v4595 = vld [vmem:[%s4585 + $0x48] sm:$0xff]
      %v4596 = vld [vmem:[%s4585 + $0x50] sm:$0xff]
      %v4597 = vld [vmem:[%s4585 + $0x58] sm:$0xff]
      %v4598 = vld [vmem:[%s4585 + $0x60] sm:$0xff]
      %v4599 = vld [vmem:[%s4585 + $0x68] sm:$0xff]
      %v4600 = vld [vmem:[%s4585 + $0x70] sm:$0xff]
      %v4601 = vld [vmem:[%s4585 + $0x78] sm:$0xff]
      %4618 = vst [vmem:[#allocation1] ss:$2 sm:$0xff] %v4569
      %s4619 = scalar_lea.vmem [#allocation1], 1
      %4620 = vst [vmem:[%s4619] ss:$2 sm:$0xff] %v4570
      %s4621 = scalar_lea.vmem [#allocation1], 16
      %4622 = vst [vmem:[%s4621] ss:$2 sm:$0xff] %v4571
      %s4623 = scalar_lea.vmem [#allocation1], 17
      %4624 = vst [vmem:[%s4623] ss:$2 sm:$0xff] %v4572
      %s4625 = scalar_lea.vmem [#allocation1], 32
      %4626 = vst [vmem:[%s4625] ss:$2 sm:$0xff] %v4573
      %s4627 = scalar_lea.vmem [#allocation1], 33
      %4628 = vst [vmem:[%s4627] ss:$2 sm:$0xff] %v4574
      %s4629 = scalar_lea.vmem [#allocation1], 48
      %4630 = vst [vmem:[%s4629] ss:$2 sm:$0xff] %v4575
      %s4631 = scalar_lea.vmem [#allocation1], 49
      %4632 = vst [vmem:[%s4631] ss:$2 sm:$0xff] %v4576
      %v4633 = vld.sshfl [vmem:[#allocation1] sm:$0xff pattern:$0x75316420]
      %v4634 = vld.sshfl [vmem:[#allocation1 + $0x10] sm:$0xff pattern:$0x75316420]
      %v4635 = vld.sshfl [vmem:[#allocation1 + $0x20] sm:$0xff pattern:$0x75316420]
      %v4636 = vld.sshfl [vmem:[#allocation1 + $0x30] sm:$0xff pattern:$0x75316420]
      %4637 = vst [vmem:[#allocation1] ss:$2 sm:$0xff] %v4577
      %4638 = vst [vmem:[%s4619] ss:$2 sm:$0xff] %v4578
      %4639 = vst [vmem:[%s4621] ss:$2 sm:$0xff] %v4579
      %4640 = vst [vmem:[%s4623] ss:$2 sm:$0xff] %v4580
      %4641 = vst [vmem:[%s4625] ss:$2 sm:$0xff] %v4581
      %4642 = vst [vmem:[%s4627] ss:$2 sm:$0xff] %v4582
      %4643 = vst [vmem:[%s4629] ss:$2 sm:$0xff] %v4583
      %4644 = vst [vmem:[%s4631] ss:$2 sm:$0xff] %v4584
      %v4645 = vld.sshfl [vmem:[#allocation1] sm:$0xff pattern:$0x75316420]
      %v4646 = vld.sshfl [vmem:[#allocation1 + $0x10] sm:$0xff pattern:$0x75316420]
      %v4647 = vld.sshfl [vmem:[#allocation1 + $0x20] sm:$0xff pattern:$0x75316420]
      %v4648 = vld.sshfl [vmem:[#allocation1 + $0x30] sm:$0xff pattern:$0x75316420]
      %4657 = vmatpush.msra.mxu0 %v4601
      %4658 = vmatpush.msra.mxu0 %v4600
      %4659 = vmatpush.msra.mxu0 %v4599
      %4660 = vmatpush.msra.mxu0 %v4598
      %4661 = vmatpush.msra.mxu0 %v4597
      %4662 = vmatpush.msra.mxu0 %v4596
      %4663 = vmatpush.msra.mxu0 %v4595
      %4664 = vmatpush.msra.mxu0 %v4594
      %4665 = vmatpush.msra.mxu0 %v4593
      %4666 = vmatpush.msra.mxu0 %v4592
      %4667 = vmatpush.msra.mxu0 %v4591
      %4668 = vmatpush.msra.mxu0 %v4590
      %4669 = vmatpush.msra.mxu0 %v4589
      %4670 = vmatpush.msra.mxu0 %v4588
      %4671 = vmatpush.msra.mxu0 %v4587
      %4672 = vmatpush.msra.mxu0 %v4586
      %4673 = vmatmul.f32.gmra.mxu0 %v4633
      %v4674 = vpop.f32.mrf.mxu0
      %v4675 = vadd.f32 0.0, %v4674
      %4676 = vmatmul.f32.gmra.mxu0 %v4634
      %v4677 = vpop.f32.mrf.mxu0
      %v4678 = vadd.f32 0.0, %v4677
      %4679 = vmatmul.f32.gmra.mxu0 %v4635
      %v4680 = vpop.f32.mrf.mxu0
      %v4681 = vadd.f32 0.0, %v4680
      %4682 = vmatmul.f32.gmra.mxu0 %v4636
      %v4683 = vpop.f32.mrf.mxu0
      %v4684 = vadd.f32 0.0, %v4683
      %4685 = vmatmul.f32.gmra.mxu0 %v4645
      %v4686 = vpop.f32.mrf.mxu0
      %v4687 = vadd.f32 0.0, %v4686
      %4688 = vmatmul.f32.gmra.mxu0 %v4646
      %v4689 = vpop.f32.mrf.mxu0
      %v4690 = vadd.f32 0.0, %v4689
      %4691 = vmatmul.f32.gmra.mxu0 %v4647
      %v4692 = vpop.f32.mrf.mxu0
      %v4693 = vadd.f32 0.0, %v4692
      %4694 = vmatmul.f32.gmra.mxu0 %v4648
      %v4695 = vpop.f32.mrf.mxu0
      %v4696 = vadd.f32 0.0, %v4695
      %4697 = vdwg.mxu0
      %v4698 = vadd.f32 %v4561, %v4675
      %v4699 = vadd.f32 %v4562, %v4678
      %v4700 = vadd.f32 %v4563, %v4681
      %v4701 = vadd.f32 %v4564, %v4684
      %v4702 = vadd.f32 %v4565, %v4687
      %v4703 = vadd.f32 %v4566, %v4690
      %v4704 = vadd.f32 %v4567, %v4693
      %v4705 = vadd.f32 %v4568, %v4696
      %v4706 = vld [vmem:[%s655 + $0x1] sm:$0xf]
      %v4707 = vld [vmem:[%s655 + $0x9] sm:$0xf]
      %v4708 = vld [vmem:[%s655 + $0x11] sm:$0xf]
      %v4709 = vld [vmem:[%s655 + $0x19] sm:$0xf]
      %v4710 = vld [vmem:[%s655 + $0x21] sm:$0xf]
      %v4711 = vld [vmem:[%s655 + $0x29] sm:$0xf]
      %v4712 = vld [vmem:[%s655 + $0x31] sm:$0xf]
      %v4713 = vld [vmem:[%s655 + $0x39] sm:$0xf]
      %v4714 = vld [vmem:[%s655 + $0x41] sm:$0xf]
      %v4715 = vld [vmem:[%s655 + $0x49] sm:$0xf]
      %v4716 = vld [vmem:[%s655 + $0x51] sm:$0xf]
      %v4717 = vld [vmem:[%s655 + $0x59] sm:$0xf]
      %v4718 = vld [vmem:[%s655 + $0x61] sm:$0xf]
      %v4719 = vld [vmem:[%s655 + $0x69] sm:$0xf]
      %v4720 = vld [vmem:[%s655 + $0x71] sm:$0xf]
      %v4721 = vld [vmem:[%s655 + $0x79] sm:$0xf]
      %s4722 = scalar_lea.vmem %s1, 3968
      %v4723 = vld [vmem:[%s4722] sm:$0xff]
      %v4724 = vld [vmem:[%s4722 + $0x8] sm:$0xff]
      %v4725 = vld [vmem:[%s4722 + $0x10] sm:$0xff]
      %v4726 = vld [vmem:[%s4722 + $0x18] sm:$0xff]
      %v4727 = vld [vmem:[%s4722 + $0x20] sm:$0xff]
      %v4728 = vld [vmem:[%s4722 + $0x28] sm:$0xff]
      %v4729 = vld [vmem:[%s4722 + $0x30] sm:$0xff]
      %v4730 = vld [vmem:[%s4722 + $0x38] sm:$0xff]
      %v4731 = vld [vmem:[%s4722 + $0x40] sm:$0xff]
      %v4732 = vld [vmem:[%s4722 + $0x48] sm:$0xff]
      %v4733 = vld [vmem:[%s4722 + $0x50] sm:$0xff]
      %v4734 = vld [vmem:[%s4722 + $0x58] sm:$0xff]
      %v4735 = vld [vmem:[%s4722 + $0x60] sm:$0xff]
      %v4736 = vld [vmem:[%s4722 + $0x68] sm:$0xff]
      %v4737 = vld [vmem:[%s4722 + $0x70] sm:$0xff]
      %v4738 = vld [vmem:[%s4722 + $0x78] sm:$0xff]
      %4755 = vst [vmem:[#allocation1] ss:$2 sm:$0xff] %v4706
      %s4756 = scalar_lea.vmem [#allocation1], 1
      %4757 = vst [vmem:[%s4756] ss:$2 sm:$0xff] %v4707
      %s4758 = scalar_lea.vmem [#allocation1], 16
      %4759 = vst [vmem:[%s4758] ss:$2 sm:$0xff] %v4708
      %s4760 = scalar_lea.vmem [#allocation1], 17
      %4761 = vst [vmem:[%s4760] ss:$2 sm:$0xff] %v4709
      %s4762 = scalar_lea.vmem [#allocation1], 32
      %4763 = vst [vmem:[%s4762] ss:$2 sm:$0xff] %v4710
      %s4764 = scalar_lea.vmem [#allocation1], 33
      %4765 = vst [vmem:[%s4764] ss:$2 sm:$0xff] %v4711
      %s4766 = scalar_lea.vmem [#allocation1], 48
      %4767 = vst [vmem:[%s4766] ss:$2 sm:$0xff] %v4712
      %s4768 = scalar_lea.vmem [#allocation1], 49
      %4769 = vst [vmem:[%s4768] ss:$2 sm:$0xff] %v4713
      %v4770 = vld.sshfl [vmem:[#allocation1] sm:$0xff pattern:$0x75316420]
      %v4771 = vld.sshfl [vmem:[#allocation1 + $0x10] sm:$0xff pattern:$0x75316420]
      %v4772 = vld.sshfl [vmem:[#allocation1 + $0x20] sm:$0xff pattern:$0x75316420]
      %v4773 = vld.sshfl [vmem:[#allocation1 + $0x30] sm:$0xff pattern:$0x75316420]
      %4774 = vst [vmem:[#allocation1] ss:$2 sm:$0xff] %v4714
      %4775 = vst [vmem:[%s4756] ss:$2 sm:$0xff] %v4715
      %4776 = vst [vmem:[%s4758] ss:$2 sm:$0xff] %v4716
      %4777 = vst [vmem:[%s4760] ss:$2 sm:$0xff] %v4717
      %4778 = vst [vmem:[%s4762] ss:$2 sm:$0xff] %v4718
      %4779 = vst [vmem:[%s4764] ss:$2 sm:$0xff] %v4719
      %4780 = vst [vmem:[%s4766] ss:$2 sm:$0xff] %v4720
      %4781 = vst [vmem:[%s4768] ss:$2 sm:$0xff] %v4721
      %v4782 = vld.sshfl [vmem:[#allocation1] sm:$0xff pattern:$0x75316420]
      %v4783 = vld.sshfl [vmem:[#allocation1 + $0x10] sm:$0xff pattern:$0x75316420]
      %v4784 = vld.sshfl [vmem:[#allocation1 + $0x20] sm:$0xff pattern:$0x75316420]
      %v4785 = vld.sshfl [vmem:[#allocation1 + $0x30] sm:$0xff pattern:$0x75316420]
      %4794 = vmatpush.msra.mxu0 %v4738
      %4795 = vmatpush.msra.mxu0 %v4737
      %4796 = vmatpush.msra.mxu0 %v4736
      %4797 = vmatpush.msra.mxu0 %v4735
      %4798 = vmatpush.msra.mxu0 %v4734
      %4799 = vmatpush.msra.mxu0 %v4733
      %4800 = vmatpush.msra.mxu0 %v4732
      %4801 = vmatpush.msra.mxu0 %v4731
      %4802 = vmatpush.msra.mxu0 %v4730
      %4803 = vmatpush.msra.mxu0 %v4729
      %4804 = vmatpush.msra.mxu0 %v4728
      %4805 = vmatpush.msra.mxu0 %v4727
      %4806 = vmatpush.msra.mxu0 %v4726
      %4807 = vmatpush.msra.mxu0 %v4725
      %4808 = vmatpush.msra.mxu0 %v4724
      %4809 = vmatpush.msra.mxu0 %v4723
      %4810 = vmatmul.f32.gmra.mxu0 %v4770
      %v4811 = vpop.f32.mrf.mxu0
      %v4812 = vadd.f32 0.0, %v4811
      %4813 = vmatmul.f32.gmra.mxu0 %v4771
      %v4814 = vpop.f32.mrf.mxu0
      %v4815 = vadd.f32 0.0, %v4814
      %4816 = vmatmul.f32.gmra.mxu0 %v4772
      %v4817 = vpop.f32.mrf.mxu0
      %v4818 = vadd.f32 0.0, %v4817
      %4819 = vmatmul.f32.gmra.mxu0 %v4773
      %v4820 = vpop.f32.mrf.mxu0
      %v4821 = vadd.f32 0.0, %v4820
      %4822 = vmatmul.f32.gmra.mxu0 %v4782
      %v4823 = vpop.f32.mrf.mxu0
      %v4824 = vadd.f32 0.0, %v4823
      %4825 = vmatmul.f32.gmra.mxu0 %v4783
      %v4826 = vpop.f32.mrf.mxu0
      %v4827 = vadd.f32 0.0, %v4826
      %4828 = vmatmul.f32.gmra.mxu0 %v4784
      %v4829 = vpop.f32.mrf.mxu0
      %v4830 = vadd.f32 0.0, %v4829
      %4831 = vmatmul.f32.gmra.mxu0 %v4785
      %v4832 = vpop.f32.mrf.mxu0
      %v4833 = vadd.f32 0.0, %v4832
      %4834 = vdwg.mxu0
      %v4835 = vadd.f32 %v4698, %v4812
      %v4836 = vadd.f32 %v4699, %v4815
      %v4837 = vadd.f32 %v4700, %v4818
      %v4838 = vadd.f32 %v4701, %v4821
      %v4839 = vadd.f32 %v4702, %v4824
      %v4840 = vadd.f32 %v4703, %v4827
      %v4841 = vadd.f32 %v4704, %v4830
      %v4842 = vadd.f32 %v4705, %v4833
      %v4843 = vld [vmem:[%s655 + $0x2] sm:$0xf]
      %v4844 = vld [vmem:[%s655 + $0xa] sm:$0xf]
      %v4845 = vld [vmem:[%s655 + $0x12] sm:$0xf]
      %v4846 = vld [vmem:[%s655 + $0x1a] sm:$0xf]
      %v4847 = vld [vmem:[%s655 + $0x22] sm:$0xf]
      %v4848 = vld [vmem:[%s655 + $0x2a] sm:$0xf]
      %v4849 = vld [vmem:[%s655 + $0x32] sm:$0xf]
      %v4850 = vld [vmem:[%s655 + $0x3a] sm:$0xf]
      %v4851 = vld [vmem:[%s655 + $0x42] sm:$0xf]
      %v4852 = vld [vmem:[%s655 + $0x4a] sm:$0xf]
      %v4853 = vld [vmem:[%s655 + $0x52] sm:$0xf]
      %v4854 = vld [vmem:[%s655 + $0x5a] sm:$0xf]
      %v4855 = vld [vmem:[%s655 + $0x62] sm:$0xf]
      %v4856 = vld [vmem:[%s655 + $0x6a] sm:$0xf]
      %v4857 = vld [vmem:[%s655 + $0x72] sm:$0xf]
      %v4858 = vld [vmem:[%s655 + $0x7a] sm:$0xf]
      %s4859 = scalar_lea.vmem %s1, 4096
      %v4860 = vld [vmem:[%s4859] sm:$0xff]
      %v4861 = vld [vmem:[%s4859 + $0x8] sm:$0xff]
      %v4862 = vld [vmem:[%s4859 + $0x10] sm:$0xff]
      %v4863 = vld [vmem:[%s4859 + $0x18] sm:$0xff]
      %v4864 = vld [vmem:[%s4859 + $0x20] sm:$0xff]
      %v4865 = vld [vmem:[%s4859 + $0x28] sm:$0xff]
      %v4866 = vld [vmem:[%s4859 + $0x30] sm:$0xff]
      %v4867 = vld [vmem:[%s4859 + $0x38] sm:$0xff]
      %v4868 = vld [vmem:[%s4859 + $0x40] sm:$0xff]
      %v4869 = vld [vmem:[%s4859 + $0x48] sm:$0xff]
      %v4870 = vld [vmem:[%s4859 + $0x50] sm:$0xff]
      %v4871 = vld [vmem:[%s4859 + $0x58] sm:$0xff]
      %v4872 = vld [vmem:[%s4859 + $0x60] sm:$0xff]
      %v4873 = vld [vmem:[%s4859 + $0x68] sm:$0xff]
      %v4874 = vld [vmem:[%s4859 + $0x70] sm:$0xff]
      %v4875 = vld [vmem:[%s4859 + $0x78] sm:$0xff]
      %4892 = vst [vmem:[#allocation1] ss:$2 sm:$0xff] %v4843
      %s4893 = scalar_lea.vmem [#allocation1], 1
      %4894 = vst [vmem:[%s4893] ss:$2 sm:$0xff] %v4844
      %s4895 = scalar_lea.vmem [#allocation1], 16
      %4896 = vst [vmem:[%s4895] ss:$2 sm:$0xff] %v4845
      %s4897 = scalar_lea.vmem [#allocation1], 17
      %4898 = vst [vmem:[%s4897] ss:$2 sm:$0xff] %v4846
      %s4899 = scalar_lea.vmem [#allocation1], 32
      %4900 = vst [vmem:[%s4899] ss:$2 sm:$0xff] %v4847
      %s4901 = scalar_lea.vmem [#allocation1], 33
      %4902 = vst [vmem:[%s4901] ss:$2 sm:$0xff] %v4848
      %s4903 = scalar_lea.vmem [#allocation1], 48
      %4904 = vst [vmem:[%s4903] ss:$2 sm:$0xff] %v4849
      %s4905 = scalar_lea.vmem [#allocation1], 49
      %4906 = vst [vmem:[%s4905] ss:$2 sm:$0xff] %v4850
      %v4907 = vld.sshfl [vmem:[#allocation1] sm:$0xff pattern:$0x75316420]
      %v4908 = vld.sshfl [vmem:[#allocation1 + $0x10] sm:$0xff pattern:$0x75316420]
      %v4909 = vld.sshfl [vmem:[#allocation1 + $0x20] sm:$0xff pattern:$0x75316420]
      %v4910 = vld.sshfl [vmem:[#allocation1 + $0x30] sm:$0xff pattern:$0x75316420]
      %4911 = vst [vmem:[#allocation1] ss:$2 sm:$0xff] %v4851
      %4912 = vst [vmem:[%s4893] ss:$2 sm:$0xff] %v4852
      %4913 = vst [vmem:[%s4895] ss:$2 sm:$0xff] %v4853
      %4914 = vst [vmem:[%s4897] ss:$2 sm:$0xff] %v4854
      %4915 = vst [vmem:[%s4899] ss:$2 sm:$0xff] %v4855
      %4916 = vst [vmem:[%s4901] ss:$2 sm:$0xff] %v4856
      %4917 = vst [vmem:[%s4903] ss:$2 sm:$0xff] %v4857
      %4918 = vst [vmem:[%s4905] ss:$2 sm:$0xff] %v4858
      %v4919 = vld.sshfl [vmem:[#allocation1] sm:$0xff pattern:$0x75316420]
      %v4920 = vld.sshfl [vmem:[#allocation1 + $0x10] sm:$0xff pattern:$0x75316420]
      %v4921 = vld.sshfl [vmem:[#allocation1 + $0x20] sm:$0xff pattern:$0x75316420]
      %v4922 = vld.sshfl [vmem:[#allocation1 + $0x30] sm:$0xff pattern:$0x75316420]
      %4931 = vmatpush.msra.mxu0 %v4875
      %4932 = vmatpush.msra.mxu0 %v4874
      %4933 = vmatpush.msra.mxu0 %v4873
      %4934 = vmatpush.msra.mxu0 %v4872
      %4935 = vmatpush.msra.mxu0 %v4871
      %4936 = vmatpush.msra.mxu0 %v4870
      %4937 = vmatpush.msra.mxu0 %v4869
      %4938 = vmatpush.msra.mxu0 %v4868
      %4939 = vmatpush.msra.mxu0 %v4867
      %4940 = vmatpush.msra.mxu0 %v4866
      %4941 = vmatpush.msra.mxu0 %v4865
      %4942 = vmatpush.msra.mxu0 %v4864
      %4943 = vmatpush.msra.mxu0 %v4863
      %4944 = vmatpush.msra.mxu0 %v4862
      %4945 = vmatpush.msra.mxu0 %v4861
      %4946 = vmatpush.msra.mxu0 %v4860
      %4947 = vmatmul.f32.gmra.mxu0 %v4907
      %v4948 = vpop.f32.mrf.mxu0
      %v4949 = vadd.f32 0.0, %v4948
      %4950 = vmatmul.f32.gmra.mxu0 %v4908
      %v4951 = vpop.f32.mrf.mxu0
      %v4952 = vadd.f32 0.0, %v4951
      %4953 = vmatmul.f32.gmra.mxu0 %v4909
      %v4954 = vpop.f32.mrf.mxu0
      %v4955 = vadd.f32 0.0, %v4954
      %4956 = vmatmul.f32.gmra.mxu0 %v4910
      %v4957 = vpop.f32.mrf.mxu0
      %v4958 = vadd.f32 0.0, %v4957
      %4959 = vmatmul.f32.gmra.mxu0 %v4919
      %v4960 = vpop.f32.mrf.mxu0
      %v4961 = vadd.f32 0.0, %v4960
      %4962 = vmatmul.f32.gmra.mxu0 %v4920
      %v4963 = vpop.f32.mrf.mxu0
      %v4964 = vadd.f32 0.0, %v4963
      %4965 = vmatmul.f32.gmra.mxu0 %v4921
      %v4966 = vpop.f32.mrf.mxu0
      %v4967 = vadd.f32 0.0, %v4966
      %4968 = vmatmul.f32.gmra.mxu0 %v4922
      %v4969 = vpop.f32.mrf.mxu0
      %v4970 = vadd.f32 0.0, %v4969
      %4971 = vdwg.mxu0
      %v4972 = vadd.f32 %v4835, %v4949
      %v4973 = vadd.f32 %v4836, %v4952
      %v4974 = vadd.f32 %v4837, %v4955
      %v4975 = vadd.f32 %v4838, %v4958
      %v4976 = vadd.f32 %v4839, %v4961
      %v4977 = vadd.f32 %v4840, %v4964
      %v4978 = vadd.f32 %v4841, %v4967
      %v4979 = vadd.f32 %v4842, %v4970
      %v4980 = vld [vmem:[%s1067] sm:$0xf]
      %v4981 = vld [vmem:[%s1067 + $0x8] sm:$0xf]
      %v4982 = vld [vmem:[%s1067 + $0x10] sm:$0xf]
      %v4983 = vld [vmem:[%s1067 + $0x18] sm:$0xf]
      %v4984 = vld [vmem:[%s1067 + $0x20] sm:$0xf]
      %v4985 = vld [vmem:[%s1067 + $0x28] sm:$0xf]
      %v4986 = vld [vmem:[%s1067 + $0x30] sm:$0xf]
      %v4987 = vld [vmem:[%s1067 + $0x38] sm:$0xf]
      %v4988 = vld [vmem:[%s1067 + $0x40] sm:$0xf]
      %v4989 = vld [vmem:[%s1067 + $0x48] sm:$0xf]
      %v4990 = vld [vmem:[%s1067 + $0x50] sm:$0xf]
      %v4991 = vld [vmem:[%s1067 + $0x58] sm:$0xf]
      %v4992 = vld [vmem:[%s1067 + $0x60] sm:$0xf]
      %v4993 = vld [vmem:[%s1067 + $0x68] sm:$0xf]
      %v4994 = vld [vmem:[%s1067 + $0x70] sm:$0xf]
      %v4995 = vld [vmem:[%s1067 + $0x78] sm:$0xf]
      %s4996 = scalar_lea.vmem %s1, 4224
      %v4997 = vld [vmem:[%s4996] sm:$0xff]
      %v4998 = vld [vmem:[%s4996 + $0x8] sm:$0xff]
      %v4999 = vld [vmem:[%s4996 + $0x10] sm:$0xff]
      %v5000 = vld [vmem:[%s4996 + $0x18] sm:$0xff]
      %v5001 = vld [vmem:[%s4996 + $0x20] sm:$0xff]
      %v5002 = vld [vmem:[%s4996 + $0x28] sm:$0xff]
      %v5003 = vld [vmem:[%s4996 + $0x30] sm:$0xff]
      %v5004 = vld [vmem:[%s4996 + $0x38] sm:$0xff]
      %v5005 = vld [vmem:[%s4996 + $0x40] sm:$0xff]
      %v5006 = vld [vmem:[%s4996 + $0x48] sm:$0xff]
      %v5007 = vld [vmem:[%s4996 + $0x50] sm:$0xff]
      %v5008 = vld [vmem:[%s4996 + $0x58] sm:$0xff]
      %v5009 = vld [vmem:[%s4996 + $0x60] sm:$0xff]
      %v5010 = vld [vmem:[%s4996 + $0x68] sm:$0xff]
      %v5011 = vld [vmem:[%s4996 + $0x70] sm:$0xff]
      %v5012 = vld [vmem:[%s4996 + $0x78] sm:$0xff]
      %5029 = vst [vmem:[#allocation1] ss:$2 sm:$0xff] %v4980
      %s5030 = scalar_lea.vmem [#allocation1], 1
      %5031 = vst [vmem:[%s5030] ss:$2 sm:$0xff] %v4981
      %s5032 = scalar_lea.vmem [#allocation1], 16
      %5033 = vst [vmem:[%s5032] ss:$2 sm:$0xff] %v4982
      %s5034 = scalar_lea.vmem [#allocation1], 17
      %5035 = vst [vmem:[%s5034] ss:$2 sm:$0xff] %v4983
      %s5036 = scalar_lea.vmem [#allocation1], 32
      %5037 = vst [vmem:[%s5036] ss:$2 sm:$0xff] %v4984
      %s5038 = scalar_lea.vmem [#allocation1], 33
      %5039 = vst [vmem:[%s5038] ss:$2 sm:$0xff] %v4985
      %s5040 = scalar_lea.vmem [#allocation1], 48
      %5041 = vst [vmem:[%s5040] ss:$2 sm:$0xff] %v4986
      %s5042 = scalar_lea.vmem [#allocation1], 49
      %5043 = vst [vmem:[%s5042] ss:$2 sm:$0xff] %v4987
      %v5044 = vld.sshfl [vmem:[#allocation1] sm:$0xff pattern:$0x75316420]
      %v5045 = vld.sshfl [vmem:[#allocation1 + $0x10] sm:$0xff pattern:$0x75316420]
      %v5046 = vld.sshfl [vmem:[#allocation1 + $0x20] sm:$0xff pattern:$0x75316420]
      %v5047 = vld.sshfl [vmem:[#allocation1 + $0x30] sm:$0xff pattern:$0x75316420]
      %5048 = vst [vmem:[#allocation1] ss:$2 sm:$0xff] %v4988
      %5049 = vst [vmem:[%s5030] ss:$2 sm:$0xff] %v4989
      %5050 = vst [vmem:[%s5032] ss:$2 sm:$0xff] %v4990
      %5051 = vst [vmem:[%s5034] ss:$2 sm:$0xff] %v4991
      %5052 = vst [vmem:[%s5036] ss:$2 sm:$0xff] %v4992
      %5053 = vst [vmem:[%s5038] ss:$2 sm:$0xff] %v4993
      %5054 = vst [vmem:[%s5040] ss:$2 sm:$0xff] %v4994
      %5055 = vst [vmem:[%s5042] ss:$2 sm:$0xff] %v4995
      %v5056 = vld.sshfl [vmem:[#allocation1] sm:$0xff pattern:$0x75316420]
      %v5057 = vld.sshfl [vmem:[#allocation1 + $0x10] sm:$0xff pattern:$0x75316420]
      %v5058 = vld.sshfl [vmem:[#allocation1 + $0x20] sm:$0xff pattern:$0x75316420]
      %v5059 = vld.sshfl [vmem:[#allocation1 + $0x30] sm:$0xff pattern:$0x75316420]
      %5068 = vmatpush.msra.mxu0 %v5012
      %5069 = vmatpush.msra.mxu0 %v5011
      %5070 = vmatpush.msra.mxu0 %v5010
      %5071 = vmatpush.msra.mxu0 %v5009
      %5072 = vmatpush.msra.mxu0 %v5008
      %5073 = vmatpush.msra.mxu0 %v5007
      %5074 = vmatpush.msra.mxu0 %v5006
      %5075 = vmatpush.msra.mxu0 %v5005
      %5076 = vmatpush.msra.mxu0 %v5004
      %5077 = vmatpush.msra.mxu0 %v5003
      %5078 = vmatpush.msra.mxu0 %v5002
      %5079 = vmatpush.msra.mxu0 %v5001
      %5080 = vmatpush.msra.mxu0 %v5000
      %5081 = vmatpush.msra.mxu0 %v4999
      %5082 = vmatpush.msra.mxu0 %v4998
      %5083 = vmatpush.msra.mxu0 %v4997
      %5084 = vmatmul.f32.gmra.mxu0 %v5044
      %v5085 = vpop.f32.mrf.mxu0
      %v5086 = vadd.f32 0.0, %v5085
      %5087 = vmatmul.f32.gmra.mxu0 %v5045
      %v5088 = vpop.f32.mrf.mxu0
      %v5089 = vadd.f32 0.0, %v5088
      %5090 = vmatmul.f32.gmra.mxu0 %v5046
      %v5091 = vpop.f32.mrf.mxu0
      %v5092 = vadd.f32 0.0, %v5091
      %5093 = vmatmul.f32.gmra.mxu0 %v5047
      %v5094 = vpop.f32.mrf.mxu0
      %v5095 = vadd.f32 0.0, %v5094
      %5096 = vmatmul.f32.gmra.mxu0 %v5056
      %v5097 = vpop.f32.mrf.mxu0
      %v5098 = vadd.f32 0.0, %v5097
      %5099 = vmatmul.f32.gmra.mxu0 %v5057
      %v5100 = vpop.f32.mrf.mxu0
      %v5101 = vadd.f32 0.0, %v5100
      %5102 = vmatmul.f32.gmra.mxu0 %v5058
      %v5103 = vpop.f32.mrf.mxu0
      %v5104 = vadd.f32 0.0, %v5103
      %5105 = vmatmul.f32.gmra.mxu0 %v5059
      %v5106 = vpop.f32.mrf.mxu0
      %v5107 = vadd.f32 0.0, %v5106
      %5108 = vdwg.mxu0
      %v5109 = vadd.f32 %v4972, %v5086
      %v5110 = vadd.f32 %v4973, %v5089
      %v5111 = vadd.f32 %v4974, %v5092
      %v5112 = vadd.f32 %v4975, %v5095
      %v5113 = vadd.f32 %v4976, %v5098
      %v5114 = vadd.f32 %v4977, %v5101
      %v5115 = vadd.f32 %v4978, %v5104
      %v5116 = vadd.f32 %v4979, %v5107
      %v5117 = vld [vmem:[%s1067 + $0x1] sm:$0xf]
      %v5118 = vld [vmem:[%s1067 + $0x9] sm:$0xf]
      %v5119 = vld [vmem:[%s1067 + $0x11] sm:$0xf]
      %v5120 = vld [vmem:[%s1067 + $0x19] sm:$0xf]
      %v5121 = vld [vmem:[%s1067 + $0x21] sm:$0xf]
      %v5122 = vld [vmem:[%s1067 + $0x29] sm:$0xf]
      %v5123 = vld [vmem:[%s1067 + $0x31] sm:$0xf]
      %v5124 = vld [vmem:[%s1067 + $0x39] sm:$0xf]
      %v5125 = vld [vmem:[%s1067 + $0x41] sm:$0xf]
      %v5126 = vld [vmem:[%s1067 + $0x49] sm:$0xf]
      %v5127 = vld [vmem:[%s1067 + $0x51] sm:$0xf]
      %v5128 = vld [vmem:[%s1067 + $0x59] sm:$0xf]
      %v5129 = vld [vmem:[%s1067 + $0x61] sm:$0xf]
      %v5130 = vld [vmem:[%s1067 + $0x69] sm:$0xf]
      %v5131 = vld [vmem:[%s1067 + $0x71] sm:$0xf]
      %v5132 = vld [vmem:[%s1067 + $0x79] sm:$0xf]
      %s5133 = scalar_lea.vmem %s1, 4352
      %v5134 = vld [vmem:[%s5133] sm:$0xff]
      %v5135 = vld [vmem:[%s5133 + $0x8] sm:$0xff]
      %v5136 = vld [vmem:[%s5133 + $0x10] sm:$0xff]
      %v5137 = vld [vmem:[%s5133 + $0x18] sm:$0xff]
      %v5138 = vld [vmem:[%s5133 + $0x20] sm:$0xff]
      %v5139 = vld [vmem:[%s5133 + $0x28] sm:$0xff]
      %v5140 = vld [vmem:[%s5133 + $0x30] sm:$0xff]
      %v5141 = vld [vmem:[%s5133 + $0x38] sm:$0xff]
      %v5142 = vld [vmem:[%s5133 + $0x40] sm:$0xff]
      %v5143 = vld [vmem:[%s5133 + $0x48] sm:$0xff]
      %v5144 = vld [vmem:[%s5133 + $0x50] sm:$0xff]
      %v5145 = vld [vmem:[%s5133 + $0x58] sm:$0xff]
      %v5146 = vld [vmem:[%s5133 + $0x60] sm:$0xff]
      %v5147 = vld [vmem:[%s5133 + $0x68] sm:$0xff]
      %v5148 = vld [vmem:[%s5133 + $0x70] sm:$0xff]
      %v5149 = vld [vmem:[%s5133 + $0x78] sm:$0xff]
      %5166 = vst [vmem:[#allocation1] ss:$2 sm:$0xff] %v5117
      %s5167 = scalar_lea.vmem [#allocation1], 1
      %5168 = vst [vmem:[%s5167] ss:$2 sm:$0xff] %v5118
      %s5169 = scalar_lea.vmem [#allocation1], 16
      %5170 = vst [vmem:[%s5169] ss:$2 sm:$0xff] %v5119
      %s5171 = scalar_lea.vmem [#allocation1], 17
      %5172 = vst [vmem:[%s5171] ss:$2 sm:$0xff] %v5120
      %s5173 = scalar_lea.vmem [#allocation1], 32
      %5174 = vst [vmem:[%s5173] ss:$2 sm:$0xff] %v5121
      %s5175 = scalar_lea.vmem [#allocation1], 33
      %5176 = vst [vmem:[%s5175] ss:$2 sm:$0xff] %v5122
      %s5177 = scalar_lea.vmem [#allocation1], 48
      %5178 = vst [vmem:[%s5177] ss:$2 sm:$0xff] %v5123
      %s5179 = scalar_lea.vmem [#allocation1], 49
      %5180 = vst [vmem:[%s5179] ss:$2 sm:$0xff] %v5124
      %v5181 = vld.sshfl [vmem:[#allocation1] sm:$0xff pattern:$0x75316420]
      %v5182 = vld.sshfl [vmem:[#allocation1 + $0x10] sm:$0xff pattern:$0x75316420]
      %v5183 = vld.sshfl [vmem:[#allocation1 + $0x20] sm:$0xff pattern:$0x75316420]
      %v5184 = vld.sshfl [vmem:[#allocation1 + $0x30] sm:$0xff pattern:$0x75316420]
      %5185 = vst [vmem:[#allocation1] ss:$2 sm:$0xff] %v5125
      %5186 = vst [vmem:[%s5167] ss:$2 sm:$0xff] %v5126
      %5187 = vst [vmem:[%s5169] ss:$2 sm:$0xff] %v5127
      %5188 = vst [vmem:[%s5171] ss:$2 sm:$0xff] %v5128
      %5189 = vst [vmem:[%s5173] ss:$2 sm:$0xff] %v5129
      %5190 = vst [vmem:[%s5175] ss:$2 sm:$0xff] %v5130
      %5191 = vst [vmem:[%s5177] ss:$2 sm:$0xff] %v5131
      %5192 = vst [vmem:[%s5179] ss:$2 sm:$0xff] %v5132
      %v5193 = vld.sshfl [vmem:[#allocation1] sm:$0xff pattern:$0x75316420]
      %v5194 = vld.sshfl [vmem:[#allocation1 + $0x10] sm:$0xff pattern:$0x75316420]
      %v5195 = vld.sshfl [vmem:[#allocation1 + $0x20] sm:$0xff pattern:$0x75316420]
      %v5196 = vld.sshfl [vmem:[#allocation1 + $0x30] sm:$0xff pattern:$0x75316420]
      %5205 = vmatpush.msra.mxu0 %v5149
      %5206 = vmatpush.msra.mxu0 %v5148
      %5207 = vmatpush.msra.mxu0 %v5147
      %5208 = vmatpush.msra.mxu0 %v5146
      %5209 = vmatpush.msra.mxu0 %v5145
      %5210 = vmatpush.msra.mxu0 %v5144
      %5211 = vmatpush.msra.mxu0 %v5143
      %5212 = vmatpush.msra.mxu0 %v5142
      %5213 = vmatpush.msra.mxu0 %v5141
      %5214 = vmatpush.msra.mxu0 %v5140
      %5215 = vmatpush.msra.mxu0 %v5139
      %5216 = vmatpush.msra.mxu0 %v5138
      %5217 = vmatpush.msra.mxu0 %v5137
      %5218 = vmatpush.msra.mxu0 %v5136
      %5219 = vmatpush.msra.mxu0 %v5135
      %5220 = vmatpush.msra.mxu0 %v5134
      %5221 = vmatmul.f32.gmra.mxu0 %v5181
      %v5222 = vpop.f32.mrf.mxu0
      %v5223 = vadd.f32 0.0, %v5222
      %5224 = vmatmul.f32.gmra.mxu0 %v5182
      %v5225 = vpop.f32.mrf.mxu0
      %v5226 = vadd.f32 0.0, %v5225
      %5227 = vmatmul.f32.gmra.mxu0 %v5183
      %v5228 = vpop.f32.mrf.mxu0
      %v5229 = vadd.f32 0.0, %v5228
      %5230 = vmatmul.f32.gmra.mxu0 %v5184
      %v5231 = vpop.f32.mrf.mxu0
      %v5232 = vadd.f32 0.0, %v5231
      %5233 = vmatmul.f32.gmra.mxu0 %v5193
      %v5234 = vpop.f32.mrf.mxu0
      %v5235 = vadd.f32 0.0, %v5234
      %5236 = vmatmul.f32.gmra.mxu0 %v5194
      %v5237 = vpop.f32.mrf.mxu0
      %v5238 = vadd.f32 0.0, %v5237
      %5239 = vmatmul.f32.gmra.mxu0 %v5195
      %v5240 = vpop.f32.mrf.mxu0
      %v5241 = vadd.f32 0.0, %v5240
      %5242 = vmatmul.f32.gmra.mxu0 %v5196
      %v5243 = vpop.f32.mrf.mxu0
      %v5244 = vadd.f32 0.0, %v5243
      %5245 = vdwg.mxu0
      %v5246 = vadd.f32 %v5109, %v5223
      %v5247 = vadd.f32 %v5110, %v5226
      %v5248 = vadd.f32 %v5111, %v5229
      %v5249 = vadd.f32 %v5112, %v5232
      %v5250 = vadd.f32 %v5113, %v5235
      %v5251 = vadd.f32 %v5114, %v5238
      %v5252 = vadd.f32 %v5115, %v5241
      %v5253 = vadd.f32 %v5116, %v5244
      %v5254 = vld [vmem:[%s1067 + $0x2] sm:$0xf]
      %v5255 = vld [vmem:[%s1067 + $0xa] sm:$0xf]
      %v5256 = vld [vmem:[%s1067 + $0x12] sm:$0xf]
      %v5257 = vld [vmem:[%s1067 + $0x1a] sm:$0xf]
      %v5258 = vld [vmem:[%s1067 + $0x22] sm:$0xf]
      %v5259 = vld [vmem:[%s1067 + $0x2a] sm:$0xf]
      %v5260 = vld [vmem:[%s1067 + $0x32] sm:$0xf]
      %v5261 = vld [vmem:[%s1067 + $0x3a] sm:$0xf]
      %v5262 = vld [vmem:[%s1067 + $0x42] sm:$0xf]
      %v5263 = vld [vmem:[%s1067 + $0x4a] sm:$0xf]
      %v5264 = vld [vmem:[%s1067 + $0x52] sm:$0xf]
      %v5265 = vld [vmem:[%s1067 + $0x5a] sm:$0xf]
      %v5266 = vld [vmem:[%s1067 + $0x62] sm:$0xf]
      %v5267 = vld [vmem:[%s1067 + $0x6a] sm:$0xf]
      %v5268 = vld [vmem:[%s1067 + $0x72] sm:$0xf]
      %v5269 = vld [vmem:[%s1067 + $0x7a] sm:$0xf]
      %s5270 = scalar_lea.vmem %s1, 4480
      %v5271 = vld [vmem:[%s5270] sm:$0xff]
      %v5272 = vld [vmem:[%s5270 + $0x8] sm:$0xff]
      %v5273 = vld [vmem:[%s5270 + $0x10] sm:$0xff]
      %v5274 = vld [vmem:[%s5270 + $0x18] sm:$0xff]
      %v5275 = vld [vmem:[%s5270 + $0x20] sm:$0xff]
      %v5276 = vld [vmem:[%s5270 + $0x28] sm:$0xff]
      %v5277 = vld [vmem:[%s5270 + $0x30] sm:$0xff]
      %v5278 = vld [vmem:[%s5270 + $0x38] sm:$0xff]
      %v5279 = vld [vmem:[%s5270 + $0x40] sm:$0xff]
      %v5280 = vld [vmem:[%s5270 + $0x48] sm:$0xff]
      %v5281 = vld [vmem:[%s5270 + $0x50] sm:$0xff]
      %v5282 = vld [vmem:[%s5270 + $0x58] sm:$0xff]
      %v5283 = vld [vmem:[%s5270 + $0x60] sm:$0xff]
      %v5284 = vld [vmem:[%s5270 + $0x68] sm:$0xff]
      %v5285 = vld [vmem:[%s5270 + $0x70] sm:$0xff]
      %v5286 = vld [vmem:[%s5270 + $0x78] sm:$0xff]
      %5303 = vst [vmem:[#allocation1] ss:$2 sm:$0xff] %v5254
      %s5304 = scalar_lea.vmem [#allocation1], 1
      %5305 = vst [vmem:[%s5304] ss:$2 sm:$0xff] %v5255
      %s5306 = scalar_lea.vmem [#allocation1], 16
      %5307 = vst [vmem:[%s5306] ss:$2 sm:$0xff] %v5256
      %s5308 = scalar_lea.vmem [#allocation1], 17
      %5309 = vst [vmem:[%s5308] ss:$2 sm:$0xff] %v5257
      %s5310 = scalar_lea.vmem [#allocation1], 32
      %5311 = vst [vmem:[%s5310] ss:$2 sm:$0xff] %v5258
      %s5312 = scalar_lea.vmem [#allocation1], 33
      %5313 = vst [vmem:[%s5312] ss:$2 sm:$0xff] %v5259
      %s5314 = scalar_lea.vmem [#allocation1], 48
      %5315 = vst [vmem:[%s5314] ss:$2 sm:$0xff] %v5260
      %s5316 = scalar_lea.vmem [#allocation1], 49
      %5317 = vst [vmem:[%s5316] ss:$2 sm:$0xff] %v5261
      %v5318 = vld.sshfl [vmem:[#allocation1] sm:$0xff pattern:$0x75316420]
      %v5319 = vld.sshfl [vmem:[#allocation1 + $0x10] sm:$0xff pattern:$0x75316420]
      %v5320 = vld.sshfl [vmem:[#allocation1 + $0x20] sm:$0xff pattern:$0x75316420]
      %v5321 = vld.sshfl [vmem:[#allocation1 + $0x30] sm:$0xff pattern:$0x75316420]
      %5322 = vst [vmem:[#allocation1] ss:$2 sm:$0xff] %v5262
      %5323 = vst [vmem:[%s5304] ss:$2 sm:$0xff] %v5263
      %5324 = vst [vmem:[%s5306] ss:$2 sm:$0xff] %v5264
      %5325 = vst [vmem:[%s5308] ss:$2 sm:$0xff] %v5265
      %5326 = vst [vmem:[%s5310] ss:$2 sm:$0xff] %v5266
      %5327 = vst [vmem:[%s5312] ss:$2 sm:$0xff] %v5267
      %5328 = vst [vmem:[%s5314] ss:$2 sm:$0xff] %v5268
      %5329 = vst [vmem:[%s5316] ss:$2 sm:$0xff] %v5269
      %v5330 = vld.sshfl [vmem:[#allocation1] sm:$0xff pattern:$0x75316420]
      %v5331 = vld.sshfl [vmem:[#allocation1 + $0x10] sm:$0xff pattern:$0x75316420]
      %v5332 = vld.sshfl [vmem:[#allocation1 + $0x20] sm:$0xff pattern:$0x75316420]
      %v5333 = vld.sshfl [vmem:[#allocation1 + $0x30] sm:$0xff pattern:$0x75316420]
      %5342 = vmatpush.msra.mxu0 %v5286
      %5343 = vmatpush.msra.mxu0 %v5285
      %5344 = vmatpush.msra.mxu0 %v5284
      %5345 = vmatpush.msra.mxu0 %v5283
      %5346 = vmatpush.msra.mxu0 %v5282
      %5347 = vmatpush.msra.mxu0 %v5281
      %5348 = vmatpush.msra.mxu0 %v5280
      %5349 = vmatpush.msra.mxu0 %v5279
      %5350 = vmatpush.msra.mxu0 %v5278
      %5351 = vmatpush.msra.mxu0 %v5277
      %5352 = vmatpush.msra.mxu0 %v5276
      %5353 = vmatpush.msra.mxu0 %v5275
      %5354 = vmatpush.msra.mxu0 %v5274
      %5355 = vmatpush.msra.mxu0 %v5273
      %5356 = vmatpush.msra.mxu0 %v5272
      %5357 = vmatpush.msra.mxu0 %v5271
      %5358 = vmatmul.f32.gmra.mxu0 %v5318
      %v5359 = vpop.f32.mrf.mxu0
      %v5360 = vadd.f32 0.0, %v5359
      %5361 = vmatmul.f32.gmra.mxu0 %v5319
      %v5362 = vpop.f32.mrf.mxu0
      %v5363 = vadd.f32 0.0, %v5362
      %5364 = vmatmul.f32.gmra.mxu0 %v5320
      %v5365 = vpop.f32.mrf.mxu0
      %v5366 = vadd.f32 0.0, %v5365
      %5367 = vmatmul.f32.gmra.mxu0 %v5321
      %v5368 = vpop.f32.mrf.mxu0
      %v5369 = vadd.f32 0.0, %v5368
      %5370 = vmatmul.f32.gmra.mxu0 %v5330
      %v5371 = vpop.f32.mrf.mxu0
      %v5372 = vadd.f32 0.0, %v5371
      %5373 = vmatmul.f32.gmra.mxu0 %v5331
      %v5374 = vpop.f32.mrf.mxu0
      %v5375 = vadd.f32 0.0, %v5374
      %5376 = vmatmul.f32.gmra.mxu0 %v5332
      %v5377 = vpop.f32.mrf.mxu0
      %v5378 = vadd.f32 0.0, %v5377
      %5379 = vmatmul.f32.gmra.mxu0 %v5333
      %v5380 = vpop.f32.mrf.mxu0
      %v5381 = vadd.f32 0.0, %v5380
      %5382 = vdwg.mxu0
      %v5383 = vadd.f32 %v5246, %v5360
      %v5384 = vadd.f32 %v5247, %v5363
      %v5385 = vadd.f32 %v5248, %v5366
      %v5386 = vadd.f32 %v5249, %v5369
      %v5387 = vadd.f32 %v5250, %v5372
      %v5388 = vadd.f32 %v5251, %v5375
      %v5389 = vadd.f32 %v5252, %v5378
      %v5390 = vadd.f32 %v5253, %v5381
      %s5391 = scalar_lea.vmem %s2, 3
      %v5392 = vld [vmem:[%s5391] sm:$0x1]
      %v5394 = vperm.slane %v5392, 0
      %v5396 = vmul.f32 %v5383, %v5394
      %v5397 = vmul.f32 %v5384, %v5394
      %v5398 = vmul.f32 %v5385, %v5394
      %v5399 = vmul.f32 %v5386, %v5394
      %v5400 = vmul.f32 %v5387, %v5394
      %v5401 = vmul.f32 %v5388, %v5394
      %v5402 = vmul.f32 %v5389, %v5394
      %v5403 = vmul.f32 %v5390, %v5394
      %s5404 = scalar_lea.vmem %s3, 3
      %v5405 = vld [vmem:[%s5404] sm:$0x1]
      %v5407 = vperm.slane %v5405, 0
      %v5409 = vadd.f32 %v5396, %v5407
      %v5410 = vadd.f32 %v5397, %v5407
      %v5411 = vadd.f32 %v5398, %v5407
      %v5412 = vadd.f32 %v5399, %v5407
      %v5413 = vadd.f32 %v5400, %v5407
      %v5414 = vadd.f32 %v5401, %v5407
      %v5415 = vadd.f32 %v5402, %v5407
      %v5416 = vadd.f32 %v5403, %v5407
      %vm5417 = vcmp.ge.f32.partialorder %v5409, 0.0
      %vm5418 = vcmp.ge.f32.partialorder %v5410, 0.0
      %vm5419 = vcmp.ge.f32.partialorder %v5411, 0.0
      %vm5420 = vcmp.ge.f32.partialorder %v5412, 0.0
      %vm5421 = vcmp.ge.f32.partialorder %v5413, 0.0
      %vm5422 = vcmp.ge.f32.partialorder %v5414, 0.0
      %vm5423 = vcmp.ge.f32.partialorder %v5415, 0.0
      %vm5424 = vcmp.ge.f32.partialorder %v5416, 0.0
      %s5425 = scalar_lea.vmem %s4, 3
      %v5426 = vld [vmem:[%s5425] sm:$0x1]
      %v5428 = vperm.slane %v5426, 0
      %v5430 = vmul.f32 %v5409, %v5428
      %v5431 = vmul.f32 %v5410, %v5428
      %v5432 = vmul.f32 %v5411, %v5428
      %v5433 = vmul.f32 %v5412, %v5428
      %v5434 = vmul.f32 %v5413, %v5428
      %v5435 = vmul.f32 %v5414, %v5428
      %v5436 = vmul.f32 %v5415, %v5428
      %v5437 = vmul.f32 %v5416, %v5428
      %v5438 = vsel %vm5417, %v5409, %v5430
      %v5439 = vsel %vm5418, %v5410, %v5431
      %v5440 = vsel %vm5419, %v5411, %v5432
      %v5441 = vsel %vm5420, %v5412, %v5433
      %v5442 = vsel %vm5421, %v5413, %v5434
      %v5443 = vsel %vm5422, %v5414, %v5435
      %v5444 = vsel %vm5423, %v5415, %v5436
      %v5445 = vsel %vm5424, %v5416, %v5437
      %v5454 = vrot.slane %v5438, 4
      %v5455 = vrot.slane %v5439, 4
      %v5456 = vrot.slane %v5440, 4
      %v5457 = vrot.slane %v5441, 4
      %v5458 = vrot.slane %v5442, 4
      %v5459 = vrot.slane %v5443, 4
      %v5460 = vrot.slane %v5444, 4
      %v5461 = vrot.slane %v5445, 4
      %5470 = vst [vmem:[%s655 + $0x1] sm:$0xf] %v5438
      %5471 = vst [vmem:[%s655 + $0x9] sm:$0xf] %v5454
      %5472 = vst [vmem:[%s655 + $0x11] sm:$0xf] %v5439
      %5473 = vst [vmem:[%s655 + $0x19] sm:$0xf] %v5455
      %5474 = vst [vmem:[%s655 + $0x21] sm:$0xf] %v5440
      %5475 = vst [vmem:[%s655 + $0x29] sm:$0xf] %v5456
      %5476 = vst [vmem:[%s655 + $0x31] sm:$0xf] %v5441
      %5477 = vst [vmem:[%s655 + $0x39] sm:$0xf] %v5457
      %5478 = vst [vmem:[%s655 + $0x41] sm:$0xf] %v5442
      %5479 = vst [vmem:[%s655 + $0x49] sm:$0xf] %v5458
      %5480 = vst [vmem:[%s655 + $0x51] sm:$0xf] %v5443
      %5481 = vst [vmem:[%s655 + $0x59] sm:$0xf] %v5459
      %5482 = vst [vmem:[%s655 + $0x61] sm:$0xf] %v5444
      %5483 = vst [vmem:[%s655 + $0x69] sm:$0xf] %v5460
      %5484 = vst [vmem:[%s655 + $0x71] sm:$0xf] %v5445
      %5485 = vst [vmem:[%s655 + $0x79] sm:$0xf] %v5461
      %v5486 = vld [vmem:[#allocation2] sm:$0xf]
      %v5487 = vld [vmem:[#allocation2 + $0x8] sm:$0xf]
      %v5488 = vld [vmem:[#allocation2 + $0x10] sm:$0xf]
      %v5489 = vld [vmem:[#allocation2 + $0x18] sm:$0xf]
      %v5490 = vld [vmem:[#allocation2 + $0x20] sm:$0xf]
      %v5491 = vld [vmem:[#allocation2 + $0x28] sm:$0xf]
      %v5492 = vld [vmem:[#allocation2 + $0x30] sm:$0xf]
      %v5493 = vld [vmem:[#allocation2 + $0x38] sm:$0xf]
      %v5494 = vld [vmem:[#allocation2 + $0x40] sm:$0xf]
      %v5495 = vld [vmem:[#allocation2 + $0x48] sm:$0xf]
      %v5496 = vld [vmem:[#allocation2 + $0x50] sm:$0xf]
      %v5497 = vld [vmem:[#allocation2 + $0x58] sm:$0xf]
      %v5498 = vld [vmem:[#allocation2 + $0x60] sm:$0xf]
      %v5499 = vld [vmem:[#allocation2 + $0x68] sm:$0xf]
      %v5500 = vld [vmem:[#allocation2 + $0x70] sm:$0xf]
      %v5501 = vld [vmem:[#allocation2 + $0x78] sm:$0xf]
      %s5502 = scalar_lea.vmem %s1, 4608
      %v5503 = vld [vmem:[%s5502] sm:$0xff]
      %v5504 = vld [vmem:[%s5502 + $0x8] sm:$0xff]
      %v5505 = vld [vmem:[%s5502 + $0x10] sm:$0xff]
      %v5506 = vld [vmem:[%s5502 + $0x18] sm:$0xff]
      %v5507 = vld [vmem:[%s5502 + $0x20] sm:$0xff]
      %v5508 = vld [vmem:[%s5502 + $0x28] sm:$0xff]
      %v5509 = vld [vmem:[%s5502 + $0x30] sm:$0xff]
      %v5510 = vld [vmem:[%s5502 + $0x38] sm:$0xff]
      %v5511 = vld [vmem:[%s5502 + $0x40] sm:$0xff]
      %v5512 = vld [vmem:[%s5502 + $0x48] sm:$0xff]
      %v5513 = vld [vmem:[%s5502 + $0x50] sm:$0xff]
      %v5514 = vld [vmem:[%s5502 + $0x58] sm:$0xff]
      %v5515 = vld [vmem:[%s5502 + $0x60] sm:$0xff]
      %v5516 = vld [vmem:[%s5502 + $0x68] sm:$0xff]
      %v5517 = vld [vmem:[%s5502 + $0x70] sm:$0xff]
      %v5518 = vld [vmem:[%s5502 + $0x78] sm:$0xff]
      %v5519 = vld [vmem:[#allocation2 + $0x1] sm:$0xf]
      %v5520 = vld [vmem:[#allocation2 + $0x9] sm:$0xf]
      %v5521 = vld [vmem:[#allocation2 + $0x11] sm:$0xf]
      %v5522 = vld [vmem:[#allocation2 + $0x19] sm:$0xf]
      %v5523 = vld [vmem:[#allocation2 + $0x21] sm:$0xf]
      %v5524 = vld [vmem:[#allocation2 + $0x29] sm:$0xf]
      %v5525 = vld [vmem:[#allocation2 + $0x31] sm:$0xf]
      %v5526 = vld [vmem:[#allocation2 + $0x39] sm:$0xf]
      %v5527 = vld [vmem:[#allocation2 + $0x41] sm:$0xf]
      %v5528 = vld [vmem:[#allocation2 + $0x49] sm:$0xf]
      %v5529 = vld [vmem:[#allocation2 + $0x51] sm:$0xf]
      %v5530 = vld [vmem:[#allocation2 + $0x59] sm:$0xf]
      %v5531 = vld [vmem:[#allocation2 + $0x61] sm:$0xf]
      %v5532 = vld [vmem:[#allocation2 + $0x69] sm:$0xf]
      %v5533 = vld [vmem:[#allocation2 + $0x71] sm:$0xf]
      %v5534 = vld [vmem:[#allocation2 + $0x79] sm:$0xf]
      %s5535 = scalar_lea.vmem %s1, 4736
      %v5536 = vld [vmem:[%s5535] sm:$0xff]
      %v5537 = vld [vmem:[%s5535 + $0x8] sm:$0xff]
      %v5538 = vld [vmem:[%s5535 + $0x10] sm:$0xff]
      %v5539 = vld [vmem:[%s5535 + $0x18] sm:$0xff]
      %v5540 = vld [vmem:[%s5535 + $0x20] sm:$0xff]
      %v5541 = vld [vmem:[%s5535 + $0x28] sm:$0xff]
      %v5542 = vld [vmem:[%s5535 + $0x30] sm:$0xff]
      %v5543 = vld [vmem:[%s5535 + $0x38] sm:$0xff]
      %v5544 = vld [vmem:[%s5535 + $0x40] sm:$0xff]
      %v5545 = vld [vmem:[%s5535 + $0x48] sm:$0xff]
      %v5546 = vld [vmem:[%s5535 + $0x50] sm:$0xff]
      %v5547 = vld [vmem:[%s5535 + $0x58] sm:$0xff]
      %v5548 = vld [vmem:[%s5535 + $0x60] sm:$0xff]
      %v5549 = vld [vmem:[%s5535 + $0x68] sm:$0xff]
      %v5550 = vld [vmem:[%s5535 + $0x70] sm:$0xff]
      %v5551 = vld [vmem:[%s5535 + $0x78] sm:$0xff]
      %5568 = vst [vmem:[#allocation1] ss:$2 sm:$0xff] %v5519
      %s5569 = scalar_lea.vmem [#allocation1], 1
      %5570 = vst [vmem:[%s5569] ss:$2 sm:$0xff] %v5520
      %s5571 = scalar_lea.vmem [#allocation1], 16
      %5572 = vst [vmem:[%s5571] ss:$2 sm:$0xff] %v5521
      %s5573 = scalar_lea.vmem [#allocation1], 17
      %5574 = vst [vmem:[%s5573] ss:$2 sm:$0xff] %v5522
      %s5575 = scalar_lea.vmem [#allocation1], 32
      %5576 = vst [vmem:[%s5575] ss:$2 sm:$0xff] %v5523
      %s5577 = scalar_lea.vmem [#allocation1], 33
      %5578 = vst [vmem:[%s5577] ss:$2 sm:$0xff] %v5524
      %s5579 = scalar_lea.vmem [#allocation1], 48
      %5580 = vst [vmem:[%s5579] ss:$2 sm:$0xff] %v5525
      %s5581 = scalar_lea.vmem [#allocation1], 49
      %5582 = vst [vmem:[%s5581] ss:$2 sm:$0xff] %v5526
      %v5583 = vld.sshfl [vmem:[#allocation1] sm:$0xff pattern:$0x75316420]
      %v5584 = vld.sshfl [vmem:[#allocation1 + $0x10] sm:$0xff pattern:$0x75316420]
      %v5585 = vld.sshfl [vmem:[#allocation1 + $0x20] sm:$0xff pattern:$0x75316420]
      %v5586 = vld.sshfl [vmem:[#allocation1 + $0x30] sm:$0xff pattern:$0x75316420]
      %5587 = vst [vmem:[#allocation1] ss:$2 sm:$0xff] %v5527
      %5588 = vst [vmem:[%s5569] ss:$2 sm:$0xff] %v5528
      %5589 = vst [vmem:[%s5571] ss:$2 sm:$0xff] %v5529
      %5590 = vst [vmem:[%s5573] ss:$2 sm:$0xff] %v5530
      %5591 = vst [vmem:[%s5575] ss:$2 sm:$0xff] %v5531
      %5592 = vst [vmem:[%s5577] ss:$2 sm:$0xff] %v5532
      %5593 = vst [vmem:[%s5579] ss:$2 sm:$0xff] %v5533
      %5594 = vst [vmem:[%s5581] ss:$2 sm:$0xff] %v5534
      %v5595 = vld.sshfl [vmem:[#allocation1] sm:$0xff pattern:$0x75316420]
      %v5596 = vld.sshfl [vmem:[#allocation1 + $0x10] sm:$0xff pattern:$0x75316420]
      %v5597 = vld.sshfl [vmem:[#allocation1 + $0x20] sm:$0xff pattern:$0x75316420]
      %v5598 = vld.sshfl [vmem:[#allocation1 + $0x30] sm:$0xff pattern:$0x75316420]
      %5607 = vmatpush.msra.mxu0 %v5551
      %5608 = vmatpush.msra.mxu0 %v5550
      %5609 = vmatpush.msra.mxu0 %v5549
      %5610 = vmatpush.msra.mxu0 %v5548
      %5611 = vmatpush.msra.mxu0 %v5547
      %5612 = vmatpush.msra.mxu0 %v5546
      %5613 = vmatpush.msra.mxu0 %v5545
      %5614 = vmatpush.msra.mxu0 %v5544
      %5615 = vmatpush.msra.mxu0 %v5543
      %5616 = vmatpush.msra.mxu0 %v5542
      %5617 = vmatpush.msra.mxu0 %v5541
      %5618 = vmatpush.msra.mxu0 %v5540
      %5619 = vmatpush.msra.mxu0 %v5539
      %5620 = vmatpush.msra.mxu0 %v5538
      %5621 = vmatpush.msra.mxu0 %v5537
      %5622 = vmatpush.msra.mxu0 %v5536
      %5623 = vmatmul.f32.gmra.mxu0 %v5583
      %v5624 = vpop.f32.mrf.mxu0
      %v5625 = vadd.f32 0.0, %v5624
      %5626 = vmatmul.f32.gmra.mxu0 %v5584
      %v5627 = vpop.f32.mrf.mxu0
      %v5628 = vadd.f32 0.0, %v5627
      %5629 = vmatmul.f32.gmra.mxu0 %v5585
      %v5630 = vpop.f32.mrf.mxu0
      %v5631 = vadd.f32 0.0, %v5630
      %5632 = vmatmul.f32.gmra.mxu0 %v5586
      %v5633 = vpop.f32.mrf.mxu0
      %v5634 = vadd.f32 0.0, %v5633
      %5635 = vmatmul.f32.gmra.mxu0 %v5595
      %v5636 = vpop.f32.mrf.mxu0
      %v5637 = vadd.f32 0.0, %v5636
      %5638 = vmatmul.f32.gmra.mxu0 %v5596
      %v5639 = vpop.f32.mrf.mxu0
      %v5640 = vadd.f32 0.0, %v5639
      %5641 = vmatmul.f32.gmra.mxu0 %v5597
      %v5642 = vpop.f32.mrf.mxu0
      %v5643 = vadd.f32 0.0, %v5642
      %5644 = vmatmul.f32.gmra.mxu0 %v5598
      %v5645 = vpop.f32.mrf.mxu0
      %v5646 = vadd.f32 0.0, %v5645
      %5647 = vdwg.mxu0
      %5664 = vst [vmem:[#allocation1] ss:$2 sm:$0xff] %v5486
      %s5665 = scalar_lea.vmem [#allocation1], 1
      %5666 = vst [vmem:[%s5665] ss:$2 sm:$0xff] %v5487
      %s5667 = scalar_lea.vmem [#allocation1], 16
      %5668 = vst [vmem:[%s5667] ss:$2 sm:$0xff] %v5488
      %s5669 = scalar_lea.vmem [#allocation1], 17
      %5670 = vst [vmem:[%s5669] ss:$2 sm:$0xff] %v5489
      %s5671 = scalar_lea.vmem [#allocation1], 32
      %5672 = vst [vmem:[%s5671] ss:$2 sm:$0xff] %v5490
      %s5673 = scalar_lea.vmem [#allocation1], 33
      %5674 = vst [vmem:[%s5673] ss:$2 sm:$0xff] %v5491
      %s5675 = scalar_lea.vmem [#allocation1], 48
      %5676 = vst [vmem:[%s5675] ss:$2 sm:$0xff] %v5492
      %s5677 = scalar_lea.vmem [#allocation1], 49
      %5678 = vst [vmem:[%s5677] ss:$2 sm:$0xff] %v5493
      %v5679 = vld.sshfl [vmem:[#allocation1] sm:$0xff pattern:$0x75316420]
      %v5680 = vld.sshfl [vmem:[#allocation1 + $0x10] sm:$0xff pattern:$0x75316420]
      %v5681 = vld.sshfl [vmem:[#allocation1 + $0x20] sm:$0xff pattern:$0x75316420]
      %v5682 = vld.sshfl [vmem:[#allocation1 + $0x30] sm:$0xff pattern:$0x75316420]
      %5683 = vst [vmem:[#allocation1] ss:$2 sm:$0xff] %v5494
      %5684 = vst [vmem:[%s5665] ss:$2 sm:$0xff] %v5495
      %5685 = vst [vmem:[%s5667] ss:$2 sm:$0xff] %v5496
      %5686 = vst [vmem:[%s5669] ss:$2 sm:$0xff] %v5497
      %5687 = vst [vmem:[%s5671] ss:$2 sm:$0xff] %v5498
      %5688 = vst [vmem:[%s5673] ss:$2 sm:$0xff] %v5499
      %5689 = vst [vmem:[%s5675] ss:$2 sm:$0xff] %v5500
      %5690 = vst [vmem:[%s5677] ss:$2 sm:$0xff] %v5501
      %v5691 = vld.sshfl [vmem:[#allocation1] sm:$0xff pattern:$0x75316420]
      %v5692 = vld.sshfl [vmem:[#allocation1 + $0x10] sm:$0xff pattern:$0x75316420]
      %v5693 = vld.sshfl [vmem:[#allocation1 + $0x20] sm:$0xff pattern:$0x75316420]
      %v5694 = vld.sshfl [vmem:[#allocation1 + $0x30] sm:$0xff pattern:$0x75316420]
      %5703 = vmatpush.msra.mxu0 %v5518
      %5704 = vmatpush.msra.mxu0 %v5517
      %5705 = vmatpush.msra.mxu0 %v5516
      %5706 = vmatpush.msra.mxu0 %v5515
      %5707 = vmatpush.msra.mxu0 %v5514
      %5708 = vmatpush.msra.mxu0 %v5513
      %5709 = vmatpush.msra.mxu0 %v5512
      %5710 = vmatpush.msra.mxu0 %v5511
      %5711 = vmatpush.msra.mxu0 %v5510
      %5712 = vmatpush.msra.mxu0 %v5509
      %5713 = vmatpush.msra.mxu0 %v5508
      %5714 = vmatpush.msra.mxu0 %v5507
      %5715 = vmatpush.msra.mxu0 %v5506
      %5716 = vmatpush.msra.mxu0 %v5505
      %5717 = vmatpush.msra.mxu0 %v5504
      %5718 = vmatpush.msra.mxu0 %v5503
      %5719 = vmatmul.f32.gmra.mxu0 %v5679
      %v5720 = vpop.f32.mrf.mxu0
      %v5721 = vadd.f32 %v5625, %v5720
      %5722 = vmatmul.f32.gmra.mxu0 %v5680
      %v5723 = vpop.f32.mrf.mxu0
      %v5724 = vadd.f32 %v5628, %v5723
      %5725 = vmatmul.f32.gmra.mxu0 %v5681
      %v5726 = vpop.f32.mrf.mxu0
      %v5727 = vadd.f32 %v5631, %v5726
      %5728 = vmatmul.f32.gmra.mxu0 %v5682
      %v5729 = vpop.f32.mrf.mxu0
      %v5730 = vadd.f32 %v5634, %v5729
      %5731 = vmatmul.f32.gmra.mxu0 %v5691
      %v5732 = vpop.f32.mrf.mxu0
      %v5733 = vadd.f32 %v5637, %v5732
      %5734 = vmatmul.f32.gmra.mxu0 %v5692
      %v5735 = vpop.f32.mrf.mxu0
      %v5736 = vadd.f32 %v5640, %v5735
      %5737 = vmatmul.f32.gmra.mxu0 %v5693
      %v5738 = vpop.f32.mrf.mxu0
      %v5739 = vadd.f32 %v5643, %v5738
      %5740 = vmatmul.f32.gmra.mxu0 %v5694
      %v5741 = vpop.f32.mrf.mxu0
      %v5742 = vadd.f32 %v5646, %v5741
      %5743 = vdwg.mxu0
      %v5744 = vld [vmem:[#allocation2 + $0x2] sm:$0xf]
      %v5745 = vld [vmem:[#allocation2 + $0xa] sm:$0xf]
      %v5746 = vld [vmem:[#allocation2 + $0x12] sm:$0xf]
      %v5747 = vld [vmem:[#allocation2 + $0x1a] sm:$0xf]
      %v5748 = vld [vmem:[#allocation2 + $0x22] sm:$0xf]
      %v5749 = vld [vmem:[#allocation2 + $0x2a] sm:$0xf]
      %v5750 = vld [vmem:[#allocation2 + $0x32] sm:$0xf]
      %v5751 = vld [vmem:[#allocation2 + $0x3a] sm:$0xf]
      %v5752 = vld [vmem:[#allocation2 + $0x42] sm:$0xf]
      %v5753 = vld [vmem:[#allocation2 + $0x4a] sm:$0xf]
      %v5754 = vld [vmem:[#allocation2 + $0x52] sm:$0xf]
      %v5755 = vld [vmem:[#allocation2 + $0x5a] sm:$0xf]
      %v5756 = vld [vmem:[#allocation2 + $0x62] sm:$0xf]
      %v5757 = vld [vmem:[#allocation2 + $0x6a] sm:$0xf]
      %v5758 = vld [vmem:[#allocation2 + $0x72] sm:$0xf]
      %v5759 = vld [vmem:[#allocation2 + $0x7a] sm:$0xf]
      %s5760 = scalar_lea.vmem %s1, 4864
      %v5761 = vld [vmem:[%s5760] sm:$0xff]
      %v5762 = vld [vmem:[%s5760 + $0x8] sm:$0xff]
      %v5763 = vld [vmem:[%s5760 + $0x10] sm:$0xff]
      %v5764 = vld [vmem:[%s5760 + $0x18] sm:$0xff]
      %v5765 = vld [vmem:[%s5760 + $0x20] sm:$0xff]
      %v5766 = vld [vmem:[%s5760 + $0x28] sm:$0xff]
      %v5767 = vld [vmem:[%s5760 + $0x30] sm:$0xff]
      %v5768 = vld [vmem:[%s5760 + $0x38] sm:$0xff]
      %v5769 = vld [vmem:[%s5760 + $0x40] sm:$0xff]
      %v5770 = vld [vmem:[%s5760 + $0x48] sm:$0xff]
      %v5771 = vld [vmem:[%s5760 + $0x50] sm:$0xff]
      %v5772 = vld [vmem:[%s5760 + $0x58] sm:$0xff]
      %v5773 = vld [vmem:[%s5760 + $0x60] sm:$0xff]
      %v5774 = vld [vmem:[%s5760 + $0x68] sm:$0xff]
      %v5775 = vld [vmem:[%s5760 + $0x70] sm:$0xff]
      %v5776 = vld [vmem:[%s5760 + $0x78] sm:$0xff]
      %5793 = vst [vmem:[#allocation1] ss:$2 sm:$0xff] %v5744
      %s5794 = scalar_lea.vmem [#allocation1], 1
      %5795 = vst [vmem:[%s5794] ss:$2 sm:$0xff] %v5745
      %s5796 = scalar_lea.vmem [#allocation1], 16
      %5797 = vst [vmem:[%s5796] ss:$2 sm:$0xff] %v5746
      %s5798 = scalar_lea.vmem [#allocation1], 17
      %5799 = vst [vmem:[%s5798] ss:$2 sm:$0xff] %v5747
      %s5800 = scalar_lea.vmem [#allocation1], 32
      %5801 = vst [vmem:[%s5800] ss:$2 sm:$0xff] %v5748
      %s5802 = scalar_lea.vmem [#allocation1], 33
      %5803 = vst [vmem:[%s5802] ss:$2 sm:$0xff] %v5749
      %s5804 = scalar_lea.vmem [#allocation1], 48
      %5805 = vst [vmem:[%s5804] ss:$2 sm:$0xff] %v5750
      %s5806 = scalar_lea.vmem [#allocation1], 49
      %5807 = vst [vmem:[%s5806] ss:$2 sm:$0xff] %v5751
      %v5808 = vld.sshfl [vmem:[#allocation1] sm:$0xff pattern:$0x75316420]
      %v5809 = vld.sshfl [vmem:[#allocation1 + $0x10] sm:$0xff pattern:$0x75316420]
      %v5810 = vld.sshfl [vmem:[#allocation1 + $0x20] sm:$0xff pattern:$0x75316420]
      %v5811 = vld.sshfl [vmem:[#allocation1 + $0x30] sm:$0xff pattern:$0x75316420]
      %5812 = vst [vmem:[#allocation1] ss:$2 sm:$0xff] %v5752
      %5813 = vst [vmem:[%s5794] ss:$2 sm:$0xff] %v5753
      %5814 = vst [vmem:[%s5796] ss:$2 sm:$0xff] %v5754
      %5815 = vst [vmem:[%s5798] ss:$2 sm:$0xff] %v5755
      %5816 = vst [vmem:[%s5800] ss:$2 sm:$0xff] %v5756
      %5817 = vst [vmem:[%s5802] ss:$2 sm:$0xff] %v5757
      %5818 = vst [vmem:[%s5804] ss:$2 sm:$0xff] %v5758
      %5819 = vst [vmem:[%s5806] ss:$2 sm:$0xff] %v5759
      %v5820 = vld.sshfl [vmem:[#allocation1] sm:$0xff pattern:$0x75316420]
      %v5821 = vld.sshfl [vmem:[#allocation1 + $0x10] sm:$0xff pattern:$0x75316420]
      %v5822 = vld.sshfl [vmem:[#allocation1 + $0x20] sm:$0xff pattern:$0x75316420]
      %v5823 = vld.sshfl [vmem:[#allocation1 + $0x30] sm:$0xff pattern:$0x75316420]
      %5832 = vmatpush.msra.mxu0 %v5776
      %5833 = vmatpush.msra.mxu0 %v5775
      %5834 = vmatpush.msra.mxu0 %v5774
      %5835 = vmatpush.msra.mxu0 %v5773
      %5836 = vmatpush.msra.mxu0 %v5772
      %5837 = vmatpush.msra.mxu0 %v5771
      %5838 = vmatpush.msra.mxu0 %v5770
      %5839 = vmatpush.msra.mxu0 %v5769
      %5840 = vmatpush.msra.mxu0 %v5768
      %5841 = vmatpush.msra.mxu0 %v5767
      %5842 = vmatpush.msra.mxu0 %v5766
      %5843 = vmatpush.msra.mxu0 %v5765
      %5844 = vmatpush.msra.mxu0 %v5764
      %5845 = vmatpush.msra.mxu0 %v5763
      %5846 = vmatpush.msra.mxu0 %v5762
      %5847 = vmatpush.msra.mxu0 %v5761
      %5848 = vmatmul.f32.gmra.mxu0 %v5808
      %v5849 = vpop.f32.mrf.mxu0
      %v5850 = vadd.f32 0.0, %v5849
      %5851 = vmatmul.f32.gmra.mxu0 %v5809
      %v5852 = vpop.f32.mrf.mxu0
      %v5853 = vadd.f32 0.0, %v5852
      %5854 = vmatmul.f32.gmra.mxu0 %v5810
      %v5855 = vpop.f32.mrf.mxu0
      %v5856 = vadd.f32 0.0, %v5855
      %5857 = vmatmul.f32.gmra.mxu0 %v5811
      %v5858 = vpop.f32.mrf.mxu0
      %v5859 = vadd.f32 0.0, %v5858
      %5860 = vmatmul.f32.gmra.mxu0 %v5820
      %v5861 = vpop.f32.mrf.mxu0
      %v5862 = vadd.f32 0.0, %v5861
      %5863 = vmatmul.f32.gmra.mxu0 %v5821
      %v5864 = vpop.f32.mrf.mxu0
      %v5865 = vadd.f32 0.0, %v5864
      %5866 = vmatmul.f32.gmra.mxu0 %v5822
      %v5867 = vpop.f32.mrf.mxu0
      %v5868 = vadd.f32 0.0, %v5867
      %5869 = vmatmul.f32.gmra.mxu0 %v5823
      %v5870 = vpop.f32.mrf.mxu0
      %v5871 = vadd.f32 0.0, %v5870
      %5872 = vdwg.mxu0
      %v5873 = vadd.f32 %v5721, %v5850
      %v5874 = vadd.f32 %v5724, %v5853
      %v5875 = vadd.f32 %v5727, %v5856
      %v5876 = vadd.f32 %v5730, %v5859
      %v5877 = vadd.f32 %v5733, %v5862
      %v5878 = vadd.f32 %v5736, %v5865
      %v5879 = vadd.f32 %v5739, %v5868
      %v5880 = vadd.f32 %v5742, %v5871
      %v5881 = vld [vmem:[%s655] sm:$0xf]
      %v5882 = vld [vmem:[%s655 + $0x8] sm:$0xf]
      %v5883 = vld [vmem:[%s655 + $0x10] sm:$0xf]
      %v5884 = vld [vmem:[%s655 + $0x18] sm:$0xf]
      %v5885 = vld [vmem:[%s655 + $0x20] sm:$0xf]
      %v5886 = vld [vmem:[%s655 + $0x28] sm:$0xf]
      %v5887 = vld [vmem:[%s655 + $0x30] sm:$0xf]
      %v5888 = vld [vmem:[%s655 + $0x38] sm:$0xf]
      %v5889 = vld [vmem:[%s655 + $0x40] sm:$0xf]
      %v5890 = vld [vmem:[%s655 + $0x48] sm:$0xf]
      %v5891 = vld [vmem:[%s655 + $0x50] sm:$0xf]
      %v5892 = vld [vmem:[%s655 + $0x58] sm:$0xf]
      %v5893 = vld [vmem:[%s655 + $0x60] sm:$0xf]
      %v5894 = vld [vmem:[%s655 + $0x68] sm:$0xf]
      %v5895 = vld [vmem:[%s655 + $0x70] sm:$0xf]
      %v5896 = vld [vmem:[%s655 + $0x78] sm:$0xf]
      %s5897 = scalar_lea.vmem %s1, 4992
      %v5898 = vld [vmem:[%s5897] sm:$0xff]
      %v5899 = vld [vmem:[%s5897 + $0x8] sm:$0xff]
      %v5900 = vld [vmem:[%s5897 + $0x10] sm:$0xff]
      %v5901 = vld [vmem:[%s5897 + $0x18] sm:$0xff]
      %v5902 = vld [vmem:[%s5897 + $0x20] sm:$0xff]
      %v5903 = vld [vmem:[%s5897 + $0x28] sm:$0xff]
      %v5904 = vld [vmem:[%s5897 + $0x30] sm:$0xff]
      %v5905 = vld [vmem:[%s5897 + $0x38] sm:$0xff]
      %v5906 = vld [vmem:[%s5897 + $0x40] sm:$0xff]
      %v5907 = vld [vmem:[%s5897 + $0x48] sm:$0xff]
      %v5908 = vld [vmem:[%s5897 + $0x50] sm:$0xff]
      %v5909 = vld [vmem:[%s5897 + $0x58] sm:$0xff]
      %v5910 = vld [vmem:[%s5897 + $0x60] sm:$0xff]
      %v5911 = vld [vmem:[%s5897 + $0x68] sm:$0xff]
      %v5912 = vld [vmem:[%s5897 + $0x70] sm:$0xff]
      %v5913 = vld [vmem:[%s5897 + $0x78] sm:$0xff]
      %5930 = vst [vmem:[#allocation1] ss:$2 sm:$0xff] %v5881
      %s5931 = scalar_lea.vmem [#allocation1], 1
      %5932 = vst [vmem:[%s5931] ss:$2 sm:$0xff] %v5882
      %s5933 = scalar_lea.vmem [#allocation1], 16
      %5934 = vst [vmem:[%s5933] ss:$2 sm:$0xff] %v5883
      %s5935 = scalar_lea.vmem [#allocation1], 17
      %5936 = vst [vmem:[%s5935] ss:$2 sm:$0xff] %v5884
      %s5937 = scalar_lea.vmem [#allocation1], 32
      %5938 = vst [vmem:[%s5937] ss:$2 sm:$0xff] %v5885
      %s5939 = scalar_lea.vmem [#allocation1], 33
      %5940 = vst [vmem:[%s5939] ss:$2 sm:$0xff] %v5886
      %s5941 = scalar_lea.vmem [#allocation1], 48
      %5942 = vst [vmem:[%s5941] ss:$2 sm:$0xff] %v5887
      %s5943 = scalar_lea.vmem [#allocation1], 49
      %5944 = vst [vmem:[%s5943] ss:$2 sm:$0xff] %v5888
      %v5945 = vld.sshfl [vmem:[#allocation1] sm:$0xff pattern:$0x75316420]
      %v5946 = vld.sshfl [vmem:[#allocation1 + $0x10] sm:$0xff pattern:$0x75316420]
      %v5947 = vld.sshfl [vmem:[#allocation1 + $0x20] sm:$0xff pattern:$0x75316420]
      %v5948 = vld.sshfl [vmem:[#allocation1 + $0x30] sm:$0xff pattern:$0x75316420]
      %5949 = vst [vmem:[#allocation1] ss:$2 sm:$0xff] %v5889
      %5950 = vst [vmem:[%s5931] ss:$2 sm:$0xff] %v5890
      %5951 = vst [vmem:[%s5933] ss:$2 sm:$0xff] %v5891
      %5952 = vst [vmem:[%s5935] ss:$2 sm:$0xff] %v5892
      %5953 = vst [vmem:[%s5937] ss:$2 sm:$0xff] %v5893
      %5954 = vst [vmem:[%s5939] ss:$2 sm:$0xff] %v5894
      %5955 = vst [vmem:[%s5941] ss:$2 sm:$0xff] %v5895
      %5956 = vst [vmem:[%s5943] ss:$2 sm:$0xff] %v5896
      %v5957 = vld.sshfl [vmem:[#allocation1] sm:$0xff pattern:$0x75316420]
      %v5958 = vld.sshfl [vmem:[#allocation1 + $0x10] sm:$0xff pattern:$0x75316420]
      %v5959 = vld.sshfl [vmem:[#allocation1 + $0x20] sm:$0xff pattern:$0x75316420]
      %v5960 = vld.sshfl [vmem:[#allocation1 + $0x30] sm:$0xff pattern:$0x75316420]
      %5969 = vmatpush.msra.mxu0 %v5913
      %5970 = vmatpush.msra.mxu0 %v5912
      %5971 = vmatpush.msra.mxu0 %v5911
      %5972 = vmatpush.msra.mxu0 %v5910
      %5973 = vmatpush.msra.mxu0 %v5909
      %5974 = vmatpush.msra.mxu0 %v5908
      %5975 = vmatpush.msra.mxu0 %v5907
      %5976 = vmatpush.msra.mxu0 %v5906
      %5977 = vmatpush.msra.mxu0 %v5905
      %5978 = vmatpush.msra.mxu0 %v5904
      %5979 = vmatpush.msra.mxu0 %v5903
      %5980 = vmatpush.msra.mxu0 %v5902
      %5981 = vmatpush.msra.mxu0 %v5901
      %5982 = vmatpush.msra.mxu0 %v5900
      %5983 = vmatpush.msra.mxu0 %v5899
      %5984 = vmatpush.msra.mxu0 %v5898
      %5985 = vmatmul.f32.gmra.mxu0 %v5945
      %v5986 = vpop.f32.mrf.mxu0
      %v5987 = vadd.f32 0.0, %v5986
      %5988 = vmatmul.f32.gmra.mxu0 %v5946
      %v5989 = vpop.f32.mrf.mxu0
      %v5990 = vadd.f32 0.0, %v5989
      %5991 = vmatmul.f32.gmra.mxu0 %v5947
      %v5992 = vpop.f32.mrf.mxu0
      %v5993 = vadd.f32 0.0, %v5992
      %5994 = vmatmul.f32.gmra.mxu0 %v5948
      %v5995 = vpop.f32.mrf.mxu0
      %v5996 = vadd.f32 0.0, %v5995
      %5997 = vmatmul.f32.gmra.mxu0 %v5957
      %v5998 = vpop.f32.mrf.mxu0
      %v5999 = vadd.f32 0.0, %v5998
      %6000 = vmatmul.f32.gmra.mxu0 %v5958
      %v6001 = vpop.f32.mrf.mxu0
      %v6002 = vadd.f32 0.0, %v6001
      %6003 = vmatmul.f32.gmra.mxu0 %v5959
      %v6004 = vpop.f32.mrf.mxu0
      %v6005 = vadd.f32 0.0, %v6004
      %6006 = vmatmul.f32.gmra.mxu0 %v5960
      %v6007 = vpop.f32.mrf.mxu0
      %v6008 = vadd.f32 0.0, %v6007
      %6009 = vdwg.mxu0
      %v6010 = vadd.f32 %v5873, %v5987
      %v6011 = vadd.f32 %v5874, %v5990
      %v6012 = vadd.f32 %v5875, %v5993
      %v6013 = vadd.f32 %v5876, %v5996
      %v6014 = vadd.f32 %v5877, %v5999
      %v6015 = vadd.f32 %v5878, %v6002
      %v6016 = vadd.f32 %v5879, %v6005
      %v6017 = vadd.f32 %v5880, %v6008
      %v6018 = vld [vmem:[%s655 + $0x1] sm:$0xf]
      %v6019 = vld [vmem:[%s655 + $0x9] sm:$0xf]
      %v6020 = vld [vmem:[%s655 + $0x11] sm:$0xf]
      %v6021 = vld [vmem:[%s655 + $0x19] sm:$0xf]
      %v6022 = vld [vmem:[%s655 + $0x21] sm:$0xf]
      %v6023 = vld [vmem:[%s655 + $0x29] sm:$0xf]
      %v6024 = vld [vmem:[%s655 + $0x31] sm:$0xf]
      %v6025 = vld [vmem:[%s655 + $0x39] sm:$0xf]
      %v6026 = vld [vmem:[%s655 + $0x41] sm:$0xf]
      %v6027 = vld [vmem:[%s655 + $0x49] sm:$0xf]
      %v6028 = vld [vmem:[%s655 + $0x51] sm:$0xf]
      %v6029 = vld [vmem:[%s655 + $0x59] sm:$0xf]
      %v6030 = vld [vmem:[%s655 + $0x61] sm:$0xf]
      %v6031 = vld [vmem:[%s655 + $0x69] sm:$0xf]
      %v6032 = vld [vmem:[%s655 + $0x71] sm:$0xf]
      %v6033 = vld [vmem:[%s655 + $0x79] sm:$0xf]
      %s6034 = scalar_lea.vmem %s1, 5120
      %v6035 = vld [vmem:[%s6034] sm:$0xff]
      %v6036 = vld [vmem:[%s6034 + $0x8] sm:$0xff]
      %v6037 = vld [vmem:[%s6034 + $0x10] sm:$0xff]
      %v6038 = vld [vmem:[%s6034 + $0x18] sm:$0xff]
      %v6039 = vld [vmem:[%s6034 + $0x20] sm:$0xff]
      %v6040 = vld [vmem:[%s6034 + $0x28] sm:$0xff]
      %v6041 = vld [vmem:[%s6034 + $0x30] sm:$0xff]
      %v6042 = vld [vmem:[%s6034 + $0x38] sm:$0xff]
      %v6043 = vld [vmem:[%s6034 + $0x40] sm:$0xff]
      %v6044 = vld [vmem:[%s6034 + $0x48] sm:$0xff]
      %v6045 = vld [vmem:[%s6034 + $0x50] sm:$0xff]
      %v6046 = vld [vmem:[%s6034 + $0x58] sm:$0xff]
      %v6047 = vld [vmem:[%s6034 + $0x60] sm:$0xff]
      %v6048 = vld [vmem:[%s6034 + $0x68] sm:$0xff]
      %v6049 = vld [vmem:[%s6034 + $0x70] sm:$0xff]
      %v6050 = vld [vmem:[%s6034 + $0x78] sm:$0xff]
      %6067 = vst [vmem:[#allocation1] ss:$2 sm:$0xff] %v6018
      %s6068 = scalar_lea.vmem [#allocation1], 1
      %6069 = vst [vmem:[%s6068] ss:$2 sm:$0xff] %v6019
      %s6070 = scalar_lea.vmem [#allocation1], 16
      %6071 = vst [vmem:[%s6070] ss:$2 sm:$0xff] %v6020
      %s6072 = scalar_lea.vmem [#allocation1], 17
      %6073 = vst [vmem:[%s6072] ss:$2 sm:$0xff] %v6021
      %s6074 = scalar_lea.vmem [#allocation1], 32
      %6075 = vst [vmem:[%s6074] ss:$2 sm:$0xff] %v6022
      %s6076 = scalar_lea.vmem [#allocation1], 33
      %6077 = vst [vmem:[%s6076] ss:$2 sm:$0xff] %v6023
      %s6078 = scalar_lea.vmem [#allocation1], 48
      %6079 = vst [vmem:[%s6078] ss:$2 sm:$0xff] %v6024
      %s6080 = scalar_lea.vmem [#allocation1], 49
      %6081 = vst [vmem:[%s6080] ss:$2 sm:$0xff] %v6025
      %v6082 = vld.sshfl [vmem:[#allocation1] sm:$0xff pattern:$0x75316420]
      %v6083 = vld.sshfl [vmem:[#allocation1 + $0x10] sm:$0xff pattern:$0x75316420]
      %v6084 = vld.sshfl [vmem:[#allocation1 + $0x20] sm:$0xff pattern:$0x75316420]
      %v6085 = vld.sshfl [vmem:[#allocation1 + $0x30] sm:$0xff pattern:$0x75316420]
      %6086 = vst [vmem:[#allocation1] ss:$2 sm:$0xff] %v6026
      %6087 = vst [vmem:[%s6068] ss:$2 sm:$0xff] %v6027
      %6088 = vst [vmem:[%s6070] ss:$2 sm:$0xff] %v6028
      %6089 = vst [vmem:[%s6072] ss:$2 sm:$0xff] %v6029
      %6090 = vst [vmem:[%s6074] ss:$2 sm:$0xff] %v6030
      %6091 = vst [vmem:[%s6076] ss:$2 sm:$0xff] %v6031
      %6092 = vst [vmem:[%s6078] ss:$2 sm:$0xff] %v6032
      %6093 = vst [vmem:[%s6080] ss:$2 sm:$0xff] %v6033
      %v6094 = vld.sshfl [vmem:[#allocation1] sm:$0xff pattern:$0x75316420]
      %v6095 = vld.sshfl [vmem:[#allocation1 + $0x10] sm:$0xff pattern:$0x75316420]
      %v6096 = vld.sshfl [vmem:[#allocation1 + $0x20] sm:$0xff pattern:$0x75316420]
      %v6097 = vld.sshfl [vmem:[#allocation1 + $0x30] sm:$0xff pattern:$0x75316420]
      %6106 = vmatpush.msra.mxu0 %v6050
      %6107 = vmatpush.msra.mxu0 %v6049
      %6108 = vmatpush.msra.mxu0 %v6048
      %6109 = vmatpush.msra.mxu0 %v6047
      %6110 = vmatpush.msra.mxu0 %v6046
      %6111 = vmatpush.msra.mxu0 %v6045
      %6112 = vmatpush.msra.mxu0 %v6044
      %6113 = vmatpush.msra.mxu0 %v6043
      %6114 = vmatpush.msra.mxu0 %v6042
      %6115 = vmatpush.msra.mxu0 %v6041
      %6116 = vmatpush.msra.mxu0 %v6040
      %6117 = vmatpush.msra.mxu0 %v6039
      %6118 = vmatpush.msra.mxu0 %v6038
      %6119 = vmatpush.msra.mxu0 %v6037
      %6120 = vmatpush.msra.mxu0 %v6036
      %6121 = vmatpush.msra.mxu0 %v6035
      %6122 = vmatmul.f32.gmra.mxu0 %v6082
      %v6123 = vpop.f32.mrf.mxu0
      %v6124 = vadd.f32 0.0, %v6123
      %6125 = vmatmul.f32.gmra.mxu0 %v6083
      %v6126 = vpop.f32.mrf.mxu0
      %v6127 = vadd.f32 0.0, %v6126
      %6128 = vmatmul.f32.gmra.mxu0 %v6084
      %v6129 = vpop.f32.mrf.mxu0
      %v6130 = vadd.f32 0.0, %v6129
      %6131 = vmatmul.f32.gmra.mxu0 %v6085
      %v6132 = vpop.f32.mrf.mxu0
      %v6133 = vadd.f32 0.0, %v6132
      %6134 = vmatmul.f32.gmra.mxu0 %v6094
      %v6135 = vpop.f32.mrf.mxu0
      %v6136 = vadd.f32 0.0, %v6135
      %6137 = vmatmul.f32.gmra.mxu0 %v6095
      %v6138 = vpop.f32.mrf.mxu0
      %v6139 = vadd.f32 0.0, %v6138
      %6140 = vmatmul.f32.gmra.mxu0 %v6096
      %v6141 = vpop.f32.mrf.mxu0
      %v6142 = vadd.f32 0.0, %v6141
      %6143 = vmatmul.f32.gmra.mxu0 %v6097
      %v6144 = vpop.f32.mrf.mxu0
      %v6145 = vadd.f32 0.0, %v6144
      %6146 = vdwg.mxu0
      %v6147 = vadd.f32 %v6010, %v6124
      %v6148 = vadd.f32 %v6011, %v6127
      %v6149 = vadd.f32 %v6012, %v6130
      %v6150 = vadd.f32 %v6013, %v6133
      %v6151 = vadd.f32 %v6014, %v6136
      %v6152 = vadd.f32 %v6015, %v6139
      %v6153 = vadd.f32 %v6016, %v6142
      %v6154 = vadd.f32 %v6017, %v6145
      %v6155 = vld [vmem:[%s655 + $0x2] sm:$0xf]
      %v6156 = vld [vmem:[%s655 + $0xa] sm:$0xf]
      %v6157 = vld [vmem:[%s655 + $0x12] sm:$0xf]
      %v6158 = vld [vmem:[%s655 + $0x1a] sm:$0xf]
      %v6159 = vld [vmem:[%s655 + $0x22] sm:$0xf]
      %v6160 = vld [vmem:[%s655 + $0x2a] sm:$0xf]
      %v6161 = vld [vmem:[%s655 + $0x32] sm:$0xf]
      %v6162 = vld [vmem:[%s655 + $0x3a] sm:$0xf]
      %v6163 = vld [vmem:[%s655 + $0x42] sm:$0xf]
      %v6164 = vld [vmem:[%s655 + $0x4a] sm:$0xf]
      %v6165 = vld [vmem:[%s655 + $0x52] sm:$0xf]
      %v6166 = vld [vmem:[%s655 + $0x5a] sm:$0xf]
      %v6167 = vld [vmem:[%s655 + $0x62] sm:$0xf]
      %v6168 = vld [vmem:[%s655 + $0x6a] sm:$0xf]
      %v6169 = vld [vmem:[%s655 + $0x72] sm:$0xf]
      %v6170 = vld [vmem:[%s655 + $0x7a] sm:$0xf]
      %s6171 = scalar_lea.vmem %s1, 5248
      %v6172 = vld [vmem:[%s6171] sm:$0xff]
      %v6173 = vld [vmem:[%s6171 + $0x8] sm:$0xff]
      %v6174 = vld [vmem:[%s6171 + $0x10] sm:$0xff]
      %v6175 = vld [vmem:[%s6171 + $0x18] sm:$0xff]
      %v6176 = vld [vmem:[%s6171 + $0x20] sm:$0xff]
      %v6177 = vld [vmem:[%s6171 + $0x28] sm:$0xff]
      %v6178 = vld [vmem:[%s6171 + $0x30] sm:$0xff]
      %v6179 = vld [vmem:[%s6171 + $0x38] sm:$0xff]
      %v6180 = vld [vmem:[%s6171 + $0x40] sm:$0xff]
      %v6181 = vld [vmem:[%s6171 + $0x48] sm:$0xff]
      %v6182 = vld [vmem:[%s6171 + $0x50] sm:$0xff]
      %v6183 = vld [vmem:[%s6171 + $0x58] sm:$0xff]
      %v6184 = vld [vmem:[%s6171 + $0x60] sm:$0xff]
      %v6185 = vld [vmem:[%s6171 + $0x68] sm:$0xff]
      %v6186 = vld [vmem:[%s6171 + $0x70] sm:$0xff]
      %v6187 = vld [vmem:[%s6171 + $0x78] sm:$0xff]
      %6204 = vst [vmem:[#allocation1] ss:$2 sm:$0xff] %v6155
      %s6205 = scalar_lea.vmem [#allocation1], 1
      %6206 = vst [vmem:[%s6205] ss:$2 sm:$0xff] %v6156
      %s6207 = scalar_lea.vmem [#allocation1], 16
      %6208 = vst [vmem:[%s6207] ss:$2 sm:$0xff] %v6157
      %s6209 = scalar_lea.vmem [#allocation1], 17
      %6210 = vst [vmem:[%s6209] ss:$2 sm:$0xff] %v6158
      %s6211 = scalar_lea.vmem [#allocation1], 32
      %6212 = vst [vmem:[%s6211] ss:$2 sm:$0xff] %v6159
      %s6213 = scalar_lea.vmem [#allocation1], 33
      %6214 = vst [vmem:[%s6213] ss:$2 sm:$0xff] %v6160
      %s6215 = scalar_lea.vmem [#allocation1], 48
      %6216 = vst [vmem:[%s6215] ss:$2 sm:$0xff] %v6161
      %s6217 = scalar_lea.vmem [#allocation1], 49
      %6218 = vst [vmem:[%s6217] ss:$2 sm:$0xff] %v6162
      %v6219 = vld.sshfl [vmem:[#allocation1] sm:$0xff pattern:$0x75316420]
      %v6220 = vld.sshfl [vmem:[#allocation1 + $0x10] sm:$0xff pattern:$0x75316420]
      %v6221 = vld.sshfl [vmem:[#allocation1 + $0x20] sm:$0xff pattern:$0x75316420]
      %v6222 = vld.sshfl [vmem:[#allocation1 + $0x30] sm:$0xff pattern:$0x75316420]
      %6223 = vst [vmem:[#allocation1] ss:$2 sm:$0xff] %v6163
      %6224 = vst [vmem:[%s6205] ss:$2 sm:$0xff] %v6164
      %6225 = vst [vmem:[%s6207] ss:$2 sm:$0xff] %v6165
      %6226 = vst [vmem:[%s6209] ss:$2 sm:$0xff] %v6166
      %6227 = vst [vmem:[%s6211] ss:$2 sm:$0xff] %v6167
      %6228 = vst [vmem:[%s6213] ss:$2 sm:$0xff] %v6168
      %6229 = vst [vmem:[%s6215] ss:$2 sm:$0xff] %v6169
      %6230 = vst [vmem:[%s6217] ss:$2 sm:$0xff] %v6170
      %v6231 = vld.sshfl [vmem:[#allocation1] sm:$0xff pattern:$0x75316420]
      %v6232 = vld.sshfl [vmem:[#allocation1 + $0x10] sm:$0xff pattern:$0x75316420]
      %v6233 = vld.sshfl [vmem:[#allocation1 + $0x20] sm:$0xff pattern:$0x75316420]
      %v6234 = vld.sshfl [vmem:[#allocation1 + $0x30] sm:$0xff pattern:$0x75316420]
      %6243 = vmatpush.msra.mxu0 %v6187
      %6244 = vmatpush.msra.mxu0 %v6186
      %6245 = vmatpush.msra.mxu0 %v6185
      %6246 = vmatpush.msra.mxu0 %v6184
      %6247 = vmatpush.msra.mxu0 %v6183
      %6248 = vmatpush.msra.mxu0 %v6182
      %6249 = vmatpush.msra.mxu0 %v6181
      %6250 = vmatpush.msra.mxu0 %v6180
      %6251 = vmatpush.msra.mxu0 %v6179
      %6252 = vmatpush.msra.mxu0 %v6178
      %6253 = vmatpush.msra.mxu0 %v6177
      %6254 = vmatpush.msra.mxu0 %v6176
      %6255 = vmatpush.msra.mxu0 %v6175
      %6256 = vmatpush.msra.mxu0 %v6174
      %6257 = vmatpush.msra.mxu0 %v6173
      %6258 = vmatpush.msra.mxu0 %v6172
      %6259 = vmatmul.f32.gmra.mxu0 %v6219
      %v6260 = vpop.f32.mrf.mxu0
      %v6261 = vadd.f32 0.0, %v6260
      %6262 = vmatmul.f32.gmra.mxu0 %v6220
      %v6263 = vpop.f32.mrf.mxu0
      %v6264 = vadd.f32 0.0, %v6263
      %6265 = vmatmul.f32.gmra.mxu0 %v6221
      %v6266 = vpop.f32.mrf.mxu0
      %v6267 = vadd.f32 0.0, %v6266
      %6268 = vmatmul.f32.gmra.mxu0 %v6222
      %v6269 = vpop.f32.mrf.mxu0
      %v6270 = vadd.f32 0.0, %v6269
      %6271 = vmatmul.f32.gmra.mxu0 %v6231
      %v6272 = vpop.f32.mrf.mxu0
      %v6273 = vadd.f32 0.0, %v6272
      %6274 = vmatmul.f32.gmra.mxu0 %v6232
      %v6275 = vpop.f32.mrf.mxu0
      %v6276 = vadd.f32 0.0, %v6275
      %6277 = vmatmul.f32.gmra.mxu0 %v6233
      %v6278 = vpop.f32.mrf.mxu0
      %v6279 = vadd.f32 0.0, %v6278
      %6280 = vmatmul.f32.gmra.mxu0 %v6234
      %v6281 = vpop.f32.mrf.mxu0
      %v6282 = vadd.f32 0.0, %v6281
      %6283 = vdwg.mxu0
      %v6284 = vadd.f32 %v6147, %v6261
      %v6285 = vadd.f32 %v6148, %v6264
      %v6286 = vadd.f32 %v6149, %v6267
      %v6287 = vadd.f32 %v6150, %v6270
      %v6288 = vadd.f32 %v6151, %v6273
      %v6289 = vadd.f32 %v6152, %v6276
      %v6290 = vadd.f32 %v6153, %v6279
      %v6291 = vadd.f32 %v6154, %v6282
      %v6292 = vld [vmem:[%s1067] sm:$0xf]
      %v6293 = vld [vmem:[%s1067 + $0x8] sm:$0xf]
      %v6294 = vld [vmem:[%s1067 + $0x10] sm:$0xf]
      %v6295 = vld [vmem:[%s1067 + $0x18] sm:$0xf]
      %v6296 = vld [vmem:[%s1067 + $0x20] sm:$0xf]
      %v6297 = vld [vmem:[%s1067 + $0x28] sm:$0xf]
      %v6298 = vld [vmem:[%s1067 + $0x30] sm:$0xf]
      %v6299 = vld [vmem:[%s1067 + $0x38] sm:$0xf]
      %v6300 = vld [vmem:[%s1067 + $0x40] sm:$0xf]
      %v6301 = vld [vmem:[%s1067 + $0x48] sm:$0xf]
      %v6302 = vld [vmem:[%s1067 + $0x50] sm:$0xf]
      %v6303 = vld [vmem:[%s1067 + $0x58] sm:$0xf]
      %v6304 = vld [vmem:[%s1067 + $0x60] sm:$0xf]
      %v6305 = vld [vmem:[%s1067 + $0x68] sm:$0xf]
      %v6306 = vld [vmem:[%s1067 + $0x70] sm:$0xf]
      %v6307 = vld [vmem:[%s1067 + $0x78] sm:$0xf]
      %s6308 = scalar_lea.vmem %s1, 5376
      %v6309 = vld [vmem:[%s6308] sm:$0xff]
      %v6310 = vld [vmem:[%s6308 + $0x8] sm:$0xff]
      %v6311 = vld [vmem:[%s6308 + $0x10] sm:$0xff]
      %v6312 = vld [vmem:[%s6308 + $0x18] sm:$0xff]
      %v6313 = vld [vmem:[%s6308 + $0x20] sm:$0xff]
      %v6314 = vld [vmem:[%s6308 + $0x28] sm:$0xff]
      %v6315 = vld [vmem:[%s6308 + $0x30] sm:$0xff]
      %v6316 = vld [vmem:[%s6308 + $0x38] sm:$0xff]
      %v6317 = vld [vmem:[%s6308 + $0x40] sm:$0xff]
      %v6318 = vld [vmem:[%s6308 + $0x48] sm:$0xff]
      %v6319 = vld [vmem:[%s6308 + $0x50] sm:$0xff]
      %v6320 = vld [vmem:[%s6308 + $0x58] sm:$0xff]
      %v6321 = vld [vmem:[%s6308 + $0x60] sm:$0xff]
      %v6322 = vld [vmem:[%s6308 + $0x68] sm:$0xff]
      %v6323 = vld [vmem:[%s6308 + $0x70] sm:$0xff]
      %v6324 = vld [vmem:[%s6308 + $0x78] sm:$0xff]
      %6341 = vst [vmem:[#allocation1] ss:$2 sm:$0xff] %v6292
      %s6342 = scalar_lea.vmem [#allocation1], 1
      %6343 = vst [vmem:[%s6342] ss:$2 sm:$0xff] %v6293
      %s6344 = scalar_lea.vmem [#allocation1], 16
      %6345 = vst [vmem:[%s6344] ss:$2 sm:$0xff] %v6294
      %s6346 = scalar_lea.vmem [#allocation1], 17
      %6347 = vst [vmem:[%s6346] ss:$2 sm:$0xff] %v6295
      %s6348 = scalar_lea.vmem [#allocation1], 32
      %6349 = vst [vmem:[%s6348] ss:$2 sm:$0xff] %v6296
      %s6350 = scalar_lea.vmem [#allocation1], 33
      %6351 = vst [vmem:[%s6350] ss:$2 sm:$0xff] %v6297
      %s6352 = scalar_lea.vmem [#allocation1], 48
      %6353 = vst [vmem:[%s6352] ss:$2 sm:$0xff] %v6298
      %s6354 = scalar_lea.vmem [#allocation1], 49
      %6355 = vst [vmem:[%s6354] ss:$2 sm:$0xff] %v6299
      %v6356 = vld.sshfl [vmem:[#allocation1] sm:$0xff pattern:$0x75316420]
      %v6357 = vld.sshfl [vmem:[#allocation1 + $0x10] sm:$0xff pattern:$0x75316420]
      %v6358 = vld.sshfl [vmem:[#allocation1 + $0x20] sm:$0xff pattern:$0x75316420]
      %v6359 = vld.sshfl [vmem:[#allocation1 + $0x30] sm:$0xff pattern:$0x75316420]
      %6360 = vst [vmem:[#allocation1] ss:$2 sm:$0xff] %v6300
      %6361 = vst [vmem:[%s6342] ss:$2 sm:$0xff] %v6301
      %6362 = vst [vmem:[%s6344] ss:$2 sm:$0xff] %v6302
      %6363 = vst [vmem:[%s6346] ss:$2 sm:$0xff] %v6303
      %6364 = vst [vmem:[%s6348] ss:$2 sm:$0xff] %v6304
      %6365 = vst [vmem:[%s6350] ss:$2 sm:$0xff] %v6305
      %6366 = vst [vmem:[%s6352] ss:$2 sm:$0xff] %v6306
      %6367 = vst [vmem:[%s6354] ss:$2 sm:$0xff] %v6307
      %v6368 = vld.sshfl [vmem:[#allocation1] sm:$0xff pattern:$0x75316420]
      %v6369 = vld.sshfl [vmem:[#allocation1 + $0x10] sm:$0xff pattern:$0x75316420]
      %v6370 = vld.sshfl [vmem:[#allocation1 + $0x20] sm:$0xff pattern:$0x75316420]
      %v6371 = vld.sshfl [vmem:[#allocation1 + $0x30] sm:$0xff pattern:$0x75316420]
      %6380 = vmatpush.msra.mxu0 %v6324
      %6381 = vmatpush.msra.mxu0 %v6323
      %6382 = vmatpush.msra.mxu0 %v6322
      %6383 = vmatpush.msra.mxu0 %v6321
      %6384 = vmatpush.msra.mxu0 %v6320
      %6385 = vmatpush.msra.mxu0 %v6319
      %6386 = vmatpush.msra.mxu0 %v6318
      %6387 = vmatpush.msra.mxu0 %v6317
      %6388 = vmatpush.msra.mxu0 %v6316
      %6389 = vmatpush.msra.mxu0 %v6315
      %6390 = vmatpush.msra.mxu0 %v6314
      %6391 = vmatpush.msra.mxu0 %v6313
      %6392 = vmatpush.msra.mxu0 %v6312
      %6393 = vmatpush.msra.mxu0 %v6311
      %6394 = vmatpush.msra.mxu0 %v6310
      %6395 = vmatpush.msra.mxu0 %v6309
      %6396 = vmatmul.f32.gmra.mxu0 %v6356
      %v6397 = vpop.f32.mrf.mxu0
      %v6398 = vadd.f32 0.0, %v6397
      %6399 = vmatmul.f32.gmra.mxu0 %v6357
      %v6400 = vpop.f32.mrf.mxu0
      %v6401 = vadd.f32 0.0, %v6400
      %6402 = vmatmul.f32.gmra.mxu0 %v6358
      %v6403 = vpop.f32.mrf.mxu0
      %v6404 = vadd.f32 0.0, %v6403
      %6405 = vmatmul.f32.gmra.mxu0 %v6359
      %v6406 = vpop.f32.mrf.mxu0
      %v6407 = vadd.f32 0.0, %v6406
      %6408 = vmatmul.f32.gmra.mxu0 %v6368
      %v6409 = vpop.f32.mrf.mxu0
      %v6410 = vadd.f32 0.0, %v6409
      %6411 = vmatmul.f32.gmra.mxu0 %v6369
      %v6412 = vpop.f32.mrf.mxu0
      %v6413 = vadd.f32 0.0, %v6412
      %6414 = vmatmul.f32.gmra.mxu0 %v6370
      %v6415 = vpop.f32.mrf.mxu0
      %v6416 = vadd.f32 0.0, %v6415
      %6417 = vmatmul.f32.gmra.mxu0 %v6371
      %v6418 = vpop.f32.mrf.mxu0
      %v6419 = vadd.f32 0.0, %v6418
      %6420 = vdwg.mxu0
      %v6421 = vadd.f32 %v6284, %v6398
      %v6422 = vadd.f32 %v6285, %v6401
      %v6423 = vadd.f32 %v6286, %v6404
      %v6424 = vadd.f32 %v6287, %v6407
      %v6425 = vadd.f32 %v6288, %v6410
      %v6426 = vadd.f32 %v6289, %v6413
      %v6427 = vadd.f32 %v6290, %v6416
      %v6428 = vadd.f32 %v6291, %v6419
      %v6429 = vld [vmem:[%s1067 + $0x1] sm:$0xf]
      %v6430 = vld [vmem:[%s1067 + $0x9] sm:$0xf]
      %v6431 = vld [vmem:[%s1067 + $0x11] sm:$0xf]
      %v6432 = vld [vmem:[%s1067 + $0x19] sm:$0xf]
      %v6433 = vld [vmem:[%s1067 + $0x21] sm:$0xf]
      %v6434 = vld [vmem:[%s1067 + $0x29] sm:$0xf]
      %v6435 = vld [vmem:[%s1067 + $0x31] sm:$0xf]
      %v6436 = vld [vmem:[%s1067 + $0x39] sm:$0xf]
      %v6437 = vld [vmem:[%s1067 + $0x41] sm:$0xf]
      %v6438 = vld [vmem:[%s1067 + $0x49] sm:$0xf]
      %v6439 = vld [vmem:[%s1067 + $0x51] sm:$0xf]
      %v6440 = vld [vmem:[%s1067 + $0x59] sm:$0xf]
      %v6441 = vld [vmem:[%s1067 + $0x61] sm:$0xf]
      %v6442 = vld [vmem:[%s1067 + $0x69] sm:$0xf]
      %v6443 = vld [vmem:[%s1067 + $0x71] sm:$0xf]
      %v6444 = vld [vmem:[%s1067 + $0x79] sm:$0xf]
      %s6445 = scalar_lea.vmem %s1, 5504
      %v6446 = vld [vmem:[%s6445] sm:$0xff]
      %v6447 = vld [vmem:[%s6445 + $0x8] sm:$0xff]
      %v6448 = vld [vmem:[%s6445 + $0x10] sm:$0xff]
      %v6449 = vld [vmem:[%s6445 + $0x18] sm:$0xff]
      %v6450 = vld [vmem:[%s6445 + $0x20] sm:$0xff]
      %v6451 = vld [vmem:[%s6445 + $0x28] sm:$0xff]
      %v6452 = vld [vmem:[%s6445 + $0x30] sm:$0xff]
      %v6453 = vld [vmem:[%s6445 + $0x38] sm:$0xff]
      %v6454 = vld [vmem:[%s6445 + $0x40] sm:$0xff]
      %v6455 = vld [vmem:[%s6445 + $0x48] sm:$0xff]
      %v6456 = vld [vmem:[%s6445 + $0x50] sm:$0xff]
      %v6457 = vld [vmem:[%s6445 + $0x58] sm:$0xff]
      %v6458 = vld [vmem:[%s6445 + $0x60] sm:$0xff]
      %v6459 = vld [vmem:[%s6445 + $0x68] sm:$0xff]
      %v6460 = vld [vmem:[%s6445 + $0x70] sm:$0xff]
      %v6461 = vld [vmem:[%s6445 + $0x78] sm:$0xff]
      %6478 = vst [vmem:[#allocation1] ss:$2 sm:$0xff] %v6429
      %s6479 = scalar_lea.vmem [#allocation1], 1
      %6480 = vst [vmem:[%s6479] ss:$2 sm:$0xff] %v6430
      %s6481 = scalar_lea.vmem [#allocation1], 16
      %6482 = vst [vmem:[%s6481] ss:$2 sm:$0xff] %v6431
      %s6483 = scalar_lea.vmem [#allocation1], 17
      %6484 = vst [vmem:[%s6483] ss:$2 sm:$0xff] %v6432
      %s6485 = scalar_lea.vmem [#allocation1], 32
      %6486 = vst [vmem:[%s6485] ss:$2 sm:$0xff] %v6433
      %s6487 = scalar_lea.vmem [#allocation1], 33
      %6488 = vst [vmem:[%s6487] ss:$2 sm:$0xff] %v6434
      %s6489 = scalar_lea.vmem [#allocation1], 48
      %6490 = vst [vmem:[%s6489] ss:$2 sm:$0xff] %v6435
      %s6491 = scalar_lea.vmem [#allocation1], 49
      %6492 = vst [vmem:[%s6491] ss:$2 sm:$0xff] %v6436
      %v6493 = vld.sshfl [vmem:[#allocation1] sm:$0xff pattern:$0x75316420]
      %v6494 = vld.sshfl [vmem:[#allocation1 + $0x10] sm:$0xff pattern:$0x75316420]
      %v6495 = vld.sshfl [vmem:[#allocation1 + $0x20] sm:$0xff pattern:$0x75316420]
      %v6496 = vld.sshfl [vmem:[#allocation1 + $0x30] sm:$0xff pattern:$0x75316420]
      %6497 = vst [vmem:[#allocation1] ss:$2 sm:$0xff] %v6437
      %6498 = vst [vmem:[%s6479] ss:$2 sm:$0xff] %v6438
      %6499 = vst [vmem:[%s6481] ss:$2 sm:$0xff] %v6439
      %6500 = vst [vmem:[%s6483] ss:$2 sm:$0xff] %v6440
      %6501 = vst [vmem:[%s6485] ss:$2 sm:$0xff] %v6441
      %6502 = vst [vmem:[%s6487] ss:$2 sm:$0xff] %v6442
      %6503 = vst [vmem:[%s6489] ss:$2 sm:$0xff] %v6443
      %6504 = vst [vmem:[%s6491] ss:$2 sm:$0xff] %v6444
      %v6505 = vld.sshfl [vmem:[#allocation1] sm:$0xff pattern:$0x75316420]
      %v6506 = vld.sshfl [vmem:[#allocation1 + $0x10] sm:$0xff pattern:$0x75316420]
      %v6507 = vld.sshfl [vmem:[#allocation1 + $0x20] sm:$0xff pattern:$0x75316420]
      %v6508 = vld.sshfl [vmem:[#allocation1 + $0x30] sm:$0xff pattern:$0x75316420]
      %6517 = vmatpush.msra.mxu0 %v6461
      %6518 = vmatpush.msra.mxu0 %v6460
      %6519 = vmatpush.msra.mxu0 %v6459
      %6520 = vmatpush.msra.mxu0 %v6458
      %6521 = vmatpush.msra.mxu0 %v6457
      %6522 = vmatpush.msra.mxu0 %v6456
      %6523 = vmatpush.msra.mxu0 %v6455
      %6524 = vmatpush.msra.mxu0 %v6454
      %6525 = vmatpush.msra.mxu0 %v6453
      %6526 = vmatpush.msra.mxu0 %v6452
      %6527 = vmatpush.msra.mxu0 %v6451
      %6528 = vmatpush.msra.mxu0 %v6450
      %6529 = vmatpush.msra.mxu0 %v6449
      %6530 = vmatpush.msra.mxu0 %v6448
      %6531 = vmatpush.msra.mxu0 %v6447
      %6532 = vmatpush.msra.mxu0 %v6446
      %6533 = vmatmul.f32.gmra.mxu0 %v6493
      %v6534 = vpop.f32.mrf.mxu0
      %v6535 = vadd.f32 0.0, %v6534
      %6536 = vmatmul.f32.gmra.mxu0 %v6494
      %v6537 = vpop.f32.mrf.mxu0
      %v6538 = vadd.f32 0.0, %v6537
      %6539 = vmatmul.f32.gmra.mxu0 %v6495
      %v6540 = vpop.f32.mrf.mxu0
      %v6541 = vadd.f32 0.0, %v6540
      %6542 = vmatmul.f32.gmra.mxu0 %v6496
      %v6543 = vpop.f32.mrf.mxu0
      %v6544 = vadd.f32 0.0, %v6543
      %6545 = vmatmul.f32.gmra.mxu0 %v6505
      %v6546 = vpop.f32.mrf.mxu0
      %v6547 = vadd.f32 0.0, %v6546
      %6548 = vmatmul.f32.gmra.mxu0 %v6506
      %v6549 = vpop.f32.mrf.mxu0
      %v6550 = vadd.f32 0.0, %v6549
      %6551 = vmatmul.f32.gmra.mxu0 %v6507
      %v6552 = vpop.f32.mrf.mxu0
      %v6553 = vadd.f32 0.0, %v6552
      %6554 = vmatmul.f32.gmra.mxu0 %v6508
      %v6555 = vpop.f32.mrf.mxu0
      %v6556 = vadd.f32 0.0, %v6555
      %6557 = vdwg.mxu0
      %v6558 = vadd.f32 %v6421, %v6535
      %v6559 = vadd.f32 %v6422, %v6538
      %v6560 = vadd.f32 %v6423, %v6541
      %v6561 = vadd.f32 %v6424, %v6544
      %v6562 = vadd.f32 %v6425, %v6547
      %v6563 = vadd.f32 %v6426, %v6550
      %v6564 = vadd.f32 %v6427, %v6553
      %v6565 = vadd.f32 %v6428, %v6556
      %v6566 = vld [vmem:[%s1067 + $0x2] sm:$0xf]
      %v6567 = vld [vmem:[%s1067 + $0xa] sm:$0xf]
      %v6568 = vld [vmem:[%s1067 + $0x12] sm:$0xf]
      %v6569 = vld [vmem:[%s1067 + $0x1a] sm:$0xf]
      %v6570 = vld [vmem:[%s1067 + $0x22] sm:$0xf]
      %v6571 = vld [vmem:[%s1067 + $0x2a] sm:$0xf]
      %v6572 = vld [vmem:[%s1067 + $0x32] sm:$0xf]
      %v6573 = vld [vmem:[%s1067 + $0x3a] sm:$0xf]
      %v6574 = vld [vmem:[%s1067 + $0x42] sm:$0xf]
      %v6575 = vld [vmem:[%s1067 + $0x4a] sm:$0xf]
      %v6576 = vld [vmem:[%s1067 + $0x52] sm:$0xf]
      %v6577 = vld [vmem:[%s1067 + $0x5a] sm:$0xf]
      %v6578 = vld [vmem:[%s1067 + $0x62] sm:$0xf]
      %v6579 = vld [vmem:[%s1067 + $0x6a] sm:$0xf]
      %v6580 = vld [vmem:[%s1067 + $0x72] sm:$0xf]
      %v6581 = vld [vmem:[%s1067 + $0x7a] sm:$0xf]
      %s6582 = scalar_lea.vmem %s1, 5632
      %v6583 = vld [vmem:[%s6582] sm:$0xff]
      %v6584 = vld [vmem:[%s6582 + $0x8] sm:$0xff]
      %v6585 = vld [vmem:[%s6582 + $0x10] sm:$0xff]
      %v6586 = vld [vmem:[%s6582 + $0x18] sm:$0xff]
      %v6587 = vld [vmem:[%s6582 + $0x20] sm:$0xff]
      %v6588 = vld [vmem:[%s6582 + $0x28] sm:$0xff]
      %v6589 = vld [vmem:[%s6582 + $0x30] sm:$0xff]
      %v6590 = vld [vmem:[%s6582 + $0x38] sm:$0xff]
      %v6591 = vld [vmem:[%s6582 + $0x40] sm:$0xff]
      %v6592 = vld [vmem:[%s6582 + $0x48] sm:$0xff]
      %v6593 = vld [vmem:[%s6582 + $0x50] sm:$0xff]
      %v6594 = vld [vmem:[%s6582 + $0x58] sm:$0xff]
      %v6595 = vld [vmem:[%s6582 + $0x60] sm:$0xff]
      %v6596 = vld [vmem:[%s6582 + $0x68] sm:$0xff]
      %v6597 = vld [vmem:[%s6582 + $0x70] sm:$0xff]
      %v6598 = vld [vmem:[%s6582 + $0x78] sm:$0xff]
      %6615 = vst [vmem:[#allocation1] ss:$2 sm:$0xff] %v6566
      %s6616 = scalar_lea.vmem [#allocation1], 1
      %6617 = vst [vmem:[%s6616] ss:$2 sm:$0xff] %v6567
      %s6618 = scalar_lea.vmem [#allocation1], 16
      %6619 = vst [vmem:[%s6618] ss:$2 sm:$0xff] %v6568
      %s6620 = scalar_lea.vmem [#allocation1], 17
      %6621 = vst [vmem:[%s6620] ss:$2 sm:$0xff] %v6569
      %s6622 = scalar_lea.vmem [#allocation1], 32
      %6623 = vst [vmem:[%s6622] ss:$2 sm:$0xff] %v6570
      %s6624 = scalar_lea.vmem [#allocation1], 33
      %6625 = vst [vmem:[%s6624] ss:$2 sm:$0xff] %v6571
      %s6626 = scalar_lea.vmem [#allocation1], 48
      %6627 = vst [vmem:[%s6626] ss:$2 sm:$0xff] %v6572
      %s6628 = scalar_lea.vmem [#allocation1], 49
      %6629 = vst [vmem:[%s6628] ss:$2 sm:$0xff] %v6573
      %v6630 = vld.sshfl [vmem:[#allocation1] sm:$0xff pattern:$0x75316420]
      %v6631 = vld.sshfl [vmem:[#allocation1 + $0x10] sm:$0xff pattern:$0x75316420]
      %v6632 = vld.sshfl [vmem:[#allocation1 + $0x20] sm:$0xff pattern:$0x75316420]
      %v6633 = vld.sshfl [vmem:[#allocation1 + $0x30] sm:$0xff pattern:$0x75316420]
      %6634 = vst [vmem:[#allocation1] ss:$2 sm:$0xff] %v6574
      %6635 = vst [vmem:[%s6616] ss:$2 sm:$0xff] %v6575
      %6636 = vst [vmem:[%s6618] ss:$2 sm:$0xff] %v6576
      %6637 = vst [vmem:[%s6620] ss:$2 sm:$0xff] %v6577
      %6638 = vst [vmem:[%s6622] ss:$2 sm:$0xff] %v6578
      %6639 = vst [vmem:[%s6624] ss:$2 sm:$0xff] %v6579
      %6640 = vst [vmem:[%s6626] ss:$2 sm:$0xff] %v6580
      %6641 = vst [vmem:[%s6628] ss:$2 sm:$0xff] %v6581
      %v6642 = vld.sshfl [vmem:[#allocation1] sm:$0xff pattern:$0x75316420]
      %v6643 = vld.sshfl [vmem:[#allocation1 + $0x10] sm:$0xff pattern:$0x75316420]
      %v6644 = vld.sshfl [vmem:[#allocation1 + $0x20] sm:$0xff pattern:$0x75316420]
      %v6645 = vld.sshfl [vmem:[#allocation1 + $0x30] sm:$0xff pattern:$0x75316420]
      %6654 = vmatpush.msra.mxu0 %v6598
      %6655 = vmatpush.msra.mxu0 %v6597
      %6656 = vmatpush.msra.mxu0 %v6596
      %6657 = vmatpush.msra.mxu0 %v6595
      %6658 = vmatpush.msra.mxu0 %v6594
      %6659 = vmatpush.msra.mxu0 %v6593
      %6660 = vmatpush.msra.mxu0 %v6592
      %6661 = vmatpush.msra.mxu0 %v6591
      %6662 = vmatpush.msra.mxu0 %v6590
      %6663 = vmatpush.msra.mxu0 %v6589
      %6664 = vmatpush.msra.mxu0 %v6588
      %6665 = vmatpush.msra.mxu0 %v6587
      %6666 = vmatpush.msra.mxu0 %v6586
      %6667 = vmatpush.msra.mxu0 %v6585
      %6668 = vmatpush.msra.mxu0 %v6584
      %6669 = vmatpush.msra.mxu0 %v6583
      %6670 = vmatmul.f32.gmra.mxu0 %v6630
      %v6671 = vpop.f32.mrf.mxu0
      %v6672 = vadd.f32 0.0, %v6671
      %6673 = vmatmul.f32.gmra.mxu0 %v6631
      %v6674 = vpop.f32.mrf.mxu0
      %v6675 = vadd.f32 0.0, %v6674
      %6676 = vmatmul.f32.gmra.mxu0 %v6632
      %v6677 = vpop.f32.mrf.mxu0
      %v6678 = vadd.f32 0.0, %v6677
      %6679 = vmatmul.f32.gmra.mxu0 %v6633
      %v6680 = vpop.f32.mrf.mxu0
      %v6681 = vadd.f32 0.0, %v6680
      %6682 = vmatmul.f32.gmra.mxu0 %v6642
      %v6683 = vpop.f32.mrf.mxu0
      %v6684 = vadd.f32 0.0, %v6683
      %6685 = vmatmul.f32.gmra.mxu0 %v6643
      %v6686 = vpop.f32.mrf.mxu0
      %v6687 = vadd.f32 0.0, %v6686
      %6688 = vmatmul.f32.gmra.mxu0 %v6644
      %v6689 = vpop.f32.mrf.mxu0
      %v6690 = vadd.f32 0.0, %v6689
      %6691 = vmatmul.f32.gmra.mxu0 %v6645
      %v6692 = vpop.f32.mrf.mxu0
      %v6693 = vadd.f32 0.0, %v6692
      %6694 = vdwg.mxu0
      %v6695 = vadd.f32 %v6558, %v6672
      %v6696 = vadd.f32 %v6559, %v6675
      %v6697 = vadd.f32 %v6560, %v6678
      %v6698 = vadd.f32 %v6561, %v6681
      %v6699 = vadd.f32 %v6562, %v6684
      %v6700 = vadd.f32 %v6563, %v6687
      %v6701 = vadd.f32 %v6564, %v6690
      %v6702 = vadd.f32 %v6565, %v6693
      %s6703 = scalar_lea.vmem %s2, 4
      %v6704 = vld [vmem:[%s6703] sm:$0x1]
      %v6706 = vperm.slane %v6704, 0
      %v6708 = vmul.f32 %v6695, %v6706
      %v6709 = vmul.f32 %v6696, %v6706
      %v6710 = vmul.f32 %v6697, %v6706
      %v6711 = vmul.f32 %v6698, %v6706
      %v6712 = vmul.f32 %v6699, %v6706
      %v6713 = vmul.f32 %v6700, %v6706
      %v6714 = vmul.f32 %v6701, %v6706
      %v6715 = vmul.f32 %v6702, %v6706
      %s6716 = scalar_lea.vmem %s3, 4
      %v6717 = vld [vmem:[%s6716] sm:$0x1]
      %v6719 = vperm.slane %v6717, 0
      %v6721 = vadd.f32 %v6708, %v6719
      %v6722 = vadd.f32 %v6709, %v6719
      %v6723 = vadd.f32 %v6710, %v6719
      %v6724 = vadd.f32 %v6711, %v6719
      %v6725 = vadd.f32 %v6712, %v6719
      %v6726 = vadd.f32 %v6713, %v6719
      %v6727 = vadd.f32 %v6714, %v6719
      %v6728 = vadd.f32 %v6715, %v6719
      %v6729 = vadd.f32 %v6721, %v4126
      %v6730 = vadd.f32 %v6722, %v4127
      %v6731 = vadd.f32 %v6723, %v4128
      %v6732 = vadd.f32 %v6724, %v4129
      %v6733 = vadd.f32 %v6725, %v4130
      %v6734 = vadd.f32 %v6726, %v4131
      %v6735 = vadd.f32 %v6727, %v4132
      %v6736 = vadd.f32 %v6728, %v4133
      %v6745 = vrot.slane %v6729, 4
      %v6746 = vrot.slane %v6730, 4
      %v6747 = vrot.slane %v6731, 4
      %v6748 = vrot.slane %v6732, 4
      %v6749 = vrot.slane %v6733, 4
      %v6750 = vrot.slane %v6734, 4
      %v6751 = vrot.slane %v6735, 4
      %v6752 = vrot.slane %v6736, 4
      %6761 = vst [vmem:[%s655 + $0x1] sm:$0xf] %v6729
      %6762 = vst [vmem:[%s655 + $0x9] sm:$0xf] %v6745
      %6763 = vst [vmem:[%s655 + $0x11] sm:$0xf] %v6730
      %6764 = vst [vmem:[%s655 + $0x19] sm:$0xf] %v6746
      %6765 = vst [vmem:[%s655 + $0x21] sm:$0xf] %v6731
      %6766 = vst [vmem:[%s655 + $0x29] sm:$0xf] %v6747
      %6767 = vst [vmem:[%s655 + $0x31] sm:$0xf] %v6732
      %6768 = vst [vmem:[%s655 + $0x39] sm:$0xf] %v6748
      %6769 = vst [vmem:[%s655 + $0x41] sm:$0xf] %v6733
      %6770 = vst [vmem:[%s655 + $0x49] sm:$0xf] %v6749
      %6771 = vst [vmem:[%s655 + $0x51] sm:$0xf] %v6734
      %6772 = vst [vmem:[%s655 + $0x59] sm:$0xf] %v6750
      %6773 = vst [vmem:[%s655 + $0x61] sm:$0xf] %v6735
      %6774 = vst [vmem:[%s655 + $0x69] sm:$0xf] %v6751
      %6775 = vst [vmem:[%s655 + $0x71] sm:$0xf] %v6736
      %6776 = vst [vmem:[%s655 + $0x79] sm:$0xf] %v6752
      %v6777 = vld [vmem:[#allocation2] sm:$0xf]
      %v6778 = vld [vmem:[#allocation2 + $0x8] sm:$0xf]
      %v6779 = vld [vmem:[#allocation2 + $0x10] sm:$0xf]
      %v6780 = vld [vmem:[#allocation2 + $0x18] sm:$0xf]
      %v6781 = vld [vmem:[#allocation2 + $0x20] sm:$0xf]
      %v6782 = vld [vmem:[#allocation2 + $0x28] sm:$0xf]
      %v6783 = vld [vmem:[#allocation2 + $0x30] sm:$0xf]
      %v6784 = vld [vmem:[#allocation2 + $0x38] sm:$0xf]
      %v6785 = vld [vmem:[#allocation2 + $0x40] sm:$0xf]
      %v6786 = vld [vmem:[#allocation2 + $0x48] sm:$0xf]
      %v6787 = vld [vmem:[#allocation2 + $0x50] sm:$0xf]
      %v6788 = vld [vmem:[#allocation2 + $0x58] sm:$0xf]
      %v6789 = vld [vmem:[#allocation2 + $0x60] sm:$0xf]
      %v6790 = vld [vmem:[#allocation2 + $0x68] sm:$0xf]
      %v6791 = vld [vmem:[#allocation2 + $0x70] sm:$0xf]
      %v6792 = vld [vmem:[#allocation2 + $0x78] sm:$0xf]
      %s6793 = scalar_lea.vmem %s1, 5760
      %v6794 = vld [vmem:[%s6793] sm:$0xff]
      %v6795 = vld [vmem:[%s6793 + $0x8] sm:$0xff]
      %v6796 = vld [vmem:[%s6793 + $0x10] sm:$0xff]
      %v6797 = vld [vmem:[%s6793 + $0x18] sm:$0xff]
      %v6798 = vld [vmem:[%s6793 + $0x20] sm:$0xff]
      %v6799 = vld [vmem:[%s6793 + $0x28] sm:$0xff]
      %v6800 = vld [vmem:[%s6793 + $0x30] sm:$0xff]
      %v6801 = vld [vmem:[%s6793 + $0x38] sm:$0xff]
      %v6802 = vld [vmem:[%s6793 + $0x40] sm:$0xff]
      %v6803 = vld [vmem:[%s6793 + $0x48] sm:$0xff]
      %v6804 = vld [vmem:[%s6793 + $0x50] sm:$0xff]
      %v6805 = vld [vmem:[%s6793 + $0x58] sm:$0xff]
      %v6806 = vld [vmem:[%s6793 + $0x60] sm:$0xff]
      %v6807 = vld [vmem:[%s6793 + $0x68] sm:$0xff]
      %v6808 = vld [vmem:[%s6793 + $0x70] sm:$0xff]
      %v6809 = vld [vmem:[%s6793 + $0x78] sm:$0xff]
      %v6810 = vld [vmem:[#allocation2 + $0x1] sm:$0xf]
      %v6811 = vld [vmem:[#allocation2 + $0x9] sm:$0xf]
      %v6812 = vld [vmem:[#allocation2 + $0x11] sm:$0xf]
      %v6813 = vld [vmem:[#allocation2 + $0x19] sm:$0xf]
      %v6814 = vld [vmem:[#allocation2 + $0x21] sm:$0xf]
      %v6815 = vld [vmem:[#allocation2 + $0x29] sm:$0xf]
      %v6816 = vld [vmem:[#allocation2 + $0x31] sm:$0xf]
      %v6817 = vld [vmem:[#allocation2 + $0x39] sm:$0xf]
      %v6818 = vld [vmem:[#allocation2 + $0x41] sm:$0xf]
      %v6819 = vld [vmem:[#allocation2 + $0x49] sm:$0xf]
      %v6820 = vld [vmem:[#allocation2 + $0x51] sm:$0xf]
      %v6821 = vld [vmem:[#allocation2 + $0x59] sm:$0xf]
      %v6822 = vld [vmem:[#allocation2 + $0x61] sm:$0xf]
      %v6823 = vld [vmem:[#allocation2 + $0x69] sm:$0xf]
      %v6824 = vld [vmem:[#allocation2 + $0x71] sm:$0xf]
      %v6825 = vld [vmem:[#allocation2 + $0x79] sm:$0xf]
      %s6826 = scalar_lea.vmem %s1, 5888
      %v6827 = vld [vmem:[%s6826] sm:$0xff]
      %v6828 = vld [vmem:[%s6826 + $0x8] sm:$0xff]
      %v6829 = vld [vmem:[%s6826 + $0x10] sm:$0xff]
      %v6830 = vld [vmem:[%s6826 + $0x18] sm:$0xff]
      %v6831 = vld [vmem:[%s6826 + $0x20] sm:$0xff]
      %v6832 = vld [vmem:[%s6826 + $0x28] sm:$0xff]
      %v6833 = vld [vmem:[%s6826 + $0x30] sm:$0xff]
      %v6834 = vld [vmem:[%s6826 + $0x38] sm:$0xff]
      %v6835 = vld [vmem:[%s6826 + $0x40] sm:$0xff]
      %v6836 = vld [vmem:[%s6826 + $0x48] sm:$0xff]
      %v6837 = vld [vmem:[%s6826 + $0x50] sm:$0xff]
      %v6838 = vld [vmem:[%s6826 + $0x58] sm:$0xff]
      %v6839 = vld [vmem:[%s6826 + $0x60] sm:$0xff]
      %v6840 = vld [vmem:[%s6826 + $0x68] sm:$0xff]
      %v6841 = vld [vmem:[%s6826 + $0x70] sm:$0xff]
      %v6842 = vld [vmem:[%s6826 + $0x78] sm:$0xff]
      %6859 = vst [vmem:[#allocation1] ss:$2 sm:$0xff] %v6810
      %s6860 = scalar_lea.vmem [#allocation1], 1
      %6861 = vst [vmem:[%s6860] ss:$2 sm:$0xff] %v6811
      %s6862 = scalar_lea.vmem [#allocation1], 16
      %6863 = vst [vmem:[%s6862] ss:$2 sm:$0xff] %v6812
      %s6864 = scalar_lea.vmem [#allocation1], 17
      %6865 = vst [vmem:[%s6864] ss:$2 sm:$0xff] %v6813
      %s6866 = scalar_lea.vmem [#allocation1], 32
      %6867 = vst [vmem:[%s6866] ss:$2 sm:$0xff] %v6814
      %s6868 = scalar_lea.vmem [#allocation1], 33
      %6869 = vst [vmem:[%s6868] ss:$2 sm:$0xff] %v6815
      %s6870 = scalar_lea.vmem [#allocation1], 48
      %6871 = vst [vmem:[%s6870] ss:$2 sm:$0xff] %v6816
      %s6872 = scalar_lea.vmem [#allocation1], 49
      %6873 = vst [vmem:[%s6872] ss:$2 sm:$0xff] %v6817
      %v6874 = vld.sshfl [vmem:[#allocation1] sm:$0xff pattern:$0x75316420]
      %v6875 = vld.sshfl [vmem:[#allocation1 + $0x10] sm:$0xff pattern:$0x75316420]
      %v6876 = vld.sshfl [vmem:[#allocation1 + $0x20] sm:$0xff pattern:$0x75316420]
      %v6877 = vld.sshfl [vmem:[#allocation1 + $0x30] sm:$0xff pattern:$0x75316420]
      %6878 = vst [vmem:[#allocation1] ss:$2 sm:$0xff] %v6818
      %6879 = vst [vmem:[%s6860] ss:$2 sm:$0xff] %v6819
      %6880 = vst [vmem:[%s6862] ss:$2 sm:$0xff] %v6820
      %6881 = vst [vmem:[%s6864] ss:$2 sm:$0xff] %v6821
      %6882 = vst [vmem:[%s6866] ss:$2 sm:$0xff] %v6822
      %6883 = vst [vmem:[%s6868] ss:$2 sm:$0xff] %v6823
      %6884 = vst [vmem:[%s6870] ss:$2 sm:$0xff] %v6824
      %6885 = vst [vmem:[%s6872] ss:$2 sm:$0xff] %v6825
      %v6886 = vld.sshfl [vmem:[#allocation1] sm:$0xff pattern:$0x75316420]
      %v6887 = vld.sshfl [vmem:[#allocation1 + $0x10] sm:$0xff pattern:$0x75316420]
      %v6888 = vld.sshfl [vmem:[#allocation1 + $0x20] sm:$0xff pattern:$0x75316420]
      %v6889 = vld.sshfl [vmem:[#allocation1 + $0x30] sm:$0xff pattern:$0x75316420]
      %6898 = vmatpush.msra.mxu0 %v6842
      %6899 = vmatpush.msra.mxu0 %v6841
      %6900 = vmatpush.msra.mxu0 %v6840
      %6901 = vmatpush.msra.mxu0 %v6839
      %6902 = vmatpush.msra.mxu0 %v6838
      %6903 = vmatpush.msra.mxu0 %v6837
      %6904 = vmatpush.msra.mxu0 %v6836
      %6905 = vmatpush.msra.mxu0 %v6835
      %6906 = vmatpush.msra.mxu0 %v6834
      %6907 = vmatpush.msra.mxu0 %v6833
      %6908 = vmatpush.msra.mxu0 %v6832
      %6909 = vmatpush.msra.mxu0 %v6831
      %6910 = vmatpush.msra.mxu0 %v6830
      %6911 = vmatpush.msra.mxu0 %v6829
      %6912 = vmatpush.msra.mxu0 %v6828
      %6913 = vmatpush.msra.mxu0 %v6827
      %6914 = vmatmul.f32.gmra.mxu0 %v6874
      %v6915 = vpop.f32.mrf.mxu0
      %v6916 = vadd.f32 0.0, %v6915
      %6917 = vmatmul.f32.gmra.mxu0 %v6875
      %v6918 = vpop.f32.mrf.mxu0
      %v6919 = vadd.f32 0.0, %v6918
      %6920 = vmatmul.f32.gmra.mxu0 %v6876
      %v6921 = vpop.f32.mrf.mxu0
      %v6922 = vadd.f32 0.0, %v6921
      %6923 = vmatmul.f32.gmra.mxu0 %v6877
      %v6924 = vpop.f32.mrf.mxu0
      %v6925 = vadd.f32 0.0, %v6924
      %6926 = vmatmul.f32.gmra.mxu0 %v6886
      %v6927 = vpop.f32.mrf.mxu0
      %v6928 = vadd.f32 0.0, %v6927
      %6929 = vmatmul.f32.gmra.mxu0 %v6887
      %v6930 = vpop.f32.mrf.mxu0
      %v6931 = vadd.f32 0.0, %v6930
      %6932 = vmatmul.f32.gmra.mxu0 %v6888
      %v6933 = vpop.f32.mrf.mxu0
      %v6934 = vadd.f32 0.0, %v6933
      %6935 = vmatmul.f32.gmra.mxu0 %v6889
      %v6936 = vpop.f32.mrf.mxu0
      %v6937 = vadd.f32 0.0, %v6936
      %6938 = vdwg.mxu0
      %6955 = vst [vmem:[#allocation1] ss:$2 sm:$0xff] %v6777
      %s6956 = scalar_lea.vmem [#allocation1], 1
      %6957 = vst [vmem:[%s6956] ss:$2 sm:$0xff] %v6778
      %s6958 = scalar_lea.vmem [#allocation1], 16
      %6959 = vst [vmem:[%s6958] ss:$2 sm:$0xff] %v6779
      %s6960 = scalar_lea.vmem [#allocation1], 17
      %6961 = vst [vmem:[%s6960] ss:$2 sm:$0xff] %v6780
      %s6962 = scalar_lea.vmem [#allocation1], 32
      %6963 = vst [vmem:[%s6962] ss:$2 sm:$0xff] %v6781
      %s6964 = scalar_lea.vmem [#allocation1], 33
      %6965 = vst [vmem:[%s6964] ss:$2 sm:$0xff] %v6782
      %s6966 = scalar_lea.vmem [#allocation1], 48
      %6967 = vst [vmem:[%s6966] ss:$2 sm:$0xff] %v6783
      %s6968 = scalar_lea.vmem [#allocation1], 49
      %6969 = vst [vmem:[%s6968] ss:$2 sm:$0xff] %v6784
      %v6970 = vld.sshfl [vmem:[#allocation1] sm:$0xff pattern:$0x75316420]
      %v6971 = vld.sshfl [vmem:[#allocation1 + $0x10] sm:$0xff pattern:$0x75316420]
      %v6972 = vld.sshfl [vmem:[#allocation1 + $0x20] sm:$0xff pattern:$0x75316420]
      %v6973 = vld.sshfl [vmem:[#allocation1 + $0x30] sm:$0xff pattern:$0x75316420]
      %6974 = vst [vmem:[#allocation1] ss:$2 sm:$0xff] %v6785
      %6975 = vst [vmem:[%s6956] ss:$2 sm:$0xff] %v6786
      %6976 = vst [vmem:[%s6958] ss:$2 sm:$0xff] %v6787
      %6977 = vst [vmem:[%s6960] ss:$2 sm:$0xff] %v6788
      %6978 = vst [vmem:[%s6962] ss:$2 sm:$0xff] %v6789
      %6979 = vst [vmem:[%s6964] ss:$2 sm:$0xff] %v6790
      %6980 = vst [vmem:[%s6966] ss:$2 sm:$0xff] %v6791
      %6981 = vst [vmem:[%s6968] ss:$2 sm:$0xff] %v6792
      %v6982 = vld.sshfl [vmem:[#allocation1] sm:$0xff pattern:$0x75316420]
      %v6983 = vld.sshfl [vmem:[#allocation1 + $0x10] sm:$0xff pattern:$0x75316420]
      %v6984 = vld.sshfl [vmem:[#allocation1 + $0x20] sm:$0xff pattern:$0x75316420]
      %v6985 = vld.sshfl [vmem:[#allocation1 + $0x30] sm:$0xff pattern:$0x75316420]
      %6994 = vmatpush.msra.mxu0 %v6809
      %6995 = vmatpush.msra.mxu0 %v6808
      %6996 = vmatpush.msra.mxu0 %v6807
      %6997 = vmatpush.msra.mxu0 %v6806
      %6998 = vmatpush.msra.mxu0 %v6805
      %6999 = vmatpush.msra.mxu0 %v6804
      %7000 = vmatpush.msra.mxu0 %v6803
      %7001 = vmatpush.msra.mxu0 %v6802
      %7002 = vmatpush.msra.mxu0 %v6801
      %7003 = vmatpush.msra.mxu0 %v6800
      %7004 = vmatpush.msra.mxu0 %v6799
      %7005 = vmatpush.msra.mxu0 %v6798
      %7006 = vmatpush.msra.mxu0 %v6797
      %7007 = vmatpush.msra.mxu0 %v6796
      %7008 = vmatpush.msra.mxu0 %v6795
      %7009 = vmatpush.msra.mxu0 %v6794
      %7010 = vmatmul.f32.gmra.mxu0 %v6970
      %v7011 = vpop.f32.mrf.mxu0
      %v7012 = vadd.f32 %v6916, %v7011
      %7013 = vmatmul.f32.gmra.mxu0 %v6971
      %v7014 = vpop.f32.mrf.mxu0
      %v7015 = vadd.f32 %v6919, %v7014
      %7016 = vmatmul.f32.gmra.mxu0 %v6972
      %v7017 = vpop.f32.mrf.mxu0
      %v7018 = vadd.f32 %v6922, %v7017
      %7019 = vmatmul.f32.gmra.mxu0 %v6973
      %v7020 = vpop.f32.mrf.mxu0
      %v7021 = vadd.f32 %v6925, %v7020
      %7022 = vmatmul.f32.gmra.mxu0 %v6982
      %v7023 = vpop.f32.mrf.mxu0
      %v7024 = vadd.f32 %v6928, %v7023
      %7025 = vmatmul.f32.gmra.mxu0 %v6983
      %v7026 = vpop.f32.mrf.mxu0
      %v7027 = vadd.f32 %v6931, %v7026
      %7028 = vmatmul.f32.gmra.mxu0 %v6984
      %v7029 = vpop.f32.mrf.mxu0
      %v7030 = vadd.f32 %v6934, %v7029
      %7031 = vmatmul.f32.gmra.mxu0 %v6985
      %v7032 = vpop.f32.mrf.mxu0
      %v7033 = vadd.f32 %v6937, %v7032
      %7034 = vdwg.mxu0
      %v7035 = vld [vmem:[#allocation2 + $0x2] sm:$0xf]
      %v7036 = vld [vmem:[#allocation2 + $0xa] sm:$0xf]
      %v7037 = vld [vmem:[#allocation2 + $0x12] sm:$0xf]
      %v7038 = vld [vmem:[#allocation2 + $0x1a] sm:$0xf]
      %v7039 = vld [vmem:[#allocation2 + $0x22] sm:$0xf]
      %v7040 = vld [vmem:[#allocation2 + $0x2a] sm:$0xf]
      %v7041 = vld [vmem:[#allocation2 + $0x32] sm:$0xf]
      %v7042 = vld [vmem:[#allocation2 + $0x3a] sm:$0xf]
      %v7043 = vld [vmem:[#allocation2 + $0x42] sm:$0xf]
      %v7044 = vld [vmem:[#allocation2 + $0x4a] sm:$0xf]
      %v7045 = vld [vmem:[#allocation2 + $0x52] sm:$0xf]
      %v7046 = vld [vmem:[#allocation2 + $0x5a] sm:$0xf]
      %v7047 = vld [vmem:[#allocation2 + $0x62] sm:$0xf]
      %v7048 = vld [vmem:[#allocation2 + $0x6a] sm:$0xf]
      %v7049 = vld [vmem:[#allocation2 + $0x72] sm:$0xf]
      %v7050 = vld [vmem:[#allocation2 + $0x7a] sm:$0xf]
      %s7051 = scalar_lea.vmem %s1, 6016
      %v7052 = vld [vmem:[%s7051] sm:$0xff]
      %v7053 = vld [vmem:[%s7051 + $0x8] sm:$0xff]
      %v7054 = vld [vmem:[%s7051 + $0x10] sm:$0xff]
      %v7055 = vld [vmem:[%s7051 + $0x18] sm:$0xff]
      %v7056 = vld [vmem:[%s7051 + $0x20] sm:$0xff]
      %v7057 = vld [vmem:[%s7051 + $0x28] sm:$0xff]
      %v7058 = vld [vmem:[%s7051 + $0x30] sm:$0xff]
      %v7059 = vld [vmem:[%s7051 + $0x38] sm:$0xff]
      %v7060 = vld [vmem:[%s7051 + $0x40] sm:$0xff]
      %v7061 = vld [vmem:[%s7051 + $0x48] sm:$0xff]
      %v7062 = vld [vmem:[%s7051 + $0x50] sm:$0xff]
      %v7063 = vld [vmem:[%s7051 + $0x58] sm:$0xff]
      %v7064 = vld [vmem:[%s7051 + $0x60] sm:$0xff]
      %v7065 = vld [vmem:[%s7051 + $0x68] sm:$0xff]
      %v7066 = vld [vmem:[%s7051 + $0x70] sm:$0xff]
      %v7067 = vld [vmem:[%s7051 + $0x78] sm:$0xff]
      %7084 = vst [vmem:[#allocation1] ss:$2 sm:$0xff] %v7035
      %s7085 = scalar_lea.vmem [#allocation1], 1
      %7086 = vst [vmem:[%s7085] ss:$2 sm:$0xff] %v7036
      %s7087 = scalar_lea.vmem [#allocation1], 16
      %7088 = vst [vmem:[%s7087] ss:$2 sm:$0xff] %v7037
      %s7089 = scalar_lea.vmem [#allocation1], 17
      %7090 = vst [vmem:[%s7089] ss:$2 sm:$0xff] %v7038
      %s7091 = scalar_lea.vmem [#allocation1], 32
      %7092 = vst [vmem:[%s7091] ss:$2 sm:$0xff] %v7039
      %s7093 = scalar_lea.vmem [#allocation1], 33
      %7094 = vst [vmem:[%s7093] ss:$2 sm:$0xff] %v7040
      %s7095 = scalar_lea.vmem [#allocation1], 48
      %7096 = vst [vmem:[%s7095] ss:$2 sm:$0xff] %v7041
      %s7097 = scalar_lea.vmem [#allocation1], 49
      %7098 = vst [vmem:[%s7097] ss:$2 sm:$0xff] %v7042
      %v7099 = vld.sshfl [vmem:[#allocation1] sm:$0xff pattern:$0x75316420]
      %v7100 = vld.sshfl [vmem:[#allocation1 + $0x10] sm:$0xff pattern:$0x75316420]
      %v7101 = vld.sshfl [vmem:[#allocation1 + $0x20] sm:$0xff pattern:$0x75316420]
      %v7102 = vld.sshfl [vmem:[#allocation1 + $0x30] sm:$0xff pattern:$0x75316420]
      %7103 = vst [vmem:[#allocation1] ss:$2 sm:$0xff] %v7043
      %7104 = vst [vmem:[%s7085] ss:$2 sm:$0xff] %v7044
      %7105 = vst [vmem:[%s7087] ss:$2 sm:$0xff] %v7045
      %7106 = vst [vmem:[%s7089] ss:$2 sm:$0xff] %v7046
      %7107 = vst [vmem:[%s7091] ss:$2 sm:$0xff] %v7047
      %7108 = vst [vmem:[%s7093] ss:$2 sm:$0xff] %v7048
      %7109 = vst [vmem:[%s7095] ss:$2 sm:$0xff] %v7049
      %7110 = vst [vmem:[%s7097] ss:$2 sm:$0xff] %v7050
      %v7111 = vld.sshfl [vmem:[#allocation1] sm:$0xff pattern:$0x75316420]
      %v7112 = vld.sshfl [vmem:[#allocation1 + $0x10] sm:$0xff pattern:$0x75316420]
      %v7113 = vld.sshfl [vmem:[#allocation1 + $0x20] sm:$0xff pattern:$0x75316420]
      %v7114 = vld.sshfl [vmem:[#allocation1 + $0x30] sm:$0xff pattern:$0x75316420]
      %7123 = vmatpush.msra.mxu0 %v7067
      %7124 = vmatpush.msra.mxu0 %v7066
      %7125 = vmatpush.msra.mxu0 %v7065
      %7126 = vmatpush.msra.mxu0 %v7064
      %7127 = vmatpush.msra.mxu0 %v7063
      %7128 = vmatpush.msra.mxu0 %v7062
      %7129 = vmatpush.msra.mxu0 %v7061
      %7130 = vmatpush.msra.mxu0 %v7060
      %7131 = vmatpush.msra.mxu0 %v7059
      %7132 = vmatpush.msra.mxu0 %v7058
      %7133 = vmatpush.msra.mxu0 %v7057
      %7134 = vmatpush.msra.mxu0 %v7056
      %7135 = vmatpush.msra.mxu0 %v7055
      %7136 = vmatpush.msra.mxu0 %v7054
      %7137 = vmatpush.msra.mxu0 %v7053
      %7138 = vmatpush.msra.mxu0 %v7052
      %7139 = vmatmul.f32.gmra.mxu0 %v7099
      %v7140 = vpop.f32.mrf.mxu0
      %v7141 = vadd.f32 0.0, %v7140
      %7142 = vmatmul.f32.gmra.mxu0 %v7100
      %v7143 = vpop.f32.mrf.mxu0
      %v7144 = vadd.f32 0.0, %v7143
      %7145 = vmatmul.f32.gmra.mxu0 %v7101
      %v7146 = vpop.f32.mrf.mxu0
      %v7147 = vadd.f32 0.0, %v7146
      %7148 = vmatmul.f32.gmra.mxu0 %v7102
      %v7149 = vpop.f32.mrf.mxu0
      %v7150 = vadd.f32 0.0, %v7149
      %7151 = vmatmul.f32.gmra.mxu0 %v7111
      %v7152 = vpop.f32.mrf.mxu0
      %v7153 = vadd.f32 0.0, %v7152
      %7154 = vmatmul.f32.gmra.mxu0 %v7112
      %v7155 = vpop.f32.mrf.mxu0
      %v7156 = vadd.f32 0.0, %v7155
      %7157 = vmatmul.f32.gmra.mxu0 %v7113
      %v7158 = vpop.f32.mrf.mxu0
      %v7159 = vadd.f32 0.0, %v7158
      %7160 = vmatmul.f32.gmra.mxu0 %v7114
      %v7161 = vpop.f32.mrf.mxu0
      %v7162 = vadd.f32 0.0, %v7161
      %7163 = vdwg.mxu0
      %v7164 = vadd.f32 %v7012, %v7141
      %v7165 = vadd.f32 %v7015, %v7144
      %v7166 = vadd.f32 %v7018, %v7147
      %v7167 = vadd.f32 %v7021, %v7150
      %v7168 = vadd.f32 %v7024, %v7153
      %v7169 = vadd.f32 %v7027, %v7156
      %v7170 = vadd.f32 %v7030, %v7159
      %v7171 = vadd.f32 %v7033, %v7162
      %v7172 = vld [vmem:[%s655] sm:$0xf]
      %v7173 = vld [vmem:[%s655 + $0x8] sm:$0xf]
      %v7174 = vld [vmem:[%s655 + $0x10] sm:$0xf]
      %v7175 = vld [vmem:[%s655 + $0x18] sm:$0xf]
      %v7176 = vld [vmem:[%s655 + $0x20] sm:$0xf]
      %v7177 = vld [vmem:[%s655 + $0x28] sm:$0xf]
      %v7178 = vld [vmem:[%s655 + $0x30] sm:$0xf]
      %v7179 = vld [vmem:[%s655 + $0x38] sm:$0xf]
      %v7180 = vld [vmem:[%s655 + $0x40] sm:$0xf]
      %v7181 = vld [vmem:[%s655 + $0x48] sm:$0xf]
      %v7182 = vld [vmem:[%s655 + $0x50] sm:$0xf]
      %v7183 = vld [vmem:[%s655 + $0x58] sm:$0xf]
      %v7184 = vld [vmem:[%s655 + $0x60] sm:$0xf]
      %v7185 = vld [vmem:[%s655 + $0x68] sm:$0xf]
      %v7186 = vld [vmem:[%s655 + $0x70] sm:$0xf]
      %v7187 = vld [vmem:[%s655 + $0x78] sm:$0xf]
      %s7188 = scalar_lea.vmem %s1, 6144
      %v7189 = vld [vmem:[%s7188] sm:$0xff]
      %v7190 = vld [vmem:[%s7188 + $0x8] sm:$0xff]
      %v7191 = vld [vmem:[%s7188 + $0x10] sm:$0xff]
      %v7192 = vld [vmem:[%s7188 + $0x18] sm:$0xff]
      %v7193 = vld [vmem:[%s7188 + $0x20] sm:$0xff]
      %v7194 = vld [vmem:[%s7188 + $0x28] sm:$0xff]
      %v7195 = vld [vmem:[%s7188 + $0x30] sm:$0xff]
      %v7196 = vld [vmem:[%s7188 + $0x38] sm:$0xff]
      %v7197 = vld [vmem:[%s7188 + $0x40] sm:$0xff]
      %v7198 = vld [vmem:[%s7188 + $0x48] sm:$0xff]
      %v7199 = vld [vmem:[%s7188 + $0x50] sm:$0xff]
      %v7200 = vld [vmem:[%s7188 + $0x58] sm:$0xff]
      %v7201 = vld [vmem:[%s7188 + $0x60] sm:$0xff]
      %v7202 = vld [vmem:[%s7188 + $0x68] sm:$0xff]
      %v7203 = vld [vmem:[%s7188 + $0x70] sm:$0xff]
      %v7204 = vld [vmem:[%s7188 + $0x78] sm:$0xff]
      %7221 = vst [vmem:[#allocation1] ss:$2 sm:$0xff] %v7172
      %s7222 = scalar_lea.vmem [#allocation1], 1
      %7223 = vst [vmem:[%s7222] ss:$2 sm:$0xff] %v7173
      %s7224 = scalar_lea.vmem [#allocation1], 16
      %7225 = vst [vmem:[%s7224] ss:$2 sm:$0xff] %v7174
      %s7226 = scalar_lea.vmem [#allocation1], 17
      %7227 = vst [vmem:[%s7226] ss:$2 sm:$0xff] %v7175
      %s7228 = scalar_lea.vmem [#allocation1], 32
      %7229 = vst [vmem:[%s7228] ss:$2 sm:$0xff] %v7176
      %s7230 = scalar_lea.vmem [#allocation1], 33
      %7231 = vst [vmem:[%s7230] ss:$2 sm:$0xff] %v7177
      %s7232 = scalar_lea.vmem [#allocation1], 48
      %7233 = vst [vmem:[%s7232] ss:$2 sm:$0xff] %v7178
      %s7234 = scalar_lea.vmem [#allocation1], 49
      %7235 = vst [vmem:[%s7234] ss:$2 sm:$0xff] %v7179
      %v7236 = vld.sshfl [vmem:[#allocation1] sm:$0xff pattern:$0x75316420]
      %v7237 = vld.sshfl [vmem:[#allocation1 + $0x10] sm:$0xff pattern:$0x75316420]
      %v7238 = vld.sshfl [vmem:[#allocation1 + $0x20] sm:$0xff pattern:$0x75316420]
      %v7239 = vld.sshfl [vmem:[#allocation1 + $0x30] sm:$0xff pattern:$0x75316420]
      %7240 = vst [vmem:[#allocation1] ss:$2 sm:$0xff] %v7180
      %7241 = vst [vmem:[%s7222] ss:$2 sm:$0xff] %v7181
      %7242 = vst [vmem:[%s7224] ss:$2 sm:$0xff] %v7182
      %7243 = vst [vmem:[%s7226] ss:$2 sm:$0xff] %v7183
      %7244 = vst [vmem:[%s7228] ss:$2 sm:$0xff] %v7184
      %7245 = vst [vmem:[%s7230] ss:$2 sm:$0xff] %v7185
      %7246 = vst [vmem:[%s7232] ss:$2 sm:$0xff] %v7186
      %7247 = vst [vmem:[%s7234] ss:$2 sm:$0xff] %v7187
      %v7248 = vld.sshfl [vmem:[#allocation1] sm:$0xff pattern:$0x75316420]
      %v7249 = vld.sshfl [vmem:[#allocation1 + $0x10] sm:$0xff pattern:$0x75316420]
      %v7250 = vld.sshfl [vmem:[#allocation1 + $0x20] sm:$0xff pattern:$0x75316420]
      %v7251 = vld.sshfl [vmem:[#allocation1 + $0x30] sm:$0xff pattern:$0x75316420]
      %7260 = vmatpush.msra.mxu0 %v7204
      %7261 = vmatpush.msra.mxu0 %v7203
      %7262 = vmatpush.msra.mxu0 %v7202
      %7263 = vmatpush.msra.mxu0 %v7201
      %7264 = vmatpush.msra.mxu0 %v7200
      %7265 = vmatpush.msra.mxu0 %v7199
      %7266 = vmatpush.msra.mxu0 %v7198
      %7267 = vmatpush.msra.mxu0 %v7197
      %7268 = vmatpush.msra.mxu0 %v7196
      %7269 = vmatpush.msra.mxu0 %v7195
      %7270 = vmatpush.msra.mxu0 %v7194
      %7271 = vmatpush.msra.mxu0 %v7193
      %7272 = vmatpush.msra.mxu0 %v7192
      %7273 = vmatpush.msra.mxu0 %v7191
      %7274 = vmatpush.msra.mxu0 %v7190
      %7275 = vmatpush.msra.mxu0 %v7189
      %7276 = vmatmul.f32.gmra.mxu0 %v7236
      %v7277 = vpop.f32.mrf.mxu0
      %v7278 = vadd.f32 0.0, %v7277
      %7279 = vmatmul.f32.gmra.mxu0 %v7237
      %v7280 = vpop.f32.mrf.mxu0
      %v7281 = vadd.f32 0.0, %v7280
      %7282 = vmatmul.f32.gmra.mxu0 %v7238
      %v7283 = vpop.f32.mrf.mxu0
      %v7284 = vadd.f32 0.0, %v7283
      %7285 = vmatmul.f32.gmra.mxu0 %v7239
      %v7286 = vpop.f32.mrf.mxu0
      %v7287 = vadd.f32 0.0, %v7286
      %7288 = vmatmul.f32.gmra.mxu0 %v7248
      %v7289 = vpop.f32.mrf.mxu0
      %v7290 = vadd.f32 0.0, %v7289
      %7291 = vmatmul.f32.gmra.mxu0 %v7249
      %v7292 = vpop.f32.mrf.mxu0
      %v7293 = vadd.f32 0.0, %v7292
      %7294 = vmatmul.f32.gmra.mxu0 %v7250
      %v7295 = vpop.f32.mrf.mxu0
      %v7296 = vadd.f32 0.0, %v7295
      %7297 = vmatmul.f32.gmra.mxu0 %v7251
      %v7298 = vpop.f32.mrf.mxu0
      %v7299 = vadd.f32 0.0, %v7298
      %7300 = vdwg.mxu0
      %v7301 = vadd.f32 %v7164, %v7278
      %v7302 = vadd.f32 %v7165, %v7281
      %v7303 = vadd.f32 %v7166, %v7284
      %v7304 = vadd.f32 %v7167, %v7287
      %v7305 = vadd.f32 %v7168, %v7290
      %v7306 = vadd.f32 %v7169, %v7293
      %v7307 = vadd.f32 %v7170, %v7296
      %v7308 = vadd.f32 %v7171, %v7299
      %v7309 = vld [vmem:[%s655 + $0x1] sm:$0xf]
      %v7310 = vld [vmem:[%s655 + $0x9] sm:$0xf]
      %v7311 = vld [vmem:[%s655 + $0x11] sm:$0xf]
      %v7312 = vld [vmem:[%s655 + $0x19] sm:$0xf]
      %v7313 = vld [vmem:[%s655 + $0x21] sm:$0xf]
      %v7314 = vld [vmem:[%s655 + $0x29] sm:$0xf]
      %v7315 = vld [vmem:[%s655 + $0x31] sm:$0xf]
      %v7316 = vld [vmem:[%s655 + $0x39] sm:$0xf]
      %v7317 = vld [vmem:[%s655 + $0x41] sm:$0xf]
      %v7318 = vld [vmem:[%s655 + $0x49] sm:$0xf]
      %v7319 = vld [vmem:[%s655 + $0x51] sm:$0xf]
      %v7320 = vld [vmem:[%s655 + $0x59] sm:$0xf]
      %v7321 = vld [vmem:[%s655 + $0x61] sm:$0xf]
      %v7322 = vld [vmem:[%s655 + $0x69] sm:$0xf]
      %v7323 = vld [vmem:[%s655 + $0x71] sm:$0xf]
      %v7324 = vld [vmem:[%s655 + $0x79] sm:$0xf]
      %s7325 = scalar_lea.vmem %s1, 6272
      %v7326 = vld [vmem:[%s7325] sm:$0xff]
      %v7327 = vld [vmem:[%s7325 + $0x8] sm:$0xff]
      %v7328 = vld [vmem:[%s7325 + $0x10] sm:$0xff]
      %v7329 = vld [vmem:[%s7325 + $0x18] sm:$0xff]
      %v7330 = vld [vmem:[%s7325 + $0x20] sm:$0xff]
      %v7331 = vld [vmem:[%s7325 + $0x28] sm:$0xff]
      %v7332 = vld [vmem:[%s7325 + $0x30] sm:$0xff]
      %v7333 = vld [vmem:[%s7325 + $0x38] sm:$0xff]
      %v7334 = vld [vmem:[%s7325 + $0x40] sm:$0xff]
      %v7335 = vld [vmem:[%s7325 + $0x48] sm:$0xff]
      %v7336 = vld [vmem:[%s7325 + $0x50] sm:$0xff]
      %v7337 = vld [vmem:[%s7325 + $0x58] sm:$0xff]
      %v7338 = vld [vmem:[%s7325 + $0x60] sm:$0xff]
      %v7339 = vld [vmem:[%s7325 + $0x68] sm:$0xff]
      %v7340 = vld [vmem:[%s7325 + $0x70] sm:$0xff]
      %v7341 = vld [vmem:[%s7325 + $0x78] sm:$0xff]
      %7358 = vst [vmem:[#allocation1] ss:$2 sm:$0xff] %v7309
      %s7359 = scalar_lea.vmem [#allocation1], 1
      %7360 = vst [vmem:[%s7359] ss:$2 sm:$0xff] %v7310
      %s7361 = scalar_lea.vmem [#allocation1], 16
      %7362 = vst [vmem:[%s7361] ss:$2 sm:$0xff] %v7311
      %s7363 = scalar_lea.vmem [#allocation1], 17
      %7364 = vst [vmem:[%s7363] ss:$2 sm:$0xff] %v7312
      %s7365 = scalar_lea.vmem [#allocation1], 32
      %7366 = vst [vmem:[%s7365] ss:$2 sm:$0xff] %v7313
      %s7367 = scalar_lea.vmem [#allocation1], 33
      %7368 = vst [vmem:[%s7367] ss:$2 sm:$0xff] %v7314
      %s7369 = scalar_lea.vmem [#allocation1], 48
      %7370 = vst [vmem:[%s7369] ss:$2 sm:$0xff] %v7315
      %s7371 = scalar_lea.vmem [#allocation1], 49
      %7372 = vst [vmem:[%s7371] ss:$2 sm:$0xff] %v7316
      %v7373 = vld.sshfl [vmem:[#allocation1] sm:$0xff pattern:$0x75316420]
      %v7374 = vld.sshfl [vmem:[#allocation1 + $0x10] sm:$0xff pattern:$0x75316420]
      %v7375 = vld.sshfl [vmem:[#allocation1 + $0x20] sm:$0xff pattern:$0x75316420]
      %v7376 = vld.sshfl [vmem:[#allocation1 + $0x30] sm:$0xff pattern:$0x75316420]
      %7377 = vst [vmem:[#allocation1] ss:$2 sm:$0xff] %v7317
      %7378 = vst [vmem:[%s7359] ss:$2 sm:$0xff] %v7318
      %7379 = vst [vmem:[%s7361] ss:$2 sm:$0xff] %v7319
      %7380 = vst [vmem:[%s7363] ss:$2 sm:$0xff] %v7320
      %7381 = vst [vmem:[%s7365] ss:$2 sm:$0xff] %v7321
      %7382 = vst [vmem:[%s7367] ss:$2 sm:$0xff] %v7322
      %7383 = vst [vmem:[%s7369] ss:$2 sm:$0xff] %v7323
      %7384 = vst [vmem:[%s7371] ss:$2 sm:$0xff] %v7324
      %v7385 = vld.sshfl [vmem:[#allocation1] sm:$0xff pattern:$0x75316420]
      %v7386 = vld.sshfl [vmem:[#allocation1 + $0x10] sm:$0xff pattern:$0x75316420]
      %v7387 = vld.sshfl [vmem:[#allocation1 + $0x20] sm:$0xff pattern:$0x75316420]
      %v7388 = vld.sshfl [vmem:[#allocation1 + $0x30] sm:$0xff pattern:$0x75316420]
      %7397 = vmatpush.msra.mxu0 %v7341
      %7398 = vmatpush.msra.mxu0 %v7340
      %7399 = vmatpush.msra.mxu0 %v7339
      %7400 = vmatpush.msra.mxu0 %v7338
      %7401 = vmatpush.msra.mxu0 %v7337
      %7402 = vmatpush.msra.mxu0 %v7336
      %7403 = vmatpush.msra.mxu0 %v7335
      %7404 = vmatpush.msra.mxu0 %v7334
      %7405 = vmatpush.msra.mxu0 %v7333
      %7406 = vmatpush.msra.mxu0 %v7332
      %7407 = vmatpush.msra.mxu0 %v7331
      %7408 = vmatpush.msra.mxu0 %v7330
      %7409 = vmatpush.msra.mxu0 %v7329
      %7410 = vmatpush.msra.mxu0 %v7328
      %7411 = vmatpush.msra.mxu0 %v7327
      %7412 = vmatpush.msra.mxu0 %v7326
      %7413 = vmatmul.f32.gmra.mxu0 %v7373
      %v7414 = vpop.f32.mrf.mxu0
      %v7415 = vadd.f32 0.0, %v7414
      %7416 = vmatmul.f32.gmra.mxu0 %v7374
      %v7417 = vpop.f32.mrf.mxu0
      %v7418 = vadd.f32 0.0, %v7417
      %7419 = vmatmul.f32.gmra.mxu0 %v7375
      %v7420 = vpop.f32.mrf.mxu0
      %v7421 = vadd.f32 0.0, %v7420
      %7422 = vmatmul.f32.gmra.mxu0 %v7376
      %v7423 = vpop.f32.mrf.mxu0
      %v7424 = vadd.f32 0.0, %v7423
      %7425 = vmatmul.f32.gmra.mxu0 %v7385
      %v7426 = vpop.f32.mrf.mxu0
      %v7427 = vadd.f32 0.0, %v7426
      %7428 = vmatmul.f32.gmra.mxu0 %v7386
      %v7429 = vpop.f32.mrf.mxu0
      %v7430 = vadd.f32 0.0, %v7429
      %7431 = vmatmul.f32.gmra.mxu0 %v7387
      %v7432 = vpop.f32.mrf.mxu0
      %v7433 = vadd.f32 0.0, %v7432
      %7434 = vmatmul.f32.gmra.mxu0 %v7388
      %v7435 = vpop.f32.mrf.mxu0
      %v7436 = vadd.f32 0.0, %v7435
      %7437 = vdwg.mxu0
      %v7438 = vadd.f32 %v7301, %v7415
      %v7439 = vadd.f32 %v7302, %v7418
      %v7440 = vadd.f32 %v7303, %v7421
      %v7441 = vadd.f32 %v7304, %v7424
      %v7442 = vadd.f32 %v7305, %v7427
      %v7443 = vadd.f32 %v7306, %v7430
      %v7444 = vadd.f32 %v7307, %v7433
      %v7445 = vadd.f32 %v7308, %v7436
      %v7446 = vld [vmem:[%s655 + $0x2] sm:$0xf]
      %v7447 = vld [vmem:[%s655 + $0xa] sm:$0xf]
      %v7448 = vld [vmem:[%s655 + $0x12] sm:$0xf]
      %v7449 = vld [vmem:[%s655 + $0x1a] sm:$0xf]
      %v7450 = vld [vmem:[%s655 + $0x22] sm:$0xf]
      %v7451 = vld [vmem:[%s655 + $0x2a] sm:$0xf]
      %v7452 = vld [vmem:[%s655 + $0x32] sm:$0xf]
      %v7453 = vld [vmem:[%s655 + $0x3a] sm:$0xf]
      %v7454 = vld [vmem:[%s655 + $0x42] sm:$0xf]
      %v7455 = vld [vmem:[%s655 + $0x4a] sm:$0xf]
      %v7456 = vld [vmem:[%s655 + $0x52] sm:$0xf]
      %v7457 = vld [vmem:[%s655 + $0x5a] sm:$0xf]
      %v7458 = vld [vmem:[%s655 + $0x62] sm:$0xf]
      %v7459 = vld [vmem:[%s655 + $0x6a] sm:$0xf]
      %v7460 = vld [vmem:[%s655 + $0x72] sm:$0xf]
      %v7461 = vld [vmem:[%s655 + $0x7a] sm:$0xf]
      %s7462 = scalar_lea.vmem %s1, 6400
      %v7463 = vld [vmem:[%s7462] sm:$0xff]
      %v7464 = vld [vmem:[%s7462 + $0x8] sm:$0xff]
      %v7465 = vld [vmem:[%s7462 + $0x10] sm:$0xff]
      %v7466 = vld [vmem:[%s7462 + $0x18] sm:$0xff]
      %v7467 = vld [vmem:[%s7462 + $0x20] sm:$0xff]
      %v7468 = vld [vmem:[%s7462 + $0x28] sm:$0xff]
      %v7469 = vld [vmem:[%s7462 + $0x30] sm:$0xff]
      %v7470 = vld [vmem:[%s7462 + $0x38] sm:$0xff]
      %v7471 = vld [vmem:[%s7462 + $0x40] sm:$0xff]
      %v7472 = vld [vmem:[%s7462 + $0x48] sm:$0xff]
      %v7473 = vld [vmem:[%s7462 + $0x50] sm:$0xff]
      %v7474 = vld [vmem:[%s7462 + $0x58] sm:$0xff]
      %v7475 = vld [vmem:[%s7462 + $0x60] sm:$0xff]
      %v7476 = vld [vmem:[%s7462 + $0x68] sm:$0xff]
      %v7477 = vld [vmem:[%s7462 + $0x70] sm:$0xff]
      %v7478 = vld [vmem:[%s7462 + $0x78] sm:$0xff]
      %7495 = vst [vmem:[#allocation1] ss:$2 sm:$0xff] %v7446
      %s7496 = scalar_lea.vmem [#allocation1], 1
      %7497 = vst [vmem:[%s7496] ss:$2 sm:$0xff] %v7447
      %s7498 = scalar_lea.vmem [#allocation1], 16
      %7499 = vst [vmem:[%s7498] ss:$2 sm:$0xff] %v7448
      %s7500 = scalar_lea.vmem [#allocation1], 17
      %7501 = vst [vmem:[%s7500] ss:$2 sm:$0xff] %v7449
      %s7502 = scalar_lea.vmem [#allocation1], 32
      %7503 = vst [vmem:[%s7502] ss:$2 sm:$0xff] %v7450
      %s7504 = scalar_lea.vmem [#allocation1], 33
      %7505 = vst [vmem:[%s7504] ss:$2 sm:$0xff] %v7451
      %s7506 = scalar_lea.vmem [#allocation1], 48
      %7507 = vst [vmem:[%s7506] ss:$2 sm:$0xff] %v7452
      %s7508 = scalar_lea.vmem [#allocation1], 49
      %7509 = vst [vmem:[%s7508] ss:$2 sm:$0xff] %v7453
      %v7510 = vld.sshfl [vmem:[#allocation1] sm:$0xff pattern:$0x75316420]
      %v7511 = vld.sshfl [vmem:[#allocation1 + $0x10] sm:$0xff pattern:$0x75316420]
      %v7512 = vld.sshfl [vmem:[#allocation1 + $0x20] sm:$0xff pattern:$0x75316420]
      %v7513 = vld.sshfl [vmem:[#allocation1 + $0x30] sm:$0xff pattern:$0x75316420]
      %7514 = vst [vmem:[#allocation1] ss:$2 sm:$0xff] %v7454
      %7515 = vst [vmem:[%s7496] ss:$2 sm:$0xff] %v7455
      %7516 = vst [vmem:[%s7498] ss:$2 sm:$0xff] %v7456
      %7517 = vst [vmem:[%s7500] ss:$2 sm:$0xff] %v7457
      %7518 = vst [vmem:[%s7502] ss:$2 sm:$0xff] %v7458
      %7519 = vst [vmem:[%s7504] ss:$2 sm:$0xff] %v7459
      %7520 = vst [vmem:[%s7506] ss:$2 sm:$0xff] %v7460
      %7521 = vst [vmem:[%s7508] ss:$2 sm:$0xff] %v7461
      %v7522 = vld.sshfl [vmem:[#allocation1] sm:$0xff pattern:$0x75316420]
      %v7523 = vld.sshfl [vmem:[#allocation1 + $0x10] sm:$0xff pattern:$0x75316420]
      %v7524 = vld.sshfl [vmem:[#allocation1 + $0x20] sm:$0xff pattern:$0x75316420]
      %v7525 = vld.sshfl [vmem:[#allocation1 + $0x30] sm:$0xff pattern:$0x75316420]
      %7534 = vmatpush.msra.mxu0 %v7478
      %7535 = vmatpush.msra.mxu0 %v7477
      %7536 = vmatpush.msra.mxu0 %v7476
      %7537 = vmatpush.msra.mxu0 %v7475
      %7538 = vmatpush.msra.mxu0 %v7474
      %7539 = vmatpush.msra.mxu0 %v7473
      %7540 = vmatpush.msra.mxu0 %v7472
      %7541 = vmatpush.msra.mxu0 %v7471
      %7542 = vmatpush.msra.mxu0 %v7470
      %7543 = vmatpush.msra.mxu0 %v7469
      %7544 = vmatpush.msra.mxu0 %v7468
      %7545 = vmatpush.msra.mxu0 %v7467
      %7546 = vmatpush.msra.mxu0 %v7466
      %7547 = vmatpush.msra.mxu0 %v7465
      %7548 = vmatpush.msra.mxu0 %v7464
      %7549 = vmatpush.msra.mxu0 %v7463
      %7550 = vmatmul.f32.gmra.mxu0 %v7510
      %v7551 = vpop.f32.mrf.mxu0
      %v7552 = vadd.f32 0.0, %v7551
      %7553 = vmatmul.f32.gmra.mxu0 %v7511
      %v7554 = vpop.f32.mrf.mxu0
      %v7555 = vadd.f32 0.0, %v7554
      %7556 = vmatmul.f32.gmra.mxu0 %v7512
      %v7557 = vpop.f32.mrf.mxu0
      %v7558 = vadd.f32 0.0, %v7557
      %7559 = vmatmul.f32.gmra.mxu0 %v7513
      %v7560 = vpop.f32.mrf.mxu0
      %v7561 = vadd.f32 0.0, %v7560
      %7562 = vmatmul.f32.gmra.mxu0 %v7522
      %v7563 = vpop.f32.mrf.mxu0
      %v7564 = vadd.f32 0.0, %v7563
      %7565 = vmatmul.f32.gmra.mxu0 %v7523
      %v7566 = vpop.f32.mrf.mxu0
      %v7567 = vadd.f32 0.0, %v7566
      %7568 = vmatmul.f32.gmra.mxu0 %v7524
      %v7569 = vpop.f32.mrf.mxu0
      %v7570 = vadd.f32 0.0, %v7569
      %7571 = vmatmul.f32.gmra.mxu0 %v7525
      %v7572 = vpop.f32.mrf.mxu0
      %v7573 = vadd.f32 0.0, %v7572
      %7574 = vdwg.mxu0
      %v7575 = vadd.f32 %v7438, %v7552
      %v7576 = vadd.f32 %v7439, %v7555
      %v7577 = vadd.f32 %v7440, %v7558
      %v7578 = vadd.f32 %v7441, %v7561
      %v7579 = vadd.f32 %v7442, %v7564
      %v7580 = vadd.f32 %v7443, %v7567
      %v7581 = vadd.f32 %v7444, %v7570
      %v7582 = vadd.f32 %v7445, %v7573
      %v7583 = vld [vmem:[%s1067] sm:$0xf]
      %v7584 = vld [vmem:[%s1067 + $0x8] sm:$0xf]
      %v7585 = vld [vmem:[%s1067 + $0x10] sm:$0xf]
      %v7586 = vld [vmem:[%s1067 + $0x18] sm:$0xf]
      %v7587 = vld [vmem:[%s1067 + $0x20] sm:$0xf]
      %v7588 = vld [vmem:[%s1067 + $0x28] sm:$0xf]
      %v7589 = vld [vmem:[%s1067 + $0x30] sm:$0xf]
      %v7590 = vld [vmem:[%s1067 + $0x38] sm:$0xf]
      %v7591 = vld [vmem:[%s1067 + $0x40] sm:$0xf]
      %v7592 = vld [vmem:[%s1067 + $0x48] sm:$0xf]
      %v7593 = vld [vmem:[%s1067 + $0x50] sm:$0xf]
      %v7594 = vld [vmem:[%s1067 + $0x58] sm:$0xf]
      %v7595 = vld [vmem:[%s1067 + $0x60] sm:$0xf]
      %v7596 = vld [vmem:[%s1067 + $0x68] sm:$0xf]
      %v7597 = vld [vmem:[%s1067 + $0x70] sm:$0xf]
      %v7598 = vld [vmem:[%s1067 + $0x78] sm:$0xf]
      %s7599 = scalar_lea.vmem %s1, 6528
      %v7600 = vld [vmem:[%s7599] sm:$0xff]
      %v7601 = vld [vmem:[%s7599 + $0x8] sm:$0xff]
      %v7602 = vld [vmem:[%s7599 + $0x10] sm:$0xff]
      %v7603 = vld [vmem:[%s7599 + $0x18] sm:$0xff]
      %v7604 = vld [vmem:[%s7599 + $0x20] sm:$0xff]
      %v7605 = vld [vmem:[%s7599 + $0x28] sm:$0xff]
      %v7606 = vld [vmem:[%s7599 + $0x30] sm:$0xff]
      %v7607 = vld [vmem:[%s7599 + $0x38] sm:$0xff]
      %v7608 = vld [vmem:[%s7599 + $0x40] sm:$0xff]
      %v7609 = vld [vmem:[%s7599 + $0x48] sm:$0xff]
      %v7610 = vld [vmem:[%s7599 + $0x50] sm:$0xff]
      %v7611 = vld [vmem:[%s7599 + $0x58] sm:$0xff]
      %v7612 = vld [vmem:[%s7599 + $0x60] sm:$0xff]
      %v7613 = vld [vmem:[%s7599 + $0x68] sm:$0xff]
      %v7614 = vld [vmem:[%s7599 + $0x70] sm:$0xff]
      %v7615 = vld [vmem:[%s7599 + $0x78] sm:$0xff]
      %7632 = vst [vmem:[#allocation1] ss:$2 sm:$0xff] %v7583
      %s7633 = scalar_lea.vmem [#allocation1], 1
      %7634 = vst [vmem:[%s7633] ss:$2 sm:$0xff] %v7584
      %s7635 = scalar_lea.vmem [#allocation1], 16
      %7636 = vst [vmem:[%s7635] ss:$2 sm:$0xff] %v7585
      %s7637 = scalar_lea.vmem [#allocation1], 17
      %7638 = vst [vmem:[%s7637] ss:$2 sm:$0xff] %v7586
      %s7639 = scalar_lea.vmem [#allocation1], 32
      %7640 = vst [vmem:[%s7639] ss:$2 sm:$0xff] %v7587
      %s7641 = scalar_lea.vmem [#allocation1], 33
      %7642 = vst [vmem:[%s7641] ss:$2 sm:$0xff] %v7588
      %s7643 = scalar_lea.vmem [#allocation1], 48
      %7644 = vst [vmem:[%s7643] ss:$2 sm:$0xff] %v7589
      %s7645 = scalar_lea.vmem [#allocation1], 49
      %7646 = vst [vmem:[%s7645] ss:$2 sm:$0xff] %v7590
      %v7647 = vld.sshfl [vmem:[#allocation1] sm:$0xff pattern:$0x75316420]
      %v7648 = vld.sshfl [vmem:[#allocation1 + $0x10] sm:$0xff pattern:$0x75316420]
      %v7649 = vld.sshfl [vmem:[#allocation1 + $0x20] sm:$0xff pattern:$0x75316420]
      %v7650 = vld.sshfl [vmem:[#allocation1 + $0x30] sm:$0xff pattern:$0x75316420]
      %7651 = vst [vmem:[#allocation1] ss:$2 sm:$0xff] %v7591
      %7652 = vst [vmem:[%s7633] ss:$2 sm:$0xff] %v7592
      %7653 = vst [vmem:[%s7635] ss:$2 sm:$0xff] %v7593
      %7654 = vst [vmem:[%s7637] ss:$2 sm:$0xff] %v7594
      %7655 = vst [vmem:[%s7639] ss:$2 sm:$0xff] %v7595
      %7656 = vst [vmem:[%s7641] ss:$2 sm:$0xff] %v7596
      %7657 = vst [vmem:[%s7643] ss:$2 sm:$0xff] %v7597
      %7658 = vst [vmem:[%s7645] ss:$2 sm:$0xff] %v7598
      %v7659 = vld.sshfl [vmem:[#allocation1] sm:$0xff pattern:$0x75316420]
      %v7660 = vld.sshfl [vmem:[#allocation1 + $0x10] sm:$0xff pattern:$0x75316420]
      %v7661 = vld.sshfl [vmem:[#allocation1 + $0x20] sm:$0xff pattern:$0x75316420]
      %v7662 = vld.sshfl [vmem:[#allocation1 + $0x30] sm:$0xff pattern:$0x75316420]
      %7671 = vmatpush.msra.mxu0 %v7615
      %7672 = vmatpush.msra.mxu0 %v7614
      %7673 = vmatpush.msra.mxu0 %v7613
      %7674 = vmatpush.msra.mxu0 %v7612
      %7675 = vmatpush.msra.mxu0 %v7611
      %7676 = vmatpush.msra.mxu0 %v7610
      %7677 = vmatpush.msra.mxu0 %v7609
      %7678 = vmatpush.msra.mxu0 %v7608
      %7679 = vmatpush.msra.mxu0 %v7607
      %7680 = vmatpush.msra.mxu0 %v7606
      %7681 = vmatpush.msra.mxu0 %v7605
      %7682 = vmatpush.msra.mxu0 %v7604
      %7683 = vmatpush.msra.mxu0 %v7603
      %7684 = vmatpush.msra.mxu0 %v7602
      %7685 = vmatpush.msra.mxu0 %v7601
      %7686 = vmatpush.msra.mxu0 %v7600
      %7687 = vmatmul.f32.gmra.mxu0 %v7647
      %v7688 = vpop.f32.mrf.mxu0
      %v7689 = vadd.f32 0.0, %v7688
      %7690 = vmatmul.f32.gmra.mxu0 %v7648
      %v7691 = vpop.f32.mrf.mxu0
      %v7692 = vadd.f32 0.0, %v7691
      %7693 = vmatmul.f32.gmra.mxu0 %v7649
      %v7694 = vpop.f32.mrf.mxu0
      %v7695 = vadd.f32 0.0, %v7694
      %7696 = vmatmul.f32.gmra.mxu0 %v7650
      %v7697 = vpop.f32.mrf.mxu0
      %v7698 = vadd.f32 0.0, %v7697
      %7699 = vmatmul.f32.gmra.mxu0 %v7659
      %v7700 = vpop.f32.mrf.mxu0
      %v7701 = vadd.f32 0.0, %v7700
      %7702 = vmatmul.f32.gmra.mxu0 %v7660
      %v7703 = vpop.f32.mrf.mxu0
      %v7704 = vadd.f32 0.0, %v7703
      %7705 = vmatmul.f32.gmra.mxu0 %v7661
      %v7706 = vpop.f32.mrf.mxu0
      %v7707 = vadd.f32 0.0, %v7706
      %7708 = vmatmul.f32.gmra.mxu0 %v7662
      %v7709 = vpop.f32.mrf.mxu0
      %v7710 = vadd.f32 0.0, %v7709
      %7711 = vdwg.mxu0
      %v7712 = vadd.f32 %v7575, %v7689
      %v7713 = vadd.f32 %v7576, %v7692
      %v7714 = vadd.f32 %v7577, %v7695
      %v7715 = vadd.f32 %v7578, %v7698
      %v7716 = vadd.f32 %v7579, %v7701
      %v7717 = vadd.f32 %v7580, %v7704
      %v7718 = vadd.f32 %v7581, %v7707
      %v7719 = vadd.f32 %v7582, %v7710
      %v7720 = vld [vmem:[%s1067 + $0x1] sm:$0xf]
      %v7721 = vld [vmem:[%s1067 + $0x9] sm:$0xf]
      %v7722 = vld [vmem:[%s1067 + $0x11] sm:$0xf]
      %v7723 = vld [vmem:[%s1067 + $0x19] sm:$0xf]
      %v7724 = vld [vmem:[%s1067 + $0x21] sm:$0xf]
      %v7725 = vld [vmem:[%s1067 + $0x29] sm:$0xf]
      %v7726 = vld [vmem:[%s1067 + $0x31] sm:$0xf]
      %v7727 = vld [vmem:[%s1067 + $0x39] sm:$0xf]
      %v7728 = vld [vmem:[%s1067 + $0x41] sm:$0xf]
      %v7729 = vld [vmem:[%s1067 + $0x49] sm:$0xf]
      %v7730 = vld [vmem:[%s1067 + $0x51] sm:$0xf]
      %v7731 = vld [vmem:[%s1067 + $0x59] sm:$0xf]
      %v7732 = vld [vmem:[%s1067 + $0x61] sm:$0xf]
      %v7733 = vld [vmem:[%s1067 + $0x69] sm:$0xf]
      %v7734 = vld [vmem:[%s1067 + $0x71] sm:$0xf]
      %v7735 = vld [vmem:[%s1067 + $0x79] sm:$0xf]
      %s7736 = scalar_lea.vmem %s1, 6656
      %v7737 = vld [vmem:[%s7736] sm:$0xff]
      %v7738 = vld [vmem:[%s7736 + $0x8] sm:$0xff]
      %v7739 = vld [vmem:[%s7736 + $0x10] sm:$0xff]
      %v7740 = vld [vmem:[%s7736 + $0x18] sm:$0xff]
      %v7741 = vld [vmem:[%s7736 + $0x20] sm:$0xff]
      %v7742 = vld [vmem:[%s7736 + $0x28] sm:$0xff]
      %v7743 = vld [vmem:[%s7736 + $0x30] sm:$0xff]
      %v7744 = vld [vmem:[%s7736 + $0x38] sm:$0xff]
      %v7745 = vld [vmem:[%s7736 + $0x40] sm:$0xff]
      %v7746 = vld [vmem:[%s7736 + $0x48] sm:$0xff]
      %v7747 = vld [vmem:[%s7736 + $0x50] sm:$0xff]
      %v7748 = vld [vmem:[%s7736 + $0x58] sm:$0xff]
      %v7749 = vld [vmem:[%s7736 + $0x60] sm:$0xff]
      %v7750 = vld [vmem:[%s7736 + $0x68] sm:$0xff]
      %v7751 = vld [vmem:[%s7736 + $0x70] sm:$0xff]
      %v7752 = vld [vmem:[%s7736 + $0x78] sm:$0xff]
      %7769 = vst [vmem:[#allocation1] ss:$2 sm:$0xff] %v7720
      %s7770 = scalar_lea.vmem [#allocation1], 1
      %7771 = vst [vmem:[%s7770] ss:$2 sm:$0xff] %v7721
      %s7772 = scalar_lea.vmem [#allocation1], 16
      %7773 = vst [vmem:[%s7772] ss:$2 sm:$0xff] %v7722
      %s7774 = scalar_lea.vmem [#allocation1], 17
      %7775 = vst [vmem:[%s7774] ss:$2 sm:$0xff] %v7723
      %s7776 = scalar_lea.vmem [#allocation1], 32
      %7777 = vst [vmem:[%s7776] ss:$2 sm:$0xff] %v7724
      %s7778 = scalar_lea.vmem [#allocation1], 33
      %7779 = vst [vmem:[%s7778] ss:$2 sm:$0xff] %v7725
      %s7780 = scalar_lea.vmem [#allocation1], 48
      %7781 = vst [vmem:[%s7780] ss:$2 sm:$0xff] %v7726
      %s7782 = scalar_lea.vmem [#allocation1], 49
      %7783 = vst [vmem:[%s7782] ss:$2 sm:$0xff] %v7727
      %v7784 = vld.sshfl [vmem:[#allocation1] sm:$0xff pattern:$0x75316420]
      %v7785 = vld.sshfl [vmem:[#allocation1 + $0x10] sm:$0xff pattern:$0x75316420]
      %v7786 = vld.sshfl [vmem:[#allocation1 + $0x20] sm:$0xff pattern:$0x75316420]
      %v7787 = vld.sshfl [vmem:[#allocation1 + $0x30] sm:$0xff pattern:$0x75316420]
      %7788 = vst [vmem:[#allocation1] ss:$2 sm:$0xff] %v7728
      %7789 = vst [vmem:[%s7770] ss:$2 sm:$0xff] %v7729
      %7790 = vst [vmem:[%s7772] ss:$2 sm:$0xff] %v7730
      %7791 = vst [vmem:[%s7774] ss:$2 sm:$0xff] %v7731
      %7792 = vst [vmem:[%s7776] ss:$2 sm:$0xff] %v7732
      %7793 = vst [vmem:[%s7778] ss:$2 sm:$0xff] %v7733
      %7794 = vst [vmem:[%s7780] ss:$2 sm:$0xff] %v7734
      %7795 = vst [vmem:[%s7782] ss:$2 sm:$0xff] %v7735
      %v7796 = vld.sshfl [vmem:[#allocation1] sm:$0xff pattern:$0x75316420]
      %v7797 = vld.sshfl [vmem:[#allocation1 + $0x10] sm:$0xff pattern:$0x75316420]
      %v7798 = vld.sshfl [vmem:[#allocation1 + $0x20] sm:$0xff pattern:$0x75316420]
      %v7799 = vld.sshfl [vmem:[#allocation1 + $0x30] sm:$0xff pattern:$0x75316420]
      %7808 = vmatpush.msra.mxu0 %v7752
      %7809 = vmatpush.msra.mxu0 %v7751
      %7810 = vmatpush.msra.mxu0 %v7750
      %7811 = vmatpush.msra.mxu0 %v7749
      %7812 = vmatpush.msra.mxu0 %v7748
      %7813 = vmatpush.msra.mxu0 %v7747
      %7814 = vmatpush.msra.mxu0 %v7746
      %7815 = vmatpush.msra.mxu0 %v7745
      %7816 = vmatpush.msra.mxu0 %v7744
      %7817 = vmatpush.msra.mxu0 %v7743
      %7818 = vmatpush.msra.mxu0 %v7742
      %7819 = vmatpush.msra.mxu0 %v7741
      %7820 = vmatpush.msra.mxu0 %v7740
      %7821 = vmatpush.msra.mxu0 %v7739
      %7822 = vmatpush.msra.mxu0 %v7738
      %7823 = vmatpush.msra.mxu0 %v7737
      %7824 = vmatmul.f32.gmra.mxu0 %v7784
      %v7825 = vpop.f32.mrf.mxu0
      %v7826 = vadd.f32 0.0, %v7825
      %7827 = vmatmul.f32.gmra.mxu0 %v7785
      %v7828 = vpop.f32.mrf.mxu0
      %v7829 = vadd.f32 0.0, %v7828
      %7830 = vmatmul.f32.gmra.mxu0 %v7786
      %v7831 = vpop.f32.mrf.mxu0
      %v7832 = vadd.f32 0.0, %v7831
      %7833 = vmatmul.f32.gmra.mxu0 %v7787
      %v7834 = vpop.f32.mrf.mxu0
      %v7835 = vadd.f32 0.0, %v7834
      %7836 = vmatmul.f32.gmra.mxu0 %v7796
      %v7837 = vpop.f32.mrf.mxu0
      %v7838 = vadd.f32 0.0, %v7837
      %7839 = vmatmul.f32.gmra.mxu0 %v7797
      %v7840 = vpop.f32.mrf.mxu0
      %v7841 = vadd.f32 0.0, %v7840
      %7842 = vmatmul.f32.gmra.mxu0 %v7798
      %v7843 = vpop.f32.mrf.mxu0
      %v7844 = vadd.f32 0.0, %v7843
      %7845 = vmatmul.f32.gmra.mxu0 %v7799
      %v7846 = vpop.f32.mrf.mxu0
      %v7847 = vadd.f32 0.0, %v7846
      %7848 = vdwg.mxu0
      %v7849 = vadd.f32 %v7712, %v7826
      %v7850 = vadd.f32 %v7713, %v7829
      %v7851 = vadd.f32 %v7714, %v7832
      %v7852 = vadd.f32 %v7715, %v7835
      %v7853 = vadd.f32 %v7716, %v7838
      %v7854 = vadd.f32 %v7717, %v7841
      %v7855 = vadd.f32 %v7718, %v7844
      %v7856 = vadd.f32 %v7719, %v7847
      %v7857 = vld [vmem:[%s1067 + $0x2] sm:$0xf]
      %v7858 = vld [vmem:[%s1067 + $0xa] sm:$0xf]
      %v7859 = vld [vmem:[%s1067 + $0x12] sm:$0xf]
      %v7860 = vld [vmem:[%s1067 + $0x1a] sm:$0xf]
      %v7861 = vld [vmem:[%s1067 + $0x22] sm:$0xf]
      %v7862 = vld [vmem:[%s1067 + $0x2a] sm:$0xf]
      %v7863 = vld [vmem:[%s1067 + $0x32] sm:$0xf]
      %v7864 = vld [vmem:[%s1067 + $0x3a] sm:$0xf]
      %v7865 = vld [vmem:[%s1067 + $0x42] sm:$0xf]
      %v7866 = vld [vmem:[%s1067 + $0x4a] sm:$0xf]
      %v7867 = vld [vmem:[%s1067 + $0x52] sm:$0xf]
      %v7868 = vld [vmem:[%s1067 + $0x5a] sm:$0xf]
      %v7869 = vld [vmem:[%s1067 + $0x62] sm:$0xf]
      %v7870 = vld [vmem:[%s1067 + $0x6a] sm:$0xf]
      %v7871 = vld [vmem:[%s1067 + $0x72] sm:$0xf]
      %v7872 = vld [vmem:[%s1067 + $0x7a] sm:$0xf]
      %s7873 = scalar_lea.vmem %s1, 6784
      %v7874 = vld [vmem:[%s7873] sm:$0xff]
      %v7875 = vld [vmem:[%s7873 + $0x8] sm:$0xff]
      %v7876 = vld [vmem:[%s7873 + $0x10] sm:$0xff]
      %v7877 = vld [vmem:[%s7873 + $0x18] sm:$0xff]
      %v7878 = vld [vmem:[%s7873 + $0x20] sm:$0xff]
      %v7879 = vld [vmem:[%s7873 + $0x28] sm:$0xff]
      %v7880 = vld [vmem:[%s7873 + $0x30] sm:$0xff]
      %v7881 = vld [vmem:[%s7873 + $0x38] sm:$0xff]
      %v7882 = vld [vmem:[%s7873 + $0x40] sm:$0xff]
      %v7883 = vld [vmem:[%s7873 + $0x48] sm:$0xff]
      %v7884 = vld [vmem:[%s7873 + $0x50] sm:$0xff]
      %v7885 = vld [vmem:[%s7873 + $0x58] sm:$0xff]
      %v7886 = vld [vmem:[%s7873 + $0x60] sm:$0xff]
      %v7887 = vld [vmem:[%s7873 + $0x68] sm:$0xff]
      %v7888 = vld [vmem:[%s7873 + $0x70] sm:$0xff]
      %v7889 = vld [vmem:[%s7873 + $0x78] sm:$0xff]
      %7906 = vst [vmem:[#allocation1] ss:$2 sm:$0xff] %v7857
      %s7907 = scalar_lea.vmem [#allocation1], 1
      %7908 = vst [vmem:[%s7907] ss:$2 sm:$0xff] %v7858
      %s7909 = scalar_lea.vmem [#allocation1], 16
      %7910 = vst [vmem:[%s7909] ss:$2 sm:$0xff] %v7859
      %s7911 = scalar_lea.vmem [#allocation1], 17
      %7912 = vst [vmem:[%s7911] ss:$2 sm:$0xff] %v7860
      %s7913 = scalar_lea.vmem [#allocation1], 32
      %7914 = vst [vmem:[%s7913] ss:$2 sm:$0xff] %v7861
      %s7915 = scalar_lea.vmem [#allocation1], 33
      %7916 = vst [vmem:[%s7915] ss:$2 sm:$0xff] %v7862
      %s7917 = scalar_lea.vmem [#allocation1], 48
      %7918 = vst [vmem:[%s7917] ss:$2 sm:$0xff] %v7863
      %s7919 = scalar_lea.vmem [#allocation1], 49
      %7920 = vst [vmem:[%s7919] ss:$2 sm:$0xff] %v7864
      %v7921 = vld.sshfl [vmem:[#allocation1] sm:$0xff pattern:$0x75316420]
      %v7922 = vld.sshfl [vmem:[#allocation1 + $0x10] sm:$0xff pattern:$0x75316420]
      %v7923 = vld.sshfl [vmem:[#allocation1 + $0x20] sm:$0xff pattern:$0x75316420]
      %v7924 = vld.sshfl [vmem:[#allocation1 + $0x30] sm:$0xff pattern:$0x75316420]
      %7925 = vst [vmem:[#allocation1] ss:$2 sm:$0xff] %v7865
      %7926 = vst [vmem:[%s7907] ss:$2 sm:$0xff] %v7866
      %7927 = vst [vmem:[%s7909] ss:$2 sm:$0xff] %v7867
      %7928 = vst [vmem:[%s7911] ss:$2 sm:$0xff] %v7868
      %7929 = vst [vmem:[%s7913] ss:$2 sm:$0xff] %v7869
      %7930 = vst [vmem:[%s7915] ss:$2 sm:$0xff] %v7870
      %7931 = vst [vmem:[%s7917] ss:$2 sm:$0xff] %v7871
      %7932 = vst [vmem:[%s7919] ss:$2 sm:$0xff] %v7872
      %v7933 = vld.sshfl [vmem:[#allocation1] sm:$0xff pattern:$0x75316420]
      %v7934 = vld.sshfl [vmem:[#allocation1 + $0x10] sm:$0xff pattern:$0x75316420]
      %v7935 = vld.sshfl [vmem:[#allocation1 + $0x20] sm:$0xff pattern:$0x75316420]
      %v7936 = vld.sshfl [vmem:[#allocation1 + $0x30] sm:$0xff pattern:$0x75316420]
      %7945 = vmatpush.msra.mxu0 %v7889
      %7946 = vmatpush.msra.mxu0 %v7888
      %7947 = vmatpush.msra.mxu0 %v7887
      %7948 = vmatpush.msra.mxu0 %v7886
      %7949 = vmatpush.msra.mxu0 %v7885
      %7950 = vmatpush.msra.mxu0 %v7884
      %7951 = vmatpush.msra.mxu0 %v7883
      %7952 = vmatpush.msra.mxu0 %v7882
      %7953 = vmatpush.msra.mxu0 %v7881
      %7954 = vmatpush.msra.mxu0 %v7880
      %7955 = vmatpush.msra.mxu0 %v7879
      %7956 = vmatpush.msra.mxu0 %v7878
      %7957 = vmatpush.msra.mxu0 %v7877
      %7958 = vmatpush.msra.mxu0 %v7876
      %7959 = vmatpush.msra.mxu0 %v7875
      %7960 = vmatpush.msra.mxu0 %v7874
      %7961 = vmatmul.f32.gmra.mxu0 %v7921
      %v7962 = vpop.f32.mrf.mxu0
      %v7963 = vadd.f32 0.0, %v7962
      %7964 = vmatmul.f32.gmra.mxu0 %v7922
      %v7965 = vpop.f32.mrf.mxu0
      %v7966 = vadd.f32 0.0, %v7965
      %7967 = vmatmul.f32.gmra.mxu0 %v7923
      %v7968 = vpop.f32.mrf.mxu0
      %v7969 = vadd.f32 0.0, %v7968
      %7970 = vmatmul.f32.gmra.mxu0 %v7924
      %v7971 = vpop.f32.mrf.mxu0
      %v7972 = vadd.f32 0.0, %v7971
      %7973 = vmatmul.f32.gmra.mxu0 %v7933
      %v7974 = vpop.f32.mrf.mxu0
      %v7975 = vadd.f32 0.0, %v7974
      %7976 = vmatmul.f32.gmra.mxu0 %v7934
      %v7977 = vpop.f32.mrf.mxu0
      %v7978 = vadd.f32 0.0, %v7977
      %7979 = vmatmul.f32.gmra.mxu0 %v7935
      %v7980 = vpop.f32.mrf.mxu0
      %v7981 = vadd.f32 0.0, %v7980
      %7982 = vmatmul.f32.gmra.mxu0 %v7936
      %v7983 = vpop.f32.mrf.mxu0
      %v7984 = vadd.f32 0.0, %v7983
      %7985 = vdwg.mxu0
      %v7986 = vadd.f32 %v7849, %v7963
      %v7987 = vadd.f32 %v7850, %v7966
      %v7988 = vadd.f32 %v7851, %v7969
      %v7989 = vadd.f32 %v7852, %v7972
      %v7990 = vadd.f32 %v7853, %v7975
      %v7991 = vadd.f32 %v7854, %v7978
      %v7992 = vadd.f32 %v7855, %v7981
      %v7993 = vadd.f32 %v7856, %v7984
      %s7994 = scalar_lea.vmem %s2, 5
      %v7995 = vld [vmem:[%s7994] sm:$0x1]
      %v7997 = vperm.slane %v7995, 0
      %v7999 = vmul.f32 %v7986, %v7997
      %v8000 = vmul.f32 %v7987, %v7997
      %v8001 = vmul.f32 %v7988, %v7997
      %v8002 = vmul.f32 %v7989, %v7997
      %v8003 = vmul.f32 %v7990, %v7997
      %v8004 = vmul.f32 %v7991, %v7997
      %v8005 = vmul.f32 %v7992, %v7997
      %v8006 = vmul.f32 %v7993, %v7997
      %s8007 = scalar_lea.vmem %s3, 5
      %v8008 = vld [vmem:[%s8007] sm:$0x1]
      %v8010 = vperm.slane %v8008, 0
      %v8012 = vadd.f32 %v7999, %v8010
      %v8013 = vadd.f32 %v8000, %v8010
      %v8014 = vadd.f32 %v8001, %v8010
      %v8015 = vadd.f32 %v8002, %v8010
      %v8016 = vadd.f32 %v8003, %v8010
      %v8017 = vadd.f32 %v8004, %v8010
      %v8018 = vadd.f32 %v8005, %v8010
      %v8019 = vadd.f32 %v8006, %v8010
      %v8020 = vadd.f32 %v8012, %v1523
      %v8021 = vadd.f32 %v8013, %v1524
      %v8022 = vadd.f32 %v8014, %v1525
      %v8023 = vadd.f32 %v8015, %v1526
      %v8024 = vadd.f32 %v8016, %v1527
      %v8025 = vadd.f32 %v8017, %v1528
      %v8026 = vadd.f32 %v8018, %v1529
      %v8027 = vadd.f32 %v8019, %v1530
      %v8036 = vrot.slane %v8020, 4
      %v8037 = vrot.slane %v8021, 4
      %v8038 = vrot.slane %v8022, 4
      %v8039 = vrot.slane %v8023, 4
      %v8040 = vrot.slane %v8024, 4
      %v8041 = vrot.slane %v8025, 4
      %v8042 = vrot.slane %v8026, 4
      %v8043 = vrot.slane %v8027, 4
      %8052 = vst [vmem:[%s655 + $0x1] sm:$0xf] %v8020
      %8053 = vst [vmem:[%s655 + $0x9] sm:$0xf] %v8036
      %8054 = vst [vmem:[%s655 + $0x11] sm:$0xf] %v8021
      %8055 = vst [vmem:[%s655 + $0x19] sm:$0xf] %v8037
      %8056 = vst [vmem:[%s655 + $0x21] sm:$0xf] %v8022
      %8057 = vst [vmem:[%s655 + $0x29] sm:$0xf] %v8038
      %8058 = vst [vmem:[%s655 + $0x31] sm:$0xf] %v8023
      %8059 = vst [vmem:[%s655 + $0x39] sm:$0xf] %v8039
      %8060 = vst [vmem:[%s655 + $0x41] sm:$0xf] %v8024
      %8061 = vst [vmem:[%s655 + $0x49] sm:$0xf] %v8040
      %8062 = vst [vmem:[%s655 + $0x51] sm:$0xf] %v8025
      %8063 = vst [vmem:[%s655 + $0x59] sm:$0xf] %v8041
      %8064 = vst [vmem:[%s655 + $0x61] sm:$0xf] %v8026
      %8065 = vst [vmem:[%s655 + $0x69] sm:$0xf] %v8042
      %8066 = vst [vmem:[%s655 + $0x71] sm:$0xf] %v8027
      %8067 = vst [vmem:[%s655 + $0x79] sm:$0xf] %v8043
      %v8068 = vld [vmem:[#allocation2] sm:$0xf]
      %v8069 = vld [vmem:[#allocation2 + $0x8] sm:$0xf]
      %v8070 = vld [vmem:[#allocation2 + $0x10] sm:$0xf]
      %v8071 = vld [vmem:[#allocation2 + $0x18] sm:$0xf]
      %v8072 = vld [vmem:[#allocation2 + $0x20] sm:$0xf]
      %v8073 = vld [vmem:[#allocation2 + $0x28] sm:$0xf]
      %v8074 = vld [vmem:[#allocation2 + $0x30] sm:$0xf]
      %v8075 = vld [vmem:[#allocation2 + $0x38] sm:$0xf]
      %v8076 = vld [vmem:[#allocation2 + $0x40] sm:$0xf]
      %v8077 = vld [vmem:[#allocation2 + $0x48] sm:$0xf]
      %v8078 = vld [vmem:[#allocation2 + $0x50] sm:$0xf]
      %v8079 = vld [vmem:[#allocation2 + $0x58] sm:$0xf]
      %v8080 = vld [vmem:[#allocation2 + $0x60] sm:$0xf]
      %v8081 = vld [vmem:[#allocation2 + $0x68] sm:$0xf]
      %v8082 = vld [vmem:[#allocation2 + $0x70] sm:$0xf]
      %v8083 = vld [vmem:[#allocation2 + $0x78] sm:$0xf]
      %s8084 = scalar_lea.vmem %s1, 6912
      %v8085 = vld [vmem:[%s8084] sm:$0xff]
      %v8086 = vld [vmem:[%s8084 + $0x8] sm:$0xff]
      %v8087 = vld [vmem:[%s8084 + $0x10] sm:$0xff]
      %v8088 = vld [vmem:[%s8084 + $0x18] sm:$0xff]
      %v8089 = vld [vmem:[%s8084 + $0x20] sm:$0xff]
      %v8090 = vld [vmem:[%s8084 + $0x28] sm:$0xff]
      %v8091 = vld [vmem:[%s8084 + $0x30] sm:$0xff]
      %v8092 = vld [vmem:[%s8084 + $0x38] sm:$0xff]
      %v8093 = vld [vmem:[%s8084 + $0x40] sm:$0xff]
      %v8094 = vld [vmem:[%s8084 + $0x48] sm:$0xff]
      %v8095 = vld [vmem:[%s8084 + $0x50] sm:$0xff]
      %v8096 = vld [vmem:[%s8084 + $0x58] sm:$0xff]
      %v8097 = vld [vmem:[%s8084 + $0x60] sm:$0xff]
      %v8098 = vld [vmem:[%s8084 + $0x68] sm:$0xff]
      %v8099 = vld [vmem:[%s8084 + $0x70] sm:$0xff]
      %v8100 = vld [vmem:[%s8084 + $0x78] sm:$0xff]
      %v8101 = vld [vmem:[#allocation2 + $0x1] sm:$0xf]
      %v8102 = vld [vmem:[#allocation2 + $0x9] sm:$0xf]
      %v8103 = vld [vmem:[#allocation2 + $0x11] sm:$0xf]
      %v8104 = vld [vmem:[#allocation2 + $0x19] sm:$0xf]
      %v8105 = vld [vmem:[#allocation2 + $0x21] sm:$0xf]
      %v8106 = vld [vmem:[#allocation2 + $0x29] sm:$0xf]
      %v8107 = vld [vmem:[#allocation2 + $0x31] sm:$0xf]
      %v8108 = vld [vmem:[#allocation2 + $0x39] sm:$0xf]
      %v8109 = vld [vmem:[#allocation2 + $0x41] sm:$0xf]
      %v8110 = vld [vmem:[#allocation2 + $0x49] sm:$0xf]
      %v8111 = vld [vmem:[#allocation2 + $0x51] sm:$0xf]
      %v8112 = vld [vmem:[#allocation2 + $0x59] sm:$0xf]
      %v8113 = vld [vmem:[#allocation2 + $0x61] sm:$0xf]
      %v8114 = vld [vmem:[#allocation2 + $0x69] sm:$0xf]
      %v8115 = vld [vmem:[#allocation2 + $0x71] sm:$0xf]
      %v8116 = vld [vmem:[#allocation2 + $0x79] sm:$0xf]
      %s8117 = scalar_lea.vmem %s1, 7040
      %v8118 = vld [vmem:[%s8117] sm:$0xff]
      %v8119 = vld [vmem:[%s8117 + $0x8] sm:$0xff]
      %v8120 = vld [vmem:[%s8117 + $0x10] sm:$0xff]
      %v8121 = vld [vmem:[%s8117 + $0x18] sm:$0xff]
      %v8122 = vld [vmem:[%s8117 + $0x20] sm:$0xff]
      %v8123 = vld [vmem:[%s8117 + $0x28] sm:$0xff]
      %v8124 = vld [vmem:[%s8117 + $0x30] sm:$0xff]
      %v8125 = vld [vmem:[%s8117 + $0x38] sm:$0xff]
      %v8126 = vld [vmem:[%s8117 + $0x40] sm:$0xff]
      %v8127 = vld [vmem:[%s8117 + $0x48] sm:$0xff]
      %v8128 = vld [vmem:[%s8117 + $0x50] sm:$0xff]
      %v8129 = vld [vmem:[%s8117 + $0x58] sm:$0xff]
      %v8130 = vld [vmem:[%s8117 + $0x60] sm:$0xff]
      %v8131 = vld [vmem:[%s8117 + $0x68] sm:$0xff]
      %v8132 = vld [vmem:[%s8117 + $0x70] sm:$0xff]
      %v8133 = vld [vmem:[%s8117 + $0x78] sm:$0xff]
      %8150 = vst [vmem:[#allocation1] ss:$2 sm:$0xff] %v8101
      %s8151 = scalar_lea.vmem [#allocation1], 1
      %8152 = vst [vmem:[%s8151] ss:$2 sm:$0xff] %v8102
      %s8153 = scalar_lea.vmem [#allocation1], 16
      %8154 = vst [vmem:[%s8153] ss:$2 sm:$0xff] %v8103
      %s8155 = scalar_lea.vmem [#allocation1], 17
      %8156 = vst [vmem:[%s8155] ss:$2 sm:$0xff] %v8104
      %s8157 = scalar_lea.vmem [#allocation1], 32
      %8158 = vst [vmem:[%s8157] ss:$2 sm:$0xff] %v8105
      %s8159 = scalar_lea.vmem [#allocation1], 33
      %8160 = vst [vmem:[%s8159] ss:$2 sm:$0xff] %v8106
      %s8161 = scalar_lea.vmem [#allocation1], 48
      %8162 = vst [vmem:[%s8161] ss:$2 sm:$0xff] %v8107
      %s8163 = scalar_lea.vmem [#allocation1], 49
      %8164 = vst [vmem:[%s8163] ss:$2 sm:$0xff] %v8108
      %v8165 = vld.sshfl [vmem:[#allocation1] sm:$0xff pattern:$0x75316420]
      %v8166 = vld.sshfl [vmem:[#allocation1 + $0x10] sm:$0xff pattern:$0x75316420]
      %v8167 = vld.sshfl [vmem:[#allocation1 + $0x20] sm:$0xff pattern:$0x75316420]
      %v8168 = vld.sshfl [vmem:[#allocation1 + $0x30] sm:$0xff pattern:$0x75316420]
      %8169 = vst [vmem:[#allocation1] ss:$2 sm:$0xff] %v8109
      %8170 = vst [vmem:[%s8151] ss:$2 sm:$0xff] %v8110
      %8171 = vst [vmem:[%s8153] ss:$2 sm:$0xff] %v8111
      %8172 = vst [vmem:[%s8155] ss:$2 sm:$0xff] %v8112
      %8173 = vst [vmem:[%s8157] ss:$2 sm:$0xff] %v8113
      %8174 = vst [vmem:[%s8159] ss:$2 sm:$0xff] %v8114
      %8175 = vst [vmem:[%s8161] ss:$2 sm:$0xff] %v8115
      %8176 = vst [vmem:[%s8163] ss:$2 sm:$0xff] %v8116
      %v8177 = vld.sshfl [vmem:[#allocation1] sm:$0xff pattern:$0x75316420]
      %v8178 = vld.sshfl [vmem:[#allocation1 + $0x10] sm:$0xff pattern:$0x75316420]
      %v8179 = vld.sshfl [vmem:[#allocation1 + $0x20] sm:$0xff pattern:$0x75316420]
      %v8180 = vld.sshfl [vmem:[#allocation1 + $0x30] sm:$0xff pattern:$0x75316420]
      %8189 = vmatpush.msra.mxu0 %v8133
      %8190 = vmatpush.msra.mxu0 %v8132
      %8191 = vmatpush.msra.mxu0 %v8131
      %8192 = vmatpush.msra.mxu0 %v8130
      %8193 = vmatpush.msra.mxu0 %v8129
      %8194 = vmatpush.msra.mxu0 %v8128
      %8195 = vmatpush.msra.mxu0 %v8127
      %8196 = vmatpush.msra.mxu0 %v8126
      %8197 = vmatpush.msra.mxu0 %v8125
      %8198 = vmatpush.msra.mxu0 %v8124
      %8199 = vmatpush.msra.mxu0 %v8123
      %8200 = vmatpush.msra.mxu0 %v8122
      %8201 = vmatpush.msra.mxu0 %v8121
      %8202 = vmatpush.msra.mxu0 %v8120
      %8203 = vmatpush.msra.mxu0 %v8119
      %8204 = vmatpush.msra.mxu0 %v8118
      %8205 = vmatmul.f32.gmra.mxu0 %v8165
      %v8206 = vpop.f32.mrf.mxu0
      %v8207 = vadd.f32 0.0, %v8206
      %8208 = vmatmul.f32.gmra.mxu0 %v8166
      %v8209 = vpop.f32.mrf.mxu0
      %v8210 = vadd.f32 0.0, %v8209
      %8211 = vmatmul.f32.gmra.mxu0 %v8167
      %v8212 = vpop.f32.mrf.mxu0
      %v8213 = vadd.f32 0.0, %v8212
      %8214 = vmatmul.f32.gmra.mxu0 %v8168
      %v8215 = vpop.f32.mrf.mxu0
      %v8216 = vadd.f32 0.0, %v8215
      %8217 = vmatmul.f32.gmra.mxu0 %v8177
      %v8218 = vpop.f32.mrf.mxu0
      %v8219 = vadd.f32 0.0, %v8218
      %8220 = vmatmul.f32.gmra.mxu0 %v8178
      %v8221 = vpop.f32.mrf.mxu0
      %v8222 = vadd.f32 0.0, %v8221
      %8223 = vmatmul.f32.gmra.mxu0 %v8179
      %v8224 = vpop.f32.mrf.mxu0
      %v8225 = vadd.f32 0.0, %v8224
      %8226 = vmatmul.f32.gmra.mxu0 %v8180
      %v8227 = vpop.f32.mrf.mxu0
      %v8228 = vadd.f32 0.0, %v8227
      %8229 = vdwg.mxu0
      %8246 = vst [vmem:[#allocation1] ss:$2 sm:$0xff] %v8068
      %s8247 = scalar_lea.vmem [#allocation1], 1
      %8248 = vst [vmem:[%s8247] ss:$2 sm:$0xff] %v8069
      %s8249 = scalar_lea.vmem [#allocation1], 16
      %8250 = vst [vmem:[%s8249] ss:$2 sm:$0xff] %v8070
      %s8251 = scalar_lea.vmem [#allocation1], 17
      %8252 = vst [vmem:[%s8251] ss:$2 sm:$0xff] %v8071
      %s8253 = scalar_lea.vmem [#allocation1], 32
      %8254 = vst [vmem:[%s8253] ss:$2 sm:$0xff] %v8072
      %s8255 = scalar_lea.vmem [#allocation1], 33
      %8256 = vst [vmem:[%s8255] ss:$2 sm:$0xff] %v8073
      %s8257 = scalar_lea.vmem [#allocation1], 48
      %8258 = vst [vmem:[%s8257] ss:$2 sm:$0xff] %v8074
      %s8259 = scalar_lea.vmem [#allocation1], 49
      %8260 = vst [vmem:[%s8259] ss:$2 sm:$0xff] %v8075
      %v8261 = vld.sshfl [vmem:[#allocation1] sm:$0xff pattern:$0x75316420]
      %v8262 = vld.sshfl [vmem:[#allocation1 + $0x10] sm:$0xff pattern:$0x75316420]
      %v8263 = vld.sshfl [vmem:[#allocation1 + $0x20] sm:$0xff pattern:$0x75316420]
      %v8264 = vld.sshfl [vmem:[#allocation1 + $0x30] sm:$0xff pattern:$0x75316420]
      %8265 = vst [vmem:[#allocation1] ss:$2 sm:$0xff] %v8076
      %8266 = vst [vmem:[%s8247] ss:$2 sm:$0xff] %v8077
      %8267 = vst [vmem:[%s8249] ss:$2 sm:$0xff] %v8078
      %8268 = vst [vmem:[%s8251] ss:$2 sm:$0xff] %v8079
      %8269 = vst [vmem:[%s8253] ss:$2 sm:$0xff] %v8080
      %8270 = vst [vmem:[%s8255] ss:$2 sm:$0xff] %v8081
      %8271 = vst [vmem:[%s8257] ss:$2 sm:$0xff] %v8082
      %8272 = vst [vmem:[%s8259] ss:$2 sm:$0xff] %v8083
      %v8273 = vld.sshfl [vmem:[#allocation1] sm:$0xff pattern:$0x75316420]
      %v8274 = vld.sshfl [vmem:[#allocation1 + $0x10] sm:$0xff pattern:$0x75316420]
      %v8275 = vld.sshfl [vmem:[#allocation1 + $0x20] sm:$0xff pattern:$0x75316420]
      %v8276 = vld.sshfl [vmem:[#allocation1 + $0x30] sm:$0xff pattern:$0x75316420]
      %8285 = vmatpush.msra.mxu0 %v8100
      %8286 = vmatpush.msra.mxu0 %v8099
      %8287 = vmatpush.msra.mxu0 %v8098
      %8288 = vmatpush.msra.mxu0 %v8097
      %8289 = vmatpush.msra.mxu0 %v8096
      %8290 = vmatpush.msra.mxu0 %v8095
      %8291 = vmatpush.msra.mxu0 %v8094
      %8292 = vmatpush.msra.mxu0 %v8093
      %8293 = vmatpush.msra.mxu0 %v8092
      %8294 = vmatpush.msra.mxu0 %v8091
      %8295 = vmatpush.msra.mxu0 %v8090
      %8296 = vmatpush.msra.mxu0 %v8089
      %8297 = vmatpush.msra.mxu0 %v8088
      %8298 = vmatpush.msra.mxu0 %v8087
      %8299 = vmatpush.msra.mxu0 %v8086
      %8300 = vmatpush.msra.mxu0 %v8085
      %8301 = vmatmul.f32.gmra.mxu0 %v8261
      %v8302 = vpop.f32.mrf.mxu0
      %v8303 = vadd.f32 %v8207, %v8302
      %8304 = vmatmul.f32.gmra.mxu0 %v8262
      %v8305 = vpop.f32.mrf.mxu0
      %v8306 = vadd.f32 %v8210, %v8305
      %8307 = vmatmul.f32.gmra.mxu0 %v8263
      %v8308 = vpop.f32.mrf.mxu0
      %v8309 = vadd.f32 %v8213, %v8308
      %8310 = vmatmul.f32.gmra.mxu0 %v8264
      %v8311 = vpop.f32.mrf.mxu0
      %v8312 = vadd.f32 %v8216, %v8311
      %8313 = vmatmul.f32.gmra.mxu0 %v8273
      %v8314 = vpop.f32.mrf.mxu0
      %v8315 = vadd.f32 %v8219, %v8314
      %8316 = vmatmul.f32.gmra.mxu0 %v8274
      %v8317 = vpop.f32.mrf.mxu0
      %v8318 = vadd.f32 %v8222, %v8317
      %8319 = vmatmul.f32.gmra.mxu0 %v8275
      %v8320 = vpop.f32.mrf.mxu0
      %v8321 = vadd.f32 %v8225, %v8320
      %8322 = vmatmul.f32.gmra.mxu0 %v8276
      %v8323 = vpop.f32.mrf.mxu0
      %v8324 = vadd.f32 %v8228, %v8323
      %8325 = vdwg.mxu0
      %v8326 = vld [vmem:[#allocation2 + $0x2] sm:$0xf]
      %v8327 = vld [vmem:[#allocation2 + $0xa] sm:$0xf]
      %v8328 = vld [vmem:[#allocation2 + $0x12] sm:$0xf]
      %v8329 = vld [vmem:[#allocation2 + $0x1a] sm:$0xf]
      %v8330 = vld [vmem:[#allocation2 + $0x22] sm:$0xf]
      %v8331 = vld [vmem:[#allocation2 + $0x2a] sm:$0xf]
      %v8332 = vld [vmem:[#allocation2 + $0x32] sm:$0xf]
      %v8333 = vld [vmem:[#allocation2 + $0x3a] sm:$0xf]
      %v8334 = vld [vmem:[#allocation2 + $0x42] sm:$0xf]
      %v8335 = vld [vmem:[#allocation2 + $0x4a] sm:$0xf]
      %v8336 = vld [vmem:[#allocation2 + $0x52] sm:$0xf]
      %v8337 = vld [vmem:[#allocation2 + $0x5a] sm:$0xf]
      %v8338 = vld [vmem:[#allocation2 + $0x62] sm:$0xf]
      %v8339 = vld [vmem:[#allocation2 + $0x6a] sm:$0xf]
      %v8340 = vld [vmem:[#allocation2 + $0x72] sm:$0xf]
      %v8341 = vld [vmem:[#allocation2 + $0x7a] sm:$0xf]
      %s8342 = scalar_lea.vmem %s1, 7168
      %v8343 = vld [vmem:[%s8342] sm:$0xff]
      %v8344 = vld [vmem:[%s8342 + $0x8] sm:$0xff]
      %v8345 = vld [vmem:[%s8342 + $0x10] sm:$0xff]
      %v8346 = vld [vmem:[%s8342 + $0x18] sm:$0xff]
      %v8347 = vld [vmem:[%s8342 + $0x20] sm:$0xff]
      %v8348 = vld [vmem:[%s8342 + $0x28] sm:$0xff]
      %v8349 = vld [vmem:[%s8342 + $0x30] sm:$0xff]
      %v8350 = vld [vmem:[%s8342 + $0x38] sm:$0xff]
      %v8351 = vld [vmem:[%s8342 + $0x40] sm:$0xff]
      %v8352 = vld [vmem:[%s8342 + $0x48] sm:$0xff]
      %v8353 = vld [vmem:[%s8342 + $0x50] sm:$0xff]
      %v8354 = vld [vmem:[%s8342 + $0x58] sm:$0xff]
      %v8355 = vld [vmem:[%s8342 + $0x60] sm:$0xff]
      %v8356 = vld [vmem:[%s8342 + $0x68] sm:$0xff]
      %v8357 = vld [vmem:[%s8342 + $0x70] sm:$0xff]
      %v8358 = vld [vmem:[%s8342 + $0x78] sm:$0xff]
      %8375 = vst [vmem:[#allocation1] ss:$2 sm:$0xff] %v8326
      %s8376 = scalar_lea.vmem [#allocation1], 1
      %8377 = vst [vmem:[%s8376] ss:$2 sm:$0xff] %v8327
      %s8378 = scalar_lea.vmem [#allocation1], 16
      %8379 = vst [vmem:[%s8378] ss:$2 sm:$0xff] %v8328
      %s8380 = scalar_lea.vmem [#allocation1], 17
      %8381 = vst [vmem:[%s8380] ss:$2 sm:$0xff] %v8329
      %s8382 = scalar_lea.vmem [#allocation1], 32
      %8383 = vst [vmem:[%s8382] ss:$2 sm:$0xff] %v8330
      %s8384 = scalar_lea.vmem [#allocation1], 33
      %8385 = vst [vmem:[%s8384] ss:$2 sm:$0xff] %v8331
      %s8386 = scalar_lea.vmem [#allocation1], 48
      %8387 = vst [vmem:[%s8386] ss:$2 sm:$0xff] %v8332
      %s8388 = scalar_lea.vmem [#allocation1], 49
      %8389 = vst [vmem:[%s8388] ss:$2 sm:$0xff] %v8333
      %v8390 = vld.sshfl [vmem:[#allocation1] sm:$0xff pattern:$0x75316420]
      %v8391 = vld.sshfl [vmem:[#allocation1 + $0x10] sm:$0xff pattern:$0x75316420]
      %v8392 = vld.sshfl [vmem:[#allocation1 + $0x20] sm:$0xff pattern:$0x75316420]
      %v8393 = vld.sshfl [vmem:[#allocation1 + $0x30] sm:$0xff pattern:$0x75316420]
      %8394 = vst [vmem:[#allocation1] ss:$2 sm:$0xff] %v8334
      %8395 = vst [vmem:[%s8376] ss:$2 sm:$0xff] %v8335
      %8396 = vst [vmem:[%s8378] ss:$2 sm:$0xff] %v8336
      %8397 = vst [vmem:[%s8380] ss:$2 sm:$0xff] %v8337
      %8398 = vst [vmem:[%s8382] ss:$2 sm:$0xff] %v8338
      %8399 = vst [vmem:[%s8384] ss:$2 sm:$0xff] %v8339
      %8400 = vst [vmem:[%s8386] ss:$2 sm:$0xff] %v8340
      %8401 = vst [vmem:[%s8388] ss:$2 sm:$0xff] %v8341
      %v8402 = vld.sshfl [vmem:[#allocation1] sm:$0xff pattern:$0x75316420]
      %v8403 = vld.sshfl [vmem:[#allocation1 + $0x10] sm:$0xff pattern:$0x75316420]
      %v8404 = vld.sshfl [vmem:[#allocation1 + $0x20] sm:$0xff pattern:$0x75316420]
      %v8405 = vld.sshfl [vmem:[#allocation1 + $0x30] sm:$0xff pattern:$0x75316420]
      %8414 = vmatpush.msra.mxu0 %v8358
      %8415 = vmatpush.msra.mxu0 %v8357
      %8416 = vmatpush.msra.mxu0 %v8356
      %8417 = vmatpush.msra.mxu0 %v8355
      %8418 = vmatpush.msra.mxu0 %v8354
      %8419 = vmatpush.msra.mxu0 %v8353
      %8420 = vmatpush.msra.mxu0 %v8352
      %8421 = vmatpush.msra.mxu0 %v8351
      %8422 = vmatpush.msra.mxu0 %v8350
      %8423 = vmatpush.msra.mxu0 %v8349
      %8424 = vmatpush.msra.mxu0 %v8348
      %8425 = vmatpush.msra.mxu0 %v8347
      %8426 = vmatpush.msra.mxu0 %v8346
      %8427 = vmatpush.msra.mxu0 %v8345
      %8428 = vmatpush.msra.mxu0 %v8344
      %8429 = vmatpush.msra.mxu0 %v8343
      %8430 = vmatmul.f32.gmra.mxu0 %v8390
      %v8431 = vpop.f32.mrf.mxu0
      %v8432 = vadd.f32 0.0, %v8431
      %8433 = vmatmul.f32.gmra.mxu0 %v8391
      %v8434 = vpop.f32.mrf.mxu0
      %v8435 = vadd.f32 0.0, %v8434
      %8436 = vmatmul.f32.gmra.mxu0 %v8392
      %v8437 = vpop.f32.mrf.mxu0
      %v8438 = vadd.f32 0.0, %v8437
      %8439 = vmatmul.f32.gmra.mxu0 %v8393
      %v8440 = vpop.f32.mrf.mxu0
      %v8441 = vadd.f32 0.0, %v8440
      %8442 = vmatmul.f32.gmra.mxu0 %v8402
      %v8443 = vpop.f32.mrf.mxu0
      %v8444 = vadd.f32 0.0, %v8443
      %8445 = vmatmul.f32.gmra.mxu0 %v8403
      %v8446 = vpop.f32.mrf.mxu0
      %v8447 = vadd.f32 0.0, %v8446
      %8448 = vmatmul.f32.gmra.mxu0 %v8404
      %v8449 = vpop.f32.mrf.mxu0
      %v8450 = vadd.f32 0.0, %v8449
      %8451 = vmatmul.f32.gmra.mxu0 %v8405
      %v8452 = vpop.f32.mrf.mxu0
      %v8453 = vadd.f32 0.0, %v8452
      %8454 = vdwg.mxu0
      %v8455 = vadd.f32 %v8303, %v8432
      %v8456 = vadd.f32 %v8306, %v8435
      %v8457 = vadd.f32 %v8309, %v8438
      %v8458 = vadd.f32 %v8312, %v8441
      %v8459 = vadd.f32 %v8315, %v8444
      %v8460 = vadd.f32 %v8318, %v8447
      %v8461 = vadd.f32 %v8321, %v8450
      %v8462 = vadd.f32 %v8324, %v8453
      %v8463 = vld [vmem:[%s655] sm:$0xf]
      %v8464 = vld [vmem:[%s655 + $0x8] sm:$0xf]
      %v8465 = vld [vmem:[%s655 + $0x10] sm:$0xf]
      %v8466 = vld [vmem:[%s655 + $0x18] sm:$0xf]
      %v8467 = vld [vmem:[%s655 + $0x20] sm:$0xf]
      %v8468 = vld [vmem:[%s655 + $0x28] sm:$0xf]
      %v8469 = vld [vmem:[%s655 + $0x30] sm:$0xf]
      %v8470 = vld [vmem:[%s655 + $0x38] sm:$0xf]
      %v8471 = vld [vmem:[%s655 + $0x40] sm:$0xf]
      %v8472 = vld [vmem:[%s655 + $0x48] sm:$0xf]
      %v8473 = vld [vmem:[%s655 + $0x50] sm:$0xf]
      %v8474 = vld [vmem:[%s655 + $0x58] sm:$0xf]
      %v8475 = vld [vmem:[%s655 + $0x60] sm:$0xf]
      %v8476 = vld [vmem:[%s655 + $0x68] sm:$0xf]
      %v8477 = vld [vmem:[%s655 + $0x70] sm:$0xf]
      %v8478 = vld [vmem:[%s655 + $0x78] sm:$0xf]
      %s8479 = scalar_lea.vmem %s1, 7296
      %v8480 = vld [vmem:[%s8479] sm:$0xff]
      %v8481 = vld [vmem:[%s8479 + $0x8] sm:$0xff]
      %v8482 = vld [vmem:[%s8479 + $0x10] sm:$0xff]
      %v8483 = vld [vmem:[%s8479 + $0x18] sm:$0xff]
      %v8484 = vld [vmem:[%s8479 + $0x20] sm:$0xff]
      %v8485 = vld [vmem:[%s8479 + $0x28] sm:$0xff]
      %v8486 = vld [vmem:[%s8479 + $0x30] sm:$0xff]
      %v8487 = vld [vmem:[%s8479 + $0x38] sm:$0xff]
      %v8488 = vld [vmem:[%s8479 + $0x40] sm:$0xff]
      %v8489 = vld [vmem:[%s8479 + $0x48] sm:$0xff]
      %v8490 = vld [vmem:[%s8479 + $0x50] sm:$0xff]
      %v8491 = vld [vmem:[%s8479 + $0x58] sm:$0xff]
      %v8492 = vld [vmem:[%s8479 + $0x60] sm:$0xff]
      %v8493 = vld [vmem:[%s8479 + $0x68] sm:$0xff]
      %v8494 = vld [vmem:[%s8479 + $0x70] sm:$0xff]
      %v8495 = vld [vmem:[%s8479 + $0x78] sm:$0xff]
      %8512 = vst [vmem:[#allocation1] ss:$2 sm:$0xff] %v8463
      %s8513 = scalar_lea.vmem [#allocation1], 1
      %8514 = vst [vmem:[%s8513] ss:$2 sm:$0xff] %v8464
      %s8515 = scalar_lea.vmem [#allocation1], 16
      %8516 = vst [vmem:[%s8515] ss:$2 sm:$0xff] %v8465
      %s8517 = scalar_lea.vmem [#allocation1], 17
      %8518 = vst [vmem:[%s8517] ss:$2 sm:$0xff] %v8466
      %s8519 = scalar_lea.vmem [#allocation1], 32
      %8520 = vst [vmem:[%s8519] ss:$2 sm:$0xff] %v8467
      %s8521 = scalar_lea.vmem [#allocation1], 33
      %8522 = vst [vmem:[%s8521] ss:$2 sm:$0xff] %v8468
      %s8523 = scalar_lea.vmem [#allocation1], 48
      %8524 = vst [vmem:[%s8523] ss:$2 sm:$0xff] %v8469
      %s8525 = scalar_lea.vmem [#allocation1], 49
      %8526 = vst [vmem:[%s8525] ss:$2 sm:$0xff] %v8470
      %v8527 = vld.sshfl [vmem:[#allocation1] sm:$0xff pattern:$0x75316420]
      %v8528 = vld.sshfl [vmem:[#allocation1 + $0x10] sm:$0xff pattern:$0x75316420]
      %v8529 = vld.sshfl [vmem:[#allocation1 + $0x20] sm:$0xff pattern:$0x75316420]
      %v8530 = vld.sshfl [vmem:[#allocation1 + $0x30] sm:$0xff pattern:$0x75316420]
      %8531 = vst [vmem:[#allocation1] ss:$2 sm:$0xff] %v8471
      %8532 = vst [vmem:[%s8513] ss:$2 sm:$0xff] %v8472
      %8533 = vst [vmem:[%s8515] ss:$2 sm:$0xff] %v8473
      %8534 = vst [vmem:[%s8517] ss:$2 sm:$0xff] %v8474
      %8535 = vst [vmem:[%s8519] ss:$2 sm:$0xff] %v8475
      %8536 = vst [vmem:[%s8521] ss:$2 sm:$0xff] %v8476
      %8537 = vst [vmem:[%s8523] ss:$2 sm:$0xff] %v8477
      %8538 = vst [vmem:[%s8525] ss:$2 sm:$0xff] %v8478
      %v8539 = vld.sshfl [vmem:[#allocation1] sm:$0xff pattern:$0x75316420]
      %v8540 = vld.sshfl [vmem:[#allocation1 + $0x10] sm:$0xff pattern:$0x75316420]
      %v8541 = vld.sshfl [vmem:[#allocation1 + $0x20] sm:$0xff pattern:$0x75316420]
      %v8542 = vld.sshfl [vmem:[#allocation1 + $0x30] sm:$0xff pattern:$0x75316420]
      %8551 = vmatpush.msra.mxu0 %v8495
      %8552 = vmatpush.msra.mxu0 %v8494
      %8553 = vmatpush.msra.mxu0 %v8493
      %8554 = vmatpush.msra.mxu0 %v8492
      %8555 = vmatpush.msra.mxu0 %v8491
      %8556 = vmatpush.msra.mxu0 %v8490
      %8557 = vmatpush.msra.mxu0 %v8489
      %8558 = vmatpush.msra.mxu0 %v8488
      %8559 = vmatpush.msra.mxu0 %v8487
      %8560 = vmatpush.msra.mxu0 %v8486
      %8561 = vmatpush.msra.mxu0 %v8485
      %8562 = vmatpush.msra.mxu0 %v8484
      %8563 = vmatpush.msra.mxu0 %v8483
      %8564 = vmatpush.msra.mxu0 %v8482
      %8565 = vmatpush.msra.mxu0 %v8481
      %8566 = vmatpush.msra.mxu0 %v8480
      %8567 = vmatmul.f32.gmra.mxu0 %v8527
      %v8568 = vpop.f32.mrf.mxu0
      %v8569 = vadd.f32 0.0, %v8568
      %8570 = vmatmul.f32.gmra.mxu0 %v8528
      %v8571 = vpop.f32.mrf.mxu0
      %v8572 = vadd.f32 0.0, %v8571
      %8573 = vmatmul.f32.gmra.mxu0 %v8529
      %v8574 = vpop.f32.mrf.mxu0
      %v8575 = vadd.f32 0.0, %v8574
      %8576 = vmatmul.f32.gmra.mxu0 %v8530
      %v8577 = vpop.f32.mrf.mxu0
      %v8578 = vadd.f32 0.0, %v8577
      %8579 = vmatmul.f32.gmra.mxu0 %v8539
      %v8580 = vpop.f32.mrf.mxu0
      %v8581 = vadd.f32 0.0, %v8580
      %8582 = vmatmul.f32.gmra.mxu0 %v8540
      %v8583 = vpop.f32.mrf.mxu0
      %v8584 = vadd.f32 0.0, %v8583
      %8585 = vmatmul.f32.gmra.mxu0 %v8541
      %v8586 = vpop.f32.mrf.mxu0
      %v8587 = vadd.f32 0.0, %v8586
      %8588 = vmatmul.f32.gmra.mxu0 %v8542
      %v8589 = vpop.f32.mrf.mxu0
      %v8590 = vadd.f32 0.0, %v8589
      %8591 = vdwg.mxu0
      %v8592 = vadd.f32 %v8455, %v8569
      %v8593 = vadd.f32 %v8456, %v8572
      %v8594 = vadd.f32 %v8457, %v8575
      %v8595 = vadd.f32 %v8458, %v8578
      %v8596 = vadd.f32 %v8459, %v8581
      %v8597 = vadd.f32 %v8460, %v8584
      %v8598 = vadd.f32 %v8461, %v8587
      %v8599 = vadd.f32 %v8462, %v8590
      %v8600 = vld [vmem:[%s655 + $0x1] sm:$0xf]
      %v8601 = vld [vmem:[%s655 + $0x9] sm:$0xf]
      %v8602 = vld [vmem:[%s655 + $0x11] sm:$0xf]
      %v8603 = vld [vmem:[%s655 + $0x19] sm:$0xf]
      %v8604 = vld [vmem:[%s655 + $0x21] sm:$0xf]
      %v8605 = vld [vmem:[%s655 + $0x29] sm:$0xf]
      %v8606 = vld [vmem:[%s655 + $0x31] sm:$0xf]
      %v8607 = vld [vmem:[%s655 + $0x39] sm:$0xf]
      %v8608 = vld [vmem:[%s655 + $0x41] sm:$0xf]
      %v8609 = vld [vmem:[%s655 + $0x49] sm:$0xf]
      %v8610 = vld [vmem:[%s655 + $0x51] sm:$0xf]
      %v8611 = vld [vmem:[%s655 + $0x59] sm:$0xf]
      %v8612 = vld [vmem:[%s655 + $0x61] sm:$0xf]
      %v8613 = vld [vmem:[%s655 + $0x69] sm:$0xf]
      %v8614 = vld [vmem:[%s655 + $0x71] sm:$0xf]
      %v8615 = vld [vmem:[%s655 + $0x79] sm:$0xf]
      %s8616 = scalar_lea.vmem %s1, 7424
      %v8617 = vld [vmem:[%s8616] sm:$0xff]
      %v8618 = vld [vmem:[%s8616 + $0x8] sm:$0xff]
      %v8619 = vld [vmem:[%s8616 + $0x10] sm:$0xff]
      %v8620 = vld [vmem:[%s8616 + $0x18] sm:$0xff]
      %v8621 = vld [vmem:[%s8616 + $0x20] sm:$0xff]
      %v8622 = vld [vmem:[%s8616 + $0x28] sm:$0xff]
      %v8623 = vld [vmem:[%s8616 + $0x30] sm:$0xff]
      %v8624 = vld [vmem:[%s8616 + $0x38] sm:$0xff]
      %v8625 = vld [vmem:[%s8616 + $0x40] sm:$0xff]
      %v8626 = vld [vmem:[%s8616 + $0x48] sm:$0xff]
      %v8627 = vld [vmem:[%s8616 + $0x50] sm:$0xff]
      %v8628 = vld [vmem:[%s8616 + $0x58] sm:$0xff]
      %v8629 = vld [vmem:[%s8616 + $0x60] sm:$0xff]
      %v8630 = vld [vmem:[%s8616 + $0x68] sm:$0xff]
      %v8631 = vld [vmem:[%s8616 + $0x70] sm:$0xff]
      %v8632 = vld [vmem:[%s8616 + $0x78] sm:$0xff]
      %8649 = vst [vmem:[#allocation1] ss:$2 sm:$0xff] %v8600
      %s8650 = scalar_lea.vmem [#allocation1], 1
      %8651 = vst [vmem:[%s8650] ss:$2 sm:$0xff] %v8601
      %s8652 = scalar_lea.vmem [#allocation1], 16
      %8653 = vst [vmem:[%s8652] ss:$2 sm:$0xff] %v8602
      %s8654 = scalar_lea.vmem [#allocation1], 17
      %8655 = vst [vmem:[%s8654] ss:$2 sm:$0xff] %v8603
      %s8656 = scalar_lea.vmem [#allocation1], 32
      %8657 = vst [vmem:[%s8656] ss:$2 sm:$0xff] %v8604
      %s8658 = scalar_lea.vmem [#allocation1], 33
      %8659 = vst [vmem:[%s8658] ss:$2 sm:$0xff] %v8605
      %s8660 = scalar_lea.vmem [#allocation1], 48
      %8661 = vst [vmem:[%s8660] ss:$2 sm:$0xff] %v8606
      %s8662 = scalar_lea.vmem [#allocation1], 49
      %8663 = vst [vmem:[%s8662] ss:$2 sm:$0xff] %v8607
      %v8664 = vld.sshfl [vmem:[#allocation1] sm:$0xff pattern:$0x75316420]
      %v8665 = vld.sshfl [vmem:[#allocation1 + $0x10] sm:$0xff pattern:$0x75316420]
      %v8666 = vld.sshfl [vmem:[#allocation1 + $0x20] sm:$0xff pattern:$0x75316420]
      %v8667 = vld.sshfl [vmem:[#allocation1 + $0x30] sm:$0xff pattern:$0x75316420]
      %8668 = vst [vmem:[#allocation1] ss:$2 sm:$0xff] %v8608
      %8669 = vst [vmem:[%s8650] ss:$2 sm:$0xff] %v8609
      %8670 = vst [vmem:[%s8652] ss:$2 sm:$0xff] %v8610
      %8671 = vst [vmem:[%s8654] ss:$2 sm:$0xff] %v8611
      %8672 = vst [vmem:[%s8656] ss:$2 sm:$0xff] %v8612
      %8673 = vst [vmem:[%s8658] ss:$2 sm:$0xff] %v8613
      %8674 = vst [vmem:[%s8660] ss:$2 sm:$0xff] %v8614
      %8675 = vst [vmem:[%s8662] ss:$2 sm:$0xff] %v8615
      %v8676 = vld.sshfl [vmem:[#allocation1] sm:$0xff pattern:$0x75316420]
      %v8677 = vld.sshfl [vmem:[#allocation1 + $0x10] sm:$0xff pattern:$0x75316420]
      %v8678 = vld.sshfl [vmem:[#allocation1 + $0x20] sm:$0xff pattern:$0x75316420]
      %v8679 = vld.sshfl [vmem:[#allocation1 + $0x30] sm:$0xff pattern:$0x75316420]
      %8688 = vmatpush.msra.mxu0 %v8632
      %8689 = vmatpush.msra.mxu0 %v8631
      %8690 = vmatpush.msra.mxu0 %v8630
      %8691 = vmatpush.msra.mxu0 %v8629
      %8692 = vmatpush.msra.mxu0 %v8628
      %8693 = vmatpush.msra.mxu0 %v8627
      %8694 = vmatpush.msra.mxu0 %v8626
      %8695 = vmatpush.msra.mxu0 %v8625
      %8696 = vmatpush.msra.mxu0 %v8624
      %8697 = vmatpush.msra.mxu0 %v8623
      %8698 = vmatpush.msra.mxu0 %v8622
      %8699 = vmatpush.msra.mxu0 %v8621
      %8700 = vmatpush.msra.mxu0 %v8620
      %8701 = vmatpush.msra.mxu0 %v8619
      %8702 = vmatpush.msra.mxu0 %v8618
      %8703 = vmatpush.msra.mxu0 %v8617
      %8704 = vmatmul.f32.gmra.mxu0 %v8664
      %v8705 = vpop.f32.mrf.mxu0
      %v8706 = vadd.f32 0.0, %v8705
      %8707 = vmatmul.f32.gmra.mxu0 %v8665
      %v8708 = vpop.f32.mrf.mxu0
      %v8709 = vadd.f32 0.0, %v8708
      %8710 = vmatmul.f32.gmra.mxu0 %v8666
      %v8711 = vpop.f32.mrf.mxu0
      %v8712 = vadd.f32 0.0, %v8711
      %8713 = vmatmul.f32.gmra.mxu0 %v8667
      %v8714 = vpop.f32.mrf.mxu0
      %v8715 = vadd.f32 0.0, %v8714
      %8716 = vmatmul.f32.gmra.mxu0 %v8676
      %v8717 = vpop.f32.mrf.mxu0
      %v8718 = vadd.f32 0.0, %v8717
      %8719 = vmatmul.f32.gmra.mxu0 %v8677
      %v8720 = vpop.f32.mrf.mxu0
      %v8721 = vadd.f32 0.0, %v8720
      %8722 = vmatmul.f32.gmra.mxu0 %v8678
      %v8723 = vpop.f32.mrf.mxu0
      %v8724 = vadd.f32 0.0, %v8723
      %8725 = vmatmul.f32.gmra.mxu0 %v8679
      %v8726 = vpop.f32.mrf.mxu0
      %v8727 = vadd.f32 0.0, %v8726
      %8728 = vdwg.mxu0
      %v8729 = vadd.f32 %v8592, %v8706
      %v8730 = vadd.f32 %v8593, %v8709
      %v8731 = vadd.f32 %v8594, %v8712
      %v8732 = vadd.f32 %v8595, %v8715
      %v8733 = vadd.f32 %v8596, %v8718
      %v8734 = vadd.f32 %v8597, %v8721
      %v8735 = vadd.f32 %v8598, %v8724
      %v8736 = vadd.f32 %v8599, %v8727
      %v8737 = vld [vmem:[%s655 + $0x2] sm:$0xf]
      %v8738 = vld [vmem:[%s655 + $0xa] sm:$0xf]
      %v8739 = vld [vmem:[%s655 + $0x12] sm:$0xf]
      %v8740 = vld [vmem:[%s655 + $0x1a] sm:$0xf]
      %v8741 = vld [vmem:[%s655 + $0x22] sm:$0xf]
      %v8742 = vld [vmem:[%s655 + $0x2a] sm:$0xf]
      %v8743 = vld [vmem:[%s655 + $0x32] sm:$0xf]
      %v8744 = vld [vmem:[%s655 + $0x3a] sm:$0xf]
      %v8745 = vld [vmem:[%s655 + $0x42] sm:$0xf]
      %v8746 = vld [vmem:[%s655 + $0x4a] sm:$0xf]
      %v8747 = vld [vmem:[%s655 + $0x52] sm:$0xf]
      %v8748 = vld [vmem:[%s655 + $0x5a] sm:$0xf]
      %v8749 = vld [vmem:[%s655 + $0x62] sm:$0xf]
      %v8750 = vld [vmem:[%s655 + $0x6a] sm:$0xf]
      %v8751 = vld [vmem:[%s655 + $0x72] sm:$0xf]
      %v8752 = vld [vmem:[%s655 + $0x7a] sm:$0xf]
      %s8753 = scalar_lea.vmem %s1, 7552
      %v8754 = vld [vmem:[%s8753] sm:$0xff]
      %v8755 = vld [vmem:[%s8753 + $0x8] sm:$0xff]
      %v8756 = vld [vmem:[%s8753 + $0x10] sm:$0xff]
      %v8757 = vld [vmem:[%s8753 + $0x18] sm:$0xff]
      %v8758 = vld [vmem:[%s8753 + $0x20] sm:$0xff]
      %v8759 = vld [vmem:[%s8753 + $0x28] sm:$0xff]
      %v8760 = vld [vmem:[%s8753 + $0x30] sm:$0xff]
      %v8761 = vld [vmem:[%s8753 + $0x38] sm:$0xff]
      %v8762 = vld [vmem:[%s8753 + $0x40] sm:$0xff]
      %v8763 = vld [vmem:[%s8753 + $0x48] sm:$0xff]
      %v8764 = vld [vmem:[%s8753 + $0x50] sm:$0xff]
      %v8765 = vld [vmem:[%s8753 + $0x58] sm:$0xff]
      %v8766 = vld [vmem:[%s8753 + $0x60] sm:$0xff]
      %v8767 = vld [vmem:[%s8753 + $0x68] sm:$0xff]
      %v8768 = vld [vmem:[%s8753 + $0x70] sm:$0xff]
      %v8769 = vld [vmem:[%s8753 + $0x78] sm:$0xff]
      %8786 = vst [vmem:[#allocation1] ss:$2 sm:$0xff] %v8737
      %s8787 = scalar_lea.vmem [#allocation1], 1
      %8788 = vst [vmem:[%s8787] ss:$2 sm:$0xff] %v8738
      %s8789 = scalar_lea.vmem [#allocation1], 16
      %8790 = vst [vmem:[%s8789] ss:$2 sm:$0xff] %v8739
      %s8791 = scalar_lea.vmem [#allocation1], 17
      %8792 = vst [vmem:[%s8791] ss:$2 sm:$0xff] %v8740
      %s8793 = scalar_lea.vmem [#allocation1], 32
      %8794 = vst [vmem:[%s8793] ss:$2 sm:$0xff] %v8741
      %s8795 = scalar_lea.vmem [#allocation1], 33
      %8796 = vst [vmem:[%s8795] ss:$2 sm:$0xff] %v8742
      %s8797 = scalar_lea.vmem [#allocation1], 48
      %8798 = vst [vmem:[%s8797] ss:$2 sm:$0xff] %v8743
      %s8799 = scalar_lea.vmem [#allocation1], 49
      %8800 = vst [vmem:[%s8799] ss:$2 sm:$0xff] %v8744
      %v8801 = vld.sshfl [vmem:[#allocation1] sm:$0xff pattern:$0x75316420]
      %v8802 = vld.sshfl [vmem:[#allocation1 + $0x10] sm:$0xff pattern:$0x75316420]
      %v8803 = vld.sshfl [vmem:[#allocation1 + $0x20] sm:$0xff pattern:$0x75316420]
      %v8804 = vld.sshfl [vmem:[#allocation1 + $0x30] sm:$0xff pattern:$0x75316420]
      %8805 = vst [vmem:[#allocation1] ss:$2 sm:$0xff] %v8745
      %8806 = vst [vmem:[%s8787] ss:$2 sm:$0xff] %v8746
      %8807 = vst [vmem:[%s8789] ss:$2 sm:$0xff] %v8747
      %8808 = vst [vmem:[%s8791] ss:$2 sm:$0xff] %v8748
      %8809 = vst [vmem:[%s8793] ss:$2 sm:$0xff] %v8749
      %8810 = vst [vmem:[%s8795] ss:$2 sm:$0xff] %v8750
      %8811 = vst [vmem:[%s8797] ss:$2 sm:$0xff] %v8751
      %8812 = vst [vmem:[%s8799] ss:$2 sm:$0xff] %v8752
      %v8813 = vld.sshfl [vmem:[#allocation1] sm:$0xff pattern:$0x75316420]
      %v8814 = vld.sshfl [vmem:[#allocation1 + $0x10] sm:$0xff pattern:$0x75316420]
      %v8815 = vld.sshfl [vmem:[#allocation1 + $0x20] sm:$0xff pattern:$0x75316420]
      %v8816 = vld.sshfl [vmem:[#allocation1 + $0x30] sm:$0xff pattern:$0x75316420]
      %8825 = vmatpush.msra.mxu0 %v8769
      %8826 = vmatpush.msra.mxu0 %v8768
      %8827 = vmatpush.msra.mxu0 %v8767
      %8828 = vmatpush.msra.mxu0 %v8766
      %8829 = vmatpush.msra.mxu0 %v8765
      %8830 = vmatpush.msra.mxu0 %v8764
      %8831 = vmatpush.msra.mxu0 %v8763
      %8832 = vmatpush.msra.mxu0 %v8762
      %8833 = vmatpush.msra.mxu0 %v8761
      %8834 = vmatpush.msra.mxu0 %v8760
      %8835 = vmatpush.msra.mxu0 %v8759
      %8836 = vmatpush.msra.mxu0 %v8758
      %8837 = vmatpush.msra.mxu0 %v8757
      %8838 = vmatpush.msra.mxu0 %v8756
      %8839 = vmatpush.msra.mxu0 %v8755
      %8840 = vmatpush.msra.mxu0 %v8754
      %8841 = vmatmul.f32.gmra.mxu0 %v8801
      %v8842 = vpop.f32.mrf.mxu0
      %v8843 = vadd.f32 0.0, %v8842
      %8844 = vmatmul.f32.gmra.mxu0 %v8802
      %v8845 = vpop.f32.mrf.mxu0
      %v8846 = vadd.f32 0.0, %v8845
      %8847 = vmatmul.f32.gmra.mxu0 %v8803
      %v8848 = vpop.f32.mrf.mxu0
      %v8849 = vadd.f32 0.0, %v8848
      %8850 = vmatmul.f32.gmra.mxu0 %v8804
      %v8851 = vpop.f32.mrf.mxu0
      %v8852 = vadd.f32 0.0, %v8851
      %8853 = vmatmul.f32.gmra.mxu0 %v8813
      %v8854 = vpop.f32.mrf.mxu0
      %v8855 = vadd.f32 0.0, %v8854
      %8856 = vmatmul.f32.gmra.mxu0 %v8814
      %v8857 = vpop.f32.mrf.mxu0
      %v8858 = vadd.f32 0.0, %v8857
      %8859 = vmatmul.f32.gmra.mxu0 %v8815
      %v8860 = vpop.f32.mrf.mxu0
      %v8861 = vadd.f32 0.0, %v8860
      %8862 = vmatmul.f32.gmra.mxu0 %v8816
      %v8863 = vpop.f32.mrf.mxu0
      %v8864 = vadd.f32 0.0, %v8863
      %8865 = vdwg.mxu0
      %v8866 = vadd.f32 %v8729, %v8843
      %v8867 = vadd.f32 %v8730, %v8846
      %v8868 = vadd.f32 %v8731, %v8849
      %v8869 = vadd.f32 %v8732, %v8852
      %v8870 = vadd.f32 %v8733, %v8855
      %v8871 = vadd.f32 %v8734, %v8858
      %v8872 = vadd.f32 %v8735, %v8861
      %v8873 = vadd.f32 %v8736, %v8864
      %v8874 = vld [vmem:[%s1067] sm:$0xf]
      %v8875 = vld [vmem:[%s1067 + $0x8] sm:$0xf]
      %v8876 = vld [vmem:[%s1067 + $0x10] sm:$0xf]
      %v8877 = vld [vmem:[%s1067 + $0x18] sm:$0xf]
      %v8878 = vld [vmem:[%s1067 + $0x20] sm:$0xf]
      %v8879 = vld [vmem:[%s1067 + $0x28] sm:$0xf]
      %v8880 = vld [vmem:[%s1067 + $0x30] sm:$0xf]
      %v8881 = vld [vmem:[%s1067 + $0x38] sm:$0xf]
      %v8882 = vld [vmem:[%s1067 + $0x40] sm:$0xf]
      %v8883 = vld [vmem:[%s1067 + $0x48] sm:$0xf]
      %v8884 = vld [vmem:[%s1067 + $0x50] sm:$0xf]
      %v8885 = vld [vmem:[%s1067 + $0x58] sm:$0xf]
      %v8886 = vld [vmem:[%s1067 + $0x60] sm:$0xf]
      %v8887 = vld [vmem:[%s1067 + $0x68] sm:$0xf]
      %v8888 = vld [vmem:[%s1067 + $0x70] sm:$0xf]
      %v8889 = vld [vmem:[%s1067 + $0x78] sm:$0xf]
      %s8890 = scalar_lea.vmem %s1, 7680
      %v8891 = vld [vmem:[%s8890] sm:$0xff]
      %v8892 = vld [vmem:[%s8890 + $0x8] sm:$0xff]
      %v8893 = vld [vmem:[%s8890 + $0x10] sm:$0xff]
      %v8894 = vld [vmem:[%s8890 + $0x18] sm:$0xff]
      %v8895 = vld [vmem:[%s8890 + $0x20] sm:$0xff]
      %v8896 = vld [vmem:[%s8890 + $0x28] sm:$0xff]
      %v8897 = vld [vmem:[%s8890 + $0x30] sm:$0xff]
      %v8898 = vld [vmem:[%s8890 + $0x38] sm:$0xff]
      %v8899 = vld [vmem:[%s8890 + $0x40] sm:$0xff]
      %v8900 = vld [vmem:[%s8890 + $0x48] sm:$0xff]
      %v8901 = vld [vmem:[%s8890 + $0x50] sm:$0xff]
      %v8902 = vld [vmem:[%s8890 + $0x58] sm:$0xff]
      %v8903 = vld [vmem:[%s8890 + $0x60] sm:$0xff]
      %v8904 = vld [vmem:[%s8890 + $0x68] sm:$0xff]
      %v8905 = vld [vmem:[%s8890 + $0x70] sm:$0xff]
      %v8906 = vld [vmem:[%s8890 + $0x78] sm:$0xff]
      %8923 = vst [vmem:[#allocation1] ss:$2 sm:$0xff] %v8874
      %s8924 = scalar_lea.vmem [#allocation1], 1
      %8925 = vst [vmem:[%s8924] ss:$2 sm:$0xff] %v8875
      %s8926 = scalar_lea.vmem [#allocation1], 16
      %8927 = vst [vmem:[%s8926] ss:$2 sm:$0xff] %v8876
      %s8928 = scalar_lea.vmem [#allocation1], 17
      %8929 = vst [vmem:[%s8928] ss:$2 sm:$0xff] %v8877
      %s8930 = scalar_lea.vmem [#allocation1], 32
      %8931 = vst [vmem:[%s8930] ss:$2 sm:$0xff] %v8878
      %s8932 = scalar_lea.vmem [#allocation1], 33
      %8933 = vst [vmem:[%s8932] ss:$2 sm:$0xff] %v8879
      %s8934 = scalar_lea.vmem [#allocation1], 48
      %8935 = vst [vmem:[%s8934] ss:$2 sm:$0xff] %v8880
      %s8936 = scalar_lea.vmem [#allocation1], 49
      %8937 = vst [vmem:[%s8936] ss:$2 sm:$0xff] %v8881
      %v8938 = vld.sshfl [vmem:[#allocation1] sm:$0xff pattern:$0x75316420]
      %v8939 = vld.sshfl [vmem:[#allocation1 + $0x10] sm:$0xff pattern:$0x75316420]
      %v8940 = vld.sshfl [vmem:[#allocation1 + $0x20] sm:$0xff pattern:$0x75316420]
      %v8941 = vld.sshfl [vmem:[#allocation1 + $0x30] sm:$0xff pattern:$0x75316420]
      %8942 = vst [vmem:[#allocation1] ss:$2 sm:$0xff] %v8882
      %8943 = vst [vmem:[%s8924] ss:$2 sm:$0xff] %v8883
      %8944 = vst [vmem:[%s8926] ss:$2 sm:$0xff] %v8884
      %8945 = vst [vmem:[%s8928] ss:$2 sm:$0xff] %v8885
      %8946 = vst [vmem:[%s8930] ss:$2 sm:$0xff] %v8886
      %8947 = vst [vmem:[%s8932] ss:$2 sm:$0xff] %v8887
      %8948 = vst [vmem:[%s8934] ss:$2 sm:$0xff] %v8888
      %8949 = vst [vmem:[%s8936] ss:$2 sm:$0xff] %v8889
      %v8950 = vld.sshfl [vmem:[#allocation1] sm:$0xff pattern:$0x75316420]
      %v8951 = vld.sshfl [vmem:[#allocation1 + $0x10] sm:$0xff pattern:$0x75316420]
      %v8952 = vld.sshfl [vmem:[#allocation1 + $0x20] sm:$0xff pattern:$0x75316420]
      %v8953 = vld.sshfl [vmem:[#allocation1 + $0x30] sm:$0xff pattern:$0x75316420]
      %8962 = vmatpush.msra.mxu0 %v8906
      %8963 = vmatpush.msra.mxu0 %v8905
      %8964 = vmatpush.msra.mxu0 %v8904
      %8965 = vmatpush.msra.mxu0 %v8903
      %8966 = vmatpush.msra.mxu0 %v8902
      %8967 = vmatpush.msra.mxu0 %v8901
      %8968 = vmatpush.msra.mxu0 %v8900
      %8969 = vmatpush.msra.mxu0 %v8899
      %8970 = vmatpush.msra.mxu0 %v8898
      %8971 = vmatpush.msra.mxu0 %v8897
      %8972 = vmatpush.msra.mxu0 %v8896
      %8973 = vmatpush.msra.mxu0 %v8895
      %8974 = vmatpush.msra.mxu0 %v8894
      %8975 = vmatpush.msra.mxu0 %v8893
      %8976 = vmatpush.msra.mxu0 %v8892
      %8977 = vmatpush.msra.mxu0 %v8891
      %8978 = vmatmul.f32.gmra.mxu0 %v8938
      %v8979 = vpop.f32.mrf.mxu0
      %v8980 = vadd.f32 0.0, %v8979
      %8981 = vmatmul.f32.gmra.mxu0 %v8939
      %v8982 = vpop.f32.mrf.mxu0
      %v8983 = vadd.f32 0.0, %v8982
      %8984 = vmatmul.f32.gmra.mxu0 %v8940
      %v8985 = vpop.f32.mrf.mxu0
      %v8986 = vadd.f32 0.0, %v8985
      %8987 = vmatmul.f32.gmra.mxu0 %v8941
      %v8988 = vpop.f32.mrf.mxu0
      %v8989 = vadd.f32 0.0, %v8988
      %8990 = vmatmul.f32.gmra.mxu0 %v8950
      %v8991 = vpop.f32.mrf.mxu0
      %v8992 = vadd.f32 0.0, %v8991
      %8993 = vmatmul.f32.gmra.mxu0 %v8951
      %v8994 = vpop.f32.mrf.mxu0
      %v8995 = vadd.f32 0.0, %v8994
      %8996 = vmatmul.f32.gmra.mxu0 %v8952
      %v8997 = vpop.f32.mrf.mxu0
      %v8998 = vadd.f32 0.0, %v8997
      %8999 = vmatmul.f32.gmra.mxu0 %v8953
      %v9000 = vpop.f32.mrf.mxu0
      %v9001 = vadd.f32 0.0, %v9000
      %9002 = vdwg.mxu0
      %v9003 = vadd.f32 %v8866, %v8980
      %v9004 = vadd.f32 %v8867, %v8983
      %v9005 = vadd.f32 %v8868, %v8986
      %v9006 = vadd.f32 %v8869, %v8989
      %v9007 = vadd.f32 %v8870, %v8992
      %v9008 = vadd.f32 %v8871, %v8995
      %v9009 = vadd.f32 %v8872, %v8998
      %v9010 = vadd.f32 %v8873, %v9001
      %v9011 = vld [vmem:[%s1067 + $0x1] sm:$0xf]
      %v9012 = vld [vmem:[%s1067 + $0x9] sm:$0xf]
      %v9013 = vld [vmem:[%s1067 + $0x11] sm:$0xf]
      %v9014 = vld [vmem:[%s1067 + $0x19] sm:$0xf]
      %v9015 = vld [vmem:[%s1067 + $0x21] sm:$0xf]
      %v9016 = vld [vmem:[%s1067 + $0x29] sm:$0xf]
      %v9017 = vld [vmem:[%s1067 + $0x31] sm:$0xf]
      %v9018 = vld [vmem:[%s1067 + $0x39] sm:$0xf]
      %v9019 = vld [vmem:[%s1067 + $0x41] sm:$0xf]
      %v9020 = vld [vmem:[%s1067 + $0x49] sm:$0xf]
      %v9021 = vld [vmem:[%s1067 + $0x51] sm:$0xf]
      %v9022 = vld [vmem:[%s1067 + $0x59] sm:$0xf]
      %v9023 = vld [vmem:[%s1067 + $0x61] sm:$0xf]
      %v9024 = vld [vmem:[%s1067 + $0x69] sm:$0xf]
      %v9025 = vld [vmem:[%s1067 + $0x71] sm:$0xf]
      %v9026 = vld [vmem:[%s1067 + $0x79] sm:$0xf]
      %s9027 = scalar_lea.vmem %s1, 7808
      %v9028 = vld [vmem:[%s9027] sm:$0xff]
      %v9029 = vld [vmem:[%s9027 + $0x8] sm:$0xff]
      %v9030 = vld [vmem:[%s9027 + $0x10] sm:$0xff]
      %v9031 = vld [vmem:[%s9027 + $0x18] sm:$0xff]
      %v9032 = vld [vmem:[%s9027 + $0x20] sm:$0xff]
      %v9033 = vld [vmem:[%s9027 + $0x28] sm:$0xff]
      %v9034 = vld [vmem:[%s9027 + $0x30] sm:$0xff]
      %v9035 = vld [vmem:[%s9027 + $0x38] sm:$0xff]
      %v9036 = vld [vmem:[%s9027 + $0x40] sm:$0xff]
      %v9037 = vld [vmem:[%s9027 + $0x48] sm:$0xff]
      %v9038 = vld [vmem:[%s9027 + $0x50] sm:$0xff]
      %v9039 = vld [vmem:[%s9027 + $0x58] sm:$0xff]
      %v9040 = vld [vmem:[%s9027 + $0x60] sm:$0xff]
      %v9041 = vld [vmem:[%s9027 + $0x68] sm:$0xff]
      %v9042 = vld [vmem:[%s9027 + $0x70] sm:$0xff]
      %v9043 = vld [vmem:[%s9027 + $0x78] sm:$0xff]
      %9060 = vst [vmem:[#allocation1] ss:$2 sm:$0xff] %v9011
      %s9061 = scalar_lea.vmem [#allocation1], 1
      %9062 = vst [vmem:[%s9061] ss:$2 sm:$0xff] %v9012
      %s9063 = scalar_lea.vmem [#allocation1], 16
      %9064 = vst [vmem:[%s9063] ss:$2 sm:$0xff] %v9013
      %s9065 = scalar_lea.vmem [#allocation1], 17
      %9066 = vst [vmem:[%s9065] ss:$2 sm:$0xff] %v9014
      %s9067 = scalar_lea.vmem [#allocation1], 32
      %9068 = vst [vmem:[%s9067] ss:$2 sm:$0xff] %v9015
      %s9069 = scalar_lea.vmem [#allocation1], 33
      %9070 = vst [vmem:[%s9069] ss:$2 sm:$0xff] %v9016
      %s9071 = scalar_lea.vmem [#allocation1], 48
      %9072 = vst [vmem:[%s9071] ss:$2 sm:$0xff] %v9017
      %s9073 = scalar_lea.vmem [#allocation1], 49
      %9074 = vst [vmem:[%s9073] ss:$2 sm:$0xff] %v9018
      %v9075 = vld.sshfl [vmem:[#allocation1] sm:$0xff pattern:$0x75316420]
      %v9076 = vld.sshfl [vmem:[#allocation1 + $0x10] sm:$0xff pattern:$0x75316420]
      %v9077 = vld.sshfl [vmem:[#allocation1 + $0x20] sm:$0xff pattern:$0x75316420]
      %v9078 = vld.sshfl [vmem:[#allocation1 + $0x30] sm:$0xff pattern:$0x75316420]
      %9079 = vst [vmem:[#allocation1] ss:$2 sm:$0xff] %v9019
      %9080 = vst [vmem:[%s9061] ss:$2 sm:$0xff] %v9020
      %9081 = vst [vmem:[%s9063] ss:$2 sm:$0xff] %v9021
      %9082 = vst [vmem:[%s9065] ss:$2 sm:$0xff] %v9022
      %9083 = vst [vmem:[%s9067] ss:$2 sm:$0xff] %v9023
      %9084 = vst [vmem:[%s9069] ss:$2 sm:$0xff] %v9024
      %9085 = vst [vmem:[%s9071] ss:$2 sm:$0xff] %v9025
      %9086 = vst [vmem:[%s9073] ss:$2 sm:$0xff] %v9026
      %v9087 = vld.sshfl [vmem:[#allocation1] sm:$0xff pattern:$0x75316420]
      %v9088 = vld.sshfl [vmem:[#allocation1 + $0x10] sm:$0xff pattern:$0x75316420]
      %v9089 = vld.sshfl [vmem:[#allocation1 + $0x20] sm:$0xff pattern:$0x75316420]
      %v9090 = vld.sshfl [vmem:[#allocation1 + $0x30] sm:$0xff pattern:$0x75316420]
      %9099 = vmatpush.msra.mxu0 %v9043
      %9100 = vmatpush.msra.mxu0 %v9042
      %9101 = vmatpush.msra.mxu0 %v9041
      %9102 = vmatpush.msra.mxu0 %v9040
      %9103 = vmatpush.msra.mxu0 %v9039
      %9104 = vmatpush.msra.mxu0 %v9038
      %9105 = vmatpush.msra.mxu0 %v9037
      %9106 = vmatpush.msra.mxu0 %v9036
      %9107 = vmatpush.msra.mxu0 %v9035
      %9108 = vmatpush.msra.mxu0 %v9034
      %9109 = vmatpush.msra.mxu0 %v9033
      %9110 = vmatpush.msra.mxu0 %v9032
      %9111 = vmatpush.msra.mxu0 %v9031
      %9112 = vmatpush.msra.mxu0 %v9030
      %9113 = vmatpush.msra.mxu0 %v9029
      %9114 = vmatpush.msra.mxu0 %v9028
      %9115 = vmatmul.f32.gmra.mxu0 %v9075
      %v9116 = vpop.f32.mrf.mxu0
      %v9117 = vadd.f32 0.0, %v9116
      %9118 = vmatmul.f32.gmra.mxu0 %v9076
      %v9119 = vpop.f32.mrf.mxu0
      %v9120 = vadd.f32 0.0, %v9119
      %9121 = vmatmul.f32.gmra.mxu0 %v9077
      %v9122 = vpop.f32.mrf.mxu0
      %v9123 = vadd.f32 0.0, %v9122
      %9124 = vmatmul.f32.gmra.mxu0 %v9078
      %v9125 = vpop.f32.mrf.mxu0
      %v9126 = vadd.f32 0.0, %v9125
      %9127 = vmatmul.f32.gmra.mxu0 %v9087
      %v9128 = vpop.f32.mrf.mxu0
      %v9129 = vadd.f32 0.0, %v9128
      %9130 = vmatmul.f32.gmra.mxu0 %v9088
      %v9131 = vpop.f32.mrf.mxu0
      %v9132 = vadd.f32 0.0, %v9131
      %9133 = vmatmul.f32.gmra.mxu0 %v9089
      %v9134 = vpop.f32.mrf.mxu0
      %v9135 = vadd.f32 0.0, %v9134
      %9136 = vmatmul.f32.gmra.mxu0 %v9090
      %v9137 = vpop.f32.mrf.mxu0
      %v9138 = vadd.f32 0.0, %v9137
      %9139 = vdwg.mxu0
      %v9140 = vadd.f32 %v9003, %v9117
      %v9141 = vadd.f32 %v9004, %v9120
      %v9142 = vadd.f32 %v9005, %v9123
      %v9143 = vadd.f32 %v9006, %v9126
      %v9144 = vadd.f32 %v9007, %v9129
      %v9145 = vadd.f32 %v9008, %v9132
      %v9146 = vadd.f32 %v9009, %v9135
      %v9147 = vadd.f32 %v9010, %v9138
      %v9148 = vld [vmem:[%s1067 + $0x2] sm:$0xf]
      %v9149 = vld [vmem:[%s1067 + $0xa] sm:$0xf]
      %v9150 = vld [vmem:[%s1067 + $0x12] sm:$0xf]
      %v9151 = vld [vmem:[%s1067 + $0x1a] sm:$0xf]
      %v9152 = vld [vmem:[%s1067 + $0x22] sm:$0xf]
      %v9153 = vld [vmem:[%s1067 + $0x2a] sm:$0xf]
      %v9154 = vld [vmem:[%s1067 + $0x32] sm:$0xf]
      %v9155 = vld [vmem:[%s1067 + $0x3a] sm:$0xf]
      %v9156 = vld [vmem:[%s1067 + $0x42] sm:$0xf]
      %v9157 = vld [vmem:[%s1067 + $0x4a] sm:$0xf]
      %v9158 = vld [vmem:[%s1067 + $0x52] sm:$0xf]
      %v9159 = vld [vmem:[%s1067 + $0x5a] sm:$0xf]
      %v9160 = vld [vmem:[%s1067 + $0x62] sm:$0xf]
      %v9161 = vld [vmem:[%s1067 + $0x6a] sm:$0xf]
      %v9162 = vld [vmem:[%s1067 + $0x72] sm:$0xf]
      %v9163 = vld [vmem:[%s1067 + $0x7a] sm:$0xf]
      %s9164 = scalar_lea.vmem %s1, 7936
      %v9165 = vld [vmem:[%s9164] sm:$0xff]
      %v9166 = vld [vmem:[%s9164 + $0x8] sm:$0xff]
      %v9167 = vld [vmem:[%s9164 + $0x10] sm:$0xff]
      %v9168 = vld [vmem:[%s9164 + $0x18] sm:$0xff]
      %v9169 = vld [vmem:[%s9164 + $0x20] sm:$0xff]
      %v9170 = vld [vmem:[%s9164 + $0x28] sm:$0xff]
      %v9171 = vld [vmem:[%s9164 + $0x30] sm:$0xff]
      %v9172 = vld [vmem:[%s9164 + $0x38] sm:$0xff]
      %v9173 = vld [vmem:[%s9164 + $0x40] sm:$0xff]
      %v9174 = vld [vmem:[%s9164 + $0x48] sm:$0xff]
      %v9175 = vld [vmem:[%s9164 + $0x50] sm:$0xff]
      %v9176 = vld [vmem:[%s9164 + $0x58] sm:$0xff]
      %v9177 = vld [vmem:[%s9164 + $0x60] sm:$0xff]
      %v9178 = vld [vmem:[%s9164 + $0x68] sm:$0xff]
      %v9179 = vld [vmem:[%s9164 + $0x70] sm:$0xff]
      %v9180 = vld [vmem:[%s9164 + $0x78] sm:$0xff]
      %9197 = vst [vmem:[#allocation1] ss:$2 sm:$0xff] %v9148
      %s9198 = scalar_lea.vmem [#allocation1], 1
      %9199 = vst [vmem:[%s9198] ss:$2 sm:$0xff] %v9149
      %s9200 = scalar_lea.vmem [#allocation1], 16
      %9201 = vst [vmem:[%s9200] ss:$2 sm:$0xff] %v9150
      %s9202 = scalar_lea.vmem [#allocation1], 17
      %9203 = vst [vmem:[%s9202] ss:$2 sm:$0xff] %v9151
      %s9204 = scalar_lea.vmem [#allocation1], 32
      %9205 = vst [vmem:[%s9204] ss:$2 sm:$0xff] %v9152
      %s9206 = scalar_lea.vmem [#allocation1], 33
      %9207 = vst [vmem:[%s9206] ss:$2 sm:$0xff] %v9153
      %s9208 = scalar_lea.vmem [#allocation1], 48
      %9209 = vst [vmem:[%s9208] ss:$2 sm:$0xff] %v9154
      %s9210 = scalar_lea.vmem [#allocation1], 49
      %9211 = vst [vmem:[%s9210] ss:$2 sm:$0xff] %v9155
      %v9212 = vld.sshfl [vmem:[#allocation1] sm:$0xff pattern:$0x75316420]
      %v9213 = vld.sshfl [vmem:[#allocation1 + $0x10] sm:$0xff pattern:$0x75316420]
      %v9214 = vld.sshfl [vmem:[#allocation1 + $0x20] sm:$0xff pattern:$0x75316420]
      %v9215 = vld.sshfl [vmem:[#allocation1 + $0x30] sm:$0xff pattern:$0x75316420]
      %9216 = vst [vmem:[#allocation1] ss:$2 sm:$0xff] %v9156
      %9217 = vst [vmem:[%s9198] ss:$2 sm:$0xff] %v9157
      %9218 = vst [vmem:[%s9200] ss:$2 sm:$0xff] %v9158
      %9219 = vst [vmem:[%s9202] ss:$2 sm:$0xff] %v9159
      %9220 = vst [vmem:[%s9204] ss:$2 sm:$0xff] %v9160
      %9221 = vst [vmem:[%s9206] ss:$2 sm:$0xff] %v9161
      %9222 = vst [vmem:[%s9208] ss:$2 sm:$0xff] %v9162
      %9223 = vst [vmem:[%s9210] ss:$2 sm:$0xff] %v9163
      %v9224 = vld.sshfl [vmem:[#allocation1] sm:$0xff pattern:$0x75316420]
      %v9225 = vld.sshfl [vmem:[#allocation1 + $0x10] sm:$0xff pattern:$0x75316420]
      %v9226 = vld.sshfl [vmem:[#allocation1 + $0x20] sm:$0xff pattern:$0x75316420]
      %v9227 = vld.sshfl [vmem:[#allocation1 + $0x30] sm:$0xff pattern:$0x75316420]
      %9236 = vmatpush.msra.mxu0 %v9180
      %9237 = vmatpush.msra.mxu0 %v9179
      %9238 = vmatpush.msra.mxu0 %v9178
      %9239 = vmatpush.msra.mxu0 %v9177
      %9240 = vmatpush.msra.mxu0 %v9176
      %9241 = vmatpush.msra.mxu0 %v9175
      %9242 = vmatpush.msra.mxu0 %v9174
      %9243 = vmatpush.msra.mxu0 %v9173
      %9244 = vmatpush.msra.mxu0 %v9172
      %9245 = vmatpush.msra.mxu0 %v9171
      %9246 = vmatpush.msra.mxu0 %v9170
      %9247 = vmatpush.msra.mxu0 %v9169
      %9248 = vmatpush.msra.mxu0 %v9168
      %9249 = vmatpush.msra.mxu0 %v9167
      %9250 = vmatpush.msra.mxu0 %v9166
      %9251 = vmatpush.msra.mxu0 %v9165
      %9252 = vmatmul.f32.gmra.mxu0 %v9212
      %v9253 = vpop.f32.mrf.mxu0
      %v9254 = vadd.f32 0.0, %v9253
      %9255 = vmatmul.f32.gmra.mxu0 %v9213
      %v9256 = vpop.f32.mrf.mxu0
      %v9257 = vadd.f32 0.0, %v9256
      %9258 = vmatmul.f32.gmra.mxu0 %v9214
      %v9259 = vpop.f32.mrf.mxu0
      %v9260 = vadd.f32 0.0, %v9259
      %9261 = vmatmul.f32.gmra.mxu0 %v9215
      %v9262 = vpop.f32.mrf.mxu0
      %v9263 = vadd.f32 0.0, %v9262
      %9264 = vmatmul.f32.gmra.mxu0 %v9224
      %v9265 = vpop.f32.mrf.mxu0
      %v9266 = vadd.f32 0.0, %v9265
      %9267 = vmatmul.f32.gmra.mxu0 %v9225
      %v9268 = vpop.f32.mrf.mxu0
      %v9269 = vadd.f32 0.0, %v9268
      %9270 = vmatmul.f32.gmra.mxu0 %v9226
      %v9271 = vpop.f32.mrf.mxu0
      %v9272 = vadd.f32 0.0, %v9271
      %9273 = vmatmul.f32.gmra.mxu0 %v9227
      %v9274 = vpop.f32.mrf.mxu0
      %v9275 = vadd.f32 0.0, %v9274
      %9276 = vdwg.mxu0
      %v9277 = vadd.f32 %v9140, %v9254
      %v9278 = vadd.f32 %v9141, %v9257
      %v9279 = vadd.f32 %v9142, %v9260
      %v9280 = vadd.f32 %v9143, %v9263
      %v9281 = vadd.f32 %v9144, %v9266
      %v9282 = vadd.f32 %v9145, %v9269
      %v9283 = vadd.f32 %v9146, %v9272
      %v9284 = vadd.f32 %v9147, %v9275
      %s9285 = scalar_lea.vmem %s2, 6
      %v9286 = vld [vmem:[%s9285] sm:$0x1]
      %v9288 = vperm.slane %v9286, 0
      %v9290 = vmul.f32 %v9277, %v9288
      %v9291 = vmul.f32 %v9278, %v9288
      %v9292 = vmul.f32 %v9279, %v9288
      %v9293 = vmul.f32 %v9280, %v9288
      %v9294 = vmul.f32 %v9281, %v9288
      %v9295 = vmul.f32 %v9282, %v9288
      %v9296 = vmul.f32 %v9283, %v9288
      %v9297 = vmul.f32 %v9284, %v9288
      %s9298 = scalar_lea.vmem %s3, 6
      %v9299 = vld [vmem:[%s9298] sm:$0x1]
      %v9301 = vperm.slane %v9299, 0
      %v9303 = vadd.f32 %v9290, %v9301
      %v9304 = vadd.f32 %v9291, %v9301
      %v9305 = vadd.f32 %v9292, %v9301
      %v9306 = vadd.f32 %v9293, %v9301
      %v9307 = vadd.f32 %v9294, %v9301
      %v9308 = vadd.f32 %v9295, %v9301
      %v9309 = vadd.f32 %v9296, %v9301
      %v9310 = vadd.f32 %v9297, %v9301
      %9311 = vst [vmem:[%s224] sm:$0xff] %v9303
      %9312 = vst [vmem:[%s224 + $0x8] sm:$0xff] %v9304
      %9313 = vst [vmem:[%s224 + $0x10] sm:$0xff] %v9305
      %9314 = vst [vmem:[%s224 + $0x18] sm:$0xff] %v9306
      %9315 = vst [vmem:[%s224 + $0x20] sm:$0xff] %v9307
      %9316 = vst [vmem:[%s224 + $0x28] sm:$0xff] %v9308
      %9317 = vst [vmem:[%s224 + $0x30] sm:$0xff] %v9309
      %9318 = vst [vmem:[%s224 + $0x38] sm:$0xff] %v9310
      %p9319 = scmp.lt.s32.totalorder %s16, 1
      %s9320 = scalar_select %p9319, %s16, 1
      %s9321 = smul.addr %s9320, 8
      %s9322 = smul.addr %s9321, 8
      %s9323 = scalar_lea.vmem %s5, %s9322
      // Predicated region
      $region41: #{srresnet_forward_pallas.1} parent=39 // pred_check
        %p9324 = pneg %p144
      $region42: #{srresnet_forward_pallas.1} parent=39 // pred_check_branch
        %9326 = sbr.rel (%p9324) target = $region44
      $region43: #{srresnet_forward_pallas.1} parent=39 // pred_region
        _
      $region44: #{srresnet_forward_pallas.1} parent=39 // pred_fallthru
        _
    $region40: #{srresnet_forward_pallas.1} parent=5 // pred_fallthru
      _
    %p9327 = scmp.le.s32.totalorder 2, %s11
    // Predicated region
    $region45: #{srresnet_forward_pallas.1} parent=5 // pred_check
      %p9328 = pneg %p9327
    $region46: #{srresnet_forward_pallas.1} parent=5 // pred_check_branch
      %9330 = sbr.rel (%p9328) target = $region48
    $region47: #{srresnet_forward_pallas.1} parent=5 // pred_region
      %s9331 = ssub.s32 %s11, 2
      // Predicated region
      $region49: #{srresnet_forward_pallas.1} parent=47 // pred_check
        %p9332 = pneg %p150
      $region50: #{srresnet_forward_pallas.1} parent=47 // pred_check_branch
        %9334 = sbr.rel (%p9332) target = $region52
      $region51: #{srresnet_forward_pallas.1} parent=47 // pred_region
        %p9335 = scmp.lt.s32.totalorder %s17, 1
        %s9336 = scalar_select %p9335, %s17, 1
        %s9337 = smul.addr %s9336, 8
        %s9338 = smul.addr %s9337, 8
        %s9339 = scalar_lea.vmem %s5, %s9338
      $region52: #{srresnet_forward_pallas.1} parent=47 // pred_fallthru
        _
    $region48: #{srresnet_forward_pallas.1} parent=5 // pred_fallthru
      _
  $region6: #{srresnet_forward_pallas.1} parent=0 // loop_footer
    %s15 = sadd.s32 1, %s11
  $region7: #{srresnet_forward_pallas.1} parent=0 // loop_footer_branch
    %10 = sbr.rel target = $region3
  $region8: #{srresnet_forward_pallas.1} parent=0 // loop_exit
    _

</llo_original>
